<compile_context>
chip_gen: v6e
topology: v6e:2x2x1
jax: 0.10.0
libtpu: 0.0.40
codegen_flags: <defaults>
</compile_context>

<pallas_src>
import functools
import math

import jax
import jax.numpy as jnp
from jax import lax
from jax.experimental import pallas as pl
from jax.experimental.pallas import tpu as pltpu


# ---------------------------------------------------------------------------
# Feature_Trans_Module_two_layer body (used twice inside the fused kernel)
#   h = x@W1+b1 ; BatchNorm2d (training-mode batch stats over rows) ; ReLU ;
#   y = h@W2+b2
# Matmuls in bf16 on the MXU, accumulation + elementwise math in f32.
# `vecs` packs [b1; gamma; beta; b2] as a single (4, d_out) f32 array.
# ---------------------------------------------------------------------------
def _feature_trans_block(x_bf16, w1, vecs, w2, eps):
    b1, gamma, beta, b2 = vecs[0:1, :], vecs[1:2, :], vecs[2:3, :], vecs[3:4, :]
    h = jnp.dot(x_bf16, w1, preferred_element_type=jnp.float32) + b1
    mean = jnp.mean(h, axis=0, keepdims=True)
    var = jnp.mean((h - mean) ** 2, axis=0, keepdims=True)
    h = (h - mean) * lax.rsqrt(var + eps)
    h = h * gamma + beta
    h = jnp.maximum(h, 0.0)                                   # ReLU
    y = jnp.dot(h.astype(jnp.bfloat16), w2,
                preferred_element_type=jnp.float32) + b2
    return y


# ---------------------------------------------------------------------------
# Fused head kernel:
#   1) image_features = L2norm(VPT_trans(feats_raw))               -> img_ref
#   2) x = mid_trans(tokens_flat)                                  -> fine_ref
#   3) [CLS, top-k patches, token mean] per batch element, realized as ONE
#      one-hot selection matmul over fine_ref, emitted slot-major  -> top_ref
# ---------------------------------------------------------------------------
def _fused_head_kernel(feats_ref, tok_ref, attn_ref,
                       vw1_ref, vvec_ref, vw2_ref,
                       mw1_ref, mvec_ref, mw2_ref,
                       img_ref, fine_ref, top_ref,
                       sel_ref,
                       *, B, L, k, eps):
    # ---- VPT_image_trans on pooled features + row-wise L2 normalize --------
    y = _feature_trans_block(feats_ref[...], vw1_ref[...], vvec_ref[...],
                             vw2_ref[...], eps)
    img_ref[...] = y * lax.rsqrt(jnp.sum(y * y, axis=-1, keepdims=True))

    # ---- mid_image_trans on flattened tokens (B*L rows) ---------------------
    fine_ref[...] = _feature_trans_block(tok_ref[...], mw1_ref[...],
                                         mvec_ref[...], mw2_ref[...], eps)

    # ---- top-k over CLS->patch attention ------------------------------------
    attn = attn_ref[...]                                   # (B, Lp), -inf padded
    Lp = attn.shape[1]
    patch_iota = lax.broadcasted_iota(jnp.int32, (B, Lp), 1)

    # Selection matrix rows are built slot-major (row = slot*B + b) into VMEM
    # scratch; every slot's (B, B*L) block starts at an 8-aligned offset.
    col = lax.broadcasted_iota(jnp.int32, (B, B * L), 1)   # flattened token col
    base = lax.broadcasted_iota(jnp.int32, (B, B * L), 0) * L

    # slot 0: the prepended zero index -> CLS token of each batch element
    sel_ref[0:B, :] = (col == base).astype(jnp.float32)

    # slots 1..k: iterative arg-top-k on the tiny (B, Lp) attention row
    # (descending, lowest index on ties).
    work = attn
    for j in range(k):
        m = jnp.max(work, axis=-1, keepdims=True)
        cand = jnp.where(work == m, patch_iota, Lp)
        idx = jnp.min(cand, axis=-1, keepdims=True)        # (B, 1) patch index
        sel_ref[(j + 1) * B:(j + 2) * B, :] = (
            col == base + idx + 1).astype(jnp.float32)     # indices += 1
        work = jnp.where(patch_iota == idx, -jnp.inf, work)

    # slot k+1: mean over all L tokens of the batch element
    sel_ref[(k + 1) * B:(k + 2) * B, :] = jnp.where(
        (col >= base) & (col < base + L),
        jnp.float32(1.0 / L), jnp.float32(0.0))

    # Gather + mean as ONE matmul, reading the already-written fine output so
    # the transformed tokens have a single backing store.  Output stays
    # slot-major; the wrapper transposes to batch-major.
    top_ref[...] = jnp.dot(sel_ref[...], fine_ref[...],
                           preferred_element_type=jnp.float32)


def fused_clip_head(feats_raw, fine_features, attn, vpt, mid, *, k=5, eps=1e-5):
    B, L, d_in = fine_features.shape
    d_out = vpt["w2"].shape[1]
    R = B * (k + 2)

    # Activations cast to bf16 in the wrapper: they only feed bf16 MXU matmuls.
    tokens_flat = fine_features.reshape(B * L, d_in).astype(jnp.bfloat16)
    feats_bf16 = feats_raw.astype(jnp.bfloat16)
    # pad attn to full 128-lane width with -inf so lane reductions are unmasked
    Lp = ((L - 1 + 127) // 128) * 128
    attn_pad = jnp.full((B, Lp), -jnp.inf, jnp.float32).at[:, :L - 1].set(attn)

    kernel = functools.partial(_fused_head_kernel, B=B, L=L, k=k, eps=eps)

    def full_spec(shape):
        zeros = (0,) * len(shape)
        return pl.BlockSpec(shape, lambda i, zeros=zeros: zeros)

    ins = (feats_bf16, tokens_flat, attn_pad,
           vpt["w1"], vpt["vecs"], vpt["w2"],
           mid["w1"], mid["vecs"], mid["w2"])
    out_shape = (jax.ShapeDtypeStruct((B, d_out), jnp.float32),
                 jax.ShapeDtypeStruct((B * L, d_out), jnp.float32),
                 jax.ShapeDtypeStruct((R, d_out), jnp.float32))

    flops = int(2 * (B + B * L) * (d_in * d_out + d_out * d_out)
                + 2 * R * (B * L) * d_out)
    in_bytes = int(sum(a.size * a.dtype.itemsize for a in ins))
    out_bytes = int(4 * sum(math.prod(o.shape) for o in out_shape))

    img, fine_flat, top_sm = pl.pallas_call(
        kernel,
        grid=(1,),
        in_specs=[full_spec(a.shape) for a in ins],
        out_specs=(full_spec((B, d_out)),
                   full_spec((B * L, d_out)),
                   full_spec((R, d_out))),
        out_shape=out_shape,
        scratch_shapes=[pltpu.VMEM((R, B * L), jnp.float32)],
        compiler_params=pltpu.CompilerParams(
            dimension_semantics=("arbitrary",),
            vmem_limit_bytes=32 * 1024 * 1024),
        cost_estimate=pl.CostEstimate(
            flops=flops,
            transcendentals=int(2 * d_out + B),
            bytes_accessed=in_bytes + out_bytes),
    )(*ins)

    # slot-major (k+2, B, d) -> batch-major (B*(k+2), d): trivial XLA transpose
    top = top_sm.reshape(k + 2, B, d_out).transpose(1, 0, 2).reshape(R, d_out)
    return img, fine_flat, top


# ---------------------------------------------------------------------------
# Glue: parameters, encoder surrogate, full CustomCLIP.forward
# ---------------------------------------------------------------------------
def init_feature_trans_params(key, d_in, d_out):
    k1, k2, k3, k4, k5, k6 = jax.random.split(key, 6)
    s1 = 1.0 / jnp.sqrt(jnp.float32(d_in))
    s2 = 1.0 / jnp.sqrt(jnp.float32(d_out))
    b1 = jax.random.uniform(k2, (d_out,), jnp.float32, -s1, s1)
    gamma = 1.0 + 0.1 * jax.random.normal(k3, (d_out,), jnp.float32)
    beta = 0.1 * jax.random.normal(k4, (d_out,), jnp.float32)
    b2 = jax.random.uniform(k6, (d_out,), jnp.float32, -s2, s2)
    return {
        # conv weights stored in bf16: the reference runs the trans modules in
        # fp16 (convert_weights); bf16 halves the dominant weight DMA stream.
        # TODO(synk): int8 + per-channel scale on v5e/v6e, fp8 on v7x.
        "w1": jax.random.uniform(k1, (d_in, d_out), jnp.float32, -s1, s1
                                 ).astype(jnp.bfloat16),
        "w2": jax.random.uniform(k5, (d_out, d_out), jnp.float32, -s2, s2
                                 ).astype(jnp.bfloat16),
        # packed small params: rows = [b1, gamma, beta, b2] -> one DMA stream
        "vecs": jnp.stack([b1, gamma, beta, b2], axis=0),
    }


def stub_image_encoder(image, patch_proj):
    # TODO(synk): the real image encoder is clip_model.visual (a full CLIP ViT
    # with all_layer_outputs=True); here a deterministic patchify+linear
    # surrogate produces the same output structure: pooled features (B, 512)
    # and per-layer (token features (B, L, 512), CLS->patch attention (B, L-1)).
    B, C, H, W = image.shape
    P = 4
    patches = image.reshape(B, C, H // P, P, W // P, P)
    patches = patches.transpose(0, 2, 4, 1, 3, 5).reshape(
        B, (H // P) * (W // P), C * P * P)
    tokens = patches @ patch_proj                                # (B, n_patch, 512)
    cls = jnp.mean(tokens, axis=1, keepdims=True)                # (B, 1, 512)
    fine_features = jnp.concatenate([cls, tokens], axis=1)       # (B, L, 512)
    attn_logits = jnp.einsum("bd,bld->bl", cls[:, 0, :], tokens) / jnp.sqrt(512.0)
    attn = jax.nn.softmax(attn_logits, axis=-1)                  # (B, n_patch)
    image_features_raw = cls[:, 0, :]                            # (B, 512)
    return image_features_raw, [(fine_features, attn)]


def custom_clip_forward(image, params):
    logit_scale = jnp.exp(params["logit_scale"])
    feats_raw, image_fine = stub_image_encoder(image, params["patch_proj"])

    # layers = [-1] -> only the last layer's (token features, attention)
    fine_features, attn = image_fine[-1]
    B, L, _ = fine_features.shape

    image_features, fine_flat, top_image_fine_list = fused_clip_head(
        feats_raw, fine_features, attn, params["vpt"], params["mid"], k=5)

    d = image_features.shape[-1]
    image_fine_list = fine_flat.reshape(B, L, d)   # torch.cat over one layer == identity
    return image_features, logit_scale, image_fine_list, top_image_fine_list


if __name__ == "__main__":
    key = jax.random.PRNGKey(0)
    k_img, k_proj, k_vpt, k_mid = jax.random.split(key, 4)

    B, C, H, W = 8, 3, 16, 16               # small image; NCHW like PyTorch
    d_in, d_out = 512, 768                  # dims hardcoded by the module

    image = jax.random.normal(k_img, (B, C, H, W), jnp.float32)
    params = {
        "logit_scale": jnp.asarray(jnp.log(1.0 / 0.07), jnp.float32),
        "patch_proj": 0.02 * jax.random.normal(k_proj, (C * 4 * 4, d_in), jnp.float32),
        "vpt": init_feature_trans_params(k_vpt, d_in, d_out),
        "mid": init_feature_trans_params(k_mid, d_in, d_out),
    }

    fwd = jax.jit(custom_clip_forward)
    outs = fwd(image, params)
    jax.block_until_ready(outs)

    img_feat, lscale, fine_list, top_list = outs
    assert img_feat.shape == (B, d_out)
    assert fine_list.shape == (B, 17, d_out)
    assert top_list.shape == (B * 7, d_out)
    print("KERNEL_OK")
</pallas_src>

<mosaic_0001>
module attributes {stable_mosaic.version = 11 : i64} {
  func.func @_fused_head_kernel(%arg0: i32, %arg1: memref<8x512xbf16, #tpu.memory_space<vmem>>, %arg2: memref<136x512xbf16, #tpu.memory_space<vmem>>, %arg3: memref<8x128xf32, #tpu.memory_space<vmem>>, %arg4: memref<512x768xbf16, #tpu.memory_space<vmem>>, %arg5: memref<4x768xf32, #tpu.memory_space<vmem>>, %arg6: memref<768x768xbf16, #tpu.memory_space<vmem>>, %arg7: memref<512x768xbf16, #tpu.memory_space<vmem>>, %arg8: memref<4x768xf32, #tpu.memory_space<vmem>>, %arg9: memref<768x768xbf16, #tpu.memory_space<vmem>>, %arg10: memref<8x768xf32, #tpu.memory_space<vmem>>, %arg11: memref<136x768xf32, #tpu.memory_space<vmem>>, %arg12: memref<56x768xf32, #tpu.memory_space<vmem>>, %arg13: memref<56x136xf32, #tpu.memory_space<vmem>>) attributes {dimension_semantics = [#tpu.dimension_semantics<arbitrary>], iteration_bounds = array<i64: 1>, scalar_prefetch = 0 : i64, scratch_operands = 1 : i64, tpu.core_type = #tpu.core_type<tc>, window_params = [{pipeline_mode = #tpu.pipeline_mode<synchronous>, transform_indices = @transform_0, window_bounds = array<i64: 8, 512>}, {pipeline_mode = #tpu.pipeline_mode<synchronous>, transform_indices = @transform_1, window_bounds = array<i64: 136, 512>}, {pipeline_mode = #tpu.pipeline_mode<synchronous>, transform_indices = @transform_2, window_bounds = array<i64: 8, 128>}, {pipeline_mode = #tpu.pipeline_mode<synchronous>, transform_indices = @transform_3, window_bounds = array<i64: 512, 768>}, {pipeline_mode = #tpu.pipeline_mode<synchronous>, transform_indices = @transform_4, window_bounds = array<i64: 4, 768>}, {pipeline_mode = #tpu.pipeline_mode<synchronous>, transform_indices = @transform_5, window_bounds = array<i64: 768, 768>}, {pipeline_mode = #tpu.pipeline_mode<synchronous>, transform_indices = @transform_6, window_bounds = array<i64: 512, 768>}, {pipeline_mode = #tpu.pipeline_mode<synchronous>, transform_indices = @transform_7, window_bounds = array<i64: 4, 768>}, {pipeline_mode = #tpu.pipeline_mode<synchronous>, transform_indices = @transform_8, window_bounds = array<i64: 768, 768>}, {pipeline_mode = #tpu.pipeline_mode<synchronous>, transform_indices = @transform_9, window_bounds = array<i64: 8, 768>}, {pipeline_mode = #tpu.pipeline_mode<synchronous>, transform_indices = @transform_10, window_bounds = array<i64: 136, 768>}, {pipeline_mode = #tpu.pipeline_mode<synchronous>, transform_indices = @transform_11, window_bounds = array<i64: 56, 768>}]} {
    %c0 = arith.constant 0 : index
    %c0_0 = arith.constant 0 : index
    %0 = vector.load %arg1[%c0, %c0_0] : memref<8x512xbf16, #tpu.memory_space<vmem>>, vector<8x512xbf16>
    %c0_1 = arith.constant 0 : index
    %c0_2 = arith.constant 0 : index
    %1 = vector.load %arg4[%c0_1, %c0_2] : memref<512x768xbf16, #tpu.memory_space<vmem>>, vector<512x768xbf16>
    %c0_3 = arith.constant 0 : index
    %c0_4 = arith.constant 0 : index
    %2 = vector.load %arg5[%c0_3, %c0_4] : memref<4x768xf32, #tpu.memory_space<vmem>>, vector<4x768xf32>
    %c0_5 = arith.constant 0 : index
    %c0_6 = arith.constant 0 : index
    %3 = vector.load %arg6[%c0_5, %c0_6] : memref<768x768xbf16, #tpu.memory_space<vmem>>, vector<768x768xbf16>
    %4 = vector.extract_strided_slice %2 {offsets = [0, 0], sizes = [1, 768], strides = [1, 1]} : vector<4x768xf32> to vector<1x768xf32>
    %5 = vector.extract_strided_slice %2 {offsets = [1, 0], sizes = [1, 768], strides = [1, 1]} : vector<4x768xf32> to vector<1x768xf32>
    %6 = vector.extract_strided_slice %2 {offsets = [2, 0], sizes = [1, 768], strides = [1, 1]} : vector<4x768xf32> to vector<1x768xf32>
    %7 = vector.extract_strided_slice %2 {offsets = [3, 0], sizes = [1, 768], strides = [1, 1]} : vector<4x768xf32> to vector<1x768xf32>
    %cst = arith.constant dense<0.000000e+00> : vector<8x768xf32>
    %8 = tpu.matmul %0, %1, %cst {dimension_numbers = #tpu.dot_dimension_numbers<[1], [0], [0], [1], [0, 0, 1, 1], [], []>} : vector<8x512xbf16>, vector<512x768xbf16>, vector<8x768xf32> -> vector<8x768xf32>
    %9 = vector.broadcast %4 : vector<1x768xf32> to vector<8x768xf32>
    %10 = arith.addf %8, %9 : vector<8x768xf32>
    %cst_7 = arith.constant dense<0.000000e+00> : vector<768xf32>
    %11 = vector.multi_reduction <add>, %10, %cst_7 [0] : vector<8x768xf32> to vector<768xf32>
    %12 = vector.shape_cast %11 : vector<768xf32> to vector<1x768xf32>
    %cst_8 = arith.constant 8.000000e+00 : f32
    %13 = vector.broadcast %cst_8 : f32 to vector<1x768xf32>
    %14 = arith.divf %12, %13 : vector<1x768xf32>
    %15 = vector.broadcast %14 : vector<1x768xf32> to vector<8x768xf32>
    %16 = arith.subf %10, %15 : vector<8x768xf32>
    %17 = arith.mulf %16, %16 : vector<8x768xf32>
    %cst_9 = arith.constant dense<0.000000e+00> : vector<768xf32>
    %18 = vector.multi_reduction <add>, %17, %cst_9 [0] : vector<8x768xf32> to vector<768xf32>
    %19 = vector.shape_cast %18 : vector<768xf32> to vector<1x768xf32>
    %cst_10 = arith.constant 8.000000e+00 : f32
    %20 = vector.broadcast %cst_10 : f32 to vector<1x768xf32>
    %21 = arith.divf %19, %20 : vector<1x768xf32>
    %22 = vector.broadcast %14 : vector<1x768xf32> to vector<8x768xf32>
    %23 = arith.subf %10, %22 : vector<8x768xf32>
    %cst_11 = arith.constant 9.99999974E-6 : f32
    %24 = vector.broadcast %cst_11 : f32 to vector<1x768xf32>
    %25 = arith.addf %21, %24 : vector<1x768xf32>
    %26 = math.rsqrt %25 : vector<1x768xf32>
    %27 = vector.broadcast %26 : vector<1x768xf32> to vector<8x768xf32>
    %28 = arith.mulf %23, %27 : vector<8x768xf32>
    %29 = vector.broadcast %5 : vector<1x768xf32> to vector<8x768xf32>
    %30 = arith.mulf %28, %29 : vector<8x768xf32>
    %31 = vector.broadcast %6 : vector<1x768xf32> to vector<8x768xf32>
    %32 = arith.addf %30, %31 : vector<8x768xf32>
    %cst_12 = arith.constant 0.000000e+00 : f32
    %33 = vector.broadcast %cst_12 : f32 to vector<8x768xf32>
    %34 = arith.maximumf %32, %33 : vector<8x768xf32>
    %35 = arith.truncf %34 : vector<8x768xf32> to vector<8x768xbf16>
    %cst_13 = arith.constant dense<0.000000e+00> : vector<8x768xf32>
    %36 = tpu.matmul %35, %3, %cst_13 {dimension_numbers = #tpu.dot_dimension_numbers<[1], [0], [0], [1], [0, 0, 1, 1], [], []>} : vector<8x768xbf16>, vector<768x768xbf16>, vector<8x768xf32> -> vector<8x768xf32>
    %37 = vector.broadcast %7 : vector<1x768xf32> to vector<8x768xf32>
    %38 = arith.addf %36, %37 : vector<8x768xf32>
    %39 = arith.mulf %38, %38 : vector<8x768xf32>
    %cst_14 = arith.constant dense<0.000000e+00> : vector<8xf32>
    %40 = vector.multi_reduction <add>, %39, %cst_14 [1] : vector<8x768xf32> to vector<8xf32>
    %41 = vector.shape_cast %40 : vector<8xf32> to vector<8x1xf32>
    %42 = math.rsqrt %41 : vector<8x1xf32>
    %43 = vector.broadcast %42 : vector<8x1xf32> to vector<8x768xf32>
    %44 = arith.mulf %38, %43 : vector<8x768xf32>
    %c0_15 = arith.constant 0 : index
    %c0_16 = arith.constant 0 : index
    %45 = vector.load %arg10[%c0_15, %c0_16] : memref<8x768xf32, #tpu.memory_space<vmem>>, vector<8x768xf32>
    tpu.vector_store %arg10[%c0_15, %c0_16], %44 {strides = array<i32>} : memref<8x768xf32, #tpu.memory_space<vmem>>, vector<8x768xf32>,
    %c0_17 = arith.constant 0 : index
    %c0_18 = arith.constant 0 : index
    %46 = vector.load %arg2[%c0_17, %c0_18] : memref<136x512xbf16, #tpu.memory_space<vmem>>, vector<136x512xbf16>
    %c0_19 = arith.constant 0 : index
    %c0_20 = arith.constant 0 : index
    %47 = vector.load %arg7[%c0_19, %c0_20] : memref<512x768xbf16, #tpu.memory_space<vmem>>, vector<512x768xbf16>
    %c0_21 = arith.constant 0 : index
    %c0_22 = arith.constant 0 : index
    %48 = vector.load %arg8[%c0_21, %c0_22] : memref<4x768xf32, #tpu.memory_space<vmem>>, vector<4x768xf32>
    %c0_23 = arith.constant 0 : index
    %c0_24 = arith.constant 0 : index
    %49 = vector.load %arg9[%c0_23, %c0_24] : memref<768x768xbf16, #tpu.memory_space<vmem>>, vector<768x768xbf16>
    %50 = vector.extract_strided_slice %48 {offsets = [0, 0], sizes = [1, 768], strides = [1, 1]} : vector<4x768xf32> to vector<1x768xf32>
    %51 = vector.extract_strided_slice %48 {offsets = [1, 0], sizes = [1, 768], strides = [1, 1]} : vector<4x768xf32> to vector<1x768xf32>
    %52 = vector.extract_strided_slice %48 {offsets = [2, 0], sizes = [1, 768], strides = [1, 1]} : vector<4x768xf32> to vector<1x768xf32>
    %53 = vector.extract_strided_slice %48 {offsets = [3, 0], sizes = [1, 768], strides = [1, 1]} : vector<4x768xf32> to vector<1x768xf32>
    %cst_25 = arith.constant dense<0.000000e+00> : vector<136x768xf32>
    %54 = tpu.matmul %46, %47, %cst_25 {dimension_numbers = #tpu.dot_dimension_numbers<[1], [0], [0], [1], [0, 0, 1, 1], [], []>} : vector<136x512xbf16>, vector<512x768xbf16>, vector<136x768xf32> -> vector<136x768xf32>
    %55 = vector.broadcast %50 : vector<1x768xf32> to vector<136x768xf32>
    %56 = arith.addf %54, %55 : vector<136x768xf32>
    %cst_26 = arith.constant dense<0.000000e+00> : vector<768xf32>
    %57 = vector.multi_reduction <add>, %56, %cst_26 [0] : vector<136x768xf32> to vector<768xf32>
    %58 = vector.shape_cast %57 : vector<768xf32> to vector<1x768xf32>
    %cst_27 = arith.constant 1.360000e+02 : f32
    %59 = vector.broadcast %cst_27 : f32 to vector<1x768xf32>
    %60 = arith.divf %58, %59 : vector<1x768xf32>
    %61 = vector.broadcast %60 : vector<1x768xf32> to vector<136x768xf32>
    %62 = arith.subf %56, %61 : vector<136x768xf32>
    %63 = arith.mulf %62, %62 : vector<136x768xf32>
    %cst_28 = arith.constant dense<0.000000e+00> : vector<768xf32>
    %64 = vector.multi_reduction <add>, %63, %cst_28 [0] : vector<136x768xf32> to vector<768xf32>
    %65 = vector.shape_cast %64 : vector<768xf32> to vector<1x768xf32>
    %cst_29 = arith.constant 1.360000e+02 : f32
    %66 = vector.broadcast %cst_29 : f32 to vector<1x768xf32>
    %67 = arith.divf %65, %66 : vector<1x768xf32>
    %68 = vector.broadcast %60 : vector<1x768xf32> to vector<136x768xf32>
    %69 = arith.subf %56, %68 : vector<136x768xf32>
    %cst_30 = arith.constant 9.99999974E-6 : f32
    %70 = vector.broadcast %cst_30 : f32 to vector<1x768xf32>
    %71 = arith.addf %67, %70 : vector<1x768xf32>
    %72 = math.rsqrt %71 : vector<1x768xf32>
    %73 = vector.broadcast %72 : vector<1x768xf32> to vector<136x768xf32>
    %74 = arith.mulf %69, %73 : vector<136x768xf32>
    %75 = vector.broadcast %51 : vector<1x768xf32> to vector<136x768xf32>
    %76 = arith.mulf %74, %75 : vector<136x768xf32>
    %77 = vector.broadcast %52 : vector<1x768xf32> to vector<136x768xf32>
    %78 = arith.addf %76, %77 : vector<136x768xf32>
    %cst_31 = arith.constant 0.000000e+00 : f32
    %79 = vector.broadcast %cst_31 : f32 to vector<136x768xf32>
    %80 = arith.maximumf %78, %79 : vector<136x768xf32>
    %81 = arith.truncf %80 : vector<136x768xf32> to vector<136x768xbf16>
    %cst_32 = arith.constant dense<0.000000e+00> : vector<136x768xf32>
    %82 = tpu.matmul %81, %49, %cst_32 {dimension_numbers = #tpu.dot_dimension_numbers<[1], [0], [0], [1], [0, 0, 1, 1], [], []>} : vector<136x768xbf16>, vector<768x768xbf16>, vector<136x768xf32> -> vector<136x768xf32>
    %83 = vector.broadcast %53 : vector<1x768xf32> to vector<136x768xf32>
    %84 = arith.addf %82, %83 : vector<136x768xf32>
    %c0_33 = arith.constant 0 : index
    %c0_34 = arith.constant 0 : index
    %85 = vector.load %arg11[%c0_33, %c0_34] : memref<136x768xf32, #tpu.memory_space<vmem>>, vector<136x768xf32>
    tpu.vector_store %arg11[%c0_33, %c0_34], %84 {strides = array<i32>} : memref<136x768xf32, #tpu.memory_space<vmem>>, vector<136x768xf32>,
    %c0_35 = arith.constant 0 : index
    %c0_36 = arith.constant 0 : index
    %86 = vector.load %arg3[%c0_35, %c0_36] : memref<8x128xf32, #tpu.memory_space<vmem>>, vector<8x128xf32>
    %87 = tpu.iota {dimensions = array<i32: 1>} : vector<8x128xi32>
    %88 = tpu.iota {dimensions = array<i32: 1>} : vector<8x136xi32>
    %89 = tpu.iota {dimensions = array<i32: 0>} : vector<8x136xi32>
    %c17_i32 = arith.constant 17 : i32
    %90 = vector.broadcast %c17_i32 : i32 to vector<8x136xi32>
    %91 = arith.muli %89, %90 : vector<8x136xi32>
    %92 = arith.cmpi eq, %88, %91 : vector<8x136xi32>
    %93 = arith.extui %92 : vector<8x136xi1> to vector<8x136xi32>
    %94 = arith.sitofp %93 : vector<8x136xi32> to vector<8x136xf32>
    %c0_37 = arith.constant 0 : index
    %c0_38 = arith.constant 0 : index
    %95 = vector.load %arg13[%c0_37, %c0_38] : memref<56x136xf32, #tpu.memory_space<vmem>>, vector<8x136xf32>
    tpu.vector_store %arg13[%c0_37, %c0_38], %94 {strides = array<i32>} : memref<56x136xf32, #tpu.memory_space<vmem>>, vector<8x136xf32>,
    %cst_39 = arith.constant dense<0xFF800000> : vector<8xf32>
    %96 = vector.multi_reduction <maximumf>, %86, %cst_39 [1] : vector<8x128xf32> to vector<8xf32>
    %97 = vector.shape_cast %96 : vector<8xf32> to vector<8x1xf32>
    %98 = vector.broadcast %97 : vector<8x1xf32> to vector<8x128xf32>
    %99 = arith.cmpf oeq, %86, %98 : vector<8x128xf32>
    %c128_i32 = arith.constant 128 : i32
    %100 = vector.broadcast %c128_i32 : i32 to vector<8x128xi32>
    %101 = arith.select %99, %87, %100 : vector<8x128xi1>, vector<8x128xi32>
    %cst_40 = arith.constant dense<2147483647> : vector<8xi32>
    %102 = vector.multi_reduction <minsi>, %101, %cst_40 [1] : vector<8x128xi32> to vector<8xi32>
    %103 = vector.shape_cast %102 : vector<8xi32> to vector<8x1xi32>
    %104 = vector.broadcast %103 : vector<8x1xi32> to vector<8x136xi32>
    %105 = arith.addi %91, %104 : vector<8x136xi32>
    %c1_i32 = arith.constant 1 : i32
    %106 = vector.broadcast %c1_i32 : i32 to vector<8x136xi32>
    %107 = arith.addi %105, %106 : vector<8x136xi32>
    %108 = arith.cmpi eq, %88, %107 : vector<8x136xi32>
    %109 = arith.extui %108 : vector<8x136xi1> to vector<8x136xi32>
    %110 = arith.sitofp %109 : vector<8x136xi32> to vector<8x136xf32>
    %c8 = arith.constant 8 : index
    %c0_41 = arith.constant 0 : index
    %111 = vector.load %arg13[%c8, %c0_41] : memref<56x136xf32, #tpu.memory_space<vmem>>, vector<8x136xf32>
    tpu.vector_store %arg13[%c8, %c0_41], %110 {strides = array<i32>} : memref<56x136xf32, #tpu.memory_space<vmem>>, vector<8x136xf32>,
    %112 = vector.broadcast %103 : vector<8x1xi32> to vector<8x128xi32>
    %113 = arith.cmpi eq, %87, %112 : vector<8x128xi32>
    %cst_42 = arith.constant 0xFF800000 : f32
    %114 = vector.broadcast %cst_42 : f32 to vector<8x128xf32>
    %115 = arith.select %113, %114, %86 : vector<8x128xi1>, vector<8x128xf32>
    %cst_43 = arith.constant dense<0xFF800000> : vector<8xf32>
    %116 = vector.multi_reduction <maximumf>, %115, %cst_43 [1] : vector<8x128xf32> to vector<8xf32>
    %117 = vector.shape_cast %116 : vector<8xf32> to vector<8x1xf32>
    %118 = vector.broadcast %117 : vector<8x1xf32> to vector<8x128xf32>
    %119 = arith.cmpf oeq, %115, %118 : vector<8x128xf32>
    %c128_i32_44 = arith.constant 128 : i32
    %120 = vector.broadcast %c128_i32_44 : i32 to vector<8x128xi32>
    %121 = arith.select %119, %87, %120 : vector<8x128xi1>, vector<8x128xi32>
    %cst_45 = arith.constant dense<2147483647> : vector<8xi32>
    %122 = vector.multi_reduction <minsi>, %121, %cst_45 [1] : vector<8x128xi32> to vector<8xi32>
    %123 = vector.shape_cast %122 : vector<8xi32> to vector<8x1xi32>
    %124 = vector.broadcast %123 : vector<8x1xi32> to vector<8x136xi32>
    %125 = arith.addi %91, %124 : vector<8x136xi32>
    %c1_i32_46 = arith.constant 1 : i32
    %126 = vector.broadcast %c1_i32_46 : i32 to vector<8x136xi32>
    %127 = arith.addi %125, %126 : vector<8x136xi32>
    %128 = arith.cmpi eq, %88, %127 : vector<8x136xi32>
    %129 = arith.extui %128 : vector<8x136xi1> to vector<8x136xi32>
    %130 = arith.sitofp %129 : vector<8x136xi32> to vector<8x136xf32>
    %c16 = arith.constant 16 : index
    %c0_47 = arith.constant 0 : index
    %131 = vector.load %arg13[%c16, %c0_47] : memref<56x136xf32, #tpu.memory_space<vmem>>, vector<8x136xf32>
    tpu.vector_store %arg13[%c16, %c0_47], %130 {strides = array<i32>} : memref<56x136xf32, #tpu.memory_space<vmem>>, vector<8x136xf32>,
    %132 = vector.broadcast %123 : vector<8x1xi32> to vector<8x128xi32>
    %133 = arith.cmpi eq, %87, %132 : vector<8x128xi32>
    %cst_48 = arith.constant 0xFF800000 : f32
    %134 = vector.broadcast %cst_48 : f32 to vector<8x128xf32>
    %135 = arith.select %133, %134, %115 : vector<8x128xi1>, vector<8x128xf32>
    %cst_49 = arith.constant dense<0xFF800000> : vector<8xf32>
    %136 = vector.multi_reduction <maximumf>, %135, %cst_49 [1] : vector<8x128xf32> to vector<8xf32>
    %137 = vector.shape_cast %136 : vector<8xf32> to vector<8x1xf32>
    %138 = vector.broadcast %137 : vector<8x1xf32> to vector<8x128xf32>
    %139 = arith.cmpf oeq, %135, %138 : vector<8x128xf32>
    %c128_i32_50 = arith.constant 128 : i32
    %140 = vector.broadcast %c128_i32_50 : i32 to vector<8x128xi32>
    %141 = arith.select %139, %87, %140 : vector<8x128xi1>, vector<8x128xi32>
    %cst_51 = arith.constant dense<2147483647> : vector<8xi32>
    %142 = vector.multi_reduction <minsi>, %141, %cst_51 [1] : vector<8x128xi32> to vector<8xi32>
    %143 = vector.shape_cast %142 : vector<8xi32> to vector<8x1xi32>
    %144 = vector.broadcast %143 : vector<8x1xi32> to vector<8x136xi32>
    %145 = arith.addi %91, %144 : vector<8x136xi32>
    %c1_i32_52 = arith.constant 1 : i32
    %146 = vector.broadcast %c1_i32_52 : i32 to vector<8x136xi32>
    %147 = arith.addi %145, %146 : vector<8x136xi32>
    %148 = arith.cmpi eq, %88, %147 : vector<8x136xi32>
    %149 = arith.extui %148 : vector<8x136xi1> to vector<8x136xi32>
    %150 = arith.sitofp %149 : vector<8x136xi32> to vector<8x136xf32>
    %c24 = arith.constant 24 : index
    %c0_53 = arith.constant 0 : index
    %151 = vector.load %arg13[%c24, %c0_53] : memref<56x136xf32, #tpu.memory_space<vmem>>, vector<8x136xf32>
    tpu.vector_store %arg13[%c24, %c0_53], %150 {strides = array<i32>} : memref<56x136xf32, #tpu.memory_space<vmem>>, vector<8x136xf32>,
    %152 = vector.broadcast %143 : vector<8x1xi32> to vector<8x128xi32>
    %153 = arith.cmpi eq, %87, %152 : vector<8x128xi32>
    %cst_54 = arith.constant 0xFF800000 : f32
    %154 = vector.broadcast %cst_54 : f32 to vector<8x128xf32>
    %155 = arith.select %153, %154, %135 : vector<8x128xi1>, vector<8x128xf32>
    %cst_55 = arith.constant dense<0xFF800000> : vector<8xf32>
    %156 = vector.multi_reduction <maximumf>, %155, %cst_55 [1] : vector<8x128xf32> to vector<8xf32>
    %157 = vector.shape_cast %156 : vector<8xf32> to vector<8x1xf32>
    %158 = vector.broadcast %157 : vector<8x1xf32> to vector<8x128xf32>
    %159 = arith.cmpf oeq, %155, %158 : vector<8x128xf32>
    %c128_i32_56 = arith.constant 128 : i32
    %160 = vector.broadcast %c128_i32_56 : i32 to vector<8x128xi32>
    %161 = arith.select %159, %87, %160 : vector<8x128xi1>, vector<8x128xi32>
    %cst_57 = arith.constant dense<2147483647> : vector<8xi32>
    %162 = vector.multi_reduction <minsi>, %161, %cst_57 [1] : vector<8x128xi32> to vector<8xi32>
    %163 = vector.shape_cast %162 : vector<8xi32> to vector<8x1xi32>
    %164 = vector.broadcast %163 : vector<8x1xi32> to vector<8x136xi32>
    %165 = arith.addi %91, %164 : vector<8x136xi32>
    %c1_i32_58 = arith.constant 1 : i32
    %166 = vector.broadcast %c1_i32_58 : i32 to vector<8x136xi32>
    %167 = arith.addi %165, %166 : vector<8x136xi32>
    %168 = arith.cmpi eq, %88, %167 : vector<8x136xi32>
    %169 = arith.extui %168 : vector<8x136xi1> to vector<8x136xi32>
    %170 = arith.sitofp %169 : vector<8x136xi32> to vector<8x136xf32>
    %c32 = arith.constant 32 : index
    %c0_59 = arith.constant 0 : index
    %171 = vector.load %arg13[%c32, %c0_59] : memref<56x136xf32, #tpu.memory_space<vmem>>, vector<8x136xf32>
    tpu.vector_store %arg13[%c32, %c0_59], %170 {strides = array<i32>} : memref<56x136xf32, #tpu.memory_space<vmem>>, vector<8x136xf32>,
    %172 = vector.broadcast %163 : vector<8x1xi32> to vector<8x128xi32>
    %173 = arith.cmpi eq, %87, %172 : vector<8x128xi32>
    %cst_60 = arith.constant 0xFF800000 : f32
    %174 = vector.broadcast %cst_60 : f32 to vector<8x128xf32>
    %175 = arith.select %173, %174, %155 : vector<8x128xi1>, vector<8x128xf32>
    %cst_61 = arith.constant dense<0xFF800000> : vector<8xf32>
    %176 = vector.multi_reduction <maximumf>, %175, %cst_61 [1] : vector<8x128xf32> to vector<8xf32>
    %177 = vector.shape_cast %176 : vector<8xf32> to vector<8x1xf32>
    %178 = vector.broadcast %177 : vector<8x1xf32> to vector<8x128xf32>
    %179 = arith.cmpf oeq, %175, %178 : vector<8x128xf32>
    %c128_i32_62 = arith.constant 128 : i32
    %180 = vector.broadcast %c128_i32_62 : i32 to vector<8x128xi32>
    %181 = arith.select %179, %87, %180 : vector<8x128xi1>, vector<8x128xi32>
    %cst_63 = arith.constant dense<2147483647> : vector<8xi32>
    %182 = vector.multi_reduction <minsi>, %181, %cst_63 [1] : vector<8x128xi32> to vector<8xi32>
    %183 = vector.shape_cast %182 : vector<8xi32> to vector<8x1xi32>
    %184 = vector.broadcast %183 : vector<8x1xi32> to vector<8x136xi32>
    %185 = arith.addi %91, %184 : vector<8x136xi32>
    %c1_i32_64 = arith.constant 1 : i32
    %186 = vector.broadcast %c1_i32_64 : i32 to vector<8x136xi32>
    %187 = arith.addi %185, %186 : vector<8x136xi32>
    %188 = arith.cmpi eq, %88, %187 : vector<8x136xi32>
    %189 = arith.extui %188 : vector<8x136xi1> to vector<8x136xi32>
    %190 = arith.sitofp %189 : vector<8x136xi32> to vector<8x136xf32>
    %c40 = arith.constant 40 : index
    %c0_65 = arith.constant 0 : index
    %191 = vector.load %arg13[%c40, %c0_65] : memref<56x136xf32, #tpu.memory_space<vmem>>, vector<8x136xf32>
    tpu.vector_store %arg13[%c40, %c0_65], %190 {strides = array<i32>} : memref<56x136xf32, #tpu.memory_space<vmem>>, vector<8x136xf32>,
    %192 = arith.cmpi sge, %88, %91 : vector<8x136xi32>
    %c17_i32_66 = arith.constant 17 : i32
    %193 = vector.broadcast %c17_i32_66 : i32 to vector<8x136xi32>
    %194 = arith.addi %91, %193 : vector<8x136xi32>
    %195 = arith.cmpi slt, %88, %194 : vector<8x136xi32>
    %196 = arith.andi %192, %195 : vector<8x136xi1>
    %cst_67 = arith.constant 0.0588235296 : f32
    %cst_68 = arith.constant 0.000000e+00 : f32
    %197 = vector.broadcast %cst_67 : f32 to vector<8x136xf32>
    %198 = vector.broadcast %cst_68 : f32 to vector<8x136xf32>
    %199 = arith.select %196, %197, %198 : vector<8x136xi1>, vector<8x136xf32>
    %c48 = arith.constant 48 : index
    %c0_69 = arith.constant 0 : index
    %200 = vector.load %arg13[%c48, %c0_69] : memref<56x136xf32, #tpu.memory_space<vmem>>, vector<8x136xf32>
    tpu.vector_store %arg13[%c48, %c0_69], %199 {strides = array<i32>} : memref<56x136xf32, #tpu.memory_space<vmem>>, vector<8x136xf32>,
    %c0_70 = arith.constant 0 : index
    %c0_71 = arith.constant 0 : index
    %201 = vector.load %arg13[%c0_70, %c0_71] : memref<56x136xf32, #tpu.memory_space<vmem>>, vector<56x136xf32>
    %c0_72 = arith.constant 0 : index
    %c0_73 = arith.constant 0 : index
    %202 = vector.load %arg11[%c0_72, %c0_73] : memref<136x768xf32, #tpu.memory_space<vmem>>, vector<136x768xf32>
    %cst_74 = arith.constant dense<0.000000e+00> : vector<56x768xf32>
    %203 = tpu.matmul %201, %202, %cst_74 {dimension_numbers = #tpu.dot_dimension_numbers<[1], [0], [0], [1], [0, 0, 1, 1], [], []>} : vector<56x136xf32>, vector<136x768xf32>, vector<56x768xf32> -> vector<56x768xf32>
    %c0_75 = arith.constant 0 : index
    %c0_76 = arith.constant 0 : index
    %204 = vector.load %arg12[%c0_75, %c0_76] : memref<56x768xf32, #tpu.memory_space<vmem>>, vector<56x768xf32>
    tpu.vector_store %arg12[%c0_75, %c0_76], %203 {strides = array<i32>} : memref<56x768xf32, #tpu.memory_space<vmem>>, vector<56x768xf32>,
    return
  }
  func.func @transform_0(%arg0: i32) -> (i32, i32) {
    %c0_i32 = arith.constant 0 : i32
    %c0_i32_0 = arith.constant 0 : i32
    %c0_i32_1 = arith.constant 0 : i32
    return %c0_i32, %c0_i32_0 : i32, i32
  }
  func.func @transform_1(%arg0: i32) -> (i32, i32) {
    %c0_i32 = arith.constant 0 : i32
    %c0_i32_0 = arith.constant 0 : i32
    %c0_i32_1 = arith.constant 0 : i32
    return %c0_i32, %c0_i32_0 : i32, i32
  }
  func.func @transform_2(%arg0: i32) -> (i32, i32) {
    %c0_i32 = arith.constant 0 : i32
    %c0_i32_0 = arith.constant 0 : i32
    %c0_i32_1 = arith.constant 0 : i32
    return %c0_i32, %c0_i32_0 : i32, i32
  }
  func.func @transform_3(%arg0: i32) -> (i32, i32) {
    %c0_i32 = arith.constant 0 : i32
    %c0_i32_0 = arith.constant 0 : i32
    %c0_i32_1 = arith.constant 0 : i32
    return %c0_i32, %c0_i32_0 : i32, i32
  }
  func.func @transform_4(%arg0: i32) -> (i32, i32) {
    %c0_i32 = arith.constant 0 : i32
    %c0_i32_0 = arith.constant 0 : i32
    %c0_i32_1 = arith.constant 0 : i32
    return %c0_i32, %c0_i32_0 : i32, i32
  }
  func.func @transform_5(%arg0: i32) -> (i32, i32) {
    %c0_i32 = arith.constant 0 : i32
    %c0_i32_0 = arith.constant 0 : i32
    %c0_i32_1 = arith.constant 0 : i32
    return %c0_i32, %c0_i32_0 : i32, i32
  }
  func.func @transform_6(%arg0: i32) -> (i32, i32) {
    %c0_i32 = arith.constant 0 : i32
    %c0_i32_0 = arith.constant 0 : i32
    %c0_i32_1 = arith.constant 0 : i32
    return %c0_i32, %c0_i32_0 : i32, i32
  }
  func.func @transform_7(%arg0: i32) -> (i32, i32) {
    %c0_i32 = arith.constant 0 : i32
    %c0_i32_0 = arith.constant 0 : i32
    %c0_i32_1 = arith.constant 0 : i32
    return %c0_i32, %c0_i32_0 : i32, i32
  }
  func.func @transform_8(%arg0: i32) -> (i32, i32) {
    %c0_i32 = arith.constant 0 : i32
    %c0_i32_0 = arith.constant 0 : i32
    %c0_i32_1 = arith.constant 0 : i32
    return %c0_i32, %c0_i32_0 : i32, i32
  }
  func.func @transform_9(%arg0: i32) -> (i32, i32) {
    %c0_i32 = arith.constant 0 : i32
    %c0_i32_0 = arith.constant 0 : i32
    %c0_i32_1 = arith.constant 0 : i32
    return %c0_i32, %c0_i32_0 : i32, i32
  }
  func.func @transform_10(%arg0: i32) -> (i32, i32) {
    %c0_i32 = arith.constant 0 : i32
    %c0_i32_0 = arith.constant 0 : i32
    %c0_i32_1 = arith.constant 0 : i32
    return %c0_i32, %c0_i32_0 : i32, i32
  }
  func.func @transform_11(%arg0: i32) -> (i32, i32) {
    %c0_i32 = arith.constant 0 : i32
    %c0_i32_0 = arith.constant 0 : i32
    %c0_i32_1 = arith.constant 0 : i32
    return %c0_i32, %c0_i32_0 : i32, i32
  }
}

</mosaic_0001>

<llo_original>
// kernel: custom_clip_forward.1
$region0: #{custom_clip_forward.1}
  #allocation0 [shape = 'u32[]', space=smem, size = 0x4, offset = 0x4, fixed_abs, tag = 'smem constant byte address 0x4 - core index']
  #allocation1 [shape = 'u32[144,128]{1,0:T(1,128)}', space=vmem, size = 0x12000, scoped, tag = 'internal scratch']
  #allocation2 [shape = 'f32[56,136]{1,0:T(8,128)}', space=vmem, size = 0xe000, scoped, tag = 'scratch operand']
  %s0 = inlined_call_operand.vmem [shape: bf16[8,512], index: 0, kind: input, shape index: {}]
  %s1 = inlined_call_operand.vmem [shape: bf16[136,512], index: 1, kind: input, shape index: {}]
  %s2 = inlined_call_operand.vmem [shape: f32[8,128], index: 2, kind: input, shape index: {}]
  %s3 = inlined_call_operand.hbm [shape: bf16[512,768], index: 3, kind: input, shape index: {}]
  %s4 = inlined_call_operand.vmem [shape: f32[4,768], index: 4, kind: input, shape index: {}]
  %s5 = inlined_call_operand.vmem [shape: bf16[768,768], index: 5, kind: input, shape index: {}]
  %s6 = inlined_call_operand.hbm [shape: bf16[512,768], index: 6, kind: input, shape index: {}]
  %s7 = inlined_call_operand.vmem [shape: f32[4,768], index: 7, kind: input, shape index: {}]
  %s8 = inlined_call_operand.vmem [shape: bf16[768,768], index: 8, kind: input, shape index: {}]
  %s9 = inlined_call_operand.hbm [shape: f32[8,768], index: 9, kind: output, shape index: {0}]
  %s10 = inlined_call_operand.vmem [shape: f32[136,768], index: 10, kind: output, shape index: {1}]
  %s11 = inlined_call_operand.vmem [shape: f32[56,768], index: 11, kind: output, shape index: {2}]
  %12 = xla_tuple %s9, %s10, %s11
  %s13 = sld [smem:[#allocation0]]
  $region70: #{custom_clip_forward.1} parent=0
    _
  %s15 = ssub.s32 1, %s13
  %s16 = scalar_select 0, %s15, %s13
  $region1: #{custom_clip_forward.1} parent=0
    #allocation3 [shape = 'u8[786432]{0}', space=vmem, size = 0xc0000, scoped, tag = 'input window, operand 3, single buffered']
    #allocation4 [shape = 's32[1]{0}', space=sflag, size = 0x4, scoped, tag = 'scoped memory for custom_clip_forward.1']
    #allocation5 [shape = 's32[1]{0}', space=sflag, size = 0x4, scoped, tag = 'scoped memory for custom_clip_forward.1']
    #allocation6 [shape = 'u8[786432]{0}', space=vmem, size = 0xc0000, scoped, tag = 'input window, operand 6, single buffered']
    #allocation7 [shape = 's32[1]{0}', space=sflag, size = 0x4, scoped, tag = 'scoped memory for custom_clip_forward.1']
    #allocation8 [shape = 'u8[24576]{0}', space=vmem, size = 0x6000, scoped, tag = 'output window, operand 0, single buffered']
    %17 = vsyncpa [#allocation4], 0
    %18 = vsyncpa [#allocation7], 0
    %19 = vsyncpa [#allocation5], 0
    // Predicated region
    $region2: #{custom_clip_forward.1} parent=1 // pred_check
      _
    $region3: #{custom_clip_forward.1} parent=1 // pred_check_branch
      %21 = sbr.rel (0) target = $region5
    $region4: #{custom_clip_forward.1} parent=1 // pred_region
      _
    $region5: #{custom_clip_forward.1} parent=1 // pred_fallthru
      _
    // Predicated region
    $region6: #{custom_clip_forward.1} parent=1 // pred_check
      _
    $region7: #{custom_clip_forward.1} parent=1 // pred_check_branch
      %23 = sbr.rel (0) target = $region9
    $region8: #{custom_clip_forward.1} parent=1 // pred_region
      _
    $region9: #{custom_clip_forward.1} parent=1 // pred_fallthru
      _
    // Predicated region
    $region10: #{custom_clip_forward.1} parent=1 // pred_check
      _
    $region11: #{custom_clip_forward.1} parent=1 // pred_check_branch
      %25 = sbr.rel (0) target = $region13
    $region12: #{custom_clip_forward.1} parent=1 // pred_region
      _
    $region13: #{custom_clip_forward.1} parent=1 // pred_fallthru
      _
    // Predicated region
    $region14: #{custom_clip_forward.1} parent=1 // pred_check
      _
    $region15: #{custom_clip_forward.1} parent=1 // pred_check_branch
      %27 = sbr.rel (0) target = $region17
    $region16: #{custom_clip_forward.1} parent=1 // pred_region
      %s29 = ssub.s32 24576, 24576
      %30 = vsyncadd [#allocation4], %s29
      %s31 = sshll.u32 [#allocation3], 4
      %s32 = int_to_ptr.vmem [resolvable:$true] %s31
      %37 = dma.hbm_to_vmem [thread:$0]  %s3, 24576, %s32, [#allocation4], 384, 384, 24
    $region17: #{custom_clip_forward.1} parent=1 // pred_fallthru
      _
    // Predicated region
    $region18: #{custom_clip_forward.1} parent=1 // pred_check
      _
    $region19: #{custom_clip_forward.1} parent=1 // pred_check_branch
      %39 = sbr.rel (0) target = $region21
    $region20: #{custom_clip_forward.1} parent=1 // pred_region
      _
    $region21: #{custom_clip_forward.1} parent=1 // pred_fallthru
      _
    // Predicated region
    $region22: #{custom_clip_forward.1} parent=1 // pred_check
      _
    $region23: #{custom_clip_forward.1} parent=1 // pred_check_branch
      %41 = sbr.rel (0) target = $region25
    $region24: #{custom_clip_forward.1} parent=1 // pred_region
      _
    $region25: #{custom_clip_forward.1} parent=1 // pred_fallthru
      _
    // Predicated region
    $region26: #{custom_clip_forward.1} parent=1 // pred_check
      _
    $region27: #{custom_clip_forward.1} parent=1 // pred_check_branch
      %43 = sbr.rel (0) target = $region29
    $region28: #{custom_clip_forward.1} parent=1 // pred_region
      %s45 = ssub.s32 24576, 24576
      %46 = vsyncadd [#allocation7], %s45
      %s47 = sshll.u32 [#allocation6], 4
      %s48 = int_to_ptr.vmem [resolvable:$true] %s47
      %53 = dma.hbm_to_vmem [thread:$0]  %s6, 24576, %s48, [#allocation7], 384, 384, 24
    $region29: #{custom_clip_forward.1} parent=1 // pred_fallthru
      _
    // Predicated region
    $region30: #{custom_clip_forward.1} parent=1 // pred_check
      _
    $region31: #{custom_clip_forward.1} parent=1 // pred_check_branch
      %55 = sbr.rel (0) target = $region33
    $region32: #{custom_clip_forward.1} parent=1 // pred_region
      _
    $region33: #{custom_clip_forward.1} parent=1 // pred_fallthru
      _
    // Predicated region
    $region34: #{custom_clip_forward.1} parent=1 // pred_check
      _
    $region35: #{custom_clip_forward.1} parent=1 // pred_check_branch
      %57 = sbr.rel (0) target = $region37
    $region36: #{custom_clip_forward.1} parent=1 // pred_region
      _
    $region37: #{custom_clip_forward.1} parent=1 // pred_fallthru
      _
    // Predicated region
    $region38: #{custom_clip_forward.1} parent=1 // pred_check
      _
    $region39: #{custom_clip_forward.1} parent=1 // pred_check_branch
      %59 = sbr.rel (0) target = $region41
    $region40: #{custom_clip_forward.1} parent=1 // pred_region
      %60 = dma.done [#allocation4], 24576
    $region41: #{custom_clip_forward.1} parent=1 // pred_fallthru
      _
    // Predicated region
    $region42: #{custom_clip_forward.1} parent=1 // pred_check
      _
    $region43: #{custom_clip_forward.1} parent=1 // pred_check_branch
      %62 = sbr.rel (0) target = $region45
    $region44: #{custom_clip_forward.1} parent=1 // pred_region
      %63 = dma.done [#allocation7], 24576
    $region45: #{custom_clip_forward.1} parent=1 // pred_fallthru
      _
    %v64 = vld [vmem:[%s0] sm:$0xff]
    %v65 = vld [vmem:[%s0 + $0x8] sm:$0xff]
    %v66 = vld [vmem:[#allocation3] sm:$0xff]
    %v67 = vld [vmem:[#allocation3 + $0x8] sm:$0xff]
    %v68 = vld [vmem:[#allocation3 + $0x10] sm:$0xff]
    %v69 = vld [vmem:[#allocation3 + $0x18] sm:$0xff]
    %v70 = vld [vmem:[#allocation3 + $0x20] sm:$0xff]
    %v71 = vld [vmem:[#allocation3 + $0x28] sm:$0xff]
    %v72 = vld [vmem:[#allocation3 + $0x30] sm:$0xff]
    %v73 = vld [vmem:[#allocation3 + $0x38] sm:$0xff]
    %v74 = vld [vmem:[#allocation3 + $0x40] sm:$0xff]
    %v75 = vld [vmem:[#allocation3 + $0x48] sm:$0xff]
    %v76 = vld [vmem:[#allocation3 + $0x50] sm:$0xff]
    %v77 = vld [vmem:[#allocation3 + $0x58] sm:$0xff]
    %v78 = vld [vmem:[#allocation3 + $0x60] sm:$0xff]
    %v79 = vld [vmem:[#allocation3 + $0x68] sm:$0xff]
    %v80 = vld [vmem:[#allocation3 + $0x70] sm:$0xff]
    %v81 = vld [vmem:[#allocation3 + $0x78] sm:$0xff]
    %v82 = vld [vmem:[#allocation3 + $0x80] sm:$0xff]
    %v83 = vld [vmem:[#allocation3 + $0x88] sm:$0xff]
    %v84 = vld [vmem:[#allocation3 + $0x90] sm:$0xff]
    %v85 = vld [vmem:[#allocation3 + $0x98] sm:$0xff]
    %v86 = vld [vmem:[#allocation3 + $0xa0] sm:$0xff]
    %v87 = vld [vmem:[#allocation3 + $0xa8] sm:$0xff]
    %v88 = vld [vmem:[#allocation3 + $0xb0] sm:$0xff]
    %v89 = vld [vmem:[#allocation3 + $0xb8] sm:$0xff]
    %v90 = vld [vmem:[#allocation3 + $0xc0] sm:$0xff]
    %v91 = vld [vmem:[#allocation3 + $0xc8] sm:$0xff]
    %v92 = vld [vmem:[#allocation3 + $0xd0] sm:$0xff]
    %v93 = vld [vmem:[#allocation3 + $0xd8] sm:$0xff]
    %v94 = vld [vmem:[#allocation3 + $0xe0] sm:$0xff]
    %v95 = vld [vmem:[#allocation3 + $0xe8] sm:$0xff]
    %v96 = vld [vmem:[#allocation3 + $0xf0] sm:$0xff]
    %v97 = vld [vmem:[#allocation3 + $0xf8] sm:$0xff]
    %v98 = vld [vmem:[#allocation3 + $0x100] sm:$0xff]
    %v99 = vld [vmem:[#allocation3 + $0x108] sm:$0xff]
    %v100 = vld [vmem:[#allocation3 + $0x110] sm:$0xff]
    %v101 = vld [vmem:[#allocation3 + $0x118] sm:$0xff]
    %v102 = vld [vmem:[#allocation3 + $0x120] sm:$0xff]
    %v103 = vld [vmem:[#allocation3 + $0x128] sm:$0xff]
    %v104 = vld [vmem:[#allocation3 + $0x130] sm:$0xff]
    %v105 = vld [vmem:[#allocation3 + $0x138] sm:$0xff]
    %v106 = vld [vmem:[#allocation3 + $0x140] sm:$0xff]
    %v107 = vld [vmem:[#allocation3 + $0x148] sm:$0xff]
    %v108 = vld [vmem:[#allocation3 + $0x150] sm:$0xff]
    %v109 = vld [vmem:[#allocation3 + $0x158] sm:$0xff]
    %v110 = vld [vmem:[#allocation3 + $0x160] sm:$0xff]
    %v111 = vld [vmem:[#allocation3 + $0x168] sm:$0xff]
    %v112 = vld [vmem:[#allocation3 + $0x170] sm:$0xff]
    %v113 = vld [vmem:[#allocation3 + $0x178] sm:$0xff]
    %v114 = vld [vmem:[#allocation3 + $0x180] sm:$0xff]
    %v115 = vld [vmem:[#allocation3 + $0x188] sm:$0xff]
    %v116 = vld [vmem:[#allocation3 + $0x190] sm:$0xff]
    %v117 = vld [vmem:[#allocation3 + $0x198] sm:$0xff]
    %v118 = vld [vmem:[#allocation3 + $0x1a0] sm:$0xff]
    %v119 = vld [vmem:[#allocation3 + $0x1a8] sm:$0xff]
    %v120 = vld [vmem:[#allocation3 + $0x1b0] sm:$0xff]
    %v121 = vld [vmem:[#allocation3 + $0x1b8] sm:$0xff]
    %v122 = vld [vmem:[#allocation3 + $0x1c0] sm:$0xff]
    %v123 = vld [vmem:[#allocation3 + $0x1c8] sm:$0xff]
    %v124 = vld [vmem:[#allocation3 + $0x1d0] sm:$0xff]
    %v125 = vld [vmem:[#allocation3 + $0x1d8] sm:$0xff]
    %v126 = vld [vmem:[#allocation3 + $0x1e0] sm:$0xff]
    %v127 = vld [vmem:[#allocation3 + $0x1e8] sm:$0xff]
    %v128 = vld [vmem:[#allocation3 + $0x1f0] sm:$0xff]
    %v129 = vld [vmem:[#allocation3 + $0x1f8] sm:$0xff]
    %v130 = vld [vmem:[#allocation3 + $0x200] sm:$0xff]
    %v131 = vld [vmem:[#allocation3 + $0x208] sm:$0xff]
    %v132 = vld [vmem:[#allocation3 + $0x210] sm:$0xff]
    %v133 = vld [vmem:[#allocation3 + $0x218] sm:$0xff]
    %v134 = vld [vmem:[#allocation3 + $0x220] sm:$0xff]
    %v135 = vld [vmem:[#allocation3 + $0x228] sm:$0xff]
    %v136 = vld [vmem:[#allocation3 + $0x230] sm:$0xff]
    %v137 = vld [vmem:[#allocation3 + $0x238] sm:$0xff]
    %v138 = vld [vmem:[#allocation3 + $0x240] sm:$0xff]
    %v139 = vld [vmem:[#allocation3 + $0x248] sm:$0xff]
    %v140 = vld [vmem:[#allocation3 + $0x250] sm:$0xff]
    %v141 = vld [vmem:[#allocation3 + $0x258] sm:$0xff]
    %v142 = vld [vmem:[#allocation3 + $0x260] sm:$0xff]
    %v143 = vld [vmem:[#allocation3 + $0x268] sm:$0xff]
    %v144 = vld [vmem:[#allocation3 + $0x270] sm:$0xff]
    %v145 = vld [vmem:[#allocation3 + $0x278] sm:$0xff]
    %v146 = vld [vmem:[#allocation3 + $0x280] sm:$0xff]
    %v147 = vld [vmem:[#allocation3 + $0x288] sm:$0xff]
    %v148 = vld [vmem:[#allocation3 + $0x290] sm:$0xff]
    %v149 = vld [vmem:[#allocation3 + $0x298] sm:$0xff]
    %v150 = vld [vmem:[#allocation3 + $0x2a0] sm:$0xff]
    %v151 = vld [vmem:[#allocation3 + $0x2a8] sm:$0xff]
    %v152 = vld [vmem:[#allocation3 + $0x2b0] sm:$0xff]
    %v153 = vld [vmem:[#allocation3 + $0x2b8] sm:$0xff]
    %v154 = vld [vmem:[#allocation3 + $0x2c0] sm:$0xff]
    %v155 = vld [vmem:[#allocation3 + $0x2c8] sm:$0xff]
    %v156 = vld [vmem:[#allocation3 + $0x2d0] sm:$0xff]
    %v157 = vld [vmem:[#allocation3 + $0x2d8] sm:$0xff]
    %v158 = vld [vmem:[#allocation3 + $0x2e0] sm:$0xff]
    %v159 = vld [vmem:[#allocation3 + $0x2e8] sm:$0xff]
    %v160 = vld [vmem:[#allocation3 + $0x2f0] sm:$0xff]
    %v161 = vld [vmem:[#allocation3 + $0x2f8] sm:$0xff]
    %v162 = vld [vmem:[#allocation3 + $0x300] sm:$0xff]
    %v163 = vld [vmem:[#allocation3 + $0x308] sm:$0xff]
    %v164 = vld [vmem:[#allocation3 + $0x310] sm:$0xff]
    %v165 = vld [vmem:[#allocation3 + $0x318] sm:$0xff]
    %v166 = vld [vmem:[#allocation3 + $0x320] sm:$0xff]
    %v167 = vld [vmem:[#allocation3 + $0x328] sm:$0xff]
    %v168 = vld [vmem:[#allocation3 + $0x330] sm:$0xff]
    %v169 = vld [vmem:[#allocation3 + $0x338] sm:$0xff]
    %v170 = vld [vmem:[#allocation3 + $0x340] sm:$0xff]
    %v171 = vld [vmem:[#allocation3 + $0x348] sm:$0xff]
    %v172 = vld [vmem:[#allocation3 + $0x350] sm:$0xff]
    %v173 = vld [vmem:[#allocation3 + $0x358] sm:$0xff]
    %v174 = vld [vmem:[#allocation3 + $0x360] sm:$0xff]
    %v175 = vld [vmem:[#allocation3 + $0x368] sm:$0xff]
    %v176 = vld [vmem:[#allocation3 + $0x370] sm:$0xff]
    %v177 = vld [vmem:[#allocation3 + $0x378] sm:$0xff]
    %v178 = vld [vmem:[#allocation3 + $0x380] sm:$0xff]
    %v179 = vld [vmem:[#allocation3 + $0x388] sm:$0xff]
    %v180 = vld [vmem:[#allocation3 + $0x390] sm:$0xff]
    %v181 = vld [vmem:[#allocation3 + $0x398] sm:$0xff]
    %v182 = vld [vmem:[#allocation3 + $0x3a0] sm:$0xff]
    %v183 = vld [vmem:[#allocation3 + $0x3a8] sm:$0xff]
    %v184 = vld [vmem:[#allocation3 + $0x3b0] sm:$0xff]
    %v185 = vld [vmem:[#allocation3 + $0x3b8] sm:$0xff]
    %v186 = vld [vmem:[#allocation3 + $0x3c0] sm:$0xff]
    %v187 = vld [vmem:[#allocation3 + $0x3c8] sm:$0xff]
    %v188 = vld [vmem:[#allocation3 + $0x3d0] sm:$0xff]
    %v189 = vld [vmem:[#allocation3 + $0x3d8] sm:$0xff]
    %v190 = vld [vmem:[#allocation3 + $0x3e0] sm:$0xff]
    %v191 = vld [vmem:[#allocation3 + $0x3e8] sm:$0xff]
    %v192 = vld [vmem:[#allocation3 + $0x3f0] sm:$0xff]
    %v193 = vld [vmem:[#allocation3 + $0x3f8] sm:$0xff]
    %v194 = vld [vmem:[#allocation3 + $0x400] sm:$0xff]
    %v195 = vld [vmem:[#allocation3 + $0x408] sm:$0xff]
    %v196 = vld [vmem:[#allocation3 + $0x410] sm:$0xff]
    %v197 = vld [vmem:[#allocation3 + $0x418] sm:$0xff]
    %v198 = vld [vmem:[#allocation3 + $0x420] sm:$0xff]
    %v199 = vld [vmem:[#allocation3 + $0x428] sm:$0xff]
    %v200 = vld [vmem:[#allocation3 + $0x430] sm:$0xff]
    %v201 = vld [vmem:[#allocation3 + $0x438] sm:$0xff]
    %v202 = vld [vmem:[#allocation3 + $0x440] sm:$0xff]
    %v203 = vld [vmem:[#allocation3 + $0x448] sm:$0xff]
    %v204 = vld [vmem:[#allocation3 + $0x450] sm:$0xff]
    %v205 = vld [vmem:[#allocation3 + $0x458] sm:$0xff]
    %v206 = vld [vmem:[#allocation3 + $0x460] sm:$0xff]
    %v207 = vld [vmem:[#allocation3 + $0x468] sm:$0xff]
    %v208 = vld [vmem:[#allocation3 + $0x470] sm:$0xff]
    %v209 = vld [vmem:[#allocation3 + $0x478] sm:$0xff]
    %v210 = vld [vmem:[#allocation3 + $0x480] sm:$0xff]
    %v211 = vld [vmem:[#allocation3 + $0x488] sm:$0xff]
    %v212 = vld [vmem:[#allocation3 + $0x490] sm:$0xff]
    %v213 = vld [vmem:[#allocation3 + $0x498] sm:$0xff]
    %v214 = vld [vmem:[#allocation3 + $0x4a0] sm:$0xff]
    %v215 = vld [vmem:[#allocation3 + $0x4a8] sm:$0xff]
    %v216 = vld [vmem:[#allocation3 + $0x4b0] sm:$0xff]
    %v217 = vld [vmem:[#allocation3 + $0x4b8] sm:$0xff]
    %v218 = vld [vmem:[#allocation3 + $0x4c0] sm:$0xff]
    %v219 = vld [vmem:[#allocation3 + $0x4c8] sm:$0xff]
    %v220 = vld [vmem:[#allocation3 + $0x4d0] sm:$0xff]
    %v221 = vld [vmem:[#allocation3 + $0x4d8] sm:$0xff]
    %v222 = vld [vmem:[#allocation3 + $0x4e0] sm:$0xff]
    %v223 = vld [vmem:[#allocation3 + $0x4e8] sm:$0xff]
    %v224 = vld [vmem:[#allocation3 + $0x4f0] sm:$0xff]
    %v225 = vld [vmem:[#allocation3 + $0x4f8] sm:$0xff]
    %v226 = vld [vmem:[#allocation3 + $0x500] sm:$0xff]
    %v227 = vld [vmem:[#allocation3 + $0x508] sm:$0xff]
    %v228 = vld [vmem:[#allocation3 + $0x510] sm:$0xff]
    %v229 = vld [vmem:[#allocation3 + $0x518] sm:$0xff]
    %v230 = vld [vmem:[#allocation3 + $0x520] sm:$0xff]
    %v231 = vld [vmem:[#allocation3 + $0x528] sm:$0xff]
    %v232 = vld [vmem:[#allocation3 + $0x530] sm:$0xff]
    %v233 = vld [vmem:[#allocation3 + $0x538] sm:$0xff]
    %v234 = vld [vmem:[#allocation3 + $0x540] sm:$0xff]
    %v235 = vld [vmem:[#allocation3 + $0x548] sm:$0xff]
    %v236 = vld [vmem:[#allocation3 + $0x550] sm:$0xff]
    %v237 = vld [vmem:[#allocation3 + $0x558] sm:$0xff]
    %v238 = vld [vmem:[#allocation3 + $0x560] sm:$0xff]
    %v239 = vld [vmem:[#allocation3 + $0x568] sm:$0xff]
    %v240 = vld [vmem:[#allocation3 + $0x570] sm:$0xff]
    %v241 = vld [vmem:[#allocation3 + $0x578] sm:$0xff]
    %v242 = vld [vmem:[#allocation3 + $0x580] sm:$0xff]
    %v243 = vld [vmem:[#allocation3 + $0x588] sm:$0xff]
    %v244 = vld [vmem:[#allocation3 + $0x590] sm:$0xff]
    %v245 = vld [vmem:[#allocation3 + $0x598] sm:$0xff]
    %v246 = vld [vmem:[#allocation3 + $0x5a0] sm:$0xff]
    %v247 = vld [vmem:[#allocation3 + $0x5a8] sm:$0xff]
    %v248 = vld [vmem:[#allocation3 + $0x5b0] sm:$0xff]
    %v249 = vld [vmem:[#allocation3 + $0x5b8] sm:$0xff]
    %v250 = vld [vmem:[#allocation3 + $0x5c0] sm:$0xff]
    %v251 = vld [vmem:[#allocation3 + $0x5c8] sm:$0xff]
    %v252 = vld [vmem:[#allocation3 + $0x5d0] sm:$0xff]
    %v253 = vld [vmem:[#allocation3 + $0x5d8] sm:$0xff]
    %v254 = vld [vmem:[#allocation3 + $0x5e0] sm:$0xff]
    %v255 = vld [vmem:[#allocation3 + $0x5e8] sm:$0xff]
    %v256 = vld [vmem:[#allocation3 + $0x5f0] sm:$0xff]
    %v257 = vld [vmem:[#allocation3 + $0x5f8] sm:$0xff]
    %v258 = vld [vmem:[%s4] sm:$0xff]
    %v259 = vld [vmem:[%s4 + $0x8] sm:$0xff]
    %v260 = vld [vmem:[%s4 + $0x10] sm:$0xff]
    %v261 = vld [vmem:[%s5] sm:$0xff]
    %v262 = vld [vmem:[%s5 + $0x8] sm:$0xff]
    %v263 = vld [vmem:[%s5 + $0x10] sm:$0xff]
    %v264 = vld [vmem:[%s5 + $0x18] sm:$0xff]
    %v265 = vld [vmem:[%s5 + $0x20] sm:$0xff]
    %v266 = vld [vmem:[%s5 + $0x28] sm:$0xff]
    %v267 = vld [vmem:[%s5 + $0x30] sm:$0xff]
    %v268 = vld [vmem:[%s5 + $0x38] sm:$0xff]
    %v269 = vld [vmem:[%s5 + $0x40] sm:$0xff]
    %v270 = vld [vmem:[%s5 + $0x48] sm:$0xff]
    %v271 = vld [vmem:[%s5 + $0x50] sm:$0xff]
    %v272 = vld [vmem:[%s5 + $0x58] sm:$0xff]
    %v273 = vld [vmem:[%s5 + $0x60] sm:$0xff]
    %v274 = vld [vmem:[%s5 + $0x68] sm:$0xff]
    %v275 = vld [vmem:[%s5 + $0x70] sm:$0xff]
    %v276 = vld [vmem:[%s5 + $0x78] sm:$0xff]
    %v277 = vld [vmem:[%s5 + $0x80] sm:$0xff]
    %v278 = vld [vmem:[%s5 + $0x88] sm:$0xff]
    %v279 = vld [vmem:[%s5 + $0x90] sm:$0xff]
    %v280 = vld [vmem:[%s5 + $0x98] sm:$0xff]
    %v281 = vld [vmem:[%s5 + $0xa0] sm:$0xff]
    %v282 = vld [vmem:[%s5 + $0xa8] sm:$0xff]
    %v283 = vld [vmem:[%s5 + $0xb0] sm:$0xff]
    %v284 = vld [vmem:[%s5 + $0xb8] sm:$0xff]
    %v285 = vld [vmem:[%s5 + $0xc0] sm:$0xff]
    %v286 = vld [vmem:[%s5 + $0xc8] sm:$0xff]
    %v287 = vld [vmem:[%s5 + $0xd0] sm:$0xff]
    %v288 = vld [vmem:[%s5 + $0xd8] sm:$0xff]
    %v289 = vld [vmem:[%s5 + $0xe0] sm:$0xff]
    %v290 = vld [vmem:[%s5 + $0xe8] sm:$0xff]
    %v291 = vld [vmem:[%s5 + $0xf0] sm:$0xff]
    %v292 = vld [vmem:[%s5 + $0xf8] sm:$0xff]
    %v293 = vld [vmem:[%s5 + $0x100] sm:$0xff]
    %v294 = vld [vmem:[%s5 + $0x108] sm:$0xff]
    %v295 = vld [vmem:[%s5 + $0x110] sm:$0xff]
    %v296 = vld [vmem:[%s5 + $0x118] sm:$0xff]
    %v297 = vld [vmem:[%s5 + $0x120] sm:$0xff]
    %v298 = vld [vmem:[%s5 + $0x128] sm:$0xff]
    %v299 = vld [vmem:[%s5 + $0x130] sm:$0xff]
    %v300 = vld [vmem:[%s5 + $0x138] sm:$0xff]
    %v301 = vld [vmem:[%s5 + $0x140] sm:$0xff]
    %v302 = vld [vmem:[%s5 + $0x148] sm:$0xff]
    %v303 = vld [vmem:[%s5 + $0x150] sm:$0xff]
    %v304 = vld [vmem:[%s5 + $0x158] sm:$0xff]
    %v305 = vld [vmem:[%s5 + $0x160] sm:$0xff]
    %v306 = vld [vmem:[%s5 + $0x168] sm:$0xff]
    %v307 = vld [vmem:[%s5 + $0x170] sm:$0xff]
    %v308 = vld [vmem:[%s5 + $0x178] sm:$0xff]
    %v309 = vld [vmem:[%s5 + $0x180] sm:$0xff]
    %v310 = vld [vmem:[%s5 + $0x188] sm:$0xff]
    %v311 = vld [vmem:[%s5 + $0x190] sm:$0xff]
    %v312 = vld [vmem:[%s5 + $0x198] sm:$0xff]
    %v313 = vld [vmem:[%s5 + $0x1a0] sm:$0xff]
    %v314 = vld [vmem:[%s5 + $0x1a8] sm:$0xff]
    %v315 = vld [vmem:[%s5 + $0x1b0] sm:$0xff]
    %v316 = vld [vmem:[%s5 + $0x1b8] sm:$0xff]
    %v317 = vld [vmem:[%s5 + $0x1c0] sm:$0xff]
    %v318 = vld [vmem:[%s5 + $0x1c8] sm:$0xff]
    %v319 = vld [vmem:[%s5 + $0x1d0] sm:$0xff]
    %v320 = vld [vmem:[%s5 + $0x1d8] sm:$0xff]
    %v321 = vld [vmem:[%s5 + $0x1e0] sm:$0xff]
    %v322 = vld [vmem:[%s5 + $0x1e8] sm:$0xff]
    %v323 = vld [vmem:[%s5 + $0x1f0] sm:$0xff]
    %v324 = vld [vmem:[%s5 + $0x1f8] sm:$0xff]
    %v325 = vld [vmem:[%s5 + $0x200] sm:$0xff]
    %v326 = vld [vmem:[%s5 + $0x208] sm:$0xff]
    %v327 = vld [vmem:[%s5 + $0x210] sm:$0xff]
    %v328 = vld [vmem:[%s5 + $0x218] sm:$0xff]
    %v329 = vld [vmem:[%s5 + $0x220] sm:$0xff]
    %v330 = vld [vmem:[%s5 + $0x228] sm:$0xff]
    %v331 = vld [vmem:[%s5 + $0x230] sm:$0xff]
    %v332 = vld [vmem:[%s5 + $0x238] sm:$0xff]
    %v333 = vld [vmem:[%s5 + $0x240] sm:$0xff]
    %v334 = vld [vmem:[%s5 + $0x248] sm:$0xff]
    %v335 = vld [vmem:[%s5 + $0x250] sm:$0xff]
    %v336 = vld [vmem:[%s5 + $0x258] sm:$0xff]
    %v337 = vld [vmem:[%s5 + $0x260] sm:$0xff]
    %v338 = vld [vmem:[%s5 + $0x268] sm:$0xff]
    %v339 = vld [vmem:[%s5 + $0x270] sm:$0xff]
    %v340 = vld [vmem:[%s5 + $0x278] sm:$0xff]
    %v341 = vld [vmem:[%s5 + $0x280] sm:$0xff]
    %v342 = vld [vmem:[%s5 + $0x288] sm:$0xff]
    %v343 = vld [vmem:[%s5 + $0x290] sm:$0xff]
    %v344 = vld [vmem:[%s5 + $0x298] sm:$0xff]
    %v345 = vld [vmem:[%s5 + $0x2a0] sm:$0xff]
    %v346 = vld [vmem:[%s5 + $0x2a8] sm:$0xff]
    %v347 = vld [vmem:[%s5 + $0x2b0] sm:$0xff]
    %v348 = vld [vmem:[%s5 + $0x2b8] sm:$0xff]
    %v349 = vld [vmem:[%s5 + $0x2c0] sm:$0xff]
    %v350 = vld [vmem:[%s5 + $0x2c8] sm:$0xff]
    %v351 = vld [vmem:[%s5 + $0x2d0] sm:$0xff]
    %v352 = vld [vmem:[%s5 + $0x2d8] sm:$0xff]
    %v353 = vld [vmem:[%s5 + $0x2e0] sm:$0xff]
    %v354 = vld [vmem:[%s5 + $0x2e8] sm:$0xff]
    %v355 = vld [vmem:[%s5 + $0x2f0] sm:$0xff]
    %v356 = vld [vmem:[%s5 + $0x2f8] sm:$0xff]
    %v357 = vld [vmem:[%s5 + $0x300] sm:$0xff]
    %v358 = vld [vmem:[%s5 + $0x308] sm:$0xff]
    %v359 = vld [vmem:[%s5 + $0x310] sm:$0xff]
    %v360 = vld [vmem:[%s5 + $0x318] sm:$0xff]
    %v361 = vld [vmem:[%s5 + $0x320] sm:$0xff]
    %v362 = vld [vmem:[%s5 + $0x328] sm:$0xff]
    %v363 = vld [vmem:[%s5 + $0x330] sm:$0xff]
    %v364 = vld [vmem:[%s5 + $0x338] sm:$0xff]
    %v365 = vld [vmem:[%s5 + $0x340] sm:$0xff]
    %v366 = vld [vmem:[%s5 + $0x348] sm:$0xff]
    %v367 = vld [vmem:[%s5 + $0x350] sm:$0xff]
    %v368 = vld [vmem:[%s5 + $0x358] sm:$0xff]
    %v369 = vld [vmem:[%s5 + $0x360] sm:$0xff]
    %v370 = vld [vmem:[%s5 + $0x368] sm:$0xff]
    %v371 = vld [vmem:[%s5 + $0x370] sm:$0xff]
    %v372 = vld [vmem:[%s5 + $0x378] sm:$0xff]
    %v373 = vld [vmem:[%s5 + $0x380] sm:$0xff]
    %v374 = vld [vmem:[%s5 + $0x388] sm:$0xff]
    %v375 = vld [vmem:[%s5 + $0x390] sm:$0xff]
    %v376 = vld [vmem:[%s5 + $0x398] sm:$0xff]
    %v377 = vld [vmem:[%s5 + $0x3a0] sm:$0xff]
    %v378 = vld [vmem:[%s5 + $0x3a8] sm:$0xff]
    %v379 = vld [vmem:[%s5 + $0x3b0] sm:$0xff]
    %v380 = vld [vmem:[%s5 + $0x3b8] sm:$0xff]
    %v381 = vld [vmem:[%s5 + $0x3c0] sm:$0xff]
    %v382 = vld [vmem:[%s5 + $0x3c8] sm:$0xff]
    %v383 = vld [vmem:[%s5 + $0x3d0] sm:$0xff]
    %v384 = vld [vmem:[%s5 + $0x3d8] sm:$0xff]
    %v385 = vld [vmem:[%s5 + $0x3e0] sm:$0xff]
    %v386 = vld [vmem:[%s5 + $0x3e8] sm:$0xff]
    %v387 = vld [vmem:[%s5 + $0x3f0] sm:$0xff]
    %v388 = vld [vmem:[%s5 + $0x3f8] sm:$0xff]
    %v389 = vld [vmem:[%s5 + $0x400] sm:$0xff]
    %v390 = vld [vmem:[%s5 + $0x408] sm:$0xff]
    %v391 = vld [vmem:[%s5 + $0x410] sm:$0xff]
    %v392 = vld [vmem:[%s5 + $0x418] sm:$0xff]
    %v393 = vld [vmem:[%s5 + $0x420] sm:$0xff]
    %v394 = vld [vmem:[%s5 + $0x428] sm:$0xff]
    %v395 = vld [vmem:[%s5 + $0x430] sm:$0xff]
    %v396 = vld [vmem:[%s5 + $0x438] sm:$0xff]
    %v397 = vld [vmem:[%s5 + $0x440] sm:$0xff]
    %v398 = vld [vmem:[%s5 + $0x448] sm:$0xff]
    %v399 = vld [vmem:[%s5 + $0x450] sm:$0xff]
    %v400 = vld [vmem:[%s5 + $0x458] sm:$0xff]
    %v401 = vld [vmem:[%s5 + $0x460] sm:$0xff]
    %v402 = vld [vmem:[%s5 + $0x468] sm:$0xff]
    %v403 = vld [vmem:[%s5 + $0x470] sm:$0xff]
    %v404 = vld [vmem:[%s5 + $0x478] sm:$0xff]
    %v405 = vld [vmem:[%s5 + $0x480] sm:$0xff]
    %v406 = vld [vmem:[%s5 + $0x488] sm:$0xff]
    %v407 = vld [vmem:[%s5 + $0x490] sm:$0xff]
    %v408 = vld [vmem:[%s5 + $0x498] sm:$0xff]
    %v409 = vld [vmem:[%s5 + $0x4a0] sm:$0xff]
    %v410 = vld [vmem:[%s5 + $0x4a8] sm:$0xff]
    %v411 = vld [vmem:[%s5 + $0x4b0] sm:$0xff]
    %v412 = vld [vmem:[%s5 + $0x4b8] sm:$0xff]
    %v413 = vld [vmem:[%s5 + $0x4c0] sm:$0xff]
    %v414 = vld [vmem:[%s5 + $0x4c8] sm:$0xff]
    %v415 = vld [vmem:[%s5 + $0x4d0] sm:$0xff]
    %v416 = vld [vmem:[%s5 + $0x4d8] sm:$0xff]
    %v417 = vld [vmem:[%s5 + $0x4e0] sm:$0xff]
    %v418 = vld [vmem:[%s5 + $0x4e8] sm:$0xff]
    %v419 = vld [vmem:[%s5 + $0x4f0] sm:$0xff]
    %v420 = vld [vmem:[%s5 + $0x4f8] sm:$0xff]
    %v421 = vld [vmem:[%s5 + $0x500] sm:$0xff]
    %v422 = vld [vmem:[%s5 + $0x508] sm:$0xff]
    %v423 = vld [vmem:[%s5 + $0x510] sm:$0xff]
    %v424 = vld [vmem:[%s5 + $0x518] sm:$0xff]
    %v425 = vld [vmem:[%s5 + $0x520] sm:$0xff]
    %v426 = vld [vmem:[%s5 + $0x528] sm:$0xff]
    %v427 = vld [vmem:[%s5 + $0x530] sm:$0xff]
    %v428 = vld [vmem:[%s5 + $0x538] sm:$0xff]
    %v429 = vld [vmem:[%s5 + $0x540] sm:$0xff]
    %v430 = vld [vmem:[%s5 + $0x548] sm:$0xff]
    %v431 = vld [vmem:[%s5 + $0x550] sm:$0xff]
    %v432 = vld [vmem:[%s5 + $0x558] sm:$0xff]
    %v433 = vld [vmem:[%s5 + $0x560] sm:$0xff]
    %v434 = vld [vmem:[%s5 + $0x568] sm:$0xff]
    %v435 = vld [vmem:[%s5 + $0x570] sm:$0xff]
    %v436 = vld [vmem:[%s5 + $0x578] sm:$0xff]
    %v437 = vld [vmem:[%s5 + $0x580] sm:$0xff]
    %v438 = vld [vmem:[%s5 + $0x588] sm:$0xff]
    %v439 = vld [vmem:[%s5 + $0x590] sm:$0xff]
    %v440 = vld [vmem:[%s5 + $0x598] sm:$0xff]
    %v441 = vld [vmem:[%s5 + $0x5a0] sm:$0xff]
    %v442 = vld [vmem:[%s5 + $0x5a8] sm:$0xff]
    %v443 = vld [vmem:[%s5 + $0x5b0] sm:$0xff]
    %v444 = vld [vmem:[%s5 + $0x5b8] sm:$0xff]
    %v445 = vld [vmem:[%s5 + $0x5c0] sm:$0xff]
    %v446 = vld [vmem:[%s5 + $0x5c8] sm:$0xff]
    %v447 = vld [vmem:[%s5 + $0x5d0] sm:$0xff]
    %v448 = vld [vmem:[%s5 + $0x5d8] sm:$0xff]
    %v449 = vld [vmem:[%s5 + $0x5e0] sm:$0xff]
    %v450 = vld [vmem:[%s5 + $0x5e8] sm:$0xff]
    %v451 = vld [vmem:[%s5 + $0x5f0] sm:$0xff]
    %v452 = vld [vmem:[%s5 + $0x5f8] sm:$0xff]
    %v453 = vld [vmem:[%s5 + $0x600] sm:$0xff]
    %v454 = vld [vmem:[%s5 + $0x608] sm:$0xff]
    %v455 = vld [vmem:[%s5 + $0x610] sm:$0xff]
    %v456 = vld [vmem:[%s5 + $0x618] sm:$0xff]
    %v457 = vld [vmem:[%s5 + $0x620] sm:$0xff]
    %v458 = vld [vmem:[%s5 + $0x628] sm:$0xff]
    %v459 = vld [vmem:[%s5 + $0x630] sm:$0xff]
    %v460 = vld [vmem:[%s5 + $0x638] sm:$0xff]
    %v461 = vld [vmem:[%s5 + $0x640] sm:$0xff]
    %v462 = vld [vmem:[%s5 + $0x648] sm:$0xff]
    %v463 = vld [vmem:[%s5 + $0x650] sm:$0xff]
    %v464 = vld [vmem:[%s5 + $0x658] sm:$0xff]
    %v465 = vld [vmem:[%s5 + $0x660] sm:$0xff]
    %v466 = vld [vmem:[%s5 + $0x668] sm:$0xff]
    %v467 = vld [vmem:[%s5 + $0x670] sm:$0xff]
    %v468 = vld [vmem:[%s5 + $0x678] sm:$0xff]
    %v469 = vld [vmem:[%s5 + $0x680] sm:$0xff]
    %v470 = vld [vmem:[%s5 + $0x688] sm:$0xff]
    %v471 = vld [vmem:[%s5 + $0x690] sm:$0xff]
    %v472 = vld [vmem:[%s5 + $0x698] sm:$0xff]
    %v473 = vld [vmem:[%s5 + $0x6a0] sm:$0xff]
    %v474 = vld [vmem:[%s5 + $0x6a8] sm:$0xff]
    %v475 = vld [vmem:[%s5 + $0x6b0] sm:$0xff]
    %v476 = vld [vmem:[%s5 + $0x6b8] sm:$0xff]
    %v477 = vld [vmem:[%s5 + $0x6c0] sm:$0xff]
    %v478 = vld [vmem:[%s5 + $0x6c8] sm:$0xff]
    %v479 = vld [vmem:[%s5 + $0x6d0] sm:$0xff]
    %v480 = vld [vmem:[%s5 + $0x6d8] sm:$0xff]
    %v481 = vld [vmem:[%s5 + $0x6e0] sm:$0xff]
    %v482 = vld [vmem:[%s5 + $0x6e8] sm:$0xff]
    %v483 = vld [vmem:[%s5 + $0x6f0] sm:$0xff]
    %v484 = vld [vmem:[%s5 + $0x6f8] sm:$0xff]
    %v485 = vld [vmem:[%s5 + $0x700] sm:$0xff]
    %v486 = vld [vmem:[%s5 + $0x708] sm:$0xff]
    %v487 = vld [vmem:[%s5 + $0x710] sm:$0xff]
    %v488 = vld [vmem:[%s5 + $0x718] sm:$0xff]
    %v489 = vld [vmem:[%s5 + $0x720] sm:$0xff]
    %v490 = vld [vmem:[%s5 + $0x728] sm:$0xff]
    %v491 = vld [vmem:[%s5 + $0x730] sm:$0xff]
    %v492 = vld [vmem:[%s5 + $0x738] sm:$0xff]
    %v493 = vld [vmem:[%s5 + $0x740] sm:$0xff]
    %v494 = vld [vmem:[%s5 + $0x748] sm:$0xff]
    %v495 = vld [vmem:[%s5 + $0x750] sm:$0xff]
    %v496 = vld [vmem:[%s5 + $0x758] sm:$0xff]
    %v497 = vld [vmem:[%s5 + $0x760] sm:$0xff]
    %v498 = vld [vmem:[%s5 + $0x768] sm:$0xff]
    %v499 = vld [vmem:[%s5 + $0x770] sm:$0xff]
    %v500 = vld [vmem:[%s5 + $0x778] sm:$0xff]
    %v501 = vld [vmem:[%s5 + $0x780] sm:$0xff]
    %v502 = vld [vmem:[%s5 + $0x788] sm:$0xff]
    %v503 = vld [vmem:[%s5 + $0x790] sm:$0xff]
    %v504 = vld [vmem:[%s5 + $0x798] sm:$0xff]
    %v505 = vld [vmem:[%s5 + $0x7a0] sm:$0xff]
    %v506 = vld [vmem:[%s5 + $0x7a8] sm:$0xff]
    %v507 = vld [vmem:[%s5 + $0x7b0] sm:$0xff]
    %v508 = vld [vmem:[%s5 + $0x7b8] sm:$0xff]
    %v509 = vld [vmem:[%s5 + $0x7c0] sm:$0xff]
    %v510 = vld [vmem:[%s5 + $0x7c8] sm:$0xff]
    %v511 = vld [vmem:[%s5 + $0x7d0] sm:$0xff]
    %v512 = vld [vmem:[%s5 + $0x7d8] sm:$0xff]
    %v513 = vld [vmem:[%s5 + $0x7e0] sm:$0xff]
    %v514 = vld [vmem:[%s5 + $0x7e8] sm:$0xff]
    %v515 = vld [vmem:[%s5 + $0x7f0] sm:$0xff]
    %v516 = vld [vmem:[%s5 + $0x7f8] sm:$0xff]
    %v517 = vld [vmem:[%s5 + $0x800] sm:$0xff]
    %v518 = vld [vmem:[%s5 + $0x808] sm:$0xff]
    %v519 = vld [vmem:[%s5 + $0x810] sm:$0xff]
    %v520 = vld [vmem:[%s5 + $0x818] sm:$0xff]
    %v521 = vld [vmem:[%s5 + $0x820] sm:$0xff]
    %v522 = vld [vmem:[%s5 + $0x828] sm:$0xff]
    %v523 = vld [vmem:[%s5 + $0x830] sm:$0xff]
    %v524 = vld [vmem:[%s5 + $0x838] sm:$0xff]
    %v525 = vld [vmem:[%s5 + $0x840] sm:$0xff]
    %v526 = vld [vmem:[%s5 + $0x848] sm:$0xff]
    %v527 = vld [vmem:[%s5 + $0x850] sm:$0xff]
    %v528 = vld [vmem:[%s5 + $0x858] sm:$0xff]
    %v529 = vld [vmem:[%s5 + $0x860] sm:$0xff]
    %v530 = vld [vmem:[%s5 + $0x868] sm:$0xff]
    %v531 = vld [vmem:[%s5 + $0x870] sm:$0xff]
    %v532 = vld [vmem:[%s5 + $0x878] sm:$0xff]
    %v533 = vld [vmem:[%s5 + $0x880] sm:$0xff]
    %v534 = vld [vmem:[%s5 + $0x888] sm:$0xff]
    %v535 = vld [vmem:[%s5 + $0x890] sm:$0xff]
    %v536 = vld [vmem:[%s5 + $0x898] sm:$0xff]
    %v537 = vld [vmem:[%s5 + $0x8a0] sm:$0xff]
    %v538 = vld [vmem:[%s5 + $0x8a8] sm:$0xff]
    %v539 = vld [vmem:[%s5 + $0x8b0] sm:$0xff]
    %v540 = vld [vmem:[%s5 + $0x8b8] sm:$0xff]
    %v541 = vld [vmem:[%s5 + $0x8c0] sm:$0xff]
    %v542 = vld [vmem:[%s5 + $0x8c8] sm:$0xff]
    %v543 = vld [vmem:[%s5 + $0x8d0] sm:$0xff]
    %v544 = vld [vmem:[%s5 + $0x8d8] sm:$0xff]
    %v545 = vld [vmem:[%s5 + $0x8e0] sm:$0xff]
    %v546 = vld [vmem:[%s5 + $0x8e8] sm:$0xff]
    %v547 = vld [vmem:[%s5 + $0x8f0] sm:$0xff]
    %v548 = vld [vmem:[%s5 + $0x8f8] sm:$0xff]
    %v552 = vlaneseq
    %v553 = vshrl.u32 %v552, 7
    %v554 = vsub.s32 0, %v553
    %v555 = vrot.slane %v258, %v554
    %v556 = vlaneseq
    %v557 = vshrl.u32 %v556, 7
    %v558 = vsub.s32 4, %v557
    %v559 = vrot.slane %v258, %v558
    %v560 = vlaneseq
    %v561 = vshrl.u32 %v560, 7
    %v562 = vsub.s32 0, %v561
    %v563 = vrot.slane %v259, %v562
    %v564 = vlaneseq
    %v565 = vshrl.u32 %v564, 7
    %v566 = vsub.s32 4, %v565
    %v567 = vrot.slane %v259, %v566
    %v568 = vlaneseq
    %v569 = vshrl.u32 %v568, 7
    %v570 = vsub.s32 0, %v569
    %v571 = vrot.slane %v260, %v570
    %v572 = vlaneseq
    %v573 = vshrl.u32 %v572, 7
    %v574 = vsub.s32 4, %v573
    %v575 = vrot.slane %v260, %v574
    %v582 = vlaneseq
    %v583 = vshrl.u32 %v582, 7
    %v584 = vsub.s32 0, %v583
    %v585 = vrot.slane %v555, %v584
    %v586 = vlaneseq
    %v587 = vshrl.u32 %v586, 7
    %v588 = vsub.s32 0, %v587
    %v589 = vrot.slane %v559, %v588
    %v590 = vlaneseq
    %v591 = vshrl.u32 %v590, 7
    %v592 = vsub.s32 0, %v591
    %v593 = vrot.slane %v563, %v592
    %v594 = vlaneseq
    %v595 = vshrl.u32 %v594, 7
    %v596 = vsub.s32 0, %v595
    %v597 = vrot.slane %v567, %v596
    %v598 = vlaneseq
    %v599 = vshrl.u32 %v598, 7
    %v600 = vsub.s32 0, %v599
    %v601 = vrot.slane %v571, %v600
    %v602 = vlaneseq
    %v603 = vshrl.u32 %v602, 7
    %v604 = vsub.s32 0, %v603
    %v605 = vrot.slane %v575, %v604
    %v608 = vunpack.c.l.b16 %v64
    %v609 = vunpack.c.h.b16 %v64
    %v610 = vunpack.c.l.b16 %v65
    %v611 = vunpack.c.h.b16 %v65
    %v612 = vpack.c.b16 %v608, %v608
    %v613 = vpack.c.b16 %v609, %v609
    %v614 = vpack.c.b16 %v610, %v610
    %v615 = vpack.c.b16 %v611, %v611
    %v812 = vunpack.c.l.b16 %v66
    %v813 = vunpack.c.h.b16 %v66
    %v814 = vunpack.c.l.b16 %v67
    %v815 = vunpack.c.h.b16 %v67
    %v816 = vunpack.c.l.b16 %v68
    %v817 = vunpack.c.h.b16 %v68
    %v818 = vunpack.c.l.b16 %v69
    %v819 = vunpack.c.h.b16 %v69
    %v820 = vunpack.c.l.b16 %v70
    %v821 = vunpack.c.h.b16 %v70
    %v822 = vunpack.c.l.b16 %v71
    %v823 = vunpack.c.h.b16 %v71
    %v824 = vunpack.c.l.b16 %v72
    %v825 = vunpack.c.h.b16 %v72
    %v826 = vunpack.c.l.b16 %v73
    %v827 = vunpack.c.h.b16 %v73
    %v828 = vunpack.c.l.b16 %v74
    %v829 = vunpack.c.h.b16 %v74
    %v830 = vunpack.c.l.b16 %v75
    %v831 = vunpack.c.h.b16 %v75
    %v832 = vunpack.c.l.b16 %v76
    %v833 = vunpack.c.h.b16 %v76
    %v834 = vunpack.c.l.b16 %v77
    %v835 = vunpack.c.h.b16 %v77
    %v836 = vunpack.c.l.b16 %v78
    %v837 = vunpack.c.h.b16 %v78
    %v838 = vunpack.c.l.b16 %v79
    %v839 = vunpack.c.h.b16 %v79
    %v840 = vunpack.c.l.b16 %v80
    %v841 = vunpack.c.h.b16 %v80
    %v842 = vunpack.c.l.b16 %v81
    %v843 = vunpack.c.h.b16 %v81
    %v844 = vunpack.c.l.b16 %v82
    %v845 = vunpack.c.h.b16 %v82
    %v846 = vunpack.c.l.b16 %v83
    %v847 = vunpack.c.h.b16 %v83
    %v848 = vunpack.c.l.b16 %v84
    %v849 = vunpack.c.h.b16 %v84
    %v850 = vunpack.c.l.b16 %v85
    %v851 = vunpack.c.h.b16 %v85
    %v852 = vunpack.c.l.b16 %v86
    %v853 = vunpack.c.h.b16 %v86
    %v854 = vunpack.c.l.b16 %v87
    %v855 = vunpack.c.h.b16 %v87
    %v856 = vunpack.c.l.b16 %v88
    %v857 = vunpack.c.h.b16 %v88
    %v858 = vunpack.c.l.b16 %v89
    %v859 = vunpack.c.h.b16 %v89
    %v860 = vunpack.c.l.b16 %v90
    %v861 = vunpack.c.h.b16 %v90
    %v862 = vunpack.c.l.b16 %v91
    %v863 = vunpack.c.h.b16 %v91
    %v864 = vunpack.c.l.b16 %v92
    %v865 = vunpack.c.h.b16 %v92
    %v866 = vunpack.c.l.b16 %v93
    %v867 = vunpack.c.h.b16 %v93
    %v868 = vunpack.c.l.b16 %v94
    %v869 = vunpack.c.h.b16 %v94
    %v870 = vunpack.c.l.b16 %v95
    %v871 = vunpack.c.h.b16 %v95
    %v872 = vunpack.c.l.b16 %v96
    %v873 = vunpack.c.h.b16 %v96
    %v874 = vunpack.c.l.b16 %v97
    %v875 = vunpack.c.h.b16 %v97
    %v876 = vunpack.c.l.b16 %v98
    %v877 = vunpack.c.h.b16 %v98
    %v878 = vunpack.c.l.b16 %v99
    %v879 = vunpack.c.h.b16 %v99
    %v880 = vunpack.c.l.b16 %v100
    %v881 = vunpack.c.h.b16 %v100
    %v882 = vunpack.c.l.b16 %v101
    %v883 = vunpack.c.h.b16 %v101
    %v884 = vunpack.c.l.b16 %v102
    %v885 = vunpack.c.h.b16 %v102
    %v886 = vunpack.c.l.b16 %v103
    %v887 = vunpack.c.h.b16 %v103
    %v888 = vunpack.c.l.b16 %v104
    %v889 = vunpack.c.h.b16 %v104
    %v890 = vunpack.c.l.b16 %v105
    %v891 = vunpack.c.h.b16 %v105
    %v892 = vunpack.c.l.b16 %v106
    %v893 = vunpack.c.h.b16 %v106
    %v894 = vunpack.c.l.b16 %v107
    %v895 = vunpack.c.h.b16 %v107
    %v896 = vunpack.c.l.b16 %v108
    %v897 = vunpack.c.h.b16 %v108
    %v898 = vunpack.c.l.b16 %v109
    %v899 = vunpack.c.h.b16 %v109
    %v900 = vunpack.c.l.b16 %v110
    %v901 = vunpack.c.h.b16 %v110
    %v902 = vunpack.c.l.b16 %v111
    %v903 = vunpack.c.h.b16 %v111
    %v904 = vunpack.c.l.b16 %v112
    %v905 = vunpack.c.h.b16 %v112
    %v906 = vunpack.c.l.b16 %v113
    %v907 = vunpack.c.h.b16 %v113
    %v908 = vunpack.c.l.b16 %v114
    %v909 = vunpack.c.h.b16 %v114
    %v910 = vunpack.c.l.b16 %v115
    %v911 = vunpack.c.h.b16 %v115
    %v912 = vunpack.c.l.b16 %v116
    %v913 = vunpack.c.h.b16 %v116
    %v914 = vunpack.c.l.b16 %v117
    %v915 = vunpack.c.h.b16 %v117
    %v916 = vunpack.c.l.b16 %v118
    %v917 = vunpack.c.h.b16 %v118
    %v918 = vunpack.c.l.b16 %v119
    %v919 = vunpack.c.h.b16 %v119
    %v920 = vunpack.c.l.b16 %v120
    %v921 = vunpack.c.h.b16 %v120
    %v922 = vunpack.c.l.b16 %v121
    %v923 = vunpack.c.h.b16 %v121
    %v924 = vunpack.c.l.b16 %v122
    %v925 = vunpack.c.h.b16 %v122
    %v926 = vunpack.c.l.b16 %v123
    %v927 = vunpack.c.h.b16 %v123
    %v928 = vunpack.c.l.b16 %v124
    %v929 = vunpack.c.h.b16 %v124
    %v930 = vunpack.c.l.b16 %v125
    %v931 = vunpack.c.h.b16 %v125
    %v932 = vunpack.c.l.b16 %v126
    %v933 = vunpack.c.h.b16 %v126
    %v934 = vunpack.c.l.b16 %v127
    %v935 = vunpack.c.h.b16 %v127
    %v936 = vunpack.c.l.b16 %v128
    %v937 = vunpack.c.h.b16 %v128
    %v938 = vunpack.c.l.b16 %v129
    %v939 = vunpack.c.h.b16 %v129
    %v940 = vunpack.c.l.b16 %v130
    %v941 = vunpack.c.h.b16 %v130
    %v942 = vunpack.c.l.b16 %v131
    %v943 = vunpack.c.h.b16 %v131
    %v944 = vunpack.c.l.b16 %v132
    %v945 = vunpack.c.h.b16 %v132
    %v946 = vunpack.c.l.b16 %v133
    %v947 = vunpack.c.h.b16 %v133
    %v948 = vunpack.c.l.b16 %v134
    %v949 = vunpack.c.h.b16 %v134
    %v950 = vunpack.c.l.b16 %v135
    %v951 = vunpack.c.h.b16 %v135
    %v952 = vunpack.c.l.b16 %v136
    %v953 = vunpack.c.h.b16 %v136
    %v954 = vunpack.c.l.b16 %v137
    %v955 = vunpack.c.h.b16 %v137
    %v956 = vunpack.c.l.b16 %v138
    %v957 = vunpack.c.h.b16 %v138
    %v958 = vunpack.c.l.b16 %v139
    %v959 = vunpack.c.h.b16 %v139
    %v960 = vunpack.c.l.b16 %v140
    %v961 = vunpack.c.h.b16 %v140
    %v962 = vunpack.c.l.b16 %v141
    %v963 = vunpack.c.h.b16 %v141
    %v964 = vunpack.c.l.b16 %v142
    %v965 = vunpack.c.h.b16 %v142
    %v966 = vunpack.c.l.b16 %v143
    %v967 = vunpack.c.h.b16 %v143
    %v968 = vunpack.c.l.b16 %v144
    %v969 = vunpack.c.h.b16 %v144
    %v970 = vunpack.c.l.b16 %v145
    %v971 = vunpack.c.h.b16 %v145
    %v972 = vunpack.c.l.b16 %v146
    %v973 = vunpack.c.h.b16 %v146
    %v974 = vunpack.c.l.b16 %v147
    %v975 = vunpack.c.h.b16 %v147
    %v976 = vunpack.c.l.b16 %v148
    %v977 = vunpack.c.h.b16 %v148
    %v978 = vunpack.c.l.b16 %v149
    %v979 = vunpack.c.h.b16 %v149
    %v980 = vunpack.c.l.b16 %v150
    %v981 = vunpack.c.h.b16 %v150
    %v982 = vunpack.c.l.b16 %v151
    %v983 = vunpack.c.h.b16 %v151
    %v984 = vunpack.c.l.b16 %v152
    %v985 = vunpack.c.h.b16 %v152
    %v986 = vunpack.c.l.b16 %v153
    %v987 = vunpack.c.h.b16 %v153
    %v988 = vunpack.c.l.b16 %v154
    %v989 = vunpack.c.h.b16 %v154
    %v990 = vunpack.c.l.b16 %v155
    %v991 = vunpack.c.h.b16 %v155
    %v992 = vunpack.c.l.b16 %v156
    %v993 = vunpack.c.h.b16 %v156
    %v994 = vunpack.c.l.b16 %v157
    %v995 = vunpack.c.h.b16 %v157
    %v996 = vunpack.c.l.b16 %v158
    %v997 = vunpack.c.h.b16 %v158
    %v998 = vunpack.c.l.b16 %v159
    %v999 = vunpack.c.h.b16 %v159
    %v1000 = vunpack.c.l.b16 %v160
    %v1001 = vunpack.c.h.b16 %v160
    %v1002 = vunpack.c.l.b16 %v161
    %v1003 = vunpack.c.h.b16 %v161
    %v1004 = vunpack.c.l.b16 %v162
    %v1005 = vunpack.c.h.b16 %v162
    %v1006 = vunpack.c.l.b16 %v163
    %v1007 = vunpack.c.h.b16 %v163
    %v1008 = vunpack.c.l.b16 %v164
    %v1009 = vunpack.c.h.b16 %v164
    %v1010 = vunpack.c.l.b16 %v165
    %v1011 = vunpack.c.h.b16 %v165
    %v1012 = vunpack.c.l.b16 %v166
    %v1013 = vunpack.c.h.b16 %v166
    %v1014 = vunpack.c.l.b16 %v167
    %v1015 = vunpack.c.h.b16 %v167
    %v1016 = vunpack.c.l.b16 %v168
    %v1017 = vunpack.c.h.b16 %v168
    %v1018 = vunpack.c.l.b16 %v169
    %v1019 = vunpack.c.h.b16 %v169
    %v1020 = vunpack.c.l.b16 %v170
    %v1021 = vunpack.c.h.b16 %v170
    %v1022 = vunpack.c.l.b16 %v171
    %v1023 = vunpack.c.h.b16 %v171
    %v1024 = vunpack.c.l.b16 %v172
    %v1025 = vunpack.c.h.b16 %v172
    %v1026 = vunpack.c.l.b16 %v173
    %v1027 = vunpack.c.h.b16 %v173
    %v1028 = vunpack.c.l.b16 %v174
    %v1029 = vunpack.c.h.b16 %v174
    %v1030 = vunpack.c.l.b16 %v175
    %v1031 = vunpack.c.h.b16 %v175
    %v1032 = vunpack.c.l.b16 %v176
    %v1033 = vunpack.c.h.b16 %v176
    %v1034 = vunpack.c.l.b16 %v177
    %v1035 = vunpack.c.h.b16 %v177
    %v1036 = vunpack.c.l.b16 %v178
    %v1037 = vunpack.c.h.b16 %v178
    %v1038 = vunpack.c.l.b16 %v179
    %v1039 = vunpack.c.h.b16 %v179
    %v1040 = vunpack.c.l.b16 %v180
    %v1041 = vunpack.c.h.b16 %v180
    %v1042 = vunpack.c.l.b16 %v181
    %v1043 = vunpack.c.h.b16 %v181
    %v1044 = vunpack.c.l.b16 %v182
    %v1045 = vunpack.c.h.b16 %v182
    %v1046 = vunpack.c.l.b16 %v183
    %v1047 = vunpack.c.h.b16 %v183
    %v1048 = vunpack.c.l.b16 %v184
    %v1049 = vunpack.c.h.b16 %v184
    %v1050 = vunpack.c.l.b16 %v185
    %v1051 = vunpack.c.h.b16 %v185
    %v1052 = vunpack.c.l.b16 %v186
    %v1053 = vunpack.c.h.b16 %v186
    %v1054 = vunpack.c.l.b16 %v187
    %v1055 = vunpack.c.h.b16 %v187
    %v1056 = vunpack.c.l.b16 %v188
    %v1057 = vunpack.c.h.b16 %v188
    %v1058 = vunpack.c.l.b16 %v189
    %v1059 = vunpack.c.h.b16 %v189
    %v1060 = vunpack.c.l.b16 %v190
    %v1061 = vunpack.c.h.b16 %v190
    %v1062 = vunpack.c.l.b16 %v191
    %v1063 = vunpack.c.h.b16 %v191
    %v1064 = vunpack.c.l.b16 %v192
    %v1065 = vunpack.c.h.b16 %v192
    %v1066 = vunpack.c.l.b16 %v193
    %v1067 = vunpack.c.h.b16 %v193
    %v1068 = vunpack.c.l.b16 %v194
    %v1069 = vunpack.c.h.b16 %v194
    %v1070 = vunpack.c.l.b16 %v195
    %v1071 = vunpack.c.h.b16 %v195
    %v1072 = vunpack.c.l.b16 %v196
    %v1073 = vunpack.c.h.b16 %v196
    %v1074 = vunpack.c.l.b16 %v197
    %v1075 = vunpack.c.h.b16 %v197
    %v1076 = vunpack.c.l.b16 %v198
    %v1077 = vunpack.c.h.b16 %v198
    %v1078 = vunpack.c.l.b16 %v199
    %v1079 = vunpack.c.h.b16 %v199
    %v1080 = vunpack.c.l.b16 %v200
    %v1081 = vunpack.c.h.b16 %v200
    %v1082 = vunpack.c.l.b16 %v201
    %v1083 = vunpack.c.h.b16 %v201
    %v1084 = vunpack.c.l.b16 %v202
    %v1085 = vunpack.c.h.b16 %v202
    %v1086 = vunpack.c.l.b16 %v203
    %v1087 = vunpack.c.h.b16 %v203
    %v1088 = vunpack.c.l.b16 %v204
    %v1089 = vunpack.c.h.b16 %v204
    %v1090 = vunpack.c.l.b16 %v205
    %v1091 = vunpack.c.h.b16 %v205
    %v1092 = vunpack.c.l.b16 %v206
    %v1093 = vunpack.c.h.b16 %v206
    %v1094 = vunpack.c.l.b16 %v207
    %v1095 = vunpack.c.h.b16 %v207
    %v1096 = vunpack.c.l.b16 %v208
    %v1097 = vunpack.c.h.b16 %v208
    %v1098 = vunpack.c.l.b16 %v209
    %v1099 = vunpack.c.h.b16 %v209
    %v1100 = vunpack.c.l.b16 %v210
    %v1101 = vunpack.c.h.b16 %v210
    %v1102 = vunpack.c.l.b16 %v211
    %v1103 = vunpack.c.h.b16 %v211
    %v1104 = vunpack.c.l.b16 %v212
    %v1105 = vunpack.c.h.b16 %v212
    %v1106 = vunpack.c.l.b16 %v213
    %v1107 = vunpack.c.h.b16 %v213
    %v1108 = vunpack.c.l.b16 %v214
    %v1109 = vunpack.c.h.b16 %v214
    %v1110 = vunpack.c.l.b16 %v215
    %v1111 = vunpack.c.h.b16 %v215
    %v1112 = vunpack.c.l.b16 %v216
    %v1113 = vunpack.c.h.b16 %v216
    %v1114 = vunpack.c.l.b16 %v217
    %v1115 = vunpack.c.h.b16 %v217
    %v1116 = vunpack.c.l.b16 %v218
    %v1117 = vunpack.c.h.b16 %v218
    %v1118 = vunpack.c.l.b16 %v219
    %v1119 = vunpack.c.h.b16 %v219
    %v1120 = vunpack.c.l.b16 %v220
    %v1121 = vunpack.c.h.b16 %v220
    %v1122 = vunpack.c.l.b16 %v221
    %v1123 = vunpack.c.h.b16 %v221
    %v1124 = vunpack.c.l.b16 %v222
    %v1125 = vunpack.c.h.b16 %v222
    %v1126 = vunpack.c.l.b16 %v223
    %v1127 = vunpack.c.h.b16 %v223
    %v1128 = vunpack.c.l.b16 %v224
    %v1129 = vunpack.c.h.b16 %v224
    %v1130 = vunpack.c.l.b16 %v225
    %v1131 = vunpack.c.h.b16 %v225
    %v1132 = vunpack.c.l.b16 %v226
    %v1133 = vunpack.c.h.b16 %v226
    %v1134 = vunpack.c.l.b16 %v227
    %v1135 = vunpack.c.h.b16 %v227
    %v1136 = vunpack.c.l.b16 %v228
    %v1137 = vunpack.c.h.b16 %v228
    %v1138 = vunpack.c.l.b16 %v229
    %v1139 = vunpack.c.h.b16 %v229
    %v1140 = vunpack.c.l.b16 %v230
    %v1141 = vunpack.c.h.b16 %v230
    %v1142 = vunpack.c.l.b16 %v231
    %v1143 = vunpack.c.h.b16 %v231
    %v1144 = vunpack.c.l.b16 %v232
    %v1145 = vunpack.c.h.b16 %v232
    %v1146 = vunpack.c.l.b16 %v233
    %v1147 = vunpack.c.h.b16 %v233
    %v1148 = vunpack.c.l.b16 %v234
    %v1149 = vunpack.c.h.b16 %v234
    %v1150 = vunpack.c.l.b16 %v235
    %v1151 = vunpack.c.h.b16 %v235
    %v1152 = vunpack.c.l.b16 %v236
    %v1153 = vunpack.c.h.b16 %v236
    %v1154 = vunpack.c.l.b16 %v237
    %v1155 = vunpack.c.h.b16 %v237
    %v1156 = vunpack.c.l.b16 %v238
    %v1157 = vunpack.c.h.b16 %v238
    %v1158 = vunpack.c.l.b16 %v239
    %v1159 = vunpack.c.h.b16 %v239
    %v1160 = vunpack.c.l.b16 %v240
    %v1161 = vunpack.c.h.b16 %v240
    %v1162 = vunpack.c.l.b16 %v241
    %v1163 = vunpack.c.h.b16 %v241
    %v1164 = vunpack.c.l.b16 %v242
    %v1165 = vunpack.c.h.b16 %v242
    %v1166 = vunpack.c.l.b16 %v243
    %v1167 = vunpack.c.h.b16 %v243
    %v1168 = vunpack.c.l.b16 %v244
    %v1169 = vunpack.c.h.b16 %v244
    %v1170 = vunpack.c.l.b16 %v245
    %v1171 = vunpack.c.h.b16 %v245
    %v1172 = vunpack.c.l.b16 %v246
    %v1173 = vunpack.c.h.b16 %v246
    %v1174 = vunpack.c.l.b16 %v247
    %v1175 = vunpack.c.h.b16 %v247
    %v1176 = vunpack.c.l.b16 %v248
    %v1177 = vunpack.c.h.b16 %v248
    %v1178 = vunpack.c.l.b16 %v249
    %v1179 = vunpack.c.h.b16 %v249
    %v1180 = vunpack.c.l.b16 %v250
    %v1181 = vunpack.c.h.b16 %v250
    %v1182 = vunpack.c.l.b16 %v251
    %v1183 = vunpack.c.h.b16 %v251
    %v1184 = vunpack.c.l.b16 %v252
    %v1185 = vunpack.c.h.b16 %v252
    %v1186 = vunpack.c.l.b16 %v253
    %v1187 = vunpack.c.h.b16 %v253
    %v1188 = vunpack.c.l.b16 %v254
    %v1189 = vunpack.c.h.b16 %v254
    %v1190 = vunpack.c.l.b16 %v255
    %v1191 = vunpack.c.h.b16 %v255
    %v1192 = vunpack.c.l.b16 %v256
    %v1193 = vunpack.c.h.b16 %v256
    %v1194 = vunpack.c.l.b16 %v257
    %v1195 = vunpack.c.h.b16 %v257
    %v1196 = vpack.c.b16 %v818, %v812
    %v1197 = vpack.c.b16 %v819, %v813
    %v1198 = vpack.c.b16 %v820, %v814
    %v1199 = vpack.c.b16 %v821, %v815
    %v1200 = vpack.c.b16 %v822, %v816
    %v1201 = vpack.c.b16 %v823, %v817
    %v1202 = vpack.c.b16 %v830, %v824
    %v1203 = vpack.c.b16 %v831, %v825
    %v1204 = vpack.c.b16 %v832, %v826
    %v1205 = vpack.c.b16 %v833, %v827
    %v1206 = vpack.c.b16 %v834, %v828
    %v1207 = vpack.c.b16 %v835, %v829
    %v1208 = vpack.c.b16 %v842, %v836
    %v1209 = vpack.c.b16 %v843, %v837
    %v1210 = vpack.c.b16 %v844, %v838
    %v1211 = vpack.c.b16 %v845, %v839
    %v1212 = vpack.c.b16 %v846, %v840
    %v1213 = vpack.c.b16 %v847, %v841
    %v1214 = vpack.c.b16 %v854, %v848
    %v1215 = vpack.c.b16 %v855, %v849
    %v1216 = vpack.c.b16 %v856, %v850
    %v1217 = vpack.c.b16 %v857, %v851
    %v1218 = vpack.c.b16 %v858, %v852
    %v1219 = vpack.c.b16 %v859, %v853
    %v1220 = vpack.c.b16 %v866, %v860
    %v1221 = vpack.c.b16 %v867, %v861
    %v1222 = vpack.c.b16 %v868, %v862
    %v1223 = vpack.c.b16 %v869, %v863
    %v1224 = vpack.c.b16 %v870, %v864
    %v1225 = vpack.c.b16 %v871, %v865
    %v1226 = vpack.c.b16 %v878, %v872
    %v1227 = vpack.c.b16 %v879, %v873
    %v1228 = vpack.c.b16 %v880, %v874
    %v1229 = vpack.c.b16 %v881, %v875
    %v1230 = vpack.c.b16 %v882, %v876
    %v1231 = vpack.c.b16 %v883, %v877
    %v1232 = vpack.c.b16 %v890, %v884
    %v1233 = vpack.c.b16 %v891, %v885
    %v1234 = vpack.c.b16 %v892, %v886
    %v1235 = vpack.c.b16 %v893, %v887
    %v1236 = vpack.c.b16 %v894, %v888
    %v1237 = vpack.c.b16 %v895, %v889
    %v1238 = vpack.c.b16 %v902, %v896
    %v1239 = vpack.c.b16 %v903, %v897
    %v1240 = vpack.c.b16 %v904, %v898
    %v1241 = vpack.c.b16 %v905, %v899
    %v1242 = vpack.c.b16 %v906, %v900
    %v1243 = vpack.c.b16 %v907, %v901
    %v1244 = vpack.c.b16 %v914, %v908
    %v1245 = vpack.c.b16 %v915, %v909
    %v1246 = vpack.c.b16 %v916, %v910
    %v1247 = vpack.c.b16 %v917, %v911
    %v1248 = vpack.c.b16 %v918, %v912
    %v1249 = vpack.c.b16 %v919, %v913
    %v1250 = vpack.c.b16 %v926, %v920
    %v1251 = vpack.c.b16 %v927, %v921
    %v1252 = vpack.c.b16 %v928, %v922
    %v1253 = vpack.c.b16 %v929, %v923
    %v1254 = vpack.c.b16 %v930, %v924
    %v1255 = vpack.c.b16 %v931, %v925
    %v1256 = vpack.c.b16 %v938, %v932
    %v1257 = vpack.c.b16 %v939, %v933
    %v1258 = vpack.c.b16 %v940, %v934
    %v1259 = vpack.c.b16 %v941, %v935
    %v1260 = vpack.c.b16 %v942, %v936
    %v1261 = vpack.c.b16 %v943, %v937
    %v1262 = vpack.c.b16 %v950, %v944
    %v1263 = vpack.c.b16 %v951, %v945
    %v1264 = vpack.c.b16 %v952, %v946
    %v1265 = vpack.c.b16 %v953, %v947
    %v1266 = vpack.c.b16 %v954, %v948
    %v1267 = vpack.c.b16 %v955, %v949
    %v1268 = vpack.c.b16 %v962, %v956
    %v1269 = vpack.c.b16 %v963, %v957
    %v1270 = vpack.c.b16 %v964, %v958
    %v1271 = vpack.c.b16 %v965, %v959
    %v1272 = vpack.c.b16 %v966, %v960
    %v1273 = vpack.c.b16 %v967, %v961
    %v1274 = vpack.c.b16 %v974, %v968
    %v1275 = vpack.c.b16 %v975, %v969
    %v1276 = vpack.c.b16 %v976, %v970
    %v1277 = vpack.c.b16 %v977, %v971
    %v1278 = vpack.c.b16 %v978, %v972
    %v1279 = vpack.c.b16 %v979, %v973
    %v1280 = vpack.c.b16 %v986, %v980
    %v1281 = vpack.c.b16 %v987, %v981
    %v1282 = vpack.c.b16 %v988, %v982
    %v1283 = vpack.c.b16 %v989, %v983
    %v1284 = vpack.c.b16 %v990, %v984
    %v1285 = vpack.c.b16 %v991, %v985
    %v1286 = vpack.c.b16 %v998, %v992
    %v1287 = vpack.c.b16 %v999, %v993
    %v1288 = vpack.c.b16 %v1000, %v994
    %v1289 = vpack.c.b16 %v1001, %v995
    %v1290 = vpack.c.b16 %v1002, %v996
    %v1291 = vpack.c.b16 %v1003, %v997
    %v1292 = vpack.c.b16 %v1010, %v1004
    %v1293 = vpack.c.b16 %v1011, %v1005
    %v1294 = vpack.c.b16 %v1012, %v1006
    %v1295 = vpack.c.b16 %v1013, %v1007
    %v1296 = vpack.c.b16 %v1014, %v1008
    %v1297 = vpack.c.b16 %v1015, %v1009
    %v1298 = vpack.c.b16 %v1022, %v1016
    %v1299 = vpack.c.b16 %v1023, %v1017
    %v1300 = vpack.c.b16 %v1024, %v1018
    %v1301 = vpack.c.b16 %v1025, %v1019
    %v1302 = vpack.c.b16 %v1026, %v1020
    %v1303 = vpack.c.b16 %v1027, %v1021
    %v1304 = vpack.c.b16 %v1034, %v1028
    %v1305 = vpack.c.b16 %v1035, %v1029
    %v1306 = vpack.c.b16 %v1036, %v1030
    %v1307 = vpack.c.b16 %v1037, %v1031
    %v1308 = vpack.c.b16 %v1038, %v1032
    %v1309 = vpack.c.b16 %v1039, %v1033
    %v1310 = vpack.c.b16 %v1046, %v1040
    %v1311 = vpack.c.b16 %v1047, %v1041
    %v1312 = vpack.c.b16 %v1048, %v1042
    %v1313 = vpack.c.b16 %v1049, %v1043
    %v1314 = vpack.c.b16 %v1050, %v1044
    %v1315 = vpack.c.b16 %v1051, %v1045
    %v1316 = vpack.c.b16 %v1058, %v1052
    %v1317 = vpack.c.b16 %v1059, %v1053
    %v1318 = vpack.c.b16 %v1060, %v1054
    %v1319 = vpack.c.b16 %v1061, %v1055
    %v1320 = vpack.c.b16 %v1062, %v1056
    %v1321 = vpack.c.b16 %v1063, %v1057
    %v1322 = vpack.c.b16 %v1070, %v1064
    %v1323 = vpack.c.b16 %v1071, %v1065
    %v1324 = vpack.c.b16 %v1072, %v1066
    %v1325 = vpack.c.b16 %v1073, %v1067
    %v1326 = vpack.c.b16 %v1074, %v1068
    %v1327 = vpack.c.b16 %v1075, %v1069
    %v1328 = vpack.c.b16 %v1082, %v1076
    %v1329 = vpack.c.b16 %v1083, %v1077
    %v1330 = vpack.c.b16 %v1084, %v1078
    %v1331 = vpack.c.b16 %v1085, %v1079
    %v1332 = vpack.c.b16 %v1086, %v1080
    %v1333 = vpack.c.b16 %v1087, %v1081
    %v1334 = vpack.c.b16 %v1094, %v1088
    %v1335 = vpack.c.b16 %v1095, %v1089
    %v1336 = vpack.c.b16 %v1096, %v1090
    %v1337 = vpack.c.b16 %v1097, %v1091
    %v1338 = vpack.c.b16 %v1098, %v1092
    %v1339 = vpack.c.b16 %v1099, %v1093
    %v1340 = vpack.c.b16 %v1106, %v1100
    %v1341 = vpack.c.b16 %v1107, %v1101
    %v1342 = vpack.c.b16 %v1108, %v1102
    %v1343 = vpack.c.b16 %v1109, %v1103
    %v1344 = vpack.c.b16 %v1110, %v1104
    %v1345 = vpack.c.b16 %v1111, %v1105
    %v1346 = vpack.c.b16 %v1118, %v1112
    %v1347 = vpack.c.b16 %v1119, %v1113
    %v1348 = vpack.c.b16 %v1120, %v1114
    %v1349 = vpack.c.b16 %v1121, %v1115
    %v1350 = vpack.c.b16 %v1122, %v1116
    %v1351 = vpack.c.b16 %v1123, %v1117
    %v1352 = vpack.c.b16 %v1130, %v1124
    %v1353 = vpack.c.b16 %v1131, %v1125
    %v1354 = vpack.c.b16 %v1132, %v1126
    %v1355 = vpack.c.b16 %v1133, %v1127
    %v1356 = vpack.c.b16 %v1134, %v1128
    %v1357 = vpack.c.b16 %v1135, %v1129
    %v1358 = vpack.c.b16 %v1142, %v1136
    %v1359 = vpack.c.b16 %v1143, %v1137
    %v1360 = vpack.c.b16 %v1144, %v1138
    %v1361 = vpack.c.b16 %v1145, %v1139
    %v1362 = vpack.c.b16 %v1146, %v1140
    %v1363 = vpack.c.b16 %v1147, %v1141
    %v1364 = vpack.c.b16 %v1154, %v1148
    %v1365 = vpack.c.b16 %v1155, %v1149
    %v1366 = vpack.c.b16 %v1156, %v1150
    %v1367 = vpack.c.b16 %v1157, %v1151
    %v1368 = vpack.c.b16 %v1158, %v1152
    %v1369 = vpack.c.b16 %v1159, %v1153
    %v1370 = vpack.c.b16 %v1166, %v1160
    %v1371 = vpack.c.b16 %v1167, %v1161
    %v1372 = vpack.c.b16 %v1168, %v1162
    %v1373 = vpack.c.b16 %v1169, %v1163
    %v1374 = vpack.c.b16 %v1170, %v1164
    %v1375 = vpack.c.b16 %v1171, %v1165
    %v1376 = vpack.c.b16 %v1178, %v1172
    %v1377 = vpack.c.b16 %v1179, %v1173
    %v1378 = vpack.c.b16 %v1180, %v1174
    %v1379 = vpack.c.b16 %v1181, %v1175
    %v1380 = vpack.c.b16 %v1182, %v1176
    %v1381 = vpack.c.b16 %v1183, %v1177
    %v1382 = vpack.c.b16 %v1190, %v1184
    %v1383 = vpack.c.b16 %v1191, %v1185
    %v1384 = vpack.c.b16 %v1192, %v1186
    %v1385 = vpack.c.b16 %v1193, %v1187
    %v1386 = vpack.c.b16 %v1194, %v1188
    %v1387 = vpack.c.b16 %v1195, %v1189
    %1580 = vmatprep.subr.bf16.mxu0 %v1239
    %1581 = vmatpush1.bf16.msra.mxu0 %v1238
    %1582 = vmatprep.subr.bf16.mxu0 %v1233
    %1583 = vmatpush1.bf16.msra.mxu0 %v1232
    %1584 = vmatprep.subr.bf16.mxu0 %v1227
    %1585 = vmatpush1.bf16.msra.mxu0 %v1226
    %1586 = vmatprep.subr.bf16.mxu0 %v1221
    %1587 = vmatpush1.bf16.msra.mxu0 %v1220
    %1588 = vmatprep.subr.bf16.mxu0 %v1215
    %1589 = vmatpush1.bf16.msra.mxu0 %v1214
    %1590 = vmatprep.subr.bf16.mxu0 %v1209
    %1591 = vmatpush1.bf16.msra.mxu0 %v1208
    %1592 = vmatprep.subr.bf16.mxu0 %v1203
    %1593 = vmatpush1.bf16.msra.mxu0 %v1202
    %1594 = vmatprep.subr.bf16.mxu0 %v1197
    %1595 = vmatpush1.bf16.msra.mxu0 %v1196
    %1596 = vmatprep.subr.bf16.mxu0 %v1287
    %1597 = vmatpush2.bf16.msra.mxu0 %v1286
    %1598 = vmatprep.subr.bf16.mxu0 %v1281
    %1599 = vmatpush2.bf16.msra.mxu0 %v1280
    %1600 = vmatprep.subr.bf16.mxu0 %v1275
    %1601 = vmatpush2.bf16.msra.mxu0 %v1274
    %1602 = vmatprep.subr.bf16.mxu0 %v1269
    %1603 = vmatpush2.bf16.msra.mxu0 %v1268
    %1604 = vmatprep.subr.bf16.mxu0 %v1263
    %1605 = vmatpush2.bf16.msra.mxu0 %v1262
    %1606 = vmatprep.subr.bf16.mxu0 %v1257
    %1607 = vmatpush2.bf16.msra.mxu0 %v1256
    %1608 = vmatprep.subr.bf16.mxu0 %v1251
    %1609 = vmatpush2.bf16.msra.mxu0 %v1250
    %1610 = vmatprep.subr.bf16.mxu0 %v1245
    %1611 = vmatpush2.bf16.msra.mxu0 %v1244
    %1612 = vmatprep.mubr.bf16.mxu0 %v613
    %1613 = vmatmul.mubr.bf16.gmra.mxu0 %v612
    %v1614 = vpop.f32.mrf.mxu0
    %v1615 = vadd.f32 %v585, %v1614
    %v1616 = vpop.f32.mrf.mxu0
    %v1617 = vadd.f32 %v589, %v1616
    %v1618 = vpop.f32.mrf.mxu0
    %v1619 = vpop.f32.mrf.mxu0
    %1620 = vdwg.mxu0
    %1621 = vmatprep.subr.bf16.mxu0 %v1335
    %1622 = vmatpush1.bf16.msra.mxu0 %v1334
    %1623 = vmatprep.subr.bf16.mxu0 %v1329
    %1624 = vmatpush1.bf16.msra.mxu0 %v1328
    %1625 = vmatprep.subr.bf16.mxu0 %v1323
    %1626 = vmatpush1.bf16.msra.mxu0 %v1322
    %1627 = vmatprep.subr.bf16.mxu0 %v1317
    %1628 = vmatpush1.bf16.msra.mxu0 %v1316
    %1629 = vmatprep.subr.bf16.mxu0 %v1311
    %1630 = vmatpush1.bf16.msra.mxu0 %v1310
    %1631 = vmatprep.subr.bf16.mxu0 %v1305
    %1632 = vmatpush1.bf16.msra.mxu0 %v1304
    %1633 = vmatprep.subr.bf16.mxu0 %v1299
    %1634 = vmatpush1.bf16.msra.mxu0 %v1298
    %1635 = vmatprep.subr.bf16.mxu0 %v1293
    %1636 = vmatpush1.bf16.msra.mxu0 %v1292
    %1637 = vmatprep.subr.bf16.mxu0 %v1383
    %1638 = vmatpush2.bf16.msra.mxu0 %v1382
    %1639 = vmatprep.subr.bf16.mxu0 %v1377
    %1640 = vmatpush2.bf16.msra.mxu0 %v1376
    %1641 = vmatprep.subr.bf16.mxu0 %v1371
    %1642 = vmatpush2.bf16.msra.mxu0 %v1370
    %1643 = vmatprep.subr.bf16.mxu0 %v1365
    %1644 = vmatpush2.bf16.msra.mxu0 %v1364
    %1645 = vmatprep.subr.bf16.mxu0 %v1359
    %1646 = vmatpush2.bf16.msra.mxu0 %v1358
    %1647 = vmatprep.subr.bf16.mxu0 %v1353
    %1648 = vmatpush2.bf16.msra.mxu0 %v1352
    %1649 = vmatprep.subr.bf16.mxu0 %v1347
    %1650 = vmatpush2.bf16.msra.mxu0 %v1346
    %1651 = vmatprep.subr.bf16.mxu0 %v1341
    %1652 = vmatpush2.bf16.msra.mxu0 %v1340
    %1653 = vmatprep.mubr.bf16.mxu0 %v615
    %1654 = vmatmul.mubr.bf16.gmra.mxu0 %v614
    %v1655 = vpop.f32.mrf.mxu0
    %v1656 = vadd.f32 %v1615, %v1655
    %v1657 = vpop.f32.mrf.mxu0
    %v1658 = vadd.f32 %v1617, %v1657
    %v1659 = vpop.f32.mrf.mxu0
    %v1660 = vpop.f32.mrf.mxu0
    %1661 = vdwg.mxu0
    %1662 = vmatprep.subr.bf16.mxu0 %v1241
    %1663 = vmatpush1.bf16.msra.mxu0 %v1240
    %1664 = vmatprep.subr.bf16.mxu0 %v1235
    %1665 = vmatpush1.bf16.msra.mxu0 %v1234
    %1666 = vmatprep.subr.bf16.mxu0 %v1229
    %1667 = vmatpush1.bf16.msra.mxu0 %v1228
    %1668 = vmatprep.subr.bf16.mxu0 %v1223
    %1669 = vmatpush1.bf16.msra.mxu0 %v1222
    %1670 = vmatprep.subr.bf16.mxu0 %v1217
    %1671 = vmatpush1.bf16.msra.mxu0 %v1216
    %1672 = vmatprep.subr.bf16.mxu0 %v1211
    %1673 = vmatpush1.bf16.msra.mxu0 %v1210
    %1674 = vmatprep.subr.bf16.mxu0 %v1205
    %1675 = vmatpush1.bf16.msra.mxu0 %v1204
    %1676 = vmatprep.subr.bf16.mxu0 %v1199
    %1677 = vmatpush1.bf16.msra.mxu0 %v1198
    %1678 = vmatprep.subr.bf16.mxu0 %v1289
    %1679 = vmatpush2.bf16.msra.mxu0 %v1288
    %1680 = vmatprep.subr.bf16.mxu0 %v1283
    %1681 = vmatpush2.bf16.msra.mxu0 %v1282
    %1682 = vmatprep.subr.bf16.mxu0 %v1277
    %1683 = vmatpush2.bf16.msra.mxu0 %v1276
    %1684 = vmatprep.subr.bf16.mxu0 %v1271
    %1685 = vmatpush2.bf16.msra.mxu0 %v1270
    %1686 = vmatprep.subr.bf16.mxu0 %v1265
    %1687 = vmatpush2.bf16.msra.mxu0 %v1264
    %1688 = vmatprep.subr.bf16.mxu0 %v1259
    %1689 = vmatpush2.bf16.msra.mxu0 %v1258
    %1690 = vmatprep.subr.bf16.mxu0 %v1253
    %1691 = vmatpush2.bf16.msra.mxu0 %v1252
    %1692 = vmatprep.subr.bf16.mxu0 %v1247
    %1693 = vmatpush2.bf16.msra.mxu0 %v1246
    %1694 = vmatprep.mubr.bf16.mxu0 %v613
    %1695 = vmatmul.mubr.bf16.gmra.mxu0 %v612
    %v1696 = vpop.f32.mrf.mxu0
    %v1697 = vadd.f32 %v593, %v1696
    %v1698 = vpop.f32.mrf.mxu0
    %v1699 = vadd.f32 %v597, %v1698
    %v1700 = vpop.f32.mrf.mxu0
    %v1701 = vpop.f32.mrf.mxu0
    %1702 = vdwg.mxu0
    %1703 = vmatprep.subr.bf16.mxu0 %v1337
    %1704 = vmatpush1.bf16.msra.mxu0 %v1336
    %1705 = vmatprep.subr.bf16.mxu0 %v1331
    %1706 = vmatpush1.bf16.msra.mxu0 %v1330
    %1707 = vmatprep.subr.bf16.mxu0 %v1325
    %1708 = vmatpush1.bf16.msra.mxu0 %v1324
    %1709 = vmatprep.subr.bf16.mxu0 %v1319
    %1710 = vmatpush1.bf16.msra.mxu0 %v1318
    %1711 = vmatprep.subr.bf16.mxu0 %v1313
    %1712 = vmatpush1.bf16.msra.mxu0 %v1312
    %1713 = vmatprep.subr.bf16.mxu0 %v1307
    %1714 = vmatpush1.bf16.msra.mxu0 %v1306
    %1715 = vmatprep.subr.bf16.mxu0 %v1301
    %1716 = vmatpush1.bf16.msra.mxu0 %v1300
    %1717 = vmatprep.subr.bf16.mxu0 %v1295
    %1718 = vmatpush1.bf16.msra.mxu0 %v1294
    %1719 = vmatprep.subr.bf16.mxu0 %v1385
    %1720 = vmatpush2.bf16.msra.mxu0 %v1384
    %1721 = vmatprep.subr.bf16.mxu0 %v1379
    %1722 = vmatpush2.bf16.msra.mxu0 %v1378
    %1723 = vmatprep.subr.bf16.mxu0 %v1373
    %1724 = vmatpush2.bf16.msra.mxu0 %v1372
    %1725 = vmatprep.subr.bf16.mxu0 %v1367
    %1726 = vmatpush2.bf16.msra.mxu0 %v1366
    %1727 = vmatprep.subr.bf16.mxu0 %v1361
    %1728 = vmatpush2.bf16.msra.mxu0 %v1360
    %1729 = vmatprep.subr.bf16.mxu0 %v1355
    %1730 = vmatpush2.bf16.msra.mxu0 %v1354
    %1731 = vmatprep.subr.bf16.mxu0 %v1349
    %1732 = vmatpush2.bf16.msra.mxu0 %v1348
    %1733 = vmatprep.subr.bf16.mxu0 %v1343
    %1734 = vmatpush2.bf16.msra.mxu0 %v1342
    %1735 = vmatprep.mubr.bf16.mxu0 %v615
    %1736 = vmatmul.mubr.bf16.gmra.mxu0 %v614
    %v1737 = vpop.f32.mrf.mxu0
    %v1738 = vadd.f32 %v1697, %v1737
    %v1739 = vpop.f32.mrf.mxu0
    %v1740 = vadd.f32 %v1699, %v1739
    %v1741 = vpop.f32.mrf.mxu0
    %v1742 = vpop.f32.mrf.mxu0
    %1743 = vdwg.mxu0
    %1744 = vmatprep.subr.bf16.mxu0 %v1243
    %1745 = vmatpush1.bf16.msra.mxu0 %v1242
    %1746 = vmatprep.subr.bf16.mxu0 %v1237
    %1747 = vmatpush1.bf16.msra.mxu0 %v1236
    %1748 = vmatprep.subr.bf16.mxu0 %v1231
    %1749 = vmatpush1.bf16.msra.mxu0 %v1230
    %1750 = vmatprep.subr.bf16.mxu0 %v1225
    %1751 = vmatpush1.bf16.msra.mxu0 %v1224
    %1752 = vmatprep.subr.bf16.mxu0 %v1219
    %1753 = vmatpush1.bf16.msra.mxu0 %v1218
    %1754 = vmatprep.subr.bf16.mxu0 %v1213
    %1755 = vmatpush1.bf16.msra.mxu0 %v1212
    %1756 = vmatprep.subr.bf16.mxu0 %v1207
    %1757 = vmatpush1.bf16.msra.mxu0 %v1206
    %1758 = vmatprep.subr.bf16.mxu0 %v1201
    %1759 = vmatpush1.bf16.msra.mxu0 %v1200
    %1760 = vmatprep.subr.bf16.mxu0 %v1291
    %1761 = vmatpush2.bf16.msra.mxu0 %v1290
    %1762 = vmatprep.subr.bf16.mxu0 %v1285
    %1763 = vmatpush2.bf16.msra.mxu0 %v1284
    %1764 = vmatprep.subr.bf16.mxu0 %v1279
    %1765 = vmatpush2.bf16.msra.mxu0 %v1278
    %1766 = vmatprep.subr.bf16.mxu0 %v1273
    %1767 = vmatpush2.bf16.msra.mxu0 %v1272
    %1768 = vmatprep.subr.bf16.mxu0 %v1267
    %1769 = vmatpush2.bf16.msra.mxu0 %v1266
    %1770 = vmatprep.subr.bf16.mxu0 %v1261
    %1771 = vmatpush2.bf16.msra.mxu0 %v1260
    %1772 = vmatprep.subr.bf16.mxu0 %v1255
    %1773 = vmatpush2.bf16.msra.mxu0 %v1254
    %1774 = vmatprep.subr.bf16.mxu0 %v1249
    %1775 = vmatpush2.bf16.msra.mxu0 %v1248
    %1776 = vmatprep.mubr.bf16.mxu0 %v613
    %1777 = vmatmul.mubr.bf16.gmra.mxu0 %v612
    %v1778 = vpop.f32.mrf.mxu0
    %v1779 = vadd.f32 %v601, %v1778
    %v1780 = vpop.f32.mrf.mxu0
    %v1781 = vadd.f32 %v605, %v1780
    %v1782 = vpop.f32.mrf.mxu0
    %v1783 = vpop.f32.mrf.mxu0
    %1784 = vdwg.mxu0
    %1785 = vmatprep.subr.bf16.mxu0 %v1339
    %1786 = vmatpush1.bf16.msra.mxu0 %v1338
    %1787 = vmatprep.subr.bf16.mxu0 %v1333
    %1788 = vmatpush1.bf16.msra.mxu0 %v1332
    %1789 = vmatprep.subr.bf16.mxu0 %v1327
    %1790 = vmatpush1.bf16.msra.mxu0 %v1326
    %1791 = vmatprep.subr.bf16.mxu0 %v1321
    %1792 = vmatpush1.bf16.msra.mxu0 %v1320
    %1793 = vmatprep.subr.bf16.mxu0 %v1315
    %1794 = vmatpush1.bf16.msra.mxu0 %v1314
    %1795 = vmatprep.subr.bf16.mxu0 %v1309
    %1796 = vmatpush1.bf16.msra.mxu0 %v1308
    %1797 = vmatprep.subr.bf16.mxu0 %v1303
    %1798 = vmatpush1.bf16.msra.mxu0 %v1302
    %1799 = vmatprep.subr.bf16.mxu0 %v1297
    %1800 = vmatpush1.bf16.msra.mxu0 %v1296
    %1801 = vmatprep.subr.bf16.mxu0 %v1387
    %1802 = vmatpush2.bf16.msra.mxu0 %v1386
    %1803 = vmatprep.subr.bf16.mxu0 %v1381
    %1804 = vmatpush2.bf16.msra.mxu0 %v1380
    %1805 = vmatprep.subr.bf16.mxu0 %v1375
    %1806 = vmatpush2.bf16.msra.mxu0 %v1374
    %1807 = vmatprep.subr.bf16.mxu0 %v1369
    %1808 = vmatpush2.bf16.msra.mxu0 %v1368
    %1809 = vmatprep.subr.bf16.mxu0 %v1363
    %1810 = vmatpush2.bf16.msra.mxu0 %v1362
    %1811 = vmatprep.subr.bf16.mxu0 %v1357
    %1812 = vmatpush2.bf16.msra.mxu0 %v1356
    %1813 = vmatprep.subr.bf16.mxu0 %v1351
    %1814 = vmatpush2.bf16.msra.mxu0 %v1350
    %1815 = vmatprep.subr.bf16.mxu0 %v1345
    %1816 = vmatpush2.bf16.msra.mxu0 %v1344
    %1817 = vmatprep.mubr.bf16.mxu0 %v615
    %1818 = vmatmul.mubr.bf16.gmra.mxu0 %v614
    %v1819 = vpop.f32.mrf.mxu0
    %v1820 = vadd.f32 %v1779, %v1819
    %v1821 = vpop.f32.mrf.mxu0
    %v1822 = vadd.f32 %v1781, %v1821
    %v1823 = vpop.f32.mrf.mxu0
    %v1824 = vpop.f32.mrf.mxu0
    %1825 = vdwg.mxu0
    %v1826 = vrot.slane %v1656, 4
    %v1827 = vadd.f32 %v1656, %v1826
    %v1828 = vrot.slane %v1827, 2
    %v1829 = vadd.f32 %v1827, %v1828
    %v1830 = vrot.slane %v1829, 1
    %v1831 = vadd.f32 %v1829, %v1830
    %v1832 = vrot.slane %v1658, 4
    %v1833 = vadd.f32 %v1658, %v1832
    %v1834 = vrot.slane %v1833, 2
    %v1835 = vadd.f32 %v1833, %v1834
    %v1836 = vrot.slane %v1835, 1
    %v1837 = vadd.f32 %v1835, %v1836
    %v1838 = vrot.slane %v1738, 4
    %v1839 = vadd.f32 %v1738, %v1838
    %v1840 = vrot.slane %v1839, 2
    %v1841 = vadd.f32 %v1839, %v1840
    %v1842 = vrot.slane %v1841, 1
    %v1843 = vadd.f32 %v1841, %v1842
    %v1844 = vrot.slane %v1740, 4
    %v1845 = vadd.f32 %v1740, %v1844
    %v1846 = vrot.slane %v1845, 2
    %v1847 = vadd.f32 %v1845, %v1846
    %v1848 = vrot.slane %v1847, 1
    %v1849 = vadd.f32 %v1847, %v1848
    %v1850 = vrot.slane %v1820, 4
    %v1851 = vadd.f32 %v1820, %v1850
    %v1852 = vrot.slane %v1851, 2
    %v1853 = vadd.f32 %v1851, %v1852
    %v1854 = vrot.slane %v1853, 1
    %v1855 = vadd.f32 %v1853, %v1854
    %v1856 = vrot.slane %v1822, 4
    %v1857 = vadd.f32 %v1822, %v1856
    %v1858 = vrot.slane %v1857, 2
    %v1859 = vadd.f32 %v1857, %v1858
    %v1860 = vrot.slane %v1859, 1
    %v1861 = vadd.f32 %v1859, %v1860
    %v1862 = vrcp.pop 8.0
    %v1863 = vmul.f32 %v1831, %v1862
    %v1864 = vmul.f32 %v1837, %v1862
    %v1865 = vmul.f32 %v1843, %v1862
    %v1866 = vmul.f32 %v1849, %v1862
    %v1867 = vmul.f32 %v1855, %v1862
    %v1868 = vmul.f32 %v1861, %v1862
    %v1869 = vsub.f32 %v1656, %v1863
    %v1870 = vsub.f32 %v1658, %v1864
    %v1871 = vsub.f32 %v1738, %v1865
    %v1872 = vsub.f32 %v1740, %v1866
    %v1873 = vsub.f32 %v1820, %v1867
    %v1874 = vsub.f32 %v1822, %v1868
    %v1875 = vmul.f32 %v1869, %v1869
    %v1876 = vmul.f32 %v1870, %v1870
    %v1877 = vmul.f32 %v1871, %v1871
    %v1878 = vmul.f32 %v1872, %v1872
    %v1879 = vmul.f32 %v1873, %v1873
    %v1880 = vmul.f32 %v1874, %v1874
    %v1881 = vrot.slane %v1875, 4
    %v1882 = vadd.f32 %v1875, %v1881
    %v1883 = vrot.slane %v1882, 2
    %v1884 = vadd.f32 %v1882, %v1883
    %v1885 = vrot.slane %v1884, 1
    %v1886 = vadd.f32 %v1884, %v1885
    %v1887 = vrot.slane %v1876, 4
    %v1888 = vadd.f32 %v1876, %v1887
    %v1889 = vrot.slane %v1888, 2
    %v1890 = vadd.f32 %v1888, %v1889
    %v1891 = vrot.slane %v1890, 1
    %v1892 = vadd.f32 %v1890, %v1891
    %v1893 = vrot.slane %v1877, 4
    %v1894 = vadd.f32 %v1877, %v1893
    %v1895 = vrot.slane %v1894, 2
    %v1896 = vadd.f32 %v1894, %v1895
    %v1897 = vrot.slane %v1896, 1
    %v1898 = vadd.f32 %v1896, %v1897
    %v1899 = vrot.slane %v1878, 4
    %v1900 = vadd.f32 %v1878, %v1899
    %v1901 = vrot.slane %v1900, 2
    %v1902 = vadd.f32 %v1900, %v1901
    %v1903 = vrot.slane %v1902, 1
    %v1904 = vadd.f32 %v1902, %v1903
    %v1905 = vrot.slane %v1879, 4
    %v1906 = vadd.f32 %v1879, %v1905
    %v1907 = vrot.slane %v1906, 2
    %v1908 = vadd.f32 %v1906, %v1907
    %v1909 = vrot.slane %v1908, 1
    %v1910 = vadd.f32 %v1908, %v1909
    %v1911 = vrot.slane %v1880, 4
    %v1912 = vadd.f32 %v1880, %v1911
    %v1913 = vrot.slane %v1912, 2
    %v1914 = vadd.f32 %v1912, %v1913
    %v1915 = vrot.slane %v1914, 1
    %v1916 = vadd.f32 %v1914, %v1915
    %v1917 = vmul.f32 %v1886, %v1862
    %v1918 = vmul.f32 %v1892, %v1862
    %v1919 = vmul.f32 %v1898, %v1862
    %v1920 = vmul.f32 %v1904, %v1862
    %v1921 = vmul.f32 %v1910, %v1862
    %v1922 = vmul.f32 %v1916, %v1862
    %v1923 = vadd.f32 %v1917, 1e-05
    %v1924 = vadd.f32 %v1918, 1e-05
    %v1925 = vadd.f32 %v1919, 1e-05
    %v1926 = vadd.f32 %v1920, 1e-05
    %v1927 = vadd.f32 %v1921, 1e-05
    %v1928 = vadd.f32 %v1922, 1e-05
    %v1929 = vrsqrt.pop %v1923
    %v1930 = vrsqrt.pop %v1924
    %v1931 = vrsqrt.pop %v1925
    %v1932 = vrsqrt.pop %v1926
    %v1933 = vrsqrt.pop %v1927
    %v1934 = vrsqrt.pop %v1928
    %v1935 = vmul.f32 %v1869, %v1929
    %v1936 = vmul.f32 %v1870, %v1930
    %v1937 = vmul.f32 %v1871, %v1931
    %v1938 = vmul.f32 %v1872, %v1932
    %v1939 = vmul.f32 %v1873, %v1933
    %v1940 = vmul.f32 %v1874, %v1934
    %v1941 = vlaneseq
    %v1942 = vshrl.u32 %v1941, 7
    %v1943 = vsub.s32 1, %v1942
    %v1944 = vrot.slane %v258, %v1943
    %v1945 = vlaneseq
    %v1946 = vshrl.u32 %v1945, 7
    %v1947 = vsub.s32 5, %v1946
    %v1948 = vrot.slane %v258, %v1947
    %v1949 = vlaneseq
    %v1950 = vshrl.u32 %v1949, 7
    %v1951 = vsub.s32 1, %v1950
    %v1952 = vrot.slane %v259, %v1951
    %v1953 = vlaneseq
    %v1954 = vshrl.u32 %v1953, 7
    %v1955 = vsub.s32 5, %v1954
    %v1956 = vrot.slane %v259, %v1955
    %v1957 = vlaneseq
    %v1958 = vshrl.u32 %v1957, 7
    %v1959 = vsub.s32 1, %v1958
    %v1960 = vrot.slane %v260, %v1959
    %v1961 = vlaneseq
    %v1962 = vshrl.u32 %v1961, 7
    %v1963 = vsub.s32 5, %v1962
    %v1964 = vrot.slane %v260, %v1963
    %v1971 = vlaneseq
    %v1972 = vshrl.u32 %v1971, 7
    %v1973 = vsub.s32 1, %v1972
    %v1974 = vrot.slane %v1944, %v1973
    %v1975 = vlaneseq
    %v1976 = vshrl.u32 %v1975, 7
    %v1977 = vsub.s32 1, %v1976
    %v1978 = vrot.slane %v1948, %v1977
    %v1979 = vlaneseq
    %v1980 = vshrl.u32 %v1979, 7
    %v1981 = vsub.s32 1, %v1980
    %v1982 = vrot.slane %v1952, %v1981
    %v1983 = vlaneseq
    %v1984 = vshrl.u32 %v1983, 7
    %v1985 = vsub.s32 1, %v1984
    %v1986 = vrot.slane %v1956, %v1985
    %v1987 = vlaneseq
    %v1988 = vshrl.u32 %v1987, 7
    %v1989 = vsub.s32 1, %v1988
    %v1990 = vrot.slane %v1960, %v1989
    %v1991 = vlaneseq
    %v1992 = vshrl.u32 %v1991, 7
    %v1993 = vsub.s32 1, %v1992
    %v1994 = vrot.slane %v1964, %v1993
    %v1995 = vmul.f32 %v1935, %v1974
    %v1996 = vmul.f32 %v1936, %v1978
    %v1997 = vmul.f32 %v1937, %v1982
    %v1998 = vmul.f32 %v1938, %v1986
    %v1999 = vmul.f32 %v1939, %v1990
    %v2000 = vmul.f32 %v1940, %v1994
    %v2001 = vlaneseq
    %v2002 = vshrl.u32 %v2001, 7
    %v2003 = vsub.s32 2, %v2002
    %v2004 = vrot.slane %v258, %v2003
    %v2005 = vlaneseq
    %v2006 = vshrl.u32 %v2005, 7
    %v2007 = vsub.s32 6, %v2006
    %v2008 = vrot.slane %v258, %v2007
    %v2009 = vlaneseq
    %v2010 = vshrl.u32 %v2009, 7
    %v2011 = vsub.s32 2, %v2010
    %v2012 = vrot.slane %v259, %v2011
    %v2013 = vlaneseq
    %v2014 = vshrl.u32 %v2013, 7
    %v2015 = vsub.s32 6, %v2014
    %v2016 = vrot.slane %v259, %v2015
    %v2017 = vlaneseq
    %v2018 = vshrl.u32 %v2017, 7
    %v2019 = vsub.s32 2, %v2018
    %v2020 = vrot.slane %v260, %v2019
    %v2021 = vlaneseq
    %v2022 = vshrl.u32 %v2021, 7
    %v2023 = vsub.s32 6, %v2022
    %v2024 = vrot.slane %v260, %v2023
    %v2031 = vlaneseq
    %v2032 = vshrl.u32 %v2031, 7
    %v2033 = vsub.s32 2, %v2032
    %v2034 = vrot.slane %v2004, %v2033
    %v2035 = vlaneseq
    %v2036 = vshrl.u32 %v2035, 7
    %v2037 = vsub.s32 2, %v2036
    %v2038 = vrot.slane %v2008, %v2037
    %v2039 = vlaneseq
    %v2040 = vshrl.u32 %v2039, 7
    %v2041 = vsub.s32 2, %v2040
    %v2042 = vrot.slane %v2012, %v2041
    %v2043 = vlaneseq
    %v2044 = vshrl.u32 %v2043, 7
    %v2045 = vsub.s32 2, %v2044
    %v2046 = vrot.slane %v2016, %v2045
    %v2047 = vlaneseq
    %v2048 = vshrl.u32 %v2047, 7
    %v2049 = vsub.s32 2, %v2048
    %v2050 = vrot.slane %v2020, %v2049
    %v2051 = vlaneseq
    %v2052 = vshrl.u32 %v2051, 7
    %v2053 = vsub.s32 2, %v2052
    %v2054 = vrot.slane %v2024, %v2053
    %v2055 = vadd.f32 %v1995, %v2034
    %v2056 = vadd.f32 %v1996, %v2038
    %v2057 = vadd.f32 %v1997, %v2042
    %v2058 = vadd.f32 %v1998, %v2046
    %v2059 = vadd.f32 %v1999, %v2050
    %v2060 = vadd.f32 %v2000, %v2054
    %v2061 = vmax.f32 %v2055, 0.0
    %v2062 = vmax.f32 %v2056, 0.0
    %v2063 = vmax.f32 %v2057, 0.0
    %v2064 = vmax.f32 %v2058, 0.0
    %v2065 = vmax.f32 %v2059, 0.0
    %v2066 = vmax.f32 %v2060, 0.0
    %v2067 = vpack.c.bf16 %v2061, %v2061
    %v2068 = vpack.c.bf16 %v2062, %v2062
    %v2069 = vpack.c.bf16 %v2063, %v2063
    %v2070 = vpack.c.bf16 %v2064, %v2064
    %v2071 = vpack.c.bf16 %v2065, %v2065
    %v2072 = vpack.c.bf16 %v2066, %v2066
    %v2073 = vlaneseq
    %v2074 = vshrl.u32 %v2073, 7
    %v2075 = vsub.s32 3, %v2074
    %v2076 = vrot.slane %v258, %v2075
    %v2077 = vlaneseq
    %v2078 = vshrl.u32 %v2077, 7
    %v2079 = vsub.s32 7, %v2078
    %v2080 = vrot.slane %v258, %v2079
    %v2081 = vlaneseq
    %v2082 = vshrl.u32 %v2081, 7
    %v2083 = vsub.s32 3, %v2082
    %v2084 = vrot.slane %v259, %v2083
    %v2085 = vlaneseq
    %v2086 = vshrl.u32 %v2085, 7
    %v2087 = vsub.s32 7, %v2086
    %v2088 = vrot.slane %v259, %v2087
    %v2089 = vlaneseq
    %v2090 = vshrl.u32 %v2089, 7
    %v2091 = vsub.s32 3, %v2090
    %v2092 = vrot.slane %v260, %v2091
    %v2093 = vlaneseq
    %v2094 = vshrl.u32 %v2093, 7
    %v2095 = vsub.s32 7, %v2094
    %v2096 = vrot.slane %v260, %v2095
    %v2103 = vlaneseq
    %v2104 = vshrl.u32 %v2103, 7
    %v2105 = vsub.s32 3, %v2104
    %v2106 = vrot.slane %v2076, %v2105
    %v2107 = vlaneseq
    %v2108 = vshrl.u32 %v2107, 7
    %v2109 = vsub.s32 3, %v2108
    %v2110 = vrot.slane %v2080, %v2109
    %v2111 = vlaneseq
    %v2112 = vshrl.u32 %v2111, 7
    %v2113 = vsub.s32 3, %v2112
    %v2114 = vrot.slane %v2084, %v2113
    %v2115 = vlaneseq
    %v2116 = vshrl.u32 %v2115, 7
    %v2117 = vsub.s32 3, %v2116
    %v2118 = vrot.slane %v2088, %v2117
    %v2119 = vlaneseq
    %v2120 = vshrl.u32 %v2119, 7
    %v2121 = vsub.s32 3, %v2120
    %v2122 = vrot.slane %v2092, %v2121
    %v2123 = vlaneseq
    %v2124 = vshrl.u32 %v2123, 7
    %v2125 = vsub.s32 3, %v2124
    %v2126 = vrot.slane %v2096, %v2125
    %v2415 = vunpack.c.l.b16 %v261
    %v2416 = vunpack.c.h.b16 %v261
    %v2417 = vunpack.c.l.b16 %v262
    %v2418 = vunpack.c.h.b16 %v262
    %v2419 = vunpack.c.l.b16 %v263
    %v2420 = vunpack.c.h.b16 %v263
    %v2421 = vunpack.c.l.b16 %v264
    %v2422 = vunpack.c.h.b16 %v264
    %v2423 = vunpack.c.l.b16 %v265
    %v2424 = vunpack.c.h.b16 %v265
    %v2425 = vunpack.c.l.b16 %v266
    %v2426 = vunpack.c.h.b16 %v266
    %v2427 = vunpack.c.l.b16 %v267
    %v2428 = vunpack.c.h.b16 %v267
    %v2429 = vunpack.c.l.b16 %v268
    %v2430 = vunpack.c.h.b16 %v268
    %v2431 = vunpack.c.l.b16 %v269
    %v2432 = vunpack.c.h.b16 %v269
    %v2433 = vunpack.c.l.b16 %v270
    %v2434 = vunpack.c.h.b16 %v270
    %v2435 = vunpack.c.l.b16 %v271
    %v2436 = vunpack.c.h.b16 %v271
    %v2437 = vunpack.c.l.b16 %v272
    %v2438 = vunpack.c.h.b16 %v272
    %v2439 = vunpack.c.l.b16 %v273
    %v2440 = vunpack.c.h.b16 %v273
    %v2441 = vunpack.c.l.b16 %v274
    %v2442 = vunpack.c.h.b16 %v274
    %v2443 = vunpack.c.l.b16 %v275
    %v2444 = vunpack.c.h.b16 %v275
    %v2445 = vunpack.c.l.b16 %v276
    %v2446 = vunpack.c.h.b16 %v276
    %v2447 = vunpack.c.l.b16 %v277
    %v2448 = vunpack.c.h.b16 %v277
    %v2449 = vunpack.c.l.b16 %v278
    %v2450 = vunpack.c.h.b16 %v278
    %v2451 = vunpack.c.l.b16 %v279
    %v2452 = vunpack.c.h.b16 %v279
    %v2453 = vunpack.c.l.b16 %v280
    %v2454 = vunpack.c.h.b16 %v280
    %v2455 = vunpack.c.l.b16 %v281
    %v2456 = vunpack.c.h.b16 %v281
    %v2457 = vunpack.c.l.b16 %v282
    %v2458 = vunpack.c.h.b16 %v282
    %v2459 = vunpack.c.l.b16 %v283
    %v2460 = vunpack.c.h.b16 %v283
    %v2461 = vunpack.c.l.b16 %v284
    %v2462 = vunpack.c.h.b16 %v284
    %v2463 = vunpack.c.l.b16 %v285
    %v2464 = vunpack.c.h.b16 %v285
    %v2465 = vunpack.c.l.b16 %v286
    %v2466 = vunpack.c.h.b16 %v286
    %v2467 = vunpack.c.l.b16 %v287
    %v2468 = vunpack.c.h.b16 %v287
    %v2469 = vunpack.c.l.b16 %v288
    %v2470 = vunpack.c.h.b16 %v288
    %v2471 = vunpack.c.l.b16 %v289
    %v2472 = vunpack.c.h.b16 %v289
    %v2473 = vunpack.c.l.b16 %v290
    %v2474 = vunpack.c.h.b16 %v290
    %v2475 = vunpack.c.l.b16 %v291
    %v2476 = vunpack.c.h.b16 %v291
    %v2477 = vunpack.c.l.b16 %v292
    %v2478 = vunpack.c.h.b16 %v292
    %v2479 = vunpack.c.l.b16 %v293
    %v2480 = vunpack.c.h.b16 %v293
    %v2481 = vunpack.c.l.b16 %v294
    %v2482 = vunpack.c.h.b16 %v294
    %v2483 = vunpack.c.l.b16 %v295
    %v2484 = vunpack.c.h.b16 %v295
    %v2485 = vunpack.c.l.b16 %v296
    %v2486 = vunpack.c.h.b16 %v296
    %v2487 = vunpack.c.l.b16 %v297
    %v2488 = vunpack.c.h.b16 %v297
    %v2489 = vunpack.c.l.b16 %v298
    %v2490 = vunpack.c.h.b16 %v298
    %v2491 = vunpack.c.l.b16 %v299
    %v2492 = vunpack.c.h.b16 %v299
    %v2493 = vunpack.c.l.b16 %v300
    %v2494 = vunpack.c.h.b16 %v300
    %v2495 = vunpack.c.l.b16 %v301
    %v2496 = vunpack.c.h.b16 %v301
    %v2497 = vunpack.c.l.b16 %v302
    %v2498 = vunpack.c.h.b16 %v302
    %v2499 = vunpack.c.l.b16 %v303
    %v2500 = vunpack.c.h.b16 %v303
    %v2501 = vunpack.c.l.b16 %v304
    %v2502 = vunpack.c.h.b16 %v304
    %v2503 = vunpack.c.l.b16 %v305
    %v2504 = vunpack.c.h.b16 %v305
    %v2505 = vunpack.c.l.b16 %v306
    %v2506 = vunpack.c.h.b16 %v306
    %v2507 = vunpack.c.l.b16 %v307
    %v2508 = vunpack.c.h.b16 %v307
    %v2509 = vunpack.c.l.b16 %v308
    %v2510 = vunpack.c.h.b16 %v308
    %v2511 = vunpack.c.l.b16 %v309
    %v2512 = vunpack.c.h.b16 %v309
    %v2513 = vunpack.c.l.b16 %v310
    %v2514 = vunpack.c.h.b16 %v310
    %v2515 = vunpack.c.l.b16 %v311
    %v2516 = vunpack.c.h.b16 %v311
    %v2517 = vunpack.c.l.b16 %v312
    %v2518 = vunpack.c.h.b16 %v312
    %v2519 = vunpack.c.l.b16 %v313
    %v2520 = vunpack.c.h.b16 %v313
    %v2521 = vunpack.c.l.b16 %v314
    %v2522 = vunpack.c.h.b16 %v314
    %v2523 = vunpack.c.l.b16 %v315
    %v2524 = vunpack.c.h.b16 %v315
    %v2525 = vunpack.c.l.b16 %v316
    %v2526 = vunpack.c.h.b16 %v316
    %v2527 = vunpack.c.l.b16 %v317
    %v2528 = vunpack.c.h.b16 %v317
    %v2529 = vunpack.c.l.b16 %v318
    %v2530 = vunpack.c.h.b16 %v318
    %v2531 = vunpack.c.l.b16 %v319
    %v2532 = vunpack.c.h.b16 %v319
    %v2533 = vunpack.c.l.b16 %v320
    %v2534 = vunpack.c.h.b16 %v320
    %v2535 = vunpack.c.l.b16 %v321
    %v2536 = vunpack.c.h.b16 %v321
    %v2537 = vunpack.c.l.b16 %v322
    %v2538 = vunpack.c.h.b16 %v322
    %v2539 = vunpack.c.l.b16 %v323
    %v2540 = vunpack.c.h.b16 %v323
    %v2541 = vunpack.c.l.b16 %v324
    %v2542 = vunpack.c.h.b16 %v324
    %v2543 = vunpack.c.l.b16 %v325
    %v2544 = vunpack.c.h.b16 %v325
    %v2545 = vunpack.c.l.b16 %v326
    %v2546 = vunpack.c.h.b16 %v326
    %v2547 = vunpack.c.l.b16 %v327
    %v2548 = vunpack.c.h.b16 %v327
    %v2549 = vunpack.c.l.b16 %v328
    %v2550 = vunpack.c.h.b16 %v328
    %v2551 = vunpack.c.l.b16 %v329
    %v2552 = vunpack.c.h.b16 %v329
    %v2553 = vunpack.c.l.b16 %v330
    %v2554 = vunpack.c.h.b16 %v330
    %v2555 = vunpack.c.l.b16 %v331
    %v2556 = vunpack.c.h.b16 %v331
    %v2557 = vunpack.c.l.b16 %v332
    %v2558 = vunpack.c.h.b16 %v332
    %v2559 = vunpack.c.l.b16 %v333
    %v2560 = vunpack.c.h.b16 %v333
    %v2561 = vunpack.c.l.b16 %v334
    %v2562 = vunpack.c.h.b16 %v334
    %v2563 = vunpack.c.l.b16 %v335
    %v2564 = vunpack.c.h.b16 %v335
    %v2565 = vunpack.c.l.b16 %v336
    %v2566 = vunpack.c.h.b16 %v336
    %v2567 = vunpack.c.l.b16 %v337
    %v2568 = vunpack.c.h.b16 %v337
    %v2569 = vunpack.c.l.b16 %v338
    %v2570 = vunpack.c.h.b16 %v338
    %v2571 = vunpack.c.l.b16 %v339
    %v2572 = vunpack.c.h.b16 %v339
    %v2573 = vunpack.c.l.b16 %v340
    %v2574 = vunpack.c.h.b16 %v340
    %v2575 = vunpack.c.l.b16 %v341
    %v2576 = vunpack.c.h.b16 %v341
    %v2577 = vunpack.c.l.b16 %v342
    %v2578 = vunpack.c.h.b16 %v342
    %v2579 = vunpack.c.l.b16 %v343
    %v2580 = vunpack.c.h.b16 %v343
    %v2581 = vunpack.c.l.b16 %v344
    %v2582 = vunpack.c.h.b16 %v344
    %v2583 = vunpack.c.l.b16 %v345
    %v2584 = vunpack.c.h.b16 %v345
    %v2585 = vunpack.c.l.b16 %v346
    %v2586 = vunpack.c.h.b16 %v346
    %v2587 = vunpack.c.l.b16 %v347
    %v2588 = vunpack.c.h.b16 %v347
    %v2589 = vunpack.c.l.b16 %v348
    %v2590 = vunpack.c.h.b16 %v348
    %v2591 = vunpack.c.l.b16 %v349
    %v2592 = vunpack.c.h.b16 %v349
    %v2593 = vunpack.c.l.b16 %v350
    %v2594 = vunpack.c.h.b16 %v350
    %v2595 = vunpack.c.l.b16 %v351
    %v2596 = vunpack.c.h.b16 %v351
    %v2597 = vunpack.c.l.b16 %v352
    %v2598 = vunpack.c.h.b16 %v352
    %v2599 = vunpack.c.l.b16 %v353
    %v2600 = vunpack.c.h.b16 %v353
    %v2601 = vunpack.c.l.b16 %v354
    %v2602 = vunpack.c.h.b16 %v354
    %v2603 = vunpack.c.l.b16 %v355
    %v2604 = vunpack.c.h.b16 %v355
    %v2605 = vunpack.c.l.b16 %v356
    %v2606 = vunpack.c.h.b16 %v356
    %v2607 = vunpack.c.l.b16 %v357
    %v2608 = vunpack.c.h.b16 %v357
    %v2609 = vunpack.c.l.b16 %v358
    %v2610 = vunpack.c.h.b16 %v358
    %v2611 = vunpack.c.l.b16 %v359
    %v2612 = vunpack.c.h.b16 %v359
    %v2613 = vunpack.c.l.b16 %v360
    %v2614 = vunpack.c.h.b16 %v360
    %v2615 = vunpack.c.l.b16 %v361
    %v2616 = vunpack.c.h.b16 %v361
    %v2617 = vunpack.c.l.b16 %v362
    %v2618 = vunpack.c.h.b16 %v362
    %v2619 = vunpack.c.l.b16 %v363
    %v2620 = vunpack.c.h.b16 %v363
    %v2621 = vunpack.c.l.b16 %v364
    %v2622 = vunpack.c.h.b16 %v364
    %v2623 = vunpack.c.l.b16 %v365
    %v2624 = vunpack.c.h.b16 %v365
    %v2625 = vunpack.c.l.b16 %v366
    %v2626 = vunpack.c.h.b16 %v366
    %v2627 = vunpack.c.l.b16 %v367
    %v2628 = vunpack.c.h.b16 %v367
    %v2629 = vunpack.c.l.b16 %v368
    %v2630 = vunpack.c.h.b16 %v368
    %v2631 = vunpack.c.l.b16 %v369
    %v2632 = vunpack.c.h.b16 %v369
    %v2633 = vunpack.c.l.b16 %v370
    %v2634 = vunpack.c.h.b16 %v370
    %v2635 = vunpack.c.l.b16 %v371
    %v2636 = vunpack.c.h.b16 %v371
    %v2637 = vunpack.c.l.b16 %v372
    %v2638 = vunpack.c.h.b16 %v372
    %v2639 = vunpack.c.l.b16 %v373
    %v2640 = vunpack.c.h.b16 %v373
    %v2641 = vunpack.c.l.b16 %v374
    %v2642 = vunpack.c.h.b16 %v374
    %v2643 = vunpack.c.l.b16 %v375
    %v2644 = vunpack.c.h.b16 %v375
    %v2645 = vunpack.c.l.b16 %v376
    %v2646 = vunpack.c.h.b16 %v376
    %v2647 = vunpack.c.l.b16 %v377
    %v2648 = vunpack.c.h.b16 %v377
    %v2649 = vunpack.c.l.b16 %v378
    %v2650 = vunpack.c.h.b16 %v378
    %v2651 = vunpack.c.l.b16 %v379
    %v2652 = vunpack.c.h.b16 %v379
    %v2653 = vunpack.c.l.b16 %v380
    %v2654 = vunpack.c.h.b16 %v380
    %v2655 = vunpack.c.l.b16 %v381
    %v2656 = vunpack.c.h.b16 %v381
    %v2657 = vunpack.c.l.b16 %v382
    %v2658 = vunpack.c.h.b16 %v382
    %v2659 = vunpack.c.l.b16 %v383
    %v2660 = vunpack.c.h.b16 %v383
    %v2661 = vunpack.c.l.b16 %v384
    %v2662 = vunpack.c.h.b16 %v384
    %v2663 = vunpack.c.l.b16 %v385
    %v2664 = vunpack.c.h.b16 %v385
    %v2665 = vunpack.c.l.b16 %v386
    %v2666 = vunpack.c.h.b16 %v386
    %v2667 = vunpack.c.l.b16 %v387
    %v2668 = vunpack.c.h.b16 %v387
    %v2669 = vunpack.c.l.b16 %v388
    %v2670 = vunpack.c.h.b16 %v388
    %v2671 = vunpack.c.l.b16 %v389
    %v2672 = vunpack.c.h.b16 %v389
    %v2673 = vunpack.c.l.b16 %v390
    %v2674 = vunpack.c.h.b16 %v390
    %v2675 = vunpack.c.l.b16 %v391
    %v2676 = vunpack.c.h.b16 %v391
    %v2677 = vunpack.c.l.b16 %v392
    %v2678 = vunpack.c.h.b16 %v392
    %v2679 = vunpack.c.l.b16 %v393
    %v2680 = vunpack.c.h.b16 %v393
    %v2681 = vunpack.c.l.b16 %v394
    %v2682 = vunpack.c.h.b16 %v394
    %v2683 = vunpack.c.l.b16 %v395
    %v2684 = vunpack.c.h.b16 %v395
    %v2685 = vunpack.c.l.b16 %v396
    %v2686 = vunpack.c.h.b16 %v396
    %v2687 = vunpack.c.l.b16 %v397
    %v2688 = vunpack.c.h.b16 %v397
    %v2689 = vunpack.c.l.b16 %v398
    %v2690 = vunpack.c.h.b16 %v398
    %v2691 = vunpack.c.l.b16 %v399
    %v2692 = vunpack.c.h.b16 %v399
    %v2693 = vunpack.c.l.b16 %v400
    %v2694 = vunpack.c.h.b16 %v400
    %v2695 = vunpack.c.l.b16 %v401
    %v2696 = vunpack.c.h.b16 %v401
    %v2697 = vunpack.c.l.b16 %v402
    %v2698 = vunpack.c.h.b16 %v402
    %v2699 = vunpack.c.l.b16 %v403
    %v2700 = vunpack.c.h.b16 %v403
    %v2701 = vunpack.c.l.b16 %v404
    %v2702 = vunpack.c.h.b16 %v404
    %v2703 = vunpack.c.l.b16 %v405
    %v2704 = vunpack.c.h.b16 %v405
    %v2705 = vunpack.c.l.b16 %v406
    %v2706 = vunpack.c.h.b16 %v406
    %v2707 = vunpack.c.l.b16 %v407
    %v2708 = vunpack.c.h.b16 %v407
    %v2709 = vunpack.c.l.b16 %v408
    %v2710 = vunpack.c.h.b16 %v408
    %v2711 = vunpack.c.l.b16 %v409
    %v2712 = vunpack.c.h.b16 %v409
    %v2713 = vunpack.c.l.b16 %v410
    %v2714 = vunpack.c.h.b16 %v410
    %v2715 = vunpack.c.l.b16 %v411
    %v2716 = vunpack.c.h.b16 %v411
    %v2717 = vunpack.c.l.b16 %v412
    %v2718 = vunpack.c.h.b16 %v412
    %v2719 = vunpack.c.l.b16 %v413
    %v2720 = vunpack.c.h.b16 %v413
    %v2721 = vunpack.c.l.b16 %v414
    %v2722 = vunpack.c.h.b16 %v414
    %v2723 = vunpack.c.l.b16 %v415
    %v2724 = vunpack.c.h.b16 %v415
    %v2725 = vunpack.c.l.b16 %v416
    %v2726 = vunpack.c.h.b16 %v416
    %v2727 = vunpack.c.l.b16 %v417
    %v2728 = vunpack.c.h.b16 %v417
    %v2729 = vunpack.c.l.b16 %v418
    %v2730 = vunpack.c.h.b16 %v418
    %v2731 = vunpack.c.l.b16 %v419
    %v2732 = vunpack.c.h.b16 %v419
    %v2733 = vunpack.c.l.b16 %v420
    %v2734 = vunpack.c.h.b16 %v420
    %v2735 = vunpack.c.l.b16 %v421
    %v2736 = vunpack.c.h.b16 %v421
    %v2737 = vunpack.c.l.b16 %v422
    %v2738 = vunpack.c.h.b16 %v422
    %v2739 = vunpack.c.l.b16 %v423
    %v2740 = vunpack.c.h.b16 %v423
    %v2741 = vunpack.c.l.b16 %v424
    %v2742 = vunpack.c.h.b16 %v424
    %v2743 = vunpack.c.l.b16 %v425
    %v2744 = vunpack.c.h.b16 %v425
    %v2745 = vunpack.c.l.b16 %v426
    %v2746 = vunpack.c.h.b16 %v426
    %v2747 = vunpack.c.l.b16 %v427
    %v2748 = vunpack.c.h.b16 %v427
    %v2749 = vunpack.c.l.b16 %v428
    %v2750 = vunpack.c.h.b16 %v428
    %v2751 = vunpack.c.l.b16 %v429
    %v2752 = vunpack.c.h.b16 %v429
    %v2753 = vunpack.c.l.b16 %v430
    %v2754 = vunpack.c.h.b16 %v430
    %v2755 = vunpack.c.l.b16 %v431
    %v2756 = vunpack.c.h.b16 %v431
    %v2757 = vunpack.c.l.b16 %v432
    %v2758 = vunpack.c.h.b16 %v432
    %v2759 = vunpack.c.l.b16 %v433
    %v2760 = vunpack.c.h.b16 %v433
    %v2761 = vunpack.c.l.b16 %v434
    %v2762 = vunpack.c.h.b16 %v434
    %v2763 = vunpack.c.l.b16 %v435
    %v2764 = vunpack.c.h.b16 %v435
    %v2765 = vunpack.c.l.b16 %v436
    %v2766 = vunpack.c.h.b16 %v436
    %v2767 = vunpack.c.l.b16 %v437
    %v2768 = vunpack.c.h.b16 %v437
    %v2769 = vunpack.c.l.b16 %v438
    %v2770 = vunpack.c.h.b16 %v438
    %v2771 = vunpack.c.l.b16 %v439
    %v2772 = vunpack.c.h.b16 %v439
    %v2773 = vunpack.c.l.b16 %v440
    %v2774 = vunpack.c.h.b16 %v440
    %v2775 = vunpack.c.l.b16 %v441
    %v2776 = vunpack.c.h.b16 %v441
    %v2777 = vunpack.c.l.b16 %v442
    %v2778 = vunpack.c.h.b16 %v442
    %v2779 = vunpack.c.l.b16 %v443
    %v2780 = vunpack.c.h.b16 %v443
    %v2781 = vunpack.c.l.b16 %v444
    %v2782 = vunpack.c.h.b16 %v444
    %v2783 = vunpack.c.l.b16 %v445
    %v2784 = vunpack.c.h.b16 %v445
    %v2785 = vunpack.c.l.b16 %v446
    %v2786 = vunpack.c.h.b16 %v446
    %v2787 = vunpack.c.l.b16 %v447
    %v2788 = vunpack.c.h.b16 %v447
    %v2789 = vunpack.c.l.b16 %v448
    %v2790 = vunpack.c.h.b16 %v448
    %v2791 = vunpack.c.l.b16 %v449
    %v2792 = vunpack.c.h.b16 %v449
    %v2793 = vunpack.c.l.b16 %v450
    %v2794 = vunpack.c.h.b16 %v450
    %v2795 = vunpack.c.l.b16 %v451
    %v2796 = vunpack.c.h.b16 %v451
    %v2797 = vunpack.c.l.b16 %v452
    %v2798 = vunpack.c.h.b16 %v452
    %v2799 = vunpack.c.l.b16 %v453
    %v2800 = vunpack.c.h.b16 %v453
    %v2801 = vunpack.c.l.b16 %v454
    %v2802 = vunpack.c.h.b16 %v454
    %v2803 = vunpack.c.l.b16 %v455
    %v2804 = vunpack.c.h.b16 %v455
    %v2805 = vunpack.c.l.b16 %v456
    %v2806 = vunpack.c.h.b16 %v456
    %v2807 = vunpack.c.l.b16 %v457
    %v2808 = vunpack.c.h.b16 %v457
    %v2809 = vunpack.c.l.b16 %v458
    %v2810 = vunpack.c.h.b16 %v458
    %v2811 = vunpack.c.l.b16 %v459
    %v2812 = vunpack.c.h.b16 %v459
    %v2813 = vunpack.c.l.b16 %v460
    %v2814 = vunpack.c.h.b16 %v460
    %v2815 = vunpack.c.l.b16 %v461
    %v2816 = vunpack.c.h.b16 %v461
    %v2817 = vunpack.c.l.b16 %v462
    %v2818 = vunpack.c.h.b16 %v462
    %v2819 = vunpack.c.l.b16 %v463
    %v2820 = vunpack.c.h.b16 %v463
    %v2821 = vunpack.c.l.b16 %v464
    %v2822 = vunpack.c.h.b16 %v464
    %v2823 = vunpack.c.l.b16 %v465
    %v2824 = vunpack.c.h.b16 %v465
    %v2825 = vunpack.c.l.b16 %v466
    %v2826 = vunpack.c.h.b16 %v466
    %v2827 = vunpack.c.l.b16 %v467
    %v2828 = vunpack.c.h.b16 %v467
    %v2829 = vunpack.c.l.b16 %v468
    %v2830 = vunpack.c.h.b16 %v468
    %v2831 = vunpack.c.l.b16 %v469
    %v2832 = vunpack.c.h.b16 %v469
    %v2833 = vunpack.c.l.b16 %v470
    %v2834 = vunpack.c.h.b16 %v470
    %v2835 = vunpack.c.l.b16 %v471
    %v2836 = vunpack.c.h.b16 %v471
    %v2837 = vunpack.c.l.b16 %v472
    %v2838 = vunpack.c.h.b16 %v472
    %v2839 = vunpack.c.l.b16 %v473
    %v2840 = vunpack.c.h.b16 %v473
    %v2841 = vunpack.c.l.b16 %v474
    %v2842 = vunpack.c.h.b16 %v474
    %v2843 = vunpack.c.l.b16 %v475
    %v2844 = vunpack.c.h.b16 %v475
    %v2845 = vunpack.c.l.b16 %v476
    %v2846 = vunpack.c.h.b16 %v476
    %v2847 = vunpack.c.l.b16 %v477
    %v2848 = vunpack.c.h.b16 %v477
    %v2849 = vunpack.c.l.b16 %v478
    %v2850 = vunpack.c.h.b16 %v478
    %v2851 = vunpack.c.l.b16 %v479
    %v2852 = vunpack.c.h.b16 %v479
    %v2853 = vunpack.c.l.b16 %v480
    %v2854 = vunpack.c.h.b16 %v480
    %v2855 = vunpack.c.l.b16 %v481
    %v2856 = vunpack.c.h.b16 %v481
    %v2857 = vunpack.c.l.b16 %v482
    %v2858 = vunpack.c.h.b16 %v482
    %v2859 = vunpack.c.l.b16 %v483
    %v2860 = vunpack.c.h.b16 %v483
    %v2861 = vunpack.c.l.b16 %v484
    %v2862 = vunpack.c.h.b16 %v484
    %v2863 = vunpack.c.l.b16 %v485
    %v2864 = vunpack.c.h.b16 %v485
    %v2865 = vunpack.c.l.b16 %v486
    %v2866 = vunpack.c.h.b16 %v486
    %v2867 = vunpack.c.l.b16 %v487
    %v2868 = vunpack.c.h.b16 %v487
    %v2869 = vunpack.c.l.b16 %v488
    %v2870 = vunpack.c.h.b16 %v488
    %v2871 = vunpack.c.l.b16 %v489
    %v2872 = vunpack.c.h.b16 %v489
    %v2873 = vunpack.c.l.b16 %v490
    %v2874 = vunpack.c.h.b16 %v490
    %v2875 = vunpack.c.l.b16 %v491
    %v2876 = vunpack.c.h.b16 %v491
    %v2877 = vunpack.c.l.b16 %v492
    %v2878 = vunpack.c.h.b16 %v492
    %v2879 = vunpack.c.l.b16 %v493
    %v2880 = vunpack.c.h.b16 %v493
    %v2881 = vunpack.c.l.b16 %v494
    %v2882 = vunpack.c.h.b16 %v494
    %v2883 = vunpack.c.l.b16 %v495
    %v2884 = vunpack.c.h.b16 %v495
    %v2885 = vunpack.c.l.b16 %v496
    %v2886 = vunpack.c.h.b16 %v496
    %v2887 = vunpack.c.l.b16 %v497
    %v2888 = vunpack.c.h.b16 %v497
    %v2889 = vunpack.c.l.b16 %v498
    %v2890 = vunpack.c.h.b16 %v498
    %v2891 = vunpack.c.l.b16 %v499
    %v2892 = vunpack.c.h.b16 %v499
    %v2893 = vunpack.c.l.b16 %v500
    %v2894 = vunpack.c.h.b16 %v500
    %v2895 = vunpack.c.l.b16 %v501
    %v2896 = vunpack.c.h.b16 %v501
    %v2897 = vunpack.c.l.b16 %v502
    %v2898 = vunpack.c.h.b16 %v502
    %v2899 = vunpack.c.l.b16 %v503
    %v2900 = vunpack.c.h.b16 %v503
    %v2901 = vunpack.c.l.b16 %v504
    %v2902 = vunpack.c.h.b16 %v504
    %v2903 = vunpack.c.l.b16 %v505
    %v2904 = vunpack.c.h.b16 %v505
    %v2905 = vunpack.c.l.b16 %v506
    %v2906 = vunpack.c.h.b16 %v506
    %v2907 = vunpack.c.l.b16 %v507
    %v2908 = vunpack.c.h.b16 %v507
    %v2909 = vunpack.c.l.b16 %v508
    %v2910 = vunpack.c.h.b16 %v508
    %v2911 = vunpack.c.l.b16 %v509
    %v2912 = vunpack.c.h.b16 %v509
    %v2913 = vunpack.c.l.b16 %v510
    %v2914 = vunpack.c.h.b16 %v510
    %v2915 = vunpack.c.l.b16 %v511
    %v2916 = vunpack.c.h.b16 %v511
    %v2917 = vunpack.c.l.b16 %v512
    %v2918 = vunpack.c.h.b16 %v512
    %v2919 = vunpack.c.l.b16 %v513
    %v2920 = vunpack.c.h.b16 %v513
    %v2921 = vunpack.c.l.b16 %v514
    %v2922 = vunpack.c.h.b16 %v514
    %v2923 = vunpack.c.l.b16 %v515
    %v2924 = vunpack.c.h.b16 %v515
    %v2925 = vunpack.c.l.b16 %v516
    %v2926 = vunpack.c.h.b16 %v516
    %v2927 = vunpack.c.l.b16 %v517
    %v2928 = vunpack.c.h.b16 %v517
    %v2929 = vunpack.c.l.b16 %v518
    %v2930 = vunpack.c.h.b16 %v518
    %v2931 = vunpack.c.l.b16 %v519
    %v2932 = vunpack.c.h.b16 %v519
    %v2933 = vunpack.c.l.b16 %v520
    %v2934 = vunpack.c.h.b16 %v520
    %v2935 = vunpack.c.l.b16 %v521
    %v2936 = vunpack.c.h.b16 %v521
    %v2937 = vunpack.c.l.b16 %v522
    %v2938 = vunpack.c.h.b16 %v522
    %v2939 = vunpack.c.l.b16 %v523
    %v2940 = vunpack.c.h.b16 %v523
    %v2941 = vunpack.c.l.b16 %v524
    %v2942 = vunpack.c.h.b16 %v524
    %v2943 = vunpack.c.l.b16 %v525
    %v2944 = vunpack.c.h.b16 %v525
    %v2945 = vunpack.c.l.b16 %v526
    %v2946 = vunpack.c.h.b16 %v526
    %v2947 = vunpack.c.l.b16 %v527
    %v2948 = vunpack.c.h.b16 %v527
    %v2949 = vunpack.c.l.b16 %v528
    %v2950 = vunpack.c.h.b16 %v528
    %v2951 = vunpack.c.l.b16 %v529
    %v2952 = vunpack.c.h.b16 %v529
    %v2953 = vunpack.c.l.b16 %v530
    %v2954 = vunpack.c.h.b16 %v530
    %v2955 = vunpack.c.l.b16 %v531
    %v2956 = vunpack.c.h.b16 %v531
    %v2957 = vunpack.c.l.b16 %v532
    %v2958 = vunpack.c.h.b16 %v532
    %v2959 = vunpack.c.l.b16 %v533
    %v2960 = vunpack.c.h.b16 %v533
    %v2961 = vunpack.c.l.b16 %v534
    %v2962 = vunpack.c.h.b16 %v534
    %v2963 = vunpack.c.l.b16 %v535
    %v2964 = vunpack.c.h.b16 %v535
    %v2965 = vunpack.c.l.b16 %v536
    %v2966 = vunpack.c.h.b16 %v536
    %v2967 = vunpack.c.l.b16 %v537
    %v2968 = vunpack.c.h.b16 %v537
    %v2969 = vunpack.c.l.b16 %v538
    %v2970 = vunpack.c.h.b16 %v538
    %v2971 = vunpack.c.l.b16 %v539
    %v2972 = vunpack.c.h.b16 %v539
    %v2973 = vunpack.c.l.b16 %v540
    %v2974 = vunpack.c.h.b16 %v540
    %v2975 = vunpack.c.l.b16 %v541
    %v2976 = vunpack.c.h.b16 %v541
    %v2977 = vunpack.c.l.b16 %v542
    %v2978 = vunpack.c.h.b16 %v542
    %v2979 = vunpack.c.l.b16 %v543
    %v2980 = vunpack.c.h.b16 %v543
    %v2981 = vunpack.c.l.b16 %v544
    %v2982 = vunpack.c.h.b16 %v544
    %v2983 = vunpack.c.l.b16 %v545
    %v2984 = vunpack.c.h.b16 %v545
    %v2985 = vunpack.c.l.b16 %v546
    %v2986 = vunpack.c.h.b16 %v546
    %v2987 = vunpack.c.l.b16 %v547
    %v2988 = vunpack.c.h.b16 %v547
    %v2989 = vunpack.c.l.b16 %v548
    %v2990 = vunpack.c.h.b16 %v548
    %v2991 = vpack.c.b16 %v2421, %v2415
    %v2992 = vpack.c.b16 %v2422, %v2416
    %v2993 = vpack.c.b16 %v2423, %v2417
    %v2994 = vpack.c.b16 %v2424, %v2418
    %v2995 = vpack.c.b16 %v2425, %v2419
    %v2996 = vpack.c.b16 %v2426, %v2420
    %v2997 = vpack.c.b16 %v2433, %v2427
    %v2998 = vpack.c.b16 %v2434, %v2428
    %v2999 = vpack.c.b16 %v2435, %v2429
    %v3000 = vpack.c.b16 %v2436, %v2430
    %v3001 = vpack.c.b16 %v2437, %v2431
    %v3002 = vpack.c.b16 %v2438, %v2432
    %v3003 = vpack.c.b16 %v2445, %v2439
    %v3004 = vpack.c.b16 %v2446, %v2440
    %v3005 = vpack.c.b16 %v2447, %v2441
    %v3006 = vpack.c.b16 %v2448, %v2442
    %v3007 = vpack.c.b16 %v2449, %v2443
    %v3008 = vpack.c.b16 %v2450, %v2444
    %v3009 = vpack.c.b16 %v2457, %v2451
    %v3010 = vpack.c.b16 %v2458, %v2452
    %v3011 = vpack.c.b16 %v2459, %v2453
    %v3012 = vpack.c.b16 %v2460, %v2454
    %v3013 = vpack.c.b16 %v2461, %v2455
    %v3014 = vpack.c.b16 %v2462, %v2456
    %v3015 = vpack.c.b16 %v2469, %v2463
    %v3016 = vpack.c.b16 %v2470, %v2464
    %v3017 = vpack.c.b16 %v2471, %v2465
    %v3018 = vpack.c.b16 %v2472, %v2466
    %v3019 = vpack.c.b16 %v2473, %v2467
    %v3020 = vpack.c.b16 %v2474, %v2468
    %v3021 = vpack.c.b16 %v2481, %v2475
    %v3022 = vpack.c.b16 %v2482, %v2476
    %v3023 = vpack.c.b16 %v2483, %v2477
    %v3024 = vpack.c.b16 %v2484, %v2478
    %v3025 = vpack.c.b16 %v2485, %v2479
    %v3026 = vpack.c.b16 %v2486, %v2480
    %v3027 = vpack.c.b16 %v2493, %v2487
    %v3028 = vpack.c.b16 %v2494, %v2488
    %v3029 = vpack.c.b16 %v2495, %v2489
    %v3030 = vpack.c.b16 %v2496, %v2490
    %v3031 = vpack.c.b16 %v2497, %v2491
    %v3032 = vpack.c.b16 %v2498, %v2492
    %v3033 = vpack.c.b16 %v2505, %v2499
    %v3034 = vpack.c.b16 %v2506, %v2500
    %v3035 = vpack.c.b16 %v2507, %v2501
    %v3036 = vpack.c.b16 %v2508, %v2502
    %v3037 = vpack.c.b16 %v2509, %v2503
    %v3038 = vpack.c.b16 %v2510, %v2504
    %v3039 = vpack.c.b16 %v2517, %v2511
    %v3040 = vpack.c.b16 %v2518, %v2512
    %v3041 = vpack.c.b16 %v2519, %v2513
    %v3042 = vpack.c.b16 %v2520, %v2514
    %v3043 = vpack.c.b16 %v2521, %v2515
    %v3044 = vpack.c.b16 %v2522, %v2516
    %v3045 = vpack.c.b16 %v2529, %v2523
    %v3046 = vpack.c.b16 %v2530, %v2524
    %v3047 = vpack.c.b16 %v2531, %v2525
    %v3048 = vpack.c.b16 %v2532, %v2526
    %v3049 = vpack.c.b16 %v2533, %v2527
    %v3050 = vpack.c.b16 %v2534, %v2528
    %v3051 = vpack.c.b16 %v2541, %v2535
    %v3052 = vpack.c.b16 %v2542, %v2536
    %v3053 = vpack.c.b16 %v2543, %v2537
    %v3054 = vpack.c.b16 %v2544, %v2538
    %v3055 = vpack.c.b16 %v2545, %v2539
    %v3056 = vpack.c.b16 %v2546, %v2540
    %v3057 = vpack.c.b16 %v2553, %v2547
    %v3058 = vpack.c.b16 %v2554, %v2548
    %v3059 = vpack.c.b16 %v2555, %v2549
    %v3060 = vpack.c.b16 %v2556, %v2550
    %v3061 = vpack.c.b16 %v2557, %v2551
    %v3062 = vpack.c.b16 %v2558, %v2552
    %v3063 = vpack.c.b16 %v2565, %v2559
    %v3064 = vpack.c.b16 %v2566, %v2560
    %v3065 = vpack.c.b16 %v2567, %v2561
    %v3066 = vpack.c.b16 %v2568, %v2562
    %v3067 = vpack.c.b16 %v2569, %v2563
    %v3068 = vpack.c.b16 %v2570, %v2564
    %v3069 = vpack.c.b16 %v2577, %v2571
    %v3070 = vpack.c.b16 %v2578, %v2572
    %v3071 = vpack.c.b16 %v2579, %v2573
    %v3072 = vpack.c.b16 %v2580, %v2574
    %v3073 = vpack.c.b16 %v2581, %v2575
    %v3074 = vpack.c.b16 %v2582, %v2576
    %v3075 = vpack.c.b16 %v2589, %v2583
    %v3076 = vpack.c.b16 %v2590, %v2584
    %v3077 = vpack.c.b16 %v2591, %v2585
    %v3078 = vpack.c.b16 %v2592, %v2586
    %v3079 = vpack.c.b16 %v2593, %v2587
    %v3080 = vpack.c.b16 %v2594, %v2588
    %v3081 = vpack.c.b16 %v2601, %v2595
    %v3082 = vpack.c.b16 %v2602, %v2596
    %v3083 = vpack.c.b16 %v2603, %v2597
    %v3084 = vpack.c.b16 %v2604, %v2598
    %v3085 = vpack.c.b16 %v2605, %v2599
    %v3086 = vpack.c.b16 %v2606, %v2600
    %v3087 = vpack.c.b16 %v2613, %v2607
    %v3088 = vpack.c.b16 %v2614, %v2608
    %v3089 = vpack.c.b16 %v2615, %v2609
    %v3090 = vpack.c.b16 %v2616, %v2610
    %v3091 = vpack.c.b16 %v2617, %v2611
    %v3092 = vpack.c.b16 %v2618, %v2612
    %v3093 = vpack.c.b16 %v2625, %v2619
    %v3094 = vpack.c.b16 %v2626, %v2620
    %v3095 = vpack.c.b16 %v2627, %v2621
    %v3096 = vpack.c.b16 %v2628, %v2622
    %v3097 = vpack.c.b16 %v2629, %v2623
    %v3098 = vpack.c.b16 %v2630, %v2624
    %v3099 = vpack.c.b16 %v2637, %v2631
    %v3100 = vpack.c.b16 %v2638, %v2632
    %v3101 = vpack.c.b16 %v2639, %v2633
    %v3102 = vpack.c.b16 %v2640, %v2634
    %v3103 = vpack.c.b16 %v2641, %v2635
    %v3104 = vpack.c.b16 %v2642, %v2636
    %v3105 = vpack.c.b16 %v2649, %v2643
    %v3106 = vpack.c.b16 %v2650, %v2644
    %v3107 = vpack.c.b16 %v2651, %v2645
    %v3108 = vpack.c.b16 %v2652, %v2646
    %v3109 = vpack.c.b16 %v2653, %v2647
    %v3110 = vpack.c.b16 %v2654, %v2648
    %v3111 = vpack.c.b16 %v2661, %v2655
    %v3112 = vpack.c.b16 %v2662, %v2656
    %v3113 = vpack.c.b16 %v2663, %v2657
    %v3114 = vpack.c.b16 %v2664, %v2658
    %v3115 = vpack.c.b16 %v2665, %v2659
    %v3116 = vpack.c.b16 %v2666, %v2660
    %v3117 = vpack.c.b16 %v2673, %v2667
    %v3118 = vpack.c.b16 %v2674, %v2668
    %v3119 = vpack.c.b16 %v2675, %v2669
    %v3120 = vpack.c.b16 %v2676, %v2670
    %v3121 = vpack.c.b16 %v2677, %v2671
    %v3122 = vpack.c.b16 %v2678, %v2672
    %v3123 = vpack.c.b16 %v2685, %v2679
    %v3124 = vpack.c.b16 %v2686, %v2680
    %v3125 = vpack.c.b16 %v2687, %v2681
    %v3126 = vpack.c.b16 %v2688, %v2682
    %v3127 = vpack.c.b16 %v2689, %v2683
    %v3128 = vpack.c.b16 %v2690, %v2684
    %v3129 = vpack.c.b16 %v2697, %v2691
    %v3130 = vpack.c.b16 %v2698, %v2692
    %v3131 = vpack.c.b16 %v2699, %v2693
    %v3132 = vpack.c.b16 %v2700, %v2694
    %v3133 = vpack.c.b16 %v2701, %v2695
    %v3134 = vpack.c.b16 %v2702, %v2696
    %v3135 = vpack.c.b16 %v2709, %v2703
    %v3136 = vpack.c.b16 %v2710, %v2704
    %v3137 = vpack.c.b16 %v2711, %v2705
    %v3138 = vpack.c.b16 %v2712, %v2706
    %v3139 = vpack.c.b16 %v2713, %v2707
    %v3140 = vpack.c.b16 %v2714, %v2708
    %v3141 = vpack.c.b16 %v2721, %v2715
    %v3142 = vpack.c.b16 %v2722, %v2716
    %v3143 = vpack.c.b16 %v2723, %v2717
    %v3144 = vpack.c.b16 %v2724, %v2718
    %v3145 = vpack.c.b16 %v2725, %v2719
    %v3146 = vpack.c.b16 %v2726, %v2720
    %v3147 = vpack.c.b16 %v2733, %v2727
    %v3148 = vpack.c.b16 %v2734, %v2728
    %v3149 = vpack.c.b16 %v2735, %v2729
    %v3150 = vpack.c.b16 %v2736, %v2730
    %v3151 = vpack.c.b16 %v2737, %v2731
    %v3152 = vpack.c.b16 %v2738, %v2732
    %v3153 = vpack.c.b16 %v2745, %v2739
    %v3154 = vpack.c.b16 %v2746, %v2740
    %v3155 = vpack.c.b16 %v2747, %v2741
    %v3156 = vpack.c.b16 %v2748, %v2742
    %v3157 = vpack.c.b16 %v2749, %v2743
    %v3158 = vpack.c.b16 %v2750, %v2744
    %v3159 = vpack.c.b16 %v2757, %v2751
    %v3160 = vpack.c.b16 %v2758, %v2752
    %v3161 = vpack.c.b16 %v2759, %v2753
    %v3162 = vpack.c.b16 %v2760, %v2754
    %v3163 = vpack.c.b16 %v2761, %v2755
    %v3164 = vpack.c.b16 %v2762, %v2756
    %v3165 = vpack.c.b16 %v2769, %v2763
    %v3166 = vpack.c.b16 %v2770, %v2764
    %v3167 = vpack.c.b16 %v2771, %v2765
    %v3168 = vpack.c.b16 %v2772, %v2766
    %v3169 = vpack.c.b16 %v2773, %v2767
    %v3170 = vpack.c.b16 %v2774, %v2768
    %v3171 = vpack.c.b16 %v2781, %v2775
    %v3172 = vpack.c.b16 %v2782, %v2776
    %v3173 = vpack.c.b16 %v2783, %v2777
    %v3174 = vpack.c.b16 %v2784, %v2778
    %v3175 = vpack.c.b16 %v2785, %v2779
    %v3176 = vpack.c.b16 %v2786, %v2780
    %v3177 = vpack.c.b16 %v2793, %v2787
    %v3178 = vpack.c.b16 %v2794, %v2788
    %v3179 = vpack.c.b16 %v2795, %v2789
    %v3180 = vpack.c.b16 %v2796, %v2790
    %v3181 = vpack.c.b16 %v2797, %v2791
    %v3182 = vpack.c.b16 %v2798, %v2792
    %v3183 = vpack.c.b16 %v2805, %v2799
    %v3184 = vpack.c.b16 %v2806, %v2800
    %v3185 = vpack.c.b16 %v2807, %v2801
    %v3186 = vpack.c.b16 %v2808, %v2802
    %v3187 = vpack.c.b16 %v2809, %v2803
    %v3188 = vpack.c.b16 %v2810, %v2804
    %v3189 = vpack.c.b16 %v2817, %v2811
    %v3190 = vpack.c.b16 %v2818, %v2812
    %v3191 = vpack.c.b16 %v2819, %v2813
    %v3192 = vpack.c.b16 %v2820, %v2814
    %v3193 = vpack.c.b16 %v2821, %v2815
    %v3194 = vpack.c.b16 %v2822, %v2816
    %v3195 = vpack.c.b16 %v2829, %v2823
    %v3196 = vpack.c.b16 %v2830, %v2824
    %v3197 = vpack.c.b16 %v2831, %v2825
    %v3198 = vpack.c.b16 %v2832, %v2826
    %v3199 = vpack.c.b16 %v2833, %v2827
    %v3200 = vpack.c.b16 %v2834, %v2828
    %v3201 = vpack.c.b16 %v2841, %v2835
    %v3202 = vpack.c.b16 %v2842, %v2836
    %v3203 = vpack.c.b16 %v2843, %v2837
    %v3204 = vpack.c.b16 %v2844, %v2838
    %v3205 = vpack.c.b16 %v2845, %v2839
    %v3206 = vpack.c.b16 %v2846, %v2840
    %v3207 = vpack.c.b16 %v2853, %v2847
    %v3208 = vpack.c.b16 %v2854, %v2848
    %v3209 = vpack.c.b16 %v2855, %v2849
    %v3210 = vpack.c.b16 %v2856, %v2850
    %v3211 = vpack.c.b16 %v2857, %v2851
    %v3212 = vpack.c.b16 %v2858, %v2852
    %v3213 = vpack.c.b16 %v2865, %v2859
    %v3214 = vpack.c.b16 %v2866, %v2860
    %v3215 = vpack.c.b16 %v2867, %v2861
    %v3216 = vpack.c.b16 %v2868, %v2862
    %v3217 = vpack.c.b16 %v2869, %v2863
    %v3218 = vpack.c.b16 %v2870, %v2864
    %v3219 = vpack.c.b16 %v2877, %v2871
    %v3220 = vpack.c.b16 %v2878, %v2872
    %v3221 = vpack.c.b16 %v2879, %v2873
    %v3222 = vpack.c.b16 %v2880, %v2874
    %v3223 = vpack.c.b16 %v2881, %v2875
    %v3224 = vpack.c.b16 %v2882, %v2876
    %v3225 = vpack.c.b16 %v2889, %v2883
    %v3226 = vpack.c.b16 %v2890, %v2884
    %v3227 = vpack.c.b16 %v2891, %v2885
    %v3228 = vpack.c.b16 %v2892, %v2886
    %v3229 = vpack.c.b16 %v2893, %v2887
    %v3230 = vpack.c.b16 %v2894, %v2888
    %v3231 = vpack.c.b16 %v2901, %v2895
    %v3232 = vpack.c.b16 %v2902, %v2896
    %v3233 = vpack.c.b16 %v2903, %v2897
    %v3234 = vpack.c.b16 %v2904, %v2898
    %v3235 = vpack.c.b16 %v2905, %v2899
    %v3236 = vpack.c.b16 %v2906, %v2900
    %v3237 = vpack.c.b16 %v2913, %v2907
    %v3238 = vpack.c.b16 %v2914, %v2908
    %v3239 = vpack.c.b16 %v2915, %v2909
    %v3240 = vpack.c.b16 %v2916, %v2910
    %v3241 = vpack.c.b16 %v2917, %v2911
    %v3242 = vpack.c.b16 %v2918, %v2912
    %v3243 = vpack.c.b16 %v2925, %v2919
    %v3244 = vpack.c.b16 %v2926, %v2920
    %v3245 = vpack.c.b16 %v2927, %v2921
    %v3246 = vpack.c.b16 %v2928, %v2922
    %v3247 = vpack.c.b16 %v2929, %v2923
    %v3248 = vpack.c.b16 %v2930, %v2924
    %v3249 = vpack.c.b16 %v2937, %v2931
    %v3250 = vpack.c.b16 %v2938, %v2932
    %v3251 = vpack.c.b16 %v2939, %v2933
    %v3252 = vpack.c.b16 %v2940, %v2934
    %v3253 = vpack.c.b16 %v2941, %v2935
    %v3254 = vpack.c.b16 %v2942, %v2936
    %v3255 = vpack.c.b16 %v2949, %v2943
    %v3256 = vpack.c.b16 %v2950, %v2944
    %v3257 = vpack.c.b16 %v2951, %v2945
    %v3258 = vpack.c.b16 %v2952, %v2946
    %v3259 = vpack.c.b16 %v2953, %v2947
    %v3260 = vpack.c.b16 %v2954, %v2948
    %v3261 = vpack.c.b16 %v2961, %v2955
    %v3262 = vpack.c.b16 %v2962, %v2956
    %v3263 = vpack.c.b16 %v2963, %v2957
    %v3264 = vpack.c.b16 %v2964, %v2958
    %v3265 = vpack.c.b16 %v2965, %v2959
    %v3266 = vpack.c.b16 %v2966, %v2960
    %v3267 = vpack.c.b16 %v2973, %v2967
    %v3268 = vpack.c.b16 %v2974, %v2968
    %v3269 = vpack.c.b16 %v2975, %v2969
    %v3270 = vpack.c.b16 %v2976, %v2970
    %v3271 = vpack.c.b16 %v2977, %v2971
    %v3272 = vpack.c.b16 %v2978, %v2972
    %v3273 = vpack.c.b16 %v2985, %v2979
    %v3274 = vpack.c.b16 %v2986, %v2980
    %v3275 = vpack.c.b16 %v2987, %v2981
    %v3276 = vpack.c.b16 %v2988, %v2982
    %v3277 = vpack.c.b16 %v2989, %v2983
    %v3278 = vpack.c.b16 %v2990, %v2984
    %3567 = vmatprep.subr.bf16.mxu0 %v3034
    %3568 = vmatpush1.bf16.msra.mxu0 %v3033
    %3569 = vmatprep.subr.bf16.mxu0 %v3028
    %3570 = vmatpush1.bf16.msra.mxu0 %v3027
    %3571 = vmatprep.subr.bf16.mxu0 %v3022
    %3572 = vmatpush1.bf16.msra.mxu0 %v3021
    %3573 = vmatprep.subr.bf16.mxu0 %v3016
    %3574 = vmatpush1.bf16.msra.mxu0 %v3015
    %3575 = vmatprep.subr.bf16.mxu0 %v3010
    %3576 = vmatpush1.bf16.msra.mxu0 %v3009
    %3577 = vmatprep.subr.bf16.mxu0 %v3004
    %3578 = vmatpush1.bf16.msra.mxu0 %v3003
    %3579 = vmatprep.subr.bf16.mxu0 %v2998
    %3580 = vmatpush1.bf16.msra.mxu0 %v2997
    %3581 = vmatprep.subr.bf16.mxu0 %v2992
    %3582 = vmatpush1.bf16.msra.mxu0 %v2991
    %3583 = vmatprep.subr.bf16.mxu0 %v3082
    %3584 = vmatpush2.bf16.msra.mxu0 %v3081
    %3585 = vmatprep.subr.bf16.mxu0 %v3076
    %3586 = vmatpush2.bf16.msra.mxu0 %v3075
    %3587 = vmatprep.subr.bf16.mxu0 %v3070
    %3588 = vmatpush2.bf16.msra.mxu0 %v3069
    %3589 = vmatprep.subr.bf16.mxu0 %v3064
    %3590 = vmatpush2.bf16.msra.mxu0 %v3063
    %3591 = vmatprep.subr.bf16.mxu0 %v3058
    %3592 = vmatpush2.bf16.msra.mxu0 %v3057
    %3593 = vmatprep.subr.bf16.mxu0 %v3052
    %3594 = vmatpush2.bf16.msra.mxu0 %v3051
    %3595 = vmatprep.subr.bf16.mxu0 %v3046
    %3596 = vmatpush2.bf16.msra.mxu0 %v3045
    %3597 = vmatprep.subr.bf16.mxu0 %v3040
    %3598 = vmatpush2.bf16.msra.mxu0 %v3039
    %3599 = vmatprep.mubr.bf16.mxu0 %v2068
    %3600 = vmatmul.mubr.bf16.gmra.mxu0 %v2067
    %v3601 = vpop.f32.mrf.mxu0
    %v3602 = vadd.f32 %v2106, %v3601
    %v3603 = vpop.f32.mrf.mxu0
    %v3604 = vadd.f32 %v2110, %v3603
    %v3605 = vpop.f32.mrf.mxu0
    %v3606 = vpop.f32.mrf.mxu0
    %3607 = vdwg.mxu0
    %3608 = vmatprep.subr.bf16.mxu0 %v3130
    %3609 = vmatpush1.bf16.msra.mxu0 %v3129
    %3610 = vmatprep.subr.bf16.mxu0 %v3124
    %3611 = vmatpush1.bf16.msra.mxu0 %v3123
    %3612 = vmatprep.subr.bf16.mxu0 %v3118
    %3613 = vmatpush1.bf16.msra.mxu0 %v3117
    %3614 = vmatprep.subr.bf16.mxu0 %v3112
    %3615 = vmatpush1.bf16.msra.mxu0 %v3111
    %3616 = vmatprep.subr.bf16.mxu0 %v3106
    %3617 = vmatpush1.bf16.msra.mxu0 %v3105
    %3618 = vmatprep.subr.bf16.mxu0 %v3100
    %3619 = vmatpush1.bf16.msra.mxu0 %v3099
    %3620 = vmatprep.subr.bf16.mxu0 %v3094
    %3621 = vmatpush1.bf16.msra.mxu0 %v3093
    %3622 = vmatprep.subr.bf16.mxu0 %v3088
    %3623 = vmatpush1.bf16.msra.mxu0 %v3087
    %3624 = vmatprep.subr.bf16.mxu0 %v3178
    %3625 = vmatpush2.bf16.msra.mxu0 %v3177
    %3626 = vmatprep.subr.bf16.mxu0 %v3172
    %3627 = vmatpush2.bf16.msra.mxu0 %v3171
    %3628 = vmatprep.subr.bf16.mxu0 %v3166
    %3629 = vmatpush2.bf16.msra.mxu0 %v3165
    %3630 = vmatprep.subr.bf16.mxu0 %v3160
    %3631 = vmatpush2.bf16.msra.mxu0 %v3159
    %3632 = vmatprep.subr.bf16.mxu0 %v3154
    %3633 = vmatpush2.bf16.msra.mxu0 %v3153
    %3634 = vmatprep.subr.bf16.mxu0 %v3148
    %3635 = vmatpush2.bf16.msra.mxu0 %v3147
    %3636 = vmatprep.subr.bf16.mxu0 %v3142
    %3637 = vmatpush2.bf16.msra.mxu0 %v3141
    %3638 = vmatprep.subr.bf16.mxu0 %v3136
    %3639 = vmatpush2.bf16.msra.mxu0 %v3135
    %3640 = vmatprep.mubr.bf16.mxu0 %v2070
    %3641 = vmatmul.mubr.bf16.gmra.mxu0 %v2069
    %v3642 = vpop.f32.mrf.mxu0
    %v3643 = vadd.f32 %v3602, %v3642
    %v3644 = vpop.f32.mrf.mxu0
    %v3645 = vadd.f32 %v3604, %v3644
    %v3646 = vpop.f32.mrf.mxu0
    %v3647 = vpop.f32.mrf.mxu0
    %3648 = vdwg.mxu0
    %3649 = vmatprep.subr.bf16.mxu0 %v3226
    %3650 = vmatpush1.bf16.msra.mxu0 %v3225
    %3651 = vmatprep.subr.bf16.mxu0 %v3220
    %3652 = vmatpush1.bf16.msra.mxu0 %v3219
    %3653 = vmatprep.subr.bf16.mxu0 %v3214
    %3654 = vmatpush1.bf16.msra.mxu0 %v3213
    %3655 = vmatprep.subr.bf16.mxu0 %v3208
    %3656 = vmatpush1.bf16.msra.mxu0 %v3207
    %3657 = vmatprep.subr.bf16.mxu0 %v3202
    %3658 = vmatpush1.bf16.msra.mxu0 %v3201
    %3659 = vmatprep.subr.bf16.mxu0 %v3196
    %3660 = vmatpush1.bf16.msra.mxu0 %v3195
    %3661 = vmatprep.subr.bf16.mxu0 %v3190
    %3662 = vmatpush1.bf16.msra.mxu0 %v3189
    %3663 = vmatprep.subr.bf16.mxu0 %v3184
    %3664 = vmatpush1.bf16.msra.mxu0 %v3183
    %3665 = vmatprep.subr.bf16.mxu0 %v3274
    %3666 = vmatpush2.bf16.msra.mxu0 %v3273
    %3667 = vmatprep.subr.bf16.mxu0 %v3268
    %3668 = vmatpush2.bf16.msra.mxu0 %v3267
    %3669 = vmatprep.subr.bf16.mxu0 %v3262
    %3670 = vmatpush2.bf16.msra.mxu0 %v3261
    %3671 = vmatprep.subr.bf16.mxu0 %v3256
    %3672 = vmatpush2.bf16.msra.mxu0 %v3255
    %3673 = vmatprep.subr.bf16.mxu0 %v3250
    %3674 = vmatpush2.bf16.msra.mxu0 %v3249
    %3675 = vmatprep.subr.bf16.mxu0 %v3244
    %3676 = vmatpush2.bf16.msra.mxu0 %v3243
    %3677 = vmatprep.subr.bf16.mxu0 %v3238
    %3678 = vmatpush2.bf16.msra.mxu0 %v3237
    %3679 = vmatprep.subr.bf16.mxu0 %v3232
    %3680 = vmatpush2.bf16.msra.mxu0 %v3231
    %3681 = vmatprep.mubr.bf16.mxu0 %v2072
    %3682 = vmatmul.mubr.bf16.gmra.mxu0 %v2071
    %v3683 = vpop.f32.mrf.mxu0
    %v3684 = vadd.f32 %v3643, %v3683
    %v3685 = vpop.f32.mrf.mxu0
    %v3686 = vadd.f32 %v3645, %v3685
    %v3687 = vpop.f32.mrf.mxu0
    %v3688 = vpop.f32.mrf.mxu0
    %3689 = vdwg.mxu0
    %3690 = vmatprep.subr.bf16.mxu0 %v3036
    %3691 = vmatpush1.bf16.msra.mxu0 %v3035
    %3692 = vmatprep.subr.bf16.mxu0 %v3030
    %3693 = vmatpush1.bf16.msra.mxu0 %v3029
    %3694 = vmatprep.subr.bf16.mxu0 %v3024
    %3695 = vmatpush1.bf16.msra.mxu0 %v3023
    %3696 = vmatprep.subr.bf16.mxu0 %v3018
    %3697 = vmatpush1.bf16.msra.mxu0 %v3017
    %3698 = vmatprep.subr.bf16.mxu0 %v3012
    %3699 = vmatpush1.bf16.msra.mxu0 %v3011
    %3700 = vmatprep.subr.bf16.mxu0 %v3006
    %3701 = vmatpush1.bf16.msra.mxu0 %v3005
    %3702 = vmatprep.subr.bf16.mxu0 %v3000
    %3703 = vmatpush1.bf16.msra.mxu0 %v2999
    %3704 = vmatprep.subr.bf16.mxu0 %v2994
    %3705 = vmatpush1.bf16.msra.mxu0 %v2993
    %3706 = vmatprep.subr.bf16.mxu0 %v3084
    %3707 = vmatpush2.bf16.msra.mxu0 %v3083
    %3708 = vmatprep.subr.bf16.mxu0 %v3078
    %3709 = vmatpush2.bf16.msra.mxu0 %v3077
    %3710 = vmatprep.subr.bf16.mxu0 %v3072
    %3711 = vmatpush2.bf16.msra.mxu0 %v3071
    %3712 = vmatprep.subr.bf16.mxu0 %v3066
    %3713 = vmatpush2.bf16.msra.mxu0 %v3065
    %3714 = vmatprep.subr.bf16.mxu0 %v3060
    %3715 = vmatpush2.bf16.msra.mxu0 %v3059
    %3716 = vmatprep.subr.bf16.mxu0 %v3054
    %3717 = vmatpush2.bf16.msra.mxu0 %v3053
    %3718 = vmatprep.subr.bf16.mxu0 %v3048
    %3719 = vmatpush2.bf16.msra.mxu0 %v3047
    %3720 = vmatprep.subr.bf16.mxu0 %v3042
    %3721 = vmatpush2.bf16.msra.mxu0 %v3041
    %3722 = vmatprep.mubr.bf16.mxu0 %v2068
    %3723 = vmatmul.mubr.bf16.gmra.mxu0 %v2067
    %v3724 = vpop.f32.mrf.mxu0
    %v3725 = vadd.f32 %v2114, %v3724
    %v3726 = vpop.f32.mrf.mxu0
    %v3727 = vadd.f32 %v2118, %v3726
    %v3728 = vpop.f32.mrf.mxu0
    %v3729 = vpop.f32.mrf.mxu0
    %3730 = vdwg.mxu0
    %3731 = vmatprep.subr.bf16.mxu0 %v3132
    %3732 = vmatpush1.bf16.msra.mxu0 %v3131
    %3733 = vmatprep.subr.bf16.mxu0 %v3126
    %3734 = vmatpush1.bf16.msra.mxu0 %v3125
    %3735 = vmatprep.subr.bf16.mxu0 %v3120
    %3736 = vmatpush1.bf16.msra.mxu0 %v3119
    %3737 = vmatprep.subr.bf16.mxu0 %v3114
    %3738 = vmatpush1.bf16.msra.mxu0 %v3113
    %3739 = vmatprep.subr.bf16.mxu0 %v3108
    %3740 = vmatpush1.bf16.msra.mxu0 %v3107
    %3741 = vmatprep.subr.bf16.mxu0 %v3102
    %3742 = vmatpush1.bf16.msra.mxu0 %v3101
    %3743 = vmatprep.subr.bf16.mxu0 %v3096
    %3744 = vmatpush1.bf16.msra.mxu0 %v3095
    %3745 = vmatprep.subr.bf16.mxu0 %v3090
    %3746 = vmatpush1.bf16.msra.mxu0 %v3089
    %3747 = vmatprep.subr.bf16.mxu0 %v3180
    %3748 = vmatpush2.bf16.msra.mxu0 %v3179
    %3749 = vmatprep.subr.bf16.mxu0 %v3174
    %3750 = vmatpush2.bf16.msra.mxu0 %v3173
    %3751 = vmatprep.subr.bf16.mxu0 %v3168
    %3752 = vmatpush2.bf16.msra.mxu0 %v3167
    %3753 = vmatprep.subr.bf16.mxu0 %v3162
    %3754 = vmatpush2.bf16.msra.mxu0 %v3161
    %3755 = vmatprep.subr.bf16.mxu0 %v3156
    %3756 = vmatpush2.bf16.msra.mxu0 %v3155
    %3757 = vmatprep.subr.bf16.mxu0 %v3150
    %3758 = vmatpush2.bf16.msra.mxu0 %v3149
    %3759 = vmatprep.subr.bf16.mxu0 %v3144
    %3760 = vmatpush2.bf16.msra.mxu0 %v3143
    %3761 = vmatprep.subr.bf16.mxu0 %v3138
    %3762 = vmatpush2.bf16.msra.mxu0 %v3137
    %3763 = vmatprep.mubr.bf16.mxu0 %v2070
    %3764 = vmatmul.mubr.bf16.gmra.mxu0 %v2069
    %v3765 = vpop.f32.mrf.mxu0
    %v3766 = vadd.f32 %v3725, %v3765
    %v3767 = vpop.f32.mrf.mxu0
    %v3768 = vadd.f32 %v3727, %v3767
    %v3769 = vpop.f32.mrf.mxu0
    %v3770 = vpop.f32.mrf.mxu0
    %3771 = vdwg.mxu0
    %3772 = vmatprep.subr.bf16.mxu0 %v3228
    %3773 = vmatpush1.bf16.msra.mxu0 %v3227
    %3774 = vmatprep.subr.bf16.mxu0 %v3222
    %3775 = vmatpush1.bf16.msra.mxu0 %v3221
    %3776 = vmatprep.subr.bf16.mxu0 %v3216
    %3777 = vmatpush1.bf16.msra.mxu0 %v3215
    %3778 = vmatprep.subr.bf16.mxu0 %v3210
    %3779 = vmatpush1.bf16.msra.mxu0 %v3209
    %3780 = vmatprep.subr.bf16.mxu0 %v3204
    %3781 = vmatpush1.bf16.msra.mxu0 %v3203
    %3782 = vmatprep.subr.bf16.mxu0 %v3198
    %3783 = vmatpush1.bf16.msra.mxu0 %v3197
    %3784 = vmatprep.subr.bf16.mxu0 %v3192
    %3785 = vmatpush1.bf16.msra.mxu0 %v3191
    %3786 = vmatprep.subr.bf16.mxu0 %v3186
    %3787 = vmatpush1.bf16.msra.mxu0 %v3185
    %3788 = vmatprep.subr.bf16.mxu0 %v3276
    %3789 = vmatpush2.bf16.msra.mxu0 %v3275
    %3790 = vmatprep.subr.bf16.mxu0 %v3270
    %3791 = vmatpush2.bf16.msra.mxu0 %v3269
    %3792 = vmatprep.subr.bf16.mxu0 %v3264
    %3793 = vmatpush2.bf16.msra.mxu0 %v3263
    %3794 = vmatprep.subr.bf16.mxu0 %v3258
    %3795 = vmatpush2.bf16.msra.mxu0 %v3257
    %3796 = vmatprep.subr.bf16.mxu0 %v3252
    %3797 = vmatpush2.bf16.msra.mxu0 %v3251
    %3798 = vmatprep.subr.bf16.mxu0 %v3246
    %3799 = vmatpush2.bf16.msra.mxu0 %v3245
    %3800 = vmatprep.subr.bf16.mxu0 %v3240
    %3801 = vmatpush2.bf16.msra.mxu0 %v3239
    %3802 = vmatprep.subr.bf16.mxu0 %v3234
    %3803 = vmatpush2.bf16.msra.mxu0 %v3233
    %3804 = vmatprep.mubr.bf16.mxu0 %v2072
    %3805 = vmatmul.mubr.bf16.gmra.mxu0 %v2071
    %v3806 = vpop.f32.mrf.mxu0
    %v3807 = vadd.f32 %v3766, %v3806
    %v3808 = vpop.f32.mrf.mxu0
    %v3809 = vadd.f32 %v3768, %v3808
    %v3810 = vpop.f32.mrf.mxu0
    %v3811 = vpop.f32.mrf.mxu0
    %3812 = vdwg.mxu0
    %3813 = vmatprep.subr.bf16.mxu0 %v3038
    %3814 = vmatpush1.bf16.msra.mxu0 %v3037
    %3815 = vmatprep.subr.bf16.mxu0 %v3032
    %3816 = vmatpush1.bf16.msra.mxu0 %v3031
    %3817 = vmatprep.subr.bf16.mxu0 %v3026
    %3818 = vmatpush1.bf16.msra.mxu0 %v3025
    %3819 = vmatprep.subr.bf16.mxu0 %v3020
    %3820 = vmatpush1.bf16.msra.mxu0 %v3019
    %3821 = vmatprep.subr.bf16.mxu0 %v3014
    %3822 = vmatpush1.bf16.msra.mxu0 %v3013
    %3823 = vmatprep.subr.bf16.mxu0 %v3008
    %3824 = vmatpush1.bf16.msra.mxu0 %v3007
    %3825 = vmatprep.subr.bf16.mxu0 %v3002
    %3826 = vmatpush1.bf16.msra.mxu0 %v3001
    %3827 = vmatprep.subr.bf16.mxu0 %v2996
    %3828 = vmatpush1.bf16.msra.mxu0 %v2995
    %3829 = vmatprep.subr.bf16.mxu0 %v3086
    %3830 = vmatpush2.bf16.msra.mxu0 %v3085
    %3831 = vmatprep.subr.bf16.mxu0 %v3080
    %3832 = vmatpush2.bf16.msra.mxu0 %v3079
    %3833 = vmatprep.subr.bf16.mxu0 %v3074
    %3834 = vmatpush2.bf16.msra.mxu0 %v3073
    %3835 = vmatprep.subr.bf16.mxu0 %v3068
    %3836 = vmatpush2.bf16.msra.mxu0 %v3067
    %3837 = vmatprep.subr.bf16.mxu0 %v3062
    %3838 = vmatpush2.bf16.msra.mxu0 %v3061
    %3839 = vmatprep.subr.bf16.mxu0 %v3056
    %3840 = vmatpush2.bf16.msra.mxu0 %v3055
    %3841 = vmatprep.subr.bf16.mxu0 %v3050
    %3842 = vmatpush2.bf16.msra.mxu0 %v3049
    %3843 = vmatprep.subr.bf16.mxu0 %v3044
    %3844 = vmatpush2.bf16.msra.mxu0 %v3043
    %3845 = vmatprep.mubr.bf16.mxu0 %v2068
    %3846 = vmatmul.mubr.bf16.gmra.mxu0 %v2067
    %v3847 = vpop.f32.mrf.mxu0
    %v3848 = vadd.f32 %v2122, %v3847
    %v3849 = vpop.f32.mrf.mxu0
    %v3850 = vadd.f32 %v2126, %v3849
    %v3851 = vpop.f32.mrf.mxu0
    %v3852 = vpop.f32.mrf.mxu0
    %3853 = vdwg.mxu0
    %3854 = vmatprep.subr.bf16.mxu0 %v3134
    %3855 = vmatpush1.bf16.msra.mxu0 %v3133
    %3856 = vmatprep.subr.bf16.mxu0 %v3128
    %3857 = vmatpush1.bf16.msra.mxu0 %v3127
    %3858 = vmatprep.subr.bf16.mxu0 %v3122
    %3859 = vmatpush1.bf16.msra.mxu0 %v3121
    %3860 = vmatprep.subr.bf16.mxu0 %v3116
    %3861 = vmatpush1.bf16.msra.mxu0 %v3115
    %3862 = vmatprep.subr.bf16.mxu0 %v3110
    %3863 = vmatpush1.bf16.msra.mxu0 %v3109
    %3864 = vmatprep.subr.bf16.mxu0 %v3104
    %3865 = vmatpush1.bf16.msra.mxu0 %v3103
    %3866 = vmatprep.subr.bf16.mxu0 %v3098
    %3867 = vmatpush1.bf16.msra.mxu0 %v3097
    %3868 = vmatprep.subr.bf16.mxu0 %v3092
    %3869 = vmatpush1.bf16.msra.mxu0 %v3091
    %3870 = vmatprep.subr.bf16.mxu0 %v3182
    %3871 = vmatpush2.bf16.msra.mxu0 %v3181
    %3872 = vmatprep.subr.bf16.mxu0 %v3176
    %3873 = vmatpush2.bf16.msra.mxu0 %v3175
    %3874 = vmatprep.subr.bf16.mxu0 %v3170
    %3875 = vmatpush2.bf16.msra.mxu0 %v3169
    %3876 = vmatprep.subr.bf16.mxu0 %v3164
    %3877 = vmatpush2.bf16.msra.mxu0 %v3163
    %3878 = vmatprep.subr.bf16.mxu0 %v3158
    %3879 = vmatpush2.bf16.msra.mxu0 %v3157
    %3880 = vmatprep.subr.bf16.mxu0 %v3152
    %3881 = vmatpush2.bf16.msra.mxu0 %v3151
    %3882 = vmatprep.subr.bf16.mxu0 %v3146
    %3883 = vmatpush2.bf16.msra.mxu0 %v3145
    %3884 = vmatprep.subr.bf16.mxu0 %v3140
    %3885 = vmatpush2.bf16.msra.mxu0 %v3139
    %3886 = vmatprep.mubr.bf16.mxu0 %v2070
    %3887 = vmatmul.mubr.bf16.gmra.mxu0 %v2069
    %v3888 = vpop.f32.mrf.mxu0
    %v3889 = vadd.f32 %v3848, %v3888
    %v3890 = vpop.f32.mrf.mxu0
    %v3891 = vadd.f32 %v3850, %v3890
    %v3892 = vpop.f32.mrf.mxu0
    %v3893 = vpop.f32.mrf.mxu0
    %3894 = vdwg.mxu0
    %3895 = vmatprep.subr.bf16.mxu0 %v3230
    %3896 = vmatpush1.bf16.msra.mxu0 %v3229
    %3897 = vmatprep.subr.bf16.mxu0 %v3224
    %3898 = vmatpush1.bf16.msra.mxu0 %v3223
    %3899 = vmatprep.subr.bf16.mxu0 %v3218
    %3900 = vmatpush1.bf16.msra.mxu0 %v3217
    %3901 = vmatprep.subr.bf16.mxu0 %v3212
    %3902 = vmatpush1.bf16.msra.mxu0 %v3211
    %3903 = vmatprep.subr.bf16.mxu0 %v3206
    %3904 = vmatpush1.bf16.msra.mxu0 %v3205
    %3905 = vmatprep.subr.bf16.mxu0 %v3200
    %3906 = vmatpush1.bf16.msra.mxu0 %v3199
    %3907 = vmatprep.subr.bf16.mxu0 %v3194
    %3908 = vmatpush1.bf16.msra.mxu0 %v3193
    %3909 = vmatprep.subr.bf16.mxu0 %v3188
    %3910 = vmatpush1.bf16.msra.mxu0 %v3187
    %3911 = vmatprep.subr.bf16.mxu0 %v3278
    %3912 = vmatpush2.bf16.msra.mxu0 %v3277
    %3913 = vmatprep.subr.bf16.mxu0 %v3272
    %3914 = vmatpush2.bf16.msra.mxu0 %v3271
    %3915 = vmatprep.subr.bf16.mxu0 %v3266
    %3916 = vmatpush2.bf16.msra.mxu0 %v3265
    %3917 = vmatprep.subr.bf16.mxu0 %v3260
    %3918 = vmatpush2.bf16.msra.mxu0 %v3259
    %3919 = vmatprep.subr.bf16.mxu0 %v3254
    %3920 = vmatpush2.bf16.msra.mxu0 %v3253
    %3921 = vmatprep.subr.bf16.mxu0 %v3248
    %3922 = vmatpush2.bf16.msra.mxu0 %v3247
    %3923 = vmatprep.subr.bf16.mxu0 %v3242
    %3924 = vmatpush2.bf16.msra.mxu0 %v3241
    %3925 = vmatprep.subr.bf16.mxu0 %v3236
    %3926 = vmatpush2.bf16.msra.mxu0 %v3235
    %3927 = vmatprep.mubr.bf16.mxu0 %v2072
    %3928 = vmatmul.mubr.bf16.gmra.mxu0 %v2071
    %v3929 = vpop.f32.mrf.mxu0
    %v3930 = vadd.f32 %v3889, %v3929
    %v3931 = vpop.f32.mrf.mxu0
    %v3932 = vadd.f32 %v3891, %v3931
    %v3933 = vpop.f32.mrf.mxu0
    %v3934 = vpop.f32.mrf.mxu0
    %3935 = vdwg.mxu0
    %v3936 = vmul.f32 %v3684, %v3684
    %v3937 = vmul.f32 %v3686, %v3686
    %v3938 = vmul.f32 %v3807, %v3807
    %v3939 = vmul.f32 %v3809, %v3809
    %v3940 = vmul.f32 %v3930, %v3930
    %v3941 = vmul.f32 %v3932, %v3932
    %v3942 = vadd.f32 %v3936, %v3937
    %v3943 = vadd.f32 %v3942, %v3938
    %v3944 = vadd.f32 %v3943, %v3939
    %v3945 = vadd.f32 %v3944, %v3940
    %v3946 = vadd.f32 %v3945, %v3941
    %3947 = vadd.xlane.f32.xlu0 %v3946
    %v3948 = vpop.xlane.xlu0 %3947
    %v3949 = vrsqrt.pop %v3948
    %v3950 = vmul.f32 %v3684, %v3949
    %v3951 = vmul.f32 %v3686, %v3949
    %v3952 = vmul.f32 %v3807, %v3949
    %v3953 = vmul.f32 %v3809, %v3949
    %v3954 = vmul.f32 %v3930, %v3949
    %v3955 = vmul.f32 %v3932, %v3949
    %3956 = vst [vmem:[#allocation8] sm:$0xff] %v3950
    %3957 = vst [vmem:[#allocation8 + $0x8] sm:$0xff] %v3951
    %3958 = vst [vmem:[#allocation8 + $0x10] sm:$0xff] %v3952
    %3959 = vst [vmem:[#allocation8 + $0x18] sm:$0xff] %v3953
    %3960 = vst [vmem:[#allocation8 + $0x20] sm:$0xff] %v3954
    %3961 = vst [vmem:[#allocation8 + $0x28] sm:$0xff] %v3955
    %v3962 = vld [vmem:[%s1] sm:$0xff]
    %v3963 = vld [vmem:[%s1 + $0x8] sm:$0xff]
    %v3964 = vld [vmem:[%s1 + $0x10] sm:$0xff]
    %v3965 = vld [vmem:[%s1 + $0x18] sm:$0xff]
    %v3966 = vld [vmem:[%s1 + $0x20] sm:$0xff]
    %v3967 = vld [vmem:[%s1 + $0x28] sm:$0xff]
    %v3968 = vld [vmem:[%s1 + $0x30] sm:$0xff]
    %v3969 = vld [vmem:[%s1 + $0x38] sm:$0xff]
    %v3970 = vld [vmem:[%s1 + $0x40] sm:$0xff]
    %v3971 = vld [vmem:[%s1 + $0x48] sm:$0xff]
    %v3972 = vld [vmem:[%s1 + $0x50] sm:$0xff]
    %v3973 = vld [vmem:[%s1 + $0x58] sm:$0xff]
    %v3974 = vld [vmem:[%s1 + $0x60] sm:$0xff]
    %v3975 = vld [vmem:[%s1 + $0x68] sm:$0xff]
    %v3976 = vld [vmem:[%s1 + $0x70] sm:$0xff]
    %v3977 = vld [vmem:[%s1 + $0x78] sm:$0xff]
    %v3978 = vld [vmem:[%s1 + $0x80] sm:$0xff]
    %v3979 = vld [vmem:[%s1 + $0x88] sm:$0xff]
    %v3980 = vld [vmem:[%s1 + $0x90] sm:$0xff]
    %v3981 = vld [vmem:[%s1 + $0x98] sm:$0xff]
    %v3982 = vld [vmem:[%s1 + $0xa0] sm:$0xff]
    %v3983 = vld [vmem:[%s1 + $0xa8] sm:$0xff]
    %v3984 = vld [vmem:[%s1 + $0xb0] sm:$0xff]
    %v3985 = vld [vmem:[%s1 + $0xb8] sm:$0xff]
    %v3986 = vld [vmem:[%s1 + $0xc0] sm:$0xff]
    %v3987 = vld [vmem:[%s1 + $0xc8] sm:$0xff]
    %v3988 = vld [vmem:[%s1 + $0xd0] sm:$0xff]
    %v3989 = vld [vmem:[%s1 + $0xd8] sm:$0xff]
    %v3990 = vld [vmem:[%s1 + $0xe0] sm:$0xff]
    %v3991 = vld [vmem:[%s1 + $0xe8] sm:$0xff]
    %v3992 = vld [vmem:[%s1 + $0xf0] sm:$0xff]
    %v3993 = vld [vmem:[%s1 + $0xf8] sm:$0xff]
    %v3994 = vld [vmem:[%s1 + $0x100] sm:$0xff]
    %v3995 = vld [vmem:[%s1 + $0x108] sm:$0xff]
    %v3996 = vld [vmem:[#allocation6] sm:$0xff]
    %v3997 = vld [vmem:[#allocation6 + $0x8] sm:$0xff]
    %v3998 = vld [vmem:[#allocation6 + $0x10] sm:$0xff]
    %v3999 = vld [vmem:[#allocation6 + $0x18] sm:$0xff]
    %v4000 = vld [vmem:[#allocation6 + $0x20] sm:$0xff]
    %v4001 = vld [vmem:[#allocation6 + $0x28] sm:$0xff]
    %v4002 = vld [vmem:[#allocation6 + $0x30] sm:$0xff]
    %v4003 = vld [vmem:[#allocation6 + $0x38] sm:$0xff]
    %v4004 = vld [vmem:[#allocation6 + $0x40] sm:$0xff]
    %v4005 = vld [vmem:[#allocation6 + $0x48] sm:$0xff]
    %v4006 = vld [vmem:[#allocation6 + $0x50] sm:$0xff]
    %v4007 = vld [vmem:[#allocation6 + $0x58] sm:$0xff]
    %v4008 = vld [vmem:[#allocation6 + $0x60] sm:$0xff]
    %v4009 = vld [vmem:[#allocation6 + $0x68] sm:$0xff]
    %v4010 = vld [vmem:[#allocation6 + $0x70] sm:$0xff]
    %v4011 = vld [vmem:[#allocation6 + $0x78] sm:$0xff]
    %v4012 = vld [vmem:[#allocation6 + $0x80] sm:$0xff]
    %v4013 = vld [vmem:[#allocation6 + $0x88] sm:$0xff]
    %v4014 = vld [vmem:[#allocation6 + $0x90] sm:$0xff]
    %v4015 = vld [vmem:[#allocation6 + $0x98] sm:$0xff]
    %v4016 = vld [vmem:[#allocation6 + $0xa0] sm:$0xff]
    %v4017 = vld [vmem:[#allocation6 + $0xa8] sm:$0xff]
    %v4018 = vld [vmem:[#allocation6 + $0xb0] sm:$0xff]
    %v4019 = vld [vmem:[#allocation6 + $0xb8] sm:$0xff]
    %v4020 = vld [vmem:[#allocation6 + $0xc0] sm:$0xff]
    %v4021 = vld [vmem:[#allocation6 + $0xc8] sm:$0xff]
    %v4022 = vld [vmem:[#allocation6 + $0xd0] sm:$0xff]
    %v4023 = vld [vmem:[#allocation6 + $0xd8] sm:$0xff]
    %v4024 = vld [vmem:[#allocation6 + $0xe0] sm:$0xff]
    %v4025 = vld [vmem:[#allocation6 + $0xe8] sm:$0xff]
    %v4026 = vld [vmem:[#allocation6 + $0xf0] sm:$0xff]
    %v4027 = vld [vmem:[#allocation6 + $0xf8] sm:$0xff]
    %v4028 = vld [vmem:[#allocation6 + $0x100] sm:$0xff]
    %v4029 = vld [vmem:[#allocation6 + $0x108] sm:$0xff]
    %v4030 = vld [vmem:[#allocation6 + $0x110] sm:$0xff]
    %v4031 = vld [vmem:[#allocation6 + $0x118] sm:$0xff]
    %v4032 = vld [vmem:[#allocation6 + $0x120] sm:$0xff]
    %v4033 = vld [vmem:[#allocation6 + $0x128] sm:$0xff]
    %v4034 = vld [vmem:[#allocation6 + $0x130] sm:$0xff]
    %v4035 = vld [vmem:[#allocation6 + $0x138] sm:$0xff]
    %v4036 = vld [vmem:[#allocation6 + $0x140] sm:$0xff]
    %v4037 = vld [vmem:[#allocation6 + $0x148] sm:$0xff]
    %v4038 = vld [vmem:[#allocation6 + $0x150] sm:$0xff]
    %v4039 = vld [vmem:[#allocation6 + $0x158] sm:$0xff]
    %v4040 = vld [vmem:[#allocation6 + $0x160] sm:$0xff]
    %v4041 = vld [vmem:[#allocation6 + $0x168] sm:$0xff]
    %v4042 = vld [vmem:[#allocation6 + $0x170] sm:$0xff]
    %v4043 = vld [vmem:[#allocation6 + $0x178] sm:$0xff]
    %v4044 = vld [vmem:[#allocation6 + $0x180] sm:$0xff]
    %v4045 = vld [vmem:[#allocation6 + $0x188] sm:$0xff]
    %v4046 = vld [vmem:[#allocation6 + $0x190] sm:$0xff]
    %v4047 = vld [vmem:[#allocation6 + $0x198] sm:$0xff]
    %v4048 = vld [vmem:[#allocation6 + $0x1a0] sm:$0xff]
    %v4049 = vld [vmem:[#allocation6 + $0x1a8] sm:$0xff]
    %v4050 = vld [vmem:[#allocation6 + $0x1b0] sm:$0xff]
    %v4051 = vld [vmem:[#allocation6 + $0x1b8] sm:$0xff]
    %v4052 = vld [vmem:[#allocation6 + $0x1c0] sm:$0xff]
    %v4053 = vld [vmem:[#allocation6 + $0x1c8] sm:$0xff]
    %v4054 = vld [vmem:[#allocation6 + $0x1d0] sm:$0xff]
    %v4055 = vld [vmem:[#allocation6 + $0x1d8] sm:$0xff]
    %v4056 = vld [vmem:[#allocation6 + $0x1e0] sm:$0xff]
    %v4057 = vld [vmem:[#allocation6 + $0x1e8] sm:$0xff]
    %v4058 = vld [vmem:[#allocation6 + $0x1f0] sm:$0xff]
    %v4059 = vld [vmem:[#allocation6 + $0x1f8] sm:$0xff]
    %v4060 = vld [vmem:[#allocation6 + $0x200] sm:$0xff]
    %v4061 = vld [vmem:[#allocation6 + $0x208] sm:$0xff]
    %v4062 = vld [vmem:[#allocation6 + $0x210] sm:$0xff]
    %v4063 = vld [vmem:[#allocation6 + $0x218] sm:$0xff]
    %v4064 = vld [vmem:[#allocation6 + $0x220] sm:$0xff]
    %v4065 = vld [vmem:[#allocation6 + $0x228] sm:$0xff]
    %v4066 = vld [vmem:[#allocation6 + $0x230] sm:$0xff]
    %v4067 = vld [vmem:[#allocation6 + $0x238] sm:$0xff]
    %v4068 = vld [vmem:[#allocation6 + $0x240] sm:$0xff]
    %v4069 = vld [vmem:[#allocation6 + $0x248] sm:$0xff]
    %v4070 = vld [vmem:[#allocation6 + $0x250] sm:$0xff]
    %v4071 = vld [vmem:[#allocation6 + $0x258] sm:$0xff]
    %v4072 = vld [vmem:[#allocation6 + $0x260] sm:$0xff]
    %v4073 = vld [vmem:[#allocation6 + $0x268] sm:$0xff]
    %v4074 = vld [vmem:[#allocation6 + $0x270] sm:$0xff]
    %v4075 = vld [vmem:[#allocation6 + $0x278] sm:$0xff]
    %v4076 = vld [vmem:[#allocation6 + $0x280] sm:$0xff]
    %v4077 = vld [vmem:[#allocation6 + $0x288] sm:$0xff]
    %v4078 = vld [vmem:[#allocation6 + $0x290] sm:$0xff]
    %v4079 = vld [vmem:[#allocation6 + $0x298] sm:$0xff]
    %v4080 = vld [vmem:[#allocation6 + $0x2a0] sm:$0xff]
    %v4081 = vld [vmem:[#allocation6 + $0x2a8] sm:$0xff]
    %v4082 = vld [vmem:[#allocation6 + $0x2b0] sm:$0xff]
    %v4083 = vld [vmem:[#allocation6 + $0x2b8] sm:$0xff]
    %v4084 = vld [vmem:[#allocation6 + $0x2c0] sm:$0xff]
    %v4085 = vld [vmem:[#allocation6 + $0x2c8] sm:$0xff]
    %v4086 = vld [vmem:[#allocation6 + $0x2d0] sm:$0xff]
    %v4087 = vld [vmem:[#allocation6 + $0x2d8] sm:$0xff]
    %v4088 = vld [vmem:[#allocation6 + $0x2e0] sm:$0xff]
    %v4089 = vld [vmem:[#allocation6 + $0x2e8] sm:$0xff]
    %v4090 = vld [vmem:[#allocation6 + $0x2f0] sm:$0xff]
    %v4091 = vld [vmem:[#allocation6 + $0x2f8] sm:$0xff]
    %v4092 = vld [vmem:[#allocation6 + $0x300] sm:$0xff]
    %v4093 = vld [vmem:[#allocation6 + $0x308] sm:$0xff]
    %v4094 = vld [vmem:[#allocation6 + $0x310] sm:$0xff]
    %v4095 = vld [vmem:[#allocation6 + $0x318] sm:$0xff]
    %v4096 = vld [vmem:[#allocation6 + $0x320] sm:$0xff]
    %v4097 = vld [vmem:[#allocation6 + $0x328] sm:$0xff]
    %v4098 = vld [vmem:[#allocation6 + $0x330] sm:$0xff]
    %v4099 = vld [vmem:[#allocation6 + $0x338] sm:$0xff]
    %v4100 = vld [vmem:[#allocation6 + $0x340] sm:$0xff]
    %v4101 = vld [vmem:[#allocation6 + $0x348] sm:$0xff]
    %v4102 = vld [vmem:[#allocation6 + $0x350] sm:$0xff]
    %v4103 = vld [vmem:[#allocation6 + $0x358] sm:$0xff]
    %v4104 = vld [vmem:[#allocation6 + $0x360] sm:$0xff]
    %v4105 = vld [vmem:[#allocation6 + $0x368] sm:$0xff]
    %v4106 = vld [vmem:[#allocation6 + $0x370] sm:$0xff]
    %v4107 = vld [vmem:[#allocation6 + $0x378] sm:$0xff]
    %v4108 = vld [vmem:[#allocation6 + $0x380] sm:$0xff]
    %v4109 = vld [vmem:[#allocation6 + $0x388] sm:$0xff]
    %v4110 = vld [vmem:[#allocation6 + $0x390] sm:$0xff]
    %v4111 = vld [vmem:[#allocation6 + $0x398] sm:$0xff]
    %v4112 = vld [vmem:[#allocation6 + $0x3a0] sm:$0xff]
    %v4113 = vld [vmem:[#allocation6 + $0x3a8] sm:$0xff]
    %v4114 = vld [vmem:[#allocation6 + $0x3b0] sm:$0xff]
    %v4115 = vld [vmem:[#allocation6 + $0x3b8] sm:$0xff]
    %v4116 = vld [vmem:[#allocation6 + $0x3c0] sm:$0xff]
    %v4117 = vld [vmem:[#allocation6 + $0x3c8] sm:$0xff]
    %v4118 = vld [vmem:[#allocation6 + $0x3d0] sm:$0xff]
    %v4119 = vld [vmem:[#allocation6 + $0x3d8] sm:$0xff]
    %v4120 = vld [vmem:[#allocation6 + $0x3e0] sm:$0xff]
    %v4121 = vld [vmem:[#allocation6 + $0x3e8] sm:$0xff]
    %v4122 = vld [vmem:[#allocation6 + $0x3f0] sm:$0xff]
    %v4123 = vld [vmem:[#allocation6 + $0x3f8] sm:$0xff]
    %v4124 = vld [vmem:[#allocation6 + $0x400] sm:$0xff]
    %v4125 = vld [vmem:[#allocation6 + $0x408] sm:$0xff]
    %v4126 = vld [vmem:[#allocation6 + $0x410] sm:$0xff]
    %v4127 = vld [vmem:[#allocation6 + $0x418] sm:$0xff]
    %v4128 = vld [vmem:[#allocation6 + $0x420] sm:$0xff]
    %v4129 = vld [vmem:[#allocation6 + $0x428] sm:$0xff]
    %v4130 = vld [vmem:[#allocation6 + $0x430] sm:$0xff]
    %v4131 = vld [vmem:[#allocation6 + $0x438] sm:$0xff]
    %v4132 = vld [vmem:[#allocation6 + $0x440] sm:$0xff]
    %v4133 = vld [vmem:[#allocation6 + $0x448] sm:$0xff]
    %v4134 = vld [vmem:[#allocation6 + $0x450] sm:$0xff]
    %v4135 = vld [vmem:[#allocation6 + $0x458] sm:$0xff]
    %v4136 = vld [vmem:[#allocation6 + $0x460] sm:$0xff]
    %v4137 = vld [vmem:[#allocation6 + $0x468] sm:$0xff]
    %v4138 = vld [vmem:[#allocation6 + $0x470] sm:$0xff]
    %v4139 = vld [vmem:[#allocation6 + $0x478] sm:$0xff]
    %v4140 = vld [vmem:[#allocation6 + $0x480] sm:$0xff]
    %v4141 = vld [vmem:[#allocation6 + $0x488] sm:$0xff]
    %v4142 = vld [vmem:[#allocation6 + $0x490] sm:$0xff]
    %v4143 = vld [vmem:[#allocation6 + $0x498] sm:$0xff]
    %v4144 = vld [vmem:[#allocation6 + $0x4a0] sm:$0xff]
    %v4145 = vld [vmem:[#allocation6 + $0x4a8] sm:$0xff]
    %v4146 = vld [vmem:[#allocation6 + $0x4b0] sm:$0xff]
    %v4147 = vld [vmem:[#allocation6 + $0x4b8] sm:$0xff]
    %v4148 = vld [vmem:[#allocation6 + $0x4c0] sm:$0xff]
    %v4149 = vld [vmem:[#allocation6 + $0x4c8] sm:$0xff]
    %v4150 = vld [vmem:[#allocation6 + $0x4d0] sm:$0xff]
    %v4151 = vld [vmem:[#allocation6 + $0x4d8] sm:$0xff]
    %v4152 = vld [vmem:[#allocation6 + $0x4e0] sm:$0xff]
    %v4153 = vld [vmem:[#allocation6 + $0x4e8] sm:$0xff]
    %v4154 = vld [vmem:[#allocation6 + $0x4f0] sm:$0xff]
    %v4155 = vld [vmem:[#allocation6 + $0x4f8] sm:$0xff]
    %v4156 = vld [vmem:[#allocation6 + $0x500] sm:$0xff]
    %v4157 = vld [vmem:[#allocation6 + $0x508] sm:$0xff]
    %v4158 = vld [vmem:[#allocation6 + $0x510] sm:$0xff]
    %v4159 = vld [vmem:[#allocation6 + $0x518] sm:$0xff]
    %v4160 = vld [vmem:[#allocation6 + $0x520] sm:$0xff]
    %v4161 = vld [vmem:[#allocation6 + $0x528] sm:$0xff]
    %v4162 = vld [vmem:[#allocation6 + $0x530] sm:$0xff]
    %v4163 = vld [vmem:[#allocation6 + $0x538] sm:$0xff]
    %v4164 = vld [vmem:[#allocation6 + $0x540] sm:$0xff]
    %v4165 = vld [vmem:[#allocation6 + $0x548] sm:$0xff]
    %v4166 = vld [vmem:[#allocation6 + $0x550] sm:$0xff]
    %v4167 = vld [vmem:[#allocation6 + $0x558] sm:$0xff]
    %v4168 = vld [vmem:[#allocation6 + $0x560] sm:$0xff]
    %v4169 = vld [vmem:[#allocation6 + $0x568] sm:$0xff]
    %v4170 = vld [vmem:[#allocation6 + $0x570] sm:$0xff]
    %v4171 = vld [vmem:[#allocation6 + $0x578] sm:$0xff]
    %v4172 = vld [vmem:[#allocation6 + $0x580] sm:$0xff]
    %v4173 = vld [vmem:[#allocation6 + $0x588] sm:$0xff]
    %v4174 = vld [vmem:[#allocation6 + $0x590] sm:$0xff]
    %v4175 = vld [vmem:[#allocation6 + $0x598] sm:$0xff]
    %v4176 = vld [vmem:[#allocation6 + $0x5a0] sm:$0xff]
    %v4177 = vld [vmem:[#allocation6 + $0x5a8] sm:$0xff]
    %v4178 = vld [vmem:[#allocation6 + $0x5b0] sm:$0xff]
    %v4179 = vld [vmem:[#allocation6 + $0x5b8] sm:$0xff]
    %v4180 = vld [vmem:[#allocation6 + $0x5c0] sm:$0xff]
    %v4181 = vld [vmem:[#allocation6 + $0x5c8] sm:$0xff]
    %v4182 = vld [vmem:[#allocation6 + $0x5d0] sm:$0xff]
    %v4183 = vld [vmem:[#allocation6 + $0x5d8] sm:$0xff]
    %v4184 = vld [vmem:[#allocation6 + $0x5e0] sm:$0xff]
    %v4185 = vld [vmem:[#allocation6 + $0x5e8] sm:$0xff]
    %v4186 = vld [vmem:[#allocation6 + $0x5f0] sm:$0xff]
    %v4187 = vld [vmem:[#allocation6 + $0x5f8] sm:$0xff]
    %v4188 = vld [vmem:[%s7] sm:$0xff]
    %v4189 = vld [vmem:[%s7 + $0x8] sm:$0xff]
    %v4190 = vld [vmem:[%s7 + $0x10] sm:$0xff]
    %v4191 = vld [vmem:[%s8] sm:$0xff]
    %v4192 = vld [vmem:[%s8 + $0x8] sm:$0xff]
    %v4193 = vld [vmem:[%s8 + $0x10] sm:$0xff]
    %v4194 = vld [vmem:[%s8 + $0x18] sm:$0xff]
    %v4195 = vld [vmem:[%s8 + $0x20] sm:$0xff]
    %v4196 = vld [vmem:[%s8 + $0x28] sm:$0xff]
    %v4197 = vld [vmem:[%s8 + $0x30] sm:$0xff]
    %v4198 = vld [vmem:[%s8 + $0x38] sm:$0xff]
    %v4199 = vld [vmem:[%s8 + $0x40] sm:$0xff]
    %v4200 = vld [vmem:[%s8 + $0x48] sm:$0xff]
    %v4201 = vld [vmem:[%s8 + $0x50] sm:$0xff]
    %v4202 = vld [vmem:[%s8 + $0x58] sm:$0xff]
    %v4203 = vld [vmem:[%s8 + $0x60] sm:$0xff]
    %v4204 = vld [vmem:[%s8 + $0x68] sm:$0xff]
    %v4205 = vld [vmem:[%s8 + $0x70] sm:$0xff]
    %v4206 = vld [vmem:[%s8 + $0x78] sm:$0xff]
    %v4207 = vld [vmem:[%s8 + $0x80] sm:$0xff]
    %v4208 = vld [vmem:[%s8 + $0x88] sm:$0xff]
    %v4209 = vld [vmem:[%s8 + $0x90] sm:$0xff]
    %v4210 = vld [vmem:[%s8 + $0x98] sm:$0xff]
    %v4211 = vld [vmem:[%s8 + $0xa0] sm:$0xff]
    %v4212 = vld [vmem:[%s8 + $0xa8] sm:$0xff]
    %v4213 = vld [vmem:[%s8 + $0xb0] sm:$0xff]
    %v4214 = vld [vmem:[%s8 + $0xb8] sm:$0xff]
    %v4215 = vld [vmem:[%s8 + $0xc0] sm:$0xff]
    %v4216 = vld [vmem:[%s8 + $0xc8] sm:$0xff]
    %v4217 = vld [vmem:[%s8 + $0xd0] sm:$0xff]
    %v4218 = vld [vmem:[%s8 + $0xd8] sm:$0xff]
    %v4219 = vld [vmem:[%s8 + $0xe0] sm:$0xff]
    %v4220 = vld [vmem:[%s8 + $0xe8] sm:$0xff]
    %v4221 = vld [vmem:[%s8 + $0xf0] sm:$0xff]
    %v4222 = vld [vmem:[%s8 + $0xf8] sm:$0xff]
    %v4223 = vld [vmem:[%s8 + $0x100] sm:$0xff]
    %v4224 = vld [vmem:[%s8 + $0x108] sm:$0xff]
    %v4225 = vld [vmem:[%s8 + $0x110] sm:$0xff]
    %v4226 = vld [vmem:[%s8 + $0x118] sm:$0xff]
    %v4227 = vld [vmem:[%s8 + $0x120] sm:$0xff]
    %v4228 = vld [vmem:[%s8 + $0x128] sm:$0xff]
    %v4229 = vld [vmem:[%s8 + $0x130] sm:$0xff]
    %v4230 = vld [vmem:[%s8 + $0x138] sm:$0xff]
    %v4231 = vld [vmem:[%s8 + $0x140] sm:$0xff]
    %v4232 = vld [vmem:[%s8 + $0x148] sm:$0xff]
    %v4233 = vld [vmem:[%s8 + $0x150] sm:$0xff]
    %v4234 = vld [vmem:[%s8 + $0x158] sm:$0xff]
    %v4235 = vld [vmem:[%s8 + $0x160] sm:$0xff]
    %v4236 = vld [vmem:[%s8 + $0x168] sm:$0xff]
    %v4237 = vld [vmem:[%s8 + $0x170] sm:$0xff]
    %v4238 = vld [vmem:[%s8 + $0x178] sm:$0xff]
    %v4239 = vld [vmem:[%s8 + $0x180] sm:$0xff]
    %v4240 = vld [vmem:[%s8 + $0x188] sm:$0xff]
    %v4241 = vld [vmem:[%s8 + $0x190] sm:$0xff]
    %v4242 = vld [vmem:[%s8 + $0x198] sm:$0xff]
    %v4243 = vld [vmem:[%s8 + $0x1a0] sm:$0xff]
    %v4244 = vld [vmem:[%s8 + $0x1a8] sm:$0xff]
    %v4245 = vld [vmem:[%s8 + $0x1b0] sm:$0xff]
    %v4246 = vld [vmem:[%s8 + $0x1b8] sm:$0xff]
    %v4247 = vld [vmem:[%s8 + $0x1c0] sm:$0xff]
    %v4248 = vld [vmem:[%s8 + $0x1c8] sm:$0xff]
    %v4249 = vld [vmem:[%s8 + $0x1d0] sm:$0xff]
    %v4250 = vld [vmem:[%s8 + $0x1d8] sm:$0xff]
    %v4251 = vld [vmem:[%s8 + $0x1e0] sm:$0xff]
    %v4252 = vld [vmem:[%s8 + $0x1e8] sm:$0xff]
    %v4253 = vld [vmem:[%s8 + $0x1f0] sm:$0xff]
    %v4254 = vld [vmem:[%s8 + $0x1f8] sm:$0xff]
    %v4255 = vld [vmem:[%s8 + $0x200] sm:$0xff]
    %v4256 = vld [vmem:[%s8 + $0x208] sm:$0xff]
    %v4257 = vld [vmem:[%s8 + $0x210] sm:$0xff]
    %v4258 = vld [vmem:[%s8 + $0x218] sm:$0xff]
    %v4259 = vld [vmem:[%s8 + $0x220] sm:$0xff]
    %v4260 = vld [vmem:[%s8 + $0x228] sm:$0xff]
    %v4261 = vld [vmem:[%s8 + $0x230] sm:$0xff]
    %v4262 = vld [vmem:[%s8 + $0x238] sm:$0xff]
    %v4263 = vld [vmem:[%s8 + $0x240] sm:$0xff]
    %v4264 = vld [vmem:[%s8 + $0x248] sm:$0xff]
    %v4265 = vld [vmem:[%s8 + $0x250] sm:$0xff]
    %v4266 = vld [vmem:[%s8 + $0x258] sm:$0xff]
    %v4267 = vld [vmem:[%s8 + $0x260] sm:$0xff]
    %v4268 = vld [vmem:[%s8 + $0x268] sm:$0xff]
    %v4269 = vld [vmem:[%s8 + $0x270] sm:$0xff]
    %v4270 = vld [vmem:[%s8 + $0x278] sm:$0xff]
    %v4271 = vld [vmem:[%s8 + $0x280] sm:$0xff]
    %v4272 = vld [vmem:[%s8 + $0x288] sm:$0xff]
    %v4273 = vld [vmem:[%s8 + $0x290] sm:$0xff]
    %v4274 = vld [vmem:[%s8 + $0x298] sm:$0xff]
    %v4275 = vld [vmem:[%s8 + $0x2a0] sm:$0xff]
    %v4276 = vld [vmem:[%s8 + $0x2a8] sm:$0xff]
    %v4277 = vld [vmem:[%s8 + $0x2b0] sm:$0xff]
    %v4278 = vld [vmem:[%s8 + $0x2b8] sm:$0xff]
    %v4279 = vld [vmem:[%s8 + $0x2c0] sm:$0xff]
    %v4280 = vld [vmem:[%s8 + $0x2c8] sm:$0xff]
    %v4281 = vld [vmem:[%s8 + $0x2d0] sm:$0xff]
    %v4282 = vld [vmem:[%s8 + $0x2d8] sm:$0xff]
    %v4283 = vld [vmem:[%s8 + $0x2e0] sm:$0xff]
    %v4284 = vld [vmem:[%s8 + $0x2e8] sm:$0xff]
    %v4285 = vld [vmem:[%s8 + $0x2f0] sm:$0xff]
    %v4286 = vld [vmem:[%s8 + $0x2f8] sm:$0xff]
    %v4287 = vld [vmem:[%s8 + $0x300] sm:$0xff]
    %v4288 = vld [vmem:[%s8 + $0x308] sm:$0xff]
    %v4289 = vld [vmem:[%s8 + $0x310] sm:$0xff]
    %v4290 = vld [vmem:[%s8 + $0x318] sm:$0xff]
    %v4291 = vld [vmem:[%s8 + $0x320] sm:$0xff]
    %v4292 = vld [vmem:[%s8 + $0x328] sm:$0xff]
    %v4293 = vld [vmem:[%s8 + $0x330] sm:$0xff]
    %v4294 = vld [vmem:[%s8 + $0x338] sm:$0xff]
    %v4295 = vld [vmem:[%s8 + $0x340] sm:$0xff]
    %v4296 = vld [vmem:[%s8 + $0x348] sm:$0xff]
    %v4297 = vld [vmem:[%s8 + $0x350] sm:$0xff]
    %v4298 = vld [vmem:[%s8 + $0x358] sm:$0xff]
    %v4299 = vld [vmem:[%s8 + $0x360] sm:$0xff]
    %v4300 = vld [vmem:[%s8 + $0x368] sm:$0xff]
    %v4301 = vld [vmem:[%s8 + $0x370] sm:$0xff]
    %v4302 = vld [vmem:[%s8 + $0x378] sm:$0xff]
    %v4303 = vld [vmem:[%s8 + $0x380] sm:$0xff]
    %v4304 = vld [vmem:[%s8 + $0x388] sm:$0xff]
    %v4305 = vld [vmem:[%s8 + $0x390] sm:$0xff]
    %v4306 = vld [vmem:[%s8 + $0x398] sm:$0xff]
    %v4307 = vld [vmem:[%s8 + $0x3a0] sm:$0xff]
    %v4308 = vld [vmem:[%s8 + $0x3a8] sm:$0xff]
    %v4309 = vld [vmem:[%s8 + $0x3b0] sm:$0xff]
    %v4310 = vld [vmem:[%s8 + $0x3b8] sm:$0xff]
    %v4311 = vld [vmem:[%s8 + $0x3c0] sm:$0xff]
    %v4312 = vld [vmem:[%s8 + $0x3c8] sm:$0xff]
    %v4313 = vld [vmem:[%s8 + $0x3d0] sm:$0xff]
    %v4314 = vld [vmem:[%s8 + $0x3d8] sm:$0xff]
    %v4315 = vld [vmem:[%s8 + $0x3e0] sm:$0xff]
    %v4316 = vld [vmem:[%s8 + $0x3e8] sm:$0xff]
    %v4317 = vld [vmem:[%s8 + $0x3f0] sm:$0xff]
    %v4318 = vld [vmem:[%s8 + $0x3f8] sm:$0xff]
    %v4319 = vld [vmem:[%s8 + $0x400] sm:$0xff]
    %v4320 = vld [vmem:[%s8 + $0x408] sm:$0xff]
    %v4321 = vld [vmem:[%s8 + $0x410] sm:$0xff]
    %v4322 = vld [vmem:[%s8 + $0x418] sm:$0xff]
    %v4323 = vld [vmem:[%s8 + $0x420] sm:$0xff]
    %v4324 = vld [vmem:[%s8 + $0x428] sm:$0xff]
    %v4325 = vld [vmem:[%s8 + $0x430] sm:$0xff]
    %v4326 = vld [vmem:[%s8 + $0x438] sm:$0xff]
    %v4327 = vld [vmem:[%s8 + $0x440] sm:$0xff]
    %v4328 = vld [vmem:[%s8 + $0x448] sm:$0xff]
    %v4329 = vld [vmem:[%s8 + $0x450] sm:$0xff]
    %v4330 = vld [vmem:[%s8 + $0x458] sm:$0xff]
    %v4331 = vld [vmem:[%s8 + $0x460] sm:$0xff]
    %v4332 = vld [vmem:[%s8 + $0x468] sm:$0xff]
    %v4333 = vld [vmem:[%s8 + $0x470] sm:$0xff]
    %v4334 = vld [vmem:[%s8 + $0x478] sm:$0xff]
    %v4335 = vld [vmem:[%s8 + $0x480] sm:$0xff]
    %v4336 = vld [vmem:[%s8 + $0x488] sm:$0xff]
    %v4337 = vld [vmem:[%s8 + $0x490] sm:$0xff]
    %v4338 = vld [vmem:[%s8 + $0x498] sm:$0xff]
    %v4339 = vld [vmem:[%s8 + $0x4a0] sm:$0xff]
    %v4340 = vld [vmem:[%s8 + $0x4a8] sm:$0xff]
    %v4341 = vld [vmem:[%s8 + $0x4b0] sm:$0xff]
    %v4342 = vld [vmem:[%s8 + $0x4b8] sm:$0xff]
    %v4343 = vld [vmem:[%s8 + $0x4c0] sm:$0xff]
    %v4344 = vld [vmem:[%s8 + $0x4c8] sm:$0xff]
    %v4345 = vld [vmem:[%s8 + $0x4d0] sm:$0xff]
    %v4346 = vld [vmem:[%s8 + $0x4d8] sm:$0xff]
    %v4347 = vld [vmem:[%s8 + $0x4e0] sm:$0xff]
    %v4348 = vld [vmem:[%s8 + $0x4e8] sm:$0xff]
    %v4349 = vld [vmem:[%s8 + $0x4f0] sm:$0xff]
    %v4350 = vld [vmem:[%s8 + $0x4f8] sm:$0xff]
    %v4351 = vld [vmem:[%s8 + $0x500] sm:$0xff]
    %v4352 = vld [vmem:[%s8 + $0x508] sm:$0xff]
    %v4353 = vld [vmem:[%s8 + $0x510] sm:$0xff]
    %v4354 = vld [vmem:[%s8 + $0x518] sm:$0xff]
    %v4355 = vld [vmem:[%s8 + $0x520] sm:$0xff]
    %v4356 = vld [vmem:[%s8 + $0x528] sm:$0xff]
    %v4357 = vld [vmem:[%s8 + $0x530] sm:$0xff]
    %v4358 = vld [vmem:[%s8 + $0x538] sm:$0xff]
    %v4359 = vld [vmem:[%s8 + $0x540] sm:$0xff]
    %v4360 = vld [vmem:[%s8 + $0x548] sm:$0xff]
    %v4361 = vld [vmem:[%s8 + $0x550] sm:$0xff]
    %v4362 = vld [vmem:[%s8 + $0x558] sm:$0xff]
    %v4363 = vld [vmem:[%s8 + $0x560] sm:$0xff]
    %v4364 = vld [vmem:[%s8 + $0x568] sm:$0xff]
    %v4365 = vld [vmem:[%s8 + $0x570] sm:$0xff]
    %v4366 = vld [vmem:[%s8 + $0x578] sm:$0xff]
    %v4367 = vld [vmem:[%s8 + $0x580] sm:$0xff]
    %v4368 = vld [vmem:[%s8 + $0x588] sm:$0xff]
    %v4369 = vld [vmem:[%s8 + $0x590] sm:$0xff]
    %v4370 = vld [vmem:[%s8 + $0x598] sm:$0xff]
    %v4371 = vld [vmem:[%s8 + $0x5a0] sm:$0xff]
    %v4372 = vld [vmem:[%s8 + $0x5a8] sm:$0xff]
    %v4373 = vld [vmem:[%s8 + $0x5b0] sm:$0xff]
    %v4374 = vld [vmem:[%s8 + $0x5b8] sm:$0xff]
    %v4375 = vld [vmem:[%s8 + $0x5c0] sm:$0xff]
    %v4376 = vld [vmem:[%s8 + $0x5c8] sm:$0xff]
    %v4377 = vld [vmem:[%s8 + $0x5d0] sm:$0xff]
    %v4378 = vld [vmem:[%s8 + $0x5d8] sm:$0xff]
    %v4379 = vld [vmem:[%s8 + $0x5e0] sm:$0xff]
    %v4380 = vld [vmem:[%s8 + $0x5e8] sm:$0xff]
    %v4381 = vld [vmem:[%s8 + $0x5f0] sm:$0xff]
    %v4382 = vld [vmem:[%s8 + $0x5f8] sm:$0xff]
    %v4383 = vld [vmem:[%s8 + $0x600] sm:$0xff]
    %v4384 = vld [vmem:[%s8 + $0x608] sm:$0xff]
    %v4385 = vld [vmem:[%s8 + $0x610] sm:$0xff]
    %v4386 = vld [vmem:[%s8 + $0x618] sm:$0xff]
    %v4387 = vld [vmem:[%s8 + $0x620] sm:$0xff]
    %v4388 = vld [vmem:[%s8 + $0x628] sm:$0xff]
    %v4389 = vld [vmem:[%s8 + $0x630] sm:$0xff]
    %v4390 = vld [vmem:[%s8 + $0x638] sm:$0xff]
    %v4391 = vld [vmem:[%s8 + $0x640] sm:$0xff]
    %v4392 = vld [vmem:[%s8 + $0x648] sm:$0xff]
    %v4393 = vld [vmem:[%s8 + $0x650] sm:$0xff]
    %v4394 = vld [vmem:[%s8 + $0x658] sm:$0xff]
    %v4395 = vld [vmem:[%s8 + $0x660] sm:$0xff]
    %v4396 = vld [vmem:[%s8 + $0x668] sm:$0xff]
    %v4397 = vld [vmem:[%s8 + $0x670] sm:$0xff]
    %v4398 = vld [vmem:[%s8 + $0x678] sm:$0xff]
    %v4399 = vld [vmem:[%s8 + $0x680] sm:$0xff]
    %v4400 = vld [vmem:[%s8 + $0x688] sm:$0xff]
    %v4401 = vld [vmem:[%s8 + $0x690] sm:$0xff]
    %v4402 = vld [vmem:[%s8 + $0x698] sm:$0xff]
    %v4403 = vld [vmem:[%s8 + $0x6a0] sm:$0xff]
    %v4404 = vld [vmem:[%s8 + $0x6a8] sm:$0xff]
    %v4405 = vld [vmem:[%s8 + $0x6b0] sm:$0xff]
    %v4406 = vld [vmem:[%s8 + $0x6b8] sm:$0xff]
    %v4407 = vld [vmem:[%s8 + $0x6c0] sm:$0xff]
    %v4408 = vld [vmem:[%s8 + $0x6c8] sm:$0xff]
    %v4409 = vld [vmem:[%s8 + $0x6d0] sm:$0xff]
    %v4410 = vld [vmem:[%s8 + $0x6d8] sm:$0xff]
    %v4411 = vld [vmem:[%s8 + $0x6e0] sm:$0xff]
    %v4412 = vld [vmem:[%s8 + $0x6e8] sm:$0xff]
    %v4413 = vld [vmem:[%s8 + $0x6f0] sm:$0xff]
    %v4414 = vld [vmem:[%s8 + $0x6f8] sm:$0xff]
    %v4415 = vld [vmem:[%s8 + $0x700] sm:$0xff]
    %v4416 = vld [vmem:[%s8 + $0x708] sm:$0xff]
    %v4417 = vld [vmem:[%s8 + $0x710] sm:$0xff]
    %v4418 = vld [vmem:[%s8 + $0x718] sm:$0xff]
    %v4419 = vld [vmem:[%s8 + $0x720] sm:$0xff]
    %v4420 = vld [vmem:[%s8 + $0x728] sm:$0xff]
    %v4421 = vld [vmem:[%s8 + $0x730] sm:$0xff]
    %v4422 = vld [vmem:[%s8 + $0x738] sm:$0xff]
    %v4423 = vld [vmem:[%s8 + $0x740] sm:$0xff]
    %v4424 = vld [vmem:[%s8 + $0x748] sm:$0xff]
    %v4425 = vld [vmem:[%s8 + $0x750] sm:$0xff]
    %v4426 = vld [vmem:[%s8 + $0x758] sm:$0xff]
    %v4427 = vld [vmem:[%s8 + $0x760] sm:$0xff]
    %v4428 = vld [vmem:[%s8 + $0x768] sm:$0xff]
    %v4429 = vld [vmem:[%s8 + $0x770] sm:$0xff]
    %v4430 = vld [vmem:[%s8 + $0x778] sm:$0xff]
    %v4431 = vld [vmem:[%s8 + $0x780] sm:$0xff]
    %v4432 = vld [vmem:[%s8 + $0x788] sm:$0xff]
    %v4433 = vld [vmem:[%s8 + $0x790] sm:$0xff]
    %v4434 = vld [vmem:[%s8 + $0x798] sm:$0xff]
    %v4435 = vld [vmem:[%s8 + $0x7a0] sm:$0xff]
    %v4436 = vld [vmem:[%s8 + $0x7a8] sm:$0xff]
    %v4437 = vld [vmem:[%s8 + $0x7b0] sm:$0xff]
    %v4438 = vld [vmem:[%s8 + $0x7b8] sm:$0xff]
    %v4439 = vld [vmem:[%s8 + $0x7c0] sm:$0xff]
    %v4440 = vld [vmem:[%s8 + $0x7c8] sm:$0xff]
    %v4441 = vld [vmem:[%s8 + $0x7d0] sm:$0xff]
    %v4442 = vld [vmem:[%s8 + $0x7d8] sm:$0xff]
    %v4443 = vld [vmem:[%s8 + $0x7e0] sm:$0xff]
    %v4444 = vld [vmem:[%s8 + $0x7e8] sm:$0xff]
    %v4445 = vld [vmem:[%s8 + $0x7f0] sm:$0xff]
    %v4446 = vld [vmem:[%s8 + $0x7f8] sm:$0xff]
    %v4447 = vld [vmem:[%s8 + $0x800] sm:$0xff]
    %v4448 = vld [vmem:[%s8 + $0x808] sm:$0xff]
    %v4449 = vld [vmem:[%s8 + $0x810] sm:$0xff]
    %v4450 = vld [vmem:[%s8 + $0x818] sm:$0xff]
    %v4451 = vld [vmem:[%s8 + $0x820] sm:$0xff]
    %v4452 = vld [vmem:[%s8 + $0x828] sm:$0xff]
    %v4453 = vld [vmem:[%s8 + $0x830] sm:$0xff]
    %v4454 = vld [vmem:[%s8 + $0x838] sm:$0xff]
    %v4455 = vld [vmem:[%s8 + $0x840] sm:$0xff]
    %v4456 = vld [vmem:[%s8 + $0x848] sm:$0xff]
    %v4457 = vld [vmem:[%s8 + $0x850] sm:$0xff]
    %v4458 = vld [vmem:[%s8 + $0x858] sm:$0xff]
    %v4459 = vld [vmem:[%s8 + $0x860] sm:$0xff]
    %v4460 = vld [vmem:[%s8 + $0x868] sm:$0xff]
    %v4461 = vld [vmem:[%s8 + $0x870] sm:$0xff]
    %v4462 = vld [vmem:[%s8 + $0x878] sm:$0xff]
    %v4463 = vld [vmem:[%s8 + $0x880] sm:$0xff]
    %v4464 = vld [vmem:[%s8 + $0x888] sm:$0xff]
    %v4465 = vld [vmem:[%s8 + $0x890] sm:$0xff]
    %v4466 = vld [vmem:[%s8 + $0x898] sm:$0xff]
    %v4467 = vld [vmem:[%s8 + $0x8a0] sm:$0xff]
    %v4468 = vld [vmem:[%s8 + $0x8a8] sm:$0xff]
    %v4469 = vld [vmem:[%s8 + $0x8b0] sm:$0xff]
    %v4470 = vld [vmem:[%s8 + $0x8b8] sm:$0xff]
    %v4471 = vld [vmem:[%s8 + $0x8c0] sm:$0xff]
    %v4472 = vld [vmem:[%s8 + $0x8c8] sm:$0xff]
    %v4473 = vld [vmem:[%s8 + $0x8d0] sm:$0xff]
    %v4474 = vld [vmem:[%s8 + $0x8d8] sm:$0xff]
    %v4475 = vld [vmem:[%s8 + $0x8e0] sm:$0xff]
    %v4476 = vld [vmem:[%s8 + $0x8e8] sm:$0xff]
    %v4477 = vld [vmem:[%s8 + $0x8f0] sm:$0xff]
    %v4478 = vld [vmem:[%s8 + $0x8f8] sm:$0xff]
    %v4482 = vlaneseq
    %v4483 = vshrl.u32 %v4482, 7
    %v4484 = vsub.s32 0, %v4483
    %v4485 = vrot.slane %v4188, %v4484
    %v4486 = vlaneseq
    %v4487 = vshrl.u32 %v4486, 7
    %v4488 = vsub.s32 4, %v4487
    %v4489 = vrot.slane %v4188, %v4488
    %v4490 = vlaneseq
    %v4491 = vshrl.u32 %v4490, 7
    %v4492 = vsub.s32 0, %v4491
    %v4493 = vrot.slane %v4189, %v4492
    %v4494 = vlaneseq
    %v4495 = vshrl.u32 %v4494, 7
    %v4496 = vsub.s32 4, %v4495
    %v4497 = vrot.slane %v4189, %v4496
    %v4498 = vlaneseq
    %v4499 = vshrl.u32 %v4498, 7
    %v4500 = vsub.s32 0, %v4499
    %v4501 = vrot.slane %v4190, %v4500
    %v4502 = vlaneseq
    %v4503 = vshrl.u32 %v4502, 7
    %v4504 = vsub.s32 4, %v4503
    %v4505 = vrot.slane %v4190, %v4504
    %v4512 = vlaneseq
    %v4513 = vshrl.u32 %v4512, 7
    %v4514 = vsub.s32 0, %v4513
    %v4515 = vrot.slane %v4485, %v4514
    %v4516 = vlaneseq
    %v4517 = vshrl.u32 %v4516, 7
    %v4518 = vsub.s32 0, %v4517
    %v4519 = vrot.slane %v4489, %v4518
    %v4520 = vlaneseq
    %v4521 = vshrl.u32 %v4520, 7
    %v4522 = vsub.s32 0, %v4521
    %v4523 = vrot.slane %v4493, %v4522
    %v4524 = vlaneseq
    %v4525 = vshrl.u32 %v4524, 7
    %v4526 = vsub.s32 0, %v4525
    %v4527 = vrot.slane %v4497, %v4526
    %v4528 = vlaneseq
    %v4529 = vshrl.u32 %v4528, 7
    %v4530 = vsub.s32 0, %v4529
    %v4531 = vrot.slane %v4501, %v4530
    %v4532 = vlaneseq
    %v4533 = vshrl.u32 %v4532, 7
    %v4534 = vsub.s32 0, %v4533
    %v4535 = vrot.slane %v4505, %v4534
    %v4570 = vunpack.c.l.b16 %v3962
    %v4571 = vunpack.c.h.b16 %v3962
    %v4572 = vunpack.c.l.b16 %v3963
    %v4573 = vunpack.c.h.b16 %v3963
    %v4574 = vunpack.c.l.b16 %v3964
    %v4575 = vunpack.c.h.b16 %v3964
    %v4576 = vunpack.c.l.b16 %v3965
    %v4577 = vunpack.c.h.b16 %v3965
    %v4578 = vunpack.c.l.b16 %v3966
    %v4579 = vunpack.c.h.b16 %v3966
    %v4580 = vunpack.c.l.b16 %v3967
    %v4581 = vunpack.c.h.b16 %v3967
    %v4582 = vunpack.c.l.b16 %v3968
    %v4583 = vunpack.c.h.b16 %v3968
    %v4584 = vunpack.c.l.b16 %v3969
    %v4585 = vunpack.c.h.b16 %v3969
    %v4586 = vunpack.c.l.b16 %v3970
    %v4587 = vunpack.c.h.b16 %v3970
    %v4588 = vunpack.c.l.b16 %v3971
    %v4589 = vunpack.c.h.b16 %v3971
    %v4590 = vunpack.c.l.b16 %v3972
    %v4591 = vunpack.c.h.b16 %v3972
    %v4592 = vunpack.c.l.b16 %v3973
    %v4593 = vunpack.c.h.b16 %v3973
    %v4594 = vunpack.c.l.b16 %v3974
    %v4595 = vunpack.c.h.b16 %v3974
    %v4596 = vunpack.c.l.b16 %v3975
    %v4597 = vunpack.c.h.b16 %v3975
    %v4598 = vunpack.c.l.b16 %v3976
    %v4599 = vunpack.c.h.b16 %v3976
    %v4600 = vunpack.c.l.b16 %v3977
    %v4601 = vunpack.c.h.b16 %v3977
    %v4602 = vunpack.c.l.b16 %v3978
    %v4603 = vunpack.c.h.b16 %v3978
    %v4604 = vunpack.c.l.b16 %v3979
    %v4605 = vunpack.c.h.b16 %v3979
    %v4606 = vunpack.c.l.b16 %v3980
    %v4607 = vunpack.c.h.b16 %v3980
    %v4608 = vunpack.c.l.b16 %v3981
    %v4609 = vunpack.c.h.b16 %v3981
    %v4610 = vunpack.c.l.b16 %v3982
    %v4611 = vunpack.c.h.b16 %v3982
    %v4612 = vunpack.c.l.b16 %v3983
    %v4613 = vunpack.c.h.b16 %v3983
    %v4614 = vunpack.c.l.b16 %v3984
    %v4615 = vunpack.c.h.b16 %v3984
    %v4616 = vunpack.c.l.b16 %v3985
    %v4617 = vunpack.c.h.b16 %v3985
    %v4618 = vunpack.c.l.b16 %v3986
    %v4619 = vunpack.c.h.b16 %v3986
    %v4620 = vunpack.c.l.b16 %v3987
    %v4621 = vunpack.c.h.b16 %v3987
    %v4622 = vunpack.c.l.b16 %v3988
    %v4623 = vunpack.c.h.b16 %v3988
    %v4624 = vunpack.c.l.b16 %v3989
    %v4625 = vunpack.c.h.b16 %v3989
    %v4626 = vunpack.c.l.b16 %v3990
    %v4627 = vunpack.c.h.b16 %v3990
    %v4628 = vunpack.c.l.b16 %v3991
    %v4629 = vunpack.c.h.b16 %v3991
    %v4630 = vunpack.c.l.b16 %v3992
    %v4631 = vunpack.c.h.b16 %v3992
    %v4632 = vunpack.c.l.b16 %v3993
    %v4633 = vunpack.c.h.b16 %v3993
    %v4634 = vunpack.c.l.b16 %v3994
    %v4635 = vunpack.c.h.b16 %v3994
    %v4636 = vunpack.c.l.b16 %v3995
    %v4637 = vunpack.c.h.b16 %v3995
    %v4638 = vpack.c.b16 %v4574, %v4570
    %v4639 = vpack.c.b16 %v4575, %v4571
    %v4640 = vpack.c.b16 %v4576, %v4572
    %v4641 = vpack.c.b16 %v4577, %v4573
    %v4642 = vpack.c.b16 %v4582, %v4578
    %v4643 = vpack.c.b16 %v4583, %v4579
    %v4644 = vpack.c.b16 %v4584, %v4580
    %v4645 = vpack.c.b16 %v4585, %v4581
    %v4646 = vpack.c.b16 %v4590, %v4586
    %v4647 = vpack.c.b16 %v4591, %v4587
    %v4648 = vpack.c.b16 %v4592, %v4588
    %v4649 = vpack.c.b16 %v4593, %v4589
    %v4650 = vpack.c.b16 %v4598, %v4594
    %v4651 = vpack.c.b16 %v4599, %v4595
    %v4652 = vpack.c.b16 %v4600, %v4596
    %v4653 = vpack.c.b16 %v4601, %v4597
    %v4654 = vpack.c.b16 %v4606, %v4602
    %v4655 = vpack.c.b16 %v4607, %v4603
    %v4656 = vpack.c.b16 %v4608, %v4604
    %v4657 = vpack.c.b16 %v4609, %v4605
    %v4658 = vpack.c.b16 %v4614, %v4610
    %v4659 = vpack.c.b16 %v4615, %v4611
    %v4660 = vpack.c.b16 %v4616, %v4612
    %v4661 = vpack.c.b16 %v4617, %v4613
    %v4662 = vpack.c.b16 %v4622, %v4618
    %v4663 = vpack.c.b16 %v4623, %v4619
    %v4664 = vpack.c.b16 %v4624, %v4620
    %v4665 = vpack.c.b16 %v4625, %v4621
    %v4666 = vpack.c.b16 %v4630, %v4626
    %v4667 = vpack.c.b16 %v4631, %v4627
    %v4668 = vpack.c.b16 %v4632, %v4628
    %v4669 = vpack.c.b16 %v4633, %v4629
    %v4670 = vpack.c.b16 %v4634, %v4634
    %v4671 = vpack.c.b16 %v4635, %v4635
    %v4672 = vpack.c.b16 %v4636, %v4636
    %v4673 = vpack.c.b16 %v4637, %v4637
    %v4902 = vunpack.c.l.b16 %v3996
    %v4903 = vunpack.c.h.b16 %v3996
    %v4904 = vunpack.c.l.b16 %v3997
    %v4905 = vunpack.c.h.b16 %v3997
    %v4906 = vunpack.c.l.b16 %v3998
    %v4907 = vunpack.c.h.b16 %v3998
    %v4908 = vunpack.c.l.b16 %v3999
    %v4909 = vunpack.c.h.b16 %v3999
    %v4910 = vunpack.c.l.b16 %v4000
    %v4911 = vunpack.c.h.b16 %v4000
    %v4912 = vunpack.c.l.b16 %v4001
    %v4913 = vunpack.c.h.b16 %v4001
    %v4914 = vunpack.c.l.b16 %v4002
    %v4915 = vunpack.c.h.b16 %v4002
    %v4916 = vunpack.c.l.b16 %v4003
    %v4917 = vunpack.c.h.b16 %v4003
    %v4918 = vunpack.c.l.b16 %v4004
    %v4919 = vunpack.c.h.b16 %v4004
    %v4920 = vunpack.c.l.b16 %v4005
    %v4921 = vunpack.c.h.b16 %v4005
    %v4922 = vunpack.c.l.b16 %v4006
    %v4923 = vunpack.c.h.b16 %v4006
    %v4924 = vunpack.c.l.b16 %v4007
    %v4925 = vunpack.c.h.b16 %v4007
    %v4926 = vunpack.c.l.b16 %v4008
    %v4927 = vunpack.c.h.b16 %v4008
    %v4928 = vunpack.c.l.b16 %v4009
    %v4929 = vunpack.c.h.b16 %v4009
    %v4930 = vunpack.c.l.b16 %v4010
    %v4931 = vunpack.c.h.b16 %v4010
    %v4932 = vunpack.c.l.b16 %v4011
    %v4933 = vunpack.c.h.b16 %v4011
    %v4934 = vunpack.c.l.b16 %v4012
    %v4935 = vunpack.c.h.b16 %v4012
    %v4936 = vunpack.c.l.b16 %v4013
    %v4937 = vunpack.c.h.b16 %v4013
    %v4938 = vunpack.c.l.b16 %v4014
    %v4939 = vunpack.c.h.b16 %v4014
    %v4940 = vunpack.c.l.b16 %v4015
    %v4941 = vunpack.c.h.b16 %v4015
    %v4942 = vunpack.c.l.b16 %v4016
    %v4943 = vunpack.c.h.b16 %v4016
    %v4944 = vunpack.c.l.b16 %v4017
    %v4945 = vunpack.c.h.b16 %v4017
    %v4946 = vunpack.c.l.b16 %v4018
    %v4947 = vunpack.c.h.b16 %v4018
    %v4948 = vunpack.c.l.b16 %v4019
    %v4949 = vunpack.c.h.b16 %v4019
    %v4950 = vunpack.c.l.b16 %v4020
    %v4951 = vunpack.c.h.b16 %v4020
    %v4952 = vunpack.c.l.b16 %v4021
    %v4953 = vunpack.c.h.b16 %v4021
    %v4954 = vunpack.c.l.b16 %v4022
    %v4955 = vunpack.c.h.b16 %v4022
    %v4956 = vunpack.c.l.b16 %v4023
    %v4957 = vunpack.c.h.b16 %v4023
    %v4958 = vunpack.c.l.b16 %v4024
    %v4959 = vunpack.c.h.b16 %v4024
    %v4960 = vunpack.c.l.b16 %v4025
    %v4961 = vunpack.c.h.b16 %v4025
    %v4962 = vunpack.c.l.b16 %v4026
    %v4963 = vunpack.c.h.b16 %v4026
    %v4964 = vunpack.c.l.b16 %v4027
    %v4965 = vunpack.c.h.b16 %v4027
    %v4966 = vunpack.c.l.b16 %v4028
    %v4967 = vunpack.c.h.b16 %v4028
    %v4968 = vunpack.c.l.b16 %v4029
    %v4969 = vunpack.c.h.b16 %v4029
    %v4970 = vunpack.c.l.b16 %v4030
    %v4971 = vunpack.c.h.b16 %v4030
    %v4972 = vunpack.c.l.b16 %v4031
    %v4973 = vunpack.c.h.b16 %v4031
    %v4974 = vunpack.c.l.b16 %v4032
    %v4975 = vunpack.c.h.b16 %v4032
    %v4976 = vunpack.c.l.b16 %v4033
    %v4977 = vunpack.c.h.b16 %v4033
    %v4978 = vunpack.c.l.b16 %v4034
    %v4979 = vunpack.c.h.b16 %v4034
    %v4980 = vunpack.c.l.b16 %v4035
    %v4981 = vunpack.c.h.b16 %v4035
    %v4982 = vunpack.c.l.b16 %v4036
    %v4983 = vunpack.c.h.b16 %v4036
    %v4984 = vunpack.c.l.b16 %v4037
    %v4985 = vunpack.c.h.b16 %v4037
    %v4986 = vunpack.c.l.b16 %v4038
    %v4987 = vunpack.c.h.b16 %v4038
    %v4988 = vunpack.c.l.b16 %v4039
    %v4989 = vunpack.c.h.b16 %v4039
    %v4990 = vunpack.c.l.b16 %v4040
    %v4991 = vunpack.c.h.b16 %v4040
    %v4992 = vunpack.c.l.b16 %v4041
    %v4993 = vunpack.c.h.b16 %v4041
    %v4994 = vunpack.c.l.b16 %v4042
    %v4995 = vunpack.c.h.b16 %v4042
    %v4996 = vunpack.c.l.b16 %v4043
    %v4997 = vunpack.c.h.b16 %v4043
    %v4998 = vunpack.c.l.b16 %v4044
    %v4999 = vunpack.c.h.b16 %v4044
    %v5000 = vunpack.c.l.b16 %v4045
    %v5001 = vunpack.c.h.b16 %v4045
    %v5002 = vunpack.c.l.b16 %v4046
    %v5003 = vunpack.c.h.b16 %v4046
    %v5004 = vunpack.c.l.b16 %v4047
    %v5005 = vunpack.c.h.b16 %v4047
    %v5006 = vunpack.c.l.b16 %v4048
    %v5007 = vunpack.c.h.b16 %v4048
    %v5008 = vunpack.c.l.b16 %v4049
    %v5009 = vunpack.c.h.b16 %v4049
    %v5010 = vunpack.c.l.b16 %v4050
    %v5011 = vunpack.c.h.b16 %v4050
    %v5012 = vunpack.c.l.b16 %v4051
    %v5013 = vunpack.c.h.b16 %v4051
    %v5014 = vunpack.c.l.b16 %v4052
    %v5015 = vunpack.c.h.b16 %v4052
    %v5016 = vunpack.c.l.b16 %v4053
    %v5017 = vunpack.c.h.b16 %v4053
    %v5018 = vunpack.c.l.b16 %v4054
    %v5019 = vunpack.c.h.b16 %v4054
    %v5020 = vunpack.c.l.b16 %v4055
    %v5021 = vunpack.c.h.b16 %v4055
    %v5022 = vunpack.c.l.b16 %v4056
    %v5023 = vunpack.c.h.b16 %v4056
    %v5024 = vunpack.c.l.b16 %v4057
    %v5025 = vunpack.c.h.b16 %v4057
    %v5026 = vunpack.c.l.b16 %v4058
    %v5027 = vunpack.c.h.b16 %v4058
    %v5028 = vunpack.c.l.b16 %v4059
    %v5029 = vunpack.c.h.b16 %v4059
    %v5030 = vunpack.c.l.b16 %v4060
    %v5031 = vunpack.c.h.b16 %v4060
    %v5032 = vunpack.c.l.b16 %v4061
    %v5033 = vunpack.c.h.b16 %v4061
    %v5034 = vunpack.c.l.b16 %v4062
    %v5035 = vunpack.c.h.b16 %v4062
    %v5036 = vunpack.c.l.b16 %v4063
    %v5037 = vunpack.c.h.b16 %v4063
    %v5038 = vunpack.c.l.b16 %v4064
    %v5039 = vunpack.c.h.b16 %v4064
    %v5040 = vunpack.c.l.b16 %v4065
    %v5041 = vunpack.c.h.b16 %v4065
    %v5042 = vunpack.c.l.b16 %v4066
    %v5043 = vunpack.c.h.b16 %v4066
    %v5044 = vunpack.c.l.b16 %v4067
    %v5045 = vunpack.c.h.b16 %v4067
    %v5046 = vunpack.c.l.b16 %v4068
    %v5047 = vunpack.c.h.b16 %v4068
    %v5048 = vunpack.c.l.b16 %v4069
    %v5049 = vunpack.c.h.b16 %v4069
    %v5050 = vunpack.c.l.b16 %v4070
    %v5051 = vunpack.c.h.b16 %v4070
    %v5052 = vunpack.c.l.b16 %v4071
    %v5053 = vunpack.c.h.b16 %v4071
    %v5054 = vunpack.c.l.b16 %v4072
    %v5055 = vunpack.c.h.b16 %v4072
    %v5056 = vunpack.c.l.b16 %v4073
    %v5057 = vunpack.c.h.b16 %v4073
    %v5058 = vunpack.c.l.b16 %v4074
    %v5059 = vunpack.c.h.b16 %v4074
    %v5060 = vunpack.c.l.b16 %v4075
    %v5061 = vunpack.c.h.b16 %v4075
    %v5062 = vunpack.c.l.b16 %v4076
    %v5063 = vunpack.c.h.b16 %v4076
    %v5064 = vunpack.c.l.b16 %v4077
    %v5065 = vunpack.c.h.b16 %v4077
    %v5066 = vunpack.c.l.b16 %v4078
    %v5067 = vunpack.c.h.b16 %v4078
    %v5068 = vunpack.c.l.b16 %v4079
    %v5069 = vunpack.c.h.b16 %v4079
    %v5070 = vunpack.c.l.b16 %v4080
    %v5071 = vunpack.c.h.b16 %v4080
    %v5072 = vunpack.c.l.b16 %v4081
    %v5073 = vunpack.c.h.b16 %v4081
    %v5074 = vunpack.c.l.b16 %v4082
    %v5075 = vunpack.c.h.b16 %v4082
    %v5076 = vunpack.c.l.b16 %v4083
    %v5077 = vunpack.c.h.b16 %v4083
    %v5078 = vunpack.c.l.b16 %v4084
    %v5079 = vunpack.c.h.b16 %v4084
    %v5080 = vunpack.c.l.b16 %v4085
    %v5081 = vunpack.c.h.b16 %v4085
    %v5082 = vunpack.c.l.b16 %v4086
    %v5083 = vunpack.c.h.b16 %v4086
    %v5084 = vunpack.c.l.b16 %v4087
    %v5085 = vunpack.c.h.b16 %v4087
    %v5086 = vunpack.c.l.b16 %v4088
    %v5087 = vunpack.c.h.b16 %v4088
    %v5088 = vunpack.c.l.b16 %v4089
    %v5089 = vunpack.c.h.b16 %v4089
    %v5090 = vunpack.c.l.b16 %v4090
    %v5091 = vunpack.c.h.b16 %v4090
    %v5092 = vunpack.c.l.b16 %v4091
    %v5093 = vunpack.c.h.b16 %v4091
    %v5094 = vunpack.c.l.b16 %v4092
    %v5095 = vunpack.c.h.b16 %v4092
    %v5096 = vunpack.c.l.b16 %v4093
    %v5097 = vunpack.c.h.b16 %v4093
    %v5098 = vunpack.c.l.b16 %v4094
    %v5099 = vunpack.c.h.b16 %v4094
    %v5100 = vunpack.c.l.b16 %v4095
    %v5101 = vunpack.c.h.b16 %v4095
    %v5102 = vunpack.c.l.b16 %v4096
    %v5103 = vunpack.c.h.b16 %v4096
    %v5104 = vunpack.c.l.b16 %v4097
    %v5105 = vunpack.c.h.b16 %v4097
    %v5106 = vunpack.c.l.b16 %v4098
    %v5107 = vunpack.c.h.b16 %v4098
    %v5108 = vunpack.c.l.b16 %v4099
    %v5109 = vunpack.c.h.b16 %v4099
    %v5110 = vunpack.c.l.b16 %v4100
    %v5111 = vunpack.c.h.b16 %v4100
    %v5112 = vunpack.c.l.b16 %v4101
    %v5113 = vunpack.c.h.b16 %v4101
    %v5114 = vunpack.c.l.b16 %v4102
    %v5115 = vunpack.c.h.b16 %v4102
    %v5116 = vunpack.c.l.b16 %v4103
    %v5117 = vunpack.c.h.b16 %v4103
    %v5118 = vunpack.c.l.b16 %v4104
    %v5119 = vunpack.c.h.b16 %v4104
    %v5120 = vunpack.c.l.b16 %v4105
    %v5121 = vunpack.c.h.b16 %v4105
    %v5122 = vunpack.c.l.b16 %v4106
    %v5123 = vunpack.c.h.b16 %v4106
    %v5124 = vunpack.c.l.b16 %v4107
    %v5125 = vunpack.c.h.b16 %v4107
    %v5126 = vunpack.c.l.b16 %v4108
    %v5127 = vunpack.c.h.b16 %v4108
    %v5128 = vunpack.c.l.b16 %v4109
    %v5129 = vunpack.c.h.b16 %v4109
    %v5130 = vunpack.c.l.b16 %v4110
    %v5131 = vunpack.c.h.b16 %v4110
    %v5132 = vunpack.c.l.b16 %v4111
    %v5133 = vunpack.c.h.b16 %v4111
    %v5134 = vunpack.c.l.b16 %v4112
    %v5135 = vunpack.c.h.b16 %v4112
    %v5136 = vunpack.c.l.b16 %v4113
    %v5137 = vunpack.c.h.b16 %v4113
    %v5138 = vunpack.c.l.b16 %v4114
    %v5139 = vunpack.c.h.b16 %v4114
    %v5140 = vunpack.c.l.b16 %v4115
    %v5141 = vunpack.c.h.b16 %v4115
    %v5142 = vunpack.c.l.b16 %v4116
    %v5143 = vunpack.c.h.b16 %v4116
    %v5144 = vunpack.c.l.b16 %v4117
    %v5145 = vunpack.c.h.b16 %v4117
    %v5146 = vunpack.c.l.b16 %v4118
    %v5147 = vunpack.c.h.b16 %v4118
    %v5148 = vunpack.c.l.b16 %v4119
    %v5149 = vunpack.c.h.b16 %v4119
    %v5150 = vunpack.c.l.b16 %v4120
    %v5151 = vunpack.c.h.b16 %v4120
    %v5152 = vunpack.c.l.b16 %v4121
    %v5153 = vunpack.c.h.b16 %v4121
    %v5154 = vunpack.c.l.b16 %v4122
    %v5155 = vunpack.c.h.b16 %v4122
    %v5156 = vunpack.c.l.b16 %v4123
    %v5157 = vunpack.c.h.b16 %v4123
    %v5158 = vunpack.c.l.b16 %v4124
    %v5159 = vunpack.c.h.b16 %v4124
    %v5160 = vunpack.c.l.b16 %v4125
    %v5161 = vunpack.c.h.b16 %v4125
    %v5162 = vunpack.c.l.b16 %v4126
    %v5163 = vunpack.c.h.b16 %v4126
    %v5164 = vunpack.c.l.b16 %v4127
    %v5165 = vunpack.c.h.b16 %v4127
    %v5166 = vunpack.c.l.b16 %v4128
    %v5167 = vunpack.c.h.b16 %v4128
    %v5168 = vunpack.c.l.b16 %v4129
    %v5169 = vunpack.c.h.b16 %v4129
    %v5170 = vunpack.c.l.b16 %v4130
    %v5171 = vunpack.c.h.b16 %v4130
    %v5172 = vunpack.c.l.b16 %v4131
    %v5173 = vunpack.c.h.b16 %v4131
    %v5174 = vunpack.c.l.b16 %v4132
    %v5175 = vunpack.c.h.b16 %v4132
    %v5176 = vunpack.c.l.b16 %v4133
    %v5177 = vunpack.c.h.b16 %v4133
    %v5178 = vunpack.c.l.b16 %v4134
    %v5179 = vunpack.c.h.b16 %v4134
    %v5180 = vunpack.c.l.b16 %v4135
    %v5181 = vunpack.c.h.b16 %v4135
    %v5182 = vunpack.c.l.b16 %v4136
    %v5183 = vunpack.c.h.b16 %v4136
    %v5184 = vunpack.c.l.b16 %v4137
    %v5185 = vunpack.c.h.b16 %v4137
    %v5186 = vunpack.c.l.b16 %v4138
    %v5187 = vunpack.c.h.b16 %v4138
    %v5188 = vunpack.c.l.b16 %v4139
    %v5189 = vunpack.c.h.b16 %v4139
    %v5190 = vunpack.c.l.b16 %v4140
    %v5191 = vunpack.c.h.b16 %v4140
    %v5192 = vunpack.c.l.b16 %v4141
    %v5193 = vunpack.c.h.b16 %v4141
    %v5194 = vunpack.c.l.b16 %v4142
    %v5195 = vunpack.c.h.b16 %v4142
    %v5196 = vunpack.c.l.b16 %v4143
    %v5197 = vunpack.c.h.b16 %v4143
    %v5198 = vunpack.c.l.b16 %v4144
    %v5199 = vunpack.c.h.b16 %v4144
    %v5200 = vunpack.c.l.b16 %v4145
    %v5201 = vunpack.c.h.b16 %v4145
    %v5202 = vunpack.c.l.b16 %v4146
    %v5203 = vunpack.c.h.b16 %v4146
    %v5204 = vunpack.c.l.b16 %v4147
    %v5205 = vunpack.c.h.b16 %v4147
    %v5206 = vunpack.c.l.b16 %v4148
    %v5207 = vunpack.c.h.b16 %v4148
    %v5208 = vunpack.c.l.b16 %v4149
    %v5209 = vunpack.c.h.b16 %v4149
    %v5210 = vunpack.c.l.b16 %v4150
    %v5211 = vunpack.c.h.b16 %v4150
    %v5212 = vunpack.c.l.b16 %v4151
    %v5213 = vunpack.c.h.b16 %v4151
    %v5214 = vunpack.c.l.b16 %v4152
    %v5215 = vunpack.c.h.b16 %v4152
    %v5216 = vunpack.c.l.b16 %v4153
    %v5217 = vunpack.c.h.b16 %v4153
    %v5218 = vunpack.c.l.b16 %v4154
    %v5219 = vunpack.c.h.b16 %v4154
    %v5220 = vunpack.c.l.b16 %v4155
    %v5221 = vunpack.c.h.b16 %v4155
    %v5222 = vunpack.c.l.b16 %v4156
    %v5223 = vunpack.c.h.b16 %v4156
    %v5224 = vunpack.c.l.b16 %v4157
    %v5225 = vunpack.c.h.b16 %v4157
    %v5226 = vunpack.c.l.b16 %v4158
    %v5227 = vunpack.c.h.b16 %v4158
    %v5228 = vunpack.c.l.b16 %v4159
    %v5229 = vunpack.c.h.b16 %v4159
    %v5230 = vunpack.c.l.b16 %v4160
    %v5231 = vunpack.c.h.b16 %v4160
    %v5232 = vunpack.c.l.b16 %v4161
    %v5233 = vunpack.c.h.b16 %v4161
    %v5234 = vunpack.c.l.b16 %v4162
    %v5235 = vunpack.c.h.b16 %v4162
    %v5236 = vunpack.c.l.b16 %v4163
    %v5237 = vunpack.c.h.b16 %v4163
    %v5238 = vunpack.c.l.b16 %v4164
    %v5239 = vunpack.c.h.b16 %v4164
    %v5240 = vunpack.c.l.b16 %v4165
    %v5241 = vunpack.c.h.b16 %v4165
    %v5242 = vunpack.c.l.b16 %v4166
    %v5243 = vunpack.c.h.b16 %v4166
    %v5244 = vunpack.c.l.b16 %v4167
    %v5245 = vunpack.c.h.b16 %v4167
    %v5246 = vunpack.c.l.b16 %v4168
    %v5247 = vunpack.c.h.b16 %v4168
    %v5248 = vunpack.c.l.b16 %v4169
    %v5249 = vunpack.c.h.b16 %v4169
    %v5250 = vunpack.c.l.b16 %v4170
    %v5251 = vunpack.c.h.b16 %v4170
    %v5252 = vunpack.c.l.b16 %v4171
    %v5253 = vunpack.c.h.b16 %v4171
    %v5254 = vunpack.c.l.b16 %v4172
    %v5255 = vunpack.c.h.b16 %v4172
    %v5256 = vunpack.c.l.b16 %v4173
    %v5257 = vunpack.c.h.b16 %v4173
    %v5258 = vunpack.c.l.b16 %v4174
    %v5259 = vunpack.c.h.b16 %v4174
    %v5260 = vunpack.c.l.b16 %v4175
    %v5261 = vunpack.c.h.b16 %v4175
    %v5262 = vunpack.c.l.b16 %v4176
    %v5263 = vunpack.c.h.b16 %v4176
    %v5264 = vunpack.c.l.b16 %v4177
    %v5265 = vunpack.c.h.b16 %v4177
    %v5266 = vunpack.c.l.b16 %v4178
    %v5267 = vunpack.c.h.b16 %v4178
    %v5268 = vunpack.c.l.b16 %v4179
    %v5269 = vunpack.c.h.b16 %v4179
    %v5270 = vunpack.c.l.b16 %v4180
    %v5271 = vunpack.c.h.b16 %v4180
    %v5272 = vunpack.c.l.b16 %v4181
    %v5273 = vunpack.c.h.b16 %v4181
    %v5274 = vunpack.c.l.b16 %v4182
    %v5275 = vunpack.c.h.b16 %v4182
    %v5276 = vunpack.c.l.b16 %v4183
    %v5277 = vunpack.c.h.b16 %v4183
    %v5278 = vunpack.c.l.b16 %v4184
    %v5279 = vunpack.c.h.b16 %v4184
    %v5280 = vunpack.c.l.b16 %v4185
    %v5281 = vunpack.c.h.b16 %v4185
    %v5282 = vunpack.c.l.b16 %v4186
    %v5283 = vunpack.c.h.b16 %v4186
    %v5284 = vunpack.c.l.b16 %v4187
    %v5285 = vunpack.c.h.b16 %v4187
    %v5286 = vpack.c.b16 %v4908, %v4902
    %v5287 = vpack.c.b16 %v4909, %v4903
    %v5288 = vpack.c.b16 %v4910, %v4904
    %v5289 = vpack.c.b16 %v4911, %v4905
    %v5290 = vpack.c.b16 %v4912, %v4906
    %v5291 = vpack.c.b16 %v4913, %v4907
    %v5292 = vpack.c.b16 %v4920, %v4914
    %v5293 = vpack.c.b16 %v4921, %v4915
    %v5294 = vpack.c.b16 %v4922, %v4916
    %v5295 = vpack.c.b16 %v4923, %v4917
    %v5296 = vpack.c.b16 %v4924, %v4918
    %v5297 = vpack.c.b16 %v4925, %v4919
    %v5298 = vpack.c.b16 %v4932, %v4926
    %v5299 = vpack.c.b16 %v4933, %v4927
    %v5300 = vpack.c.b16 %v4934, %v4928
    %v5301 = vpack.c.b16 %v4935, %v4929
    %v5302 = vpack.c.b16 %v4936, %v4930
    %v5303 = vpack.c.b16 %v4937, %v4931
    %v5304 = vpack.c.b16 %v4944, %v4938
    %v5305 = vpack.c.b16 %v4945, %v4939
    %v5306 = vpack.c.b16 %v4946, %v4940
    %v5307 = vpack.c.b16 %v4947, %v4941
    %v5308 = vpack.c.b16 %v4948, %v4942
    %v5309 = vpack.c.b16 %v4949, %v4943
    %v5310 = vpack.c.b16 %v4956, %v4950
    %v5311 = vpack.c.b16 %v4957, %v4951
    %v5312 = vpack.c.b16 %v4958, %v4952
    %v5313 = vpack.c.b16 %v4959, %v4953
    %v5314 = vpack.c.b16 %v4960, %v4954
    %v5315 = vpack.c.b16 %v4961, %v4955
    %v5316 = vpack.c.b16 %v4968, %v4962
    %v5317 = vpack.c.b16 %v4969, %v4963
    %v5318 = vpack.c.b16 %v4970, %v4964
    %v5319 = vpack.c.b16 %v4971, %v4965
    %v5320 = vpack.c.b16 %v4972, %v4966
    %v5321 = vpack.c.b16 %v4973, %v4967
    %v5322 = vpack.c.b16 %v4980, %v4974
    %v5323 = vpack.c.b16 %v4981, %v4975
    %v5324 = vpack.c.b16 %v4982, %v4976
    %v5325 = vpack.c.b16 %v4983, %v4977
    %v5326 = vpack.c.b16 %v4984, %v4978
    %v5327 = vpack.c.b16 %v4985, %v4979
    %v5328 = vpack.c.b16 %v4992, %v4986
    %v5329 = vpack.c.b16 %v4993, %v4987
    %v5330 = vpack.c.b16 %v4994, %v4988
    %v5331 = vpack.c.b16 %v4995, %v4989
    %v5332 = vpack.c.b16 %v4996, %v4990
    %v5333 = vpack.c.b16 %v4997, %v4991
    %v5334 = vpack.c.b16 %v5004, %v4998
    %v5335 = vpack.c.b16 %v5005, %v4999
    %v5336 = vpack.c.b16 %v5006, %v5000
    %v5337 = vpack.c.b16 %v5007, %v5001
    %v5338 = vpack.c.b16 %v5008, %v5002
    %v5339 = vpack.c.b16 %v5009, %v5003
    %v5340 = vpack.c.b16 %v5016, %v5010
    %v5341 = vpack.c.b16 %v5017, %v5011
    %v5342 = vpack.c.b16 %v5018, %v5012
    %v5343 = vpack.c.b16 %v5019, %v5013
    %v5344 = vpack.c.b16 %v5020, %v5014
    %v5345 = vpack.c.b16 %v5021, %v5015
    %v5346 = vpack.c.b16 %v5028, %v5022
    %v5347 = vpack.c.b16 %v5029, %v5023
    %v5348 = vpack.c.b16 %v5030, %v5024
    %v5349 = vpack.c.b16 %v5031, %v5025
    %v5350 = vpack.c.b16 %v5032, %v5026
    %v5351 = vpack.c.b16 %v5033, %v5027
    %v5352 = vpack.c.b16 %v5040, %v5034
    %v5353 = vpack.c.b16 %v5041, %v5035
    %v5354 = vpack.c.b16 %v5042, %v5036
    %v5355 = vpack.c.b16 %v5043, %v5037
    %v5356 = vpack.c.b16 %v5044, %v5038
    %v5357 = vpack.c.b16 %v5045, %v5039
    %v5358 = vpack.c.b16 %v5052, %v5046
    %v5359 = vpack.c.b16 %v5053, %v5047
    %v5360 = vpack.c.b16 %v5054, %v5048
    %v5361 = vpack.c.b16 %v5055, %v5049
    %v5362 = vpack.c.b16 %v5056, %v5050
    %v5363 = vpack.c.b16 %v5057, %v5051
    %v5364 = vpack.c.b16 %v5064, %v5058
    %v5365 = vpack.c.b16 %v5065, %v5059
    %v5366 = vpack.c.b16 %v5066, %v5060
    %v5367 = vpack.c.b16 %v5067, %v5061
    %v5368 = vpack.c.b16 %v5068, %v5062
    %v5369 = vpack.c.b16 %v5069, %v5063
    %v5370 = vpack.c.b16 %v5076, %v5070
    %v5371 = vpack.c.b16 %v5077, %v5071
    %v5372 = vpack.c.b16 %v5078, %v5072
    %v5373 = vpack.c.b16 %v5079, %v5073
    %v5374 = vpack.c.b16 %v5080, %v5074
    %v5375 = vpack.c.b16 %v5081, %v5075
    %v5376 = vpack.c.b16 %v5088, %v5082
    %v5377 = vpack.c.b16 %v5089, %v5083
    %v5378 = vpack.c.b16 %v5090, %v5084
    %v5379 = vpack.c.b16 %v5091, %v5085
    %v5380 = vpack.c.b16 %v5092, %v5086
    %v5381 = vpack.c.b16 %v5093, %v5087
    %v5382 = vpack.c.b16 %v5100, %v5094
    %v5383 = vpack.c.b16 %v5101, %v5095
    %v5384 = vpack.c.b16 %v5102, %v5096
    %v5385 = vpack.c.b16 %v5103, %v5097
    %v5386 = vpack.c.b16 %v5104, %v5098
    %v5387 = vpack.c.b16 %v5105, %v5099
    %v5388 = vpack.c.b16 %v5112, %v5106
    %v5389 = vpack.c.b16 %v5113, %v5107
    %v5390 = vpack.c.b16 %v5114, %v5108
    %v5391 = vpack.c.b16 %v5115, %v5109
    %v5392 = vpack.c.b16 %v5116, %v5110
    %v5393 = vpack.c.b16 %v5117, %v5111
    %v5394 = vpack.c.b16 %v5124, %v5118
    %v5395 = vpack.c.b16 %v5125, %v5119
    %v5396 = vpack.c.b16 %v5126, %v5120
    %v5397 = vpack.c.b16 %v5127, %v5121
    %v5398 = vpack.c.b16 %v5128, %v5122
    %v5399 = vpack.c.b16 %v5129, %v5123
    %v5400 = vpack.c.b16 %v5136, %v5130
    %v5401 = vpack.c.b16 %v5137, %v5131
    %v5402 = vpack.c.b16 %v5138, %v5132
    %v5403 = vpack.c.b16 %v5139, %v5133
    %v5404 = vpack.c.b16 %v5140, %v5134
    %v5405 = vpack.c.b16 %v5141, %v5135
    %v5406 = vpack.c.b16 %v5148, %v5142
    %v5407 = vpack.c.b16 %v5149, %v5143
    %v5408 = vpack.c.b16 %v5150, %v5144
    %v5409 = vpack.c.b16 %v5151, %v5145
    %v5410 = vpack.c.b16 %v5152, %v5146
    %v5411 = vpack.c.b16 %v5153, %v5147
    %v5412 = vpack.c.b16 %v5160, %v5154
    %v5413 = vpack.c.b16 %v5161, %v5155
    %v5414 = vpack.c.b16 %v5162, %v5156
    %v5415 = vpack.c.b16 %v5163, %v5157
    %v5416 = vpack.c.b16 %v5164, %v5158
    %v5417 = vpack.c.b16 %v5165, %v5159
    %v5418 = vpack.c.b16 %v5172, %v5166
    %v5419 = vpack.c.b16 %v5173, %v5167
    %v5420 = vpack.c.b16 %v5174, %v5168
    %v5421 = vpack.c.b16 %v5175, %v5169
    %v5422 = vpack.c.b16 %v5176, %v5170
    %v5423 = vpack.c.b16 %v5177, %v5171
    %v5424 = vpack.c.b16 %v5184, %v5178
    %v5425 = vpack.c.b16 %v5185, %v5179
    %v5426 = vpack.c.b16 %v5186, %v5180
    %v5427 = vpack.c.b16 %v5187, %v5181
    %v5428 = vpack.c.b16 %v5188, %v5182
    %v5429 = vpack.c.b16 %v5189, %v5183
    %v5430 = vpack.c.b16 %v5196, %v5190
    %v5431 = vpack.c.b16 %v5197, %v5191
    %v5432 = vpack.c.b16 %v5198, %v5192
    %v5433 = vpack.c.b16 %v5199, %v5193
    %v5434 = vpack.c.b16 %v5200, %v5194
    %v5435 = vpack.c.b16 %v5201, %v5195
    %v5436 = vpack.c.b16 %v5208, %v5202
    %v5437 = vpack.c.b16 %v5209, %v5203
    %v5438 = vpack.c.b16 %v5210, %v5204
    %v5439 = vpack.c.b16 %v5211, %v5205
    %v5440 = vpack.c.b16 %v5212, %v5206
    %v5441 = vpack.c.b16 %v5213, %v5207
    %v5442 = vpack.c.b16 %v5220, %v5214
    %v5443 = vpack.c.b16 %v5221, %v5215
    %v5444 = vpack.c.b16 %v5222, %v5216
    %v5445 = vpack.c.b16 %v5223, %v5217
    %v5446 = vpack.c.b16 %v5224, %v5218
    %v5447 = vpack.c.b16 %v5225, %v5219
    %v5448 = vpack.c.b16 %v5232, %v5226
    %v5449 = vpack.c.b16 %v5233, %v5227
    %v5450 = vpack.c.b16 %v5234, %v5228
    %v5451 = vpack.c.b16 %v5235, %v5229
    %v5452 = vpack.c.b16 %v5236, %v5230
    %v5453 = vpack.c.b16 %v5237, %v5231
    %v5454 = vpack.c.b16 %v5244, %v5238
    %v5455 = vpack.c.b16 %v5245, %v5239
    %v5456 = vpack.c.b16 %v5246, %v5240
    %v5457 = vpack.c.b16 %v5247, %v5241
    %v5458 = vpack.c.b16 %v5248, %v5242
    %v5459 = vpack.c.b16 %v5249, %v5243
    %v5460 = vpack.c.b16 %v5256, %v5250
    %v5461 = vpack.c.b16 %v5257, %v5251
    %v5462 = vpack.c.b16 %v5258, %v5252
    %v5463 = vpack.c.b16 %v5259, %v5253
    %v5464 = vpack.c.b16 %v5260, %v5254
    %v5465 = vpack.c.b16 %v5261, %v5255
    %v5466 = vpack.c.b16 %v5268, %v5262
    %v5467 = vpack.c.b16 %v5269, %v5263
    %v5468 = vpack.c.b16 %v5270, %v5264
    %v5469 = vpack.c.b16 %v5271, %v5265
    %v5470 = vpack.c.b16 %v5272, %v5266
    %v5471 = vpack.c.b16 %v5273, %v5267
    %v5472 = vpack.c.b16 %v5280, %v5274
    %v5473 = vpack.c.b16 %v5281, %v5275
    %v5474 = vpack.c.b16 %v5282, %v5276
    %v5475 = vpack.c.b16 %v5283, %v5277
    %v5476 = vpack.c.b16 %v5284, %v5278
    %v5477 = vpack.c.b16 %v5285, %v5279
    %5670 = vmatprep.subr.bf16.mxu0 %v5329
    %5671 = vmatpush1.bf16.msra.mxu0 %v5328
    %5672 = vmatprep.subr.bf16.mxu0 %v5323
    %5673 = vmatpush1.bf16.msra.mxu0 %v5322
    %5674 = vmatprep.subr.bf16.mxu0 %v5317
    %5675 = vmatpush1.bf16.msra.mxu0 %v5316
    %5676 = vmatprep.subr.bf16.mxu0 %v5311
    %5677 = vmatpush1.bf16.msra.mxu0 %v5310
    %5678 = vmatprep.subr.bf16.mxu0 %v5305
    %5679 = vmatpush1.bf16.msra.mxu0 %v5304
    %5680 = vmatprep.subr.bf16.mxu0 %v5299
    %5681 = vmatpush1.bf16.msra.mxu0 %v5298
    %5682 = vmatprep.subr.bf16.mxu0 %v5293
    %5683 = vmatpush1.bf16.msra.mxu0 %v5292
    %5684 = vmatprep.subr.bf16.mxu0 %v5287
    %5685 = vmatpush1.bf16.msra.mxu0 %v5286
    %5686 = vmatprep.subr.bf16.mxu0 %v5377
    %5687 = vmatpush2.bf16.msra.mxu0 %v5376
    %5688 = vmatprep.subr.bf16.mxu0 %v5371
    %5689 = vmatpush2.bf16.msra.mxu0 %v5370
    %5690 = vmatprep.subr.bf16.mxu0 %v5365
    %5691 = vmatpush2.bf16.msra.mxu0 %v5364
    %5692 = vmatprep.subr.bf16.mxu0 %v5359
    %5693 = vmatpush2.bf16.msra.mxu0 %v5358
    %5694 = vmatprep.subr.bf16.mxu0 %v5353
    %5695 = vmatpush2.bf16.msra.mxu0 %v5352
    %5696 = vmatprep.subr.bf16.mxu0 %v5347
    %5697 = vmatpush2.bf16.msra.mxu0 %v5346
    %5698 = vmatprep.subr.bf16.mxu0 %v5341
    %5699 = vmatpush2.bf16.msra.mxu0 %v5340
    %5700 = vmatprep.subr.bf16.mxu0 %v5335
    %5701 = vmatpush2.bf16.msra.mxu0 %v5334
    %5702 = vmatprep.mubr.bf16.mxu0 %v4639
    %5703 = vmatmul.mubr.bf16.gmra.mxu0 %v4638
    %v5704 = vpop.f32.mrf.mxu0
    %v5705 = vadd.f32 %v4515, %v5704
    %v5706 = vpop.f32.mrf.mxu0
    %v5707 = vadd.f32 %v4519, %v5706
    %v5708 = vpop.f32.mrf.mxu0
    %v5709 = vadd.f32 %v4515, %v5708
    %v5710 = vpop.f32.mrf.mxu0
    %v5711 = vadd.f32 %v4519, %v5710
    %5712 = vmatprep.mubr.bf16.mxu0 %v4643
    %5713 = vmatmul.mubr.bf16.gmra.mxu0 %v4642
    %v5714 = vpop.f32.mrf.mxu0
    %v5715 = vadd.f32 %v4515, %v5714
    %v5716 = vpop.f32.mrf.mxu0
    %v5717 = vadd.f32 %v4519, %v5716
    %v5718 = vpop.f32.mrf.mxu0
    %v5719 = vadd.f32 %v4515, %v5718
    %v5720 = vpop.f32.mrf.mxu0
    %v5721 = vadd.f32 %v4519, %v5720
    %5722 = vmatprep.mubr.bf16.mxu0 %v4647
    %5723 = vmatmul.mubr.bf16.gmra.mxu0 %v4646
    %v5724 = vpop.f32.mrf.mxu0
    %v5725 = vadd.f32 %v4515, %v5724
    %v5726 = vpop.f32.mrf.mxu0
    %v5727 = vadd.f32 %v4519, %v5726
    %v5728 = vpop.f32.mrf.mxu0
    %v5729 = vadd.f32 %v4515, %v5728
    %v5730 = vpop.f32.mrf.mxu0
    %v5731 = vadd.f32 %v4519, %v5730
    %5732 = vmatprep.mubr.bf16.mxu0 %v4651
    %5733 = vmatmul.mubr.bf16.gmra.mxu0 %v4650
    %v5734 = vpop.f32.mrf.mxu0
    %v5735 = vadd.f32 %v4515, %v5734
    %v5736 = vpop.f32.mrf.mxu0
    %v5737 = vadd.f32 %v4519, %v5736
    %v5738 = vpop.f32.mrf.mxu0
    %v5739 = vadd.f32 %v4515, %v5738
    %v5740 = vpop.f32.mrf.mxu0
    %v5741 = vadd.f32 %v4519, %v5740
    %5742 = vmatprep.mubr.bf16.mxu0 %v4655
    %5743 = vmatmul.mubr.bf16.gmra.mxu0 %v4654
    %v5744 = vpop.f32.mrf.mxu0
    %v5745 = vadd.f32 %v4515, %v5744
    %v5746 = vpop.f32.mrf.mxu0
    %v5747 = vadd.f32 %v4519, %v5746
    %v5748 = vpop.f32.mrf.mxu0
    %v5749 = vadd.f32 %v4515, %v5748
    %v5750 = vpop.f32.mrf.mxu0
    %v5751 = vadd.f32 %v4519, %v5750
    %5752 = vmatprep.mubr.bf16.mxu0 %v4659
    %5753 = vmatmul.mubr.bf16.gmra.mxu0 %v4658
    %v5754 = vpop.f32.mrf.mxu0
    %v5755 = vadd.f32 %v4515, %v5754
    %v5756 = vpop.f32.mrf.mxu0
    %v5757 = vadd.f32 %v4519, %v5756
    %v5758 = vpop.f32.mrf.mxu0
    %v5759 = vadd.f32 %v4515, %v5758
    %v5760 = vpop.f32.mrf.mxu0
    %v5761 = vadd.f32 %v4519, %v5760
    %5762 = vmatprep.mubr.bf16.mxu0 %v4663
    %5763 = vmatmul.mubr.bf16.gmra.mxu0 %v4662
    %v5764 = vpop.f32.mrf.mxu0
    %v5765 = vadd.f32 %v4515, %v5764
    %v5766 = vpop.f32.mrf.mxu0
    %v5767 = vadd.f32 %v4519, %v5766
    %v5768 = vpop.f32.mrf.mxu0
    %v5769 = vadd.f32 %v4515, %v5768
    %v5770 = vpop.f32.mrf.mxu0
    %v5771 = vadd.f32 %v4519, %v5770
    %5772 = vmatprep.mubr.bf16.mxu0 %v4667
    %5773 = vmatmul.mubr.bf16.gmra.mxu0 %v4666
    %v5774 = vpop.f32.mrf.mxu0
    %v5775 = vadd.f32 %v4515, %v5774
    %v5776 = vpop.f32.mrf.mxu0
    %v5777 = vadd.f32 %v4519, %v5776
    %v5778 = vpop.f32.mrf.mxu0
    %v5779 = vadd.f32 %v4515, %v5778
    %v5780 = vpop.f32.mrf.mxu0
    %v5781 = vadd.f32 %v4519, %v5780
    %5782 = vmatprep.mubr.bf16.mxu0 %v4671
    %5783 = vmatmul.mubr.bf16.gmra.mxu0 %v4670
    %v5784 = vpop.f32.mrf.mxu0
    %v5785 = vadd.f32 %v4515, %v5784
    %v5786 = vpop.f32.mrf.mxu0
    %v5787 = vadd.f32 %v4519, %v5786
    %v5788 = vpop.f32.mrf.mxu0
    %v5789 = vpop.f32.mrf.mxu0
    %5790 = vdwg.mxu0
    %5791 = vmatprep.subr.bf16.mxu0 %v5425
    %5792 = vmatpush1.bf16.msra.mxu0 %v5424
    %5793 = vmatprep.subr.bf16.mxu0 %v5419
    %5794 = vmatpush1.bf16.msra.mxu0 %v5418
    %5795 = vmatprep.subr.bf16.mxu0 %v5413
    %5796 = vmatpush1.bf16.msra.mxu0 %v5412
    %5797 = vmatprep.subr.bf16.mxu0 %v5407
    %5798 = vmatpush1.bf16.msra.mxu0 %v5406
    %5799 = vmatprep.subr.bf16.mxu0 %v5401
    %5800 = vmatpush1.bf16.msra.mxu0 %v5400
    %5801 = vmatprep.subr.bf16.mxu0 %v5395
    %5802 = vmatpush1.bf16.msra.mxu0 %v5394
    %5803 = vmatprep.subr.bf16.mxu0 %v5389
    %5804 = vmatpush1.bf16.msra.mxu0 %v5388
    %5805 = vmatprep.subr.bf16.mxu0 %v5383
    %5806 = vmatpush1.bf16.msra.mxu0 %v5382
    %5807 = vmatprep.subr.bf16.mxu0 %v5473
    %5808 = vmatpush2.bf16.msra.mxu0 %v5472
    %5809 = vmatprep.subr.bf16.mxu0 %v5467
    %5810 = vmatpush2.bf16.msra.mxu0 %v5466
    %5811 = vmatprep.subr.bf16.mxu0 %v5461
    %5812 = vmatpush2.bf16.msra.mxu0 %v5460
    %5813 = vmatprep.subr.bf16.mxu0 %v5455
    %5814 = vmatpush2.bf16.msra.mxu0 %v5454
    %5815 = vmatprep.subr.bf16.mxu0 %v5449
    %5816 = vmatpush2.bf16.msra.mxu0 %v5448
    %5817 = vmatprep.subr.bf16.mxu0 %v5443
    %5818 = vmatpush2.bf16.msra.mxu0 %v5442
    %5819 = vmatprep.subr.bf16.mxu0 %v5437
    %5820 = vmatpush2.bf16.msra.mxu0 %v5436
    %5821 = vmatprep.subr.bf16.mxu0 %v5431
    %5822 = vmatpush2.bf16.msra.mxu0 %v5430
    %5823 = vmatprep.mubr.bf16.mxu0 %v4641
    %5824 = vmatmul.mubr.bf16.gmra.mxu0 %v4640
    %v5825 = vpop.f32.mrf.mxu0
    %v5826 = vadd.f32 %v5705, %v5825
    %v5827 = vpop.f32.mrf.mxu0
    %v5828 = vadd.f32 %v5707, %v5827
    %v5829 = vpop.f32.mrf.mxu0
    %v5830 = vadd.f32 %v5709, %v5829
    %v5831 = vpop.f32.mrf.mxu0
    %v5832 = vadd.f32 %v5711, %v5831
    %5833 = vmatprep.mubr.bf16.mxu0 %v4645
    %5834 = vmatmul.mubr.bf16.gmra.mxu0 %v4644
    %v5835 = vpop.f32.mrf.mxu0
    %v5836 = vadd.f32 %v5715, %v5835
    %v5837 = vpop.f32.mrf.mxu0
    %v5838 = vadd.f32 %v5717, %v5837
    %v5839 = vpop.f32.mrf.mxu0
    %v5840 = vadd.f32 %v5719, %v5839
    %v5841 = vpop.f32.mrf.mxu0
    %v5842 = vadd.f32 %v5721, %v5841
    %5843 = vmatprep.mubr.bf16.mxu0 %v4649
    %5844 = vmatmul.mubr.bf16.gmra.mxu0 %v4648
    %v5845 = vpop.f32.mrf.mxu0
    %v5846 = vadd.f32 %v5725, %v5845
    %v5847 = vpop.f32.mrf.mxu0
    %v5848 = vadd.f32 %v5727, %v5847
    %v5849 = vpop.f32.mrf.mxu0
    %v5850 = vadd.f32 %v5729, %v5849
    %v5851 = vpop.f32.mrf.mxu0
    %v5852 = vadd.f32 %v5731, %v5851
    %5853 = vmatprep.mubr.bf16.mxu0 %v4653
    %5854 = vmatmul.mubr.bf16.gmra.mxu0 %v4652
    %v5855 = vpop.f32.mrf.mxu0
    %v5856 = vadd.f32 %v5735, %v5855
    %v5857 = vpop.f32.mrf.mxu0
    %v5858 = vadd.f32 %v5737, %v5857
    %v5859 = vpop.f32.mrf.mxu0
    %v5860 = vadd.f32 %v5739, %v5859
    %v5861 = vpop.f32.mrf.mxu0
    %v5862 = vadd.f32 %v5741, %v5861
    %5863 = vmatprep.mubr.bf16.mxu0 %v4657
    %5864 = vmatmul.mubr.bf16.gmra.mxu0 %v4656
    %v5865 = vpop.f32.mrf.mxu0
    %v5866 = vadd.f32 %v5745, %v5865
    %v5867 = vpop.f32.mrf.mxu0
    %v5868 = vadd.f32 %v5747, %v5867
    %v5869 = vpop.f32.mrf.mxu0
    %v5870 = vadd.f32 %v5749, %v5869
    %v5871 = vpop.f32.mrf.mxu0
    %v5872 = vadd.f32 %v5751, %v5871
    %5873 = vmatprep.mubr.bf16.mxu0 %v4661
    %5874 = vmatmul.mubr.bf16.gmra.mxu0 %v4660
    %v5875 = vpop.f32.mrf.mxu0
    %v5876 = vadd.f32 %v5755, %v5875
    %v5877 = vpop.f32.mrf.mxu0
    %v5878 = vadd.f32 %v5757, %v5877
    %v5879 = vpop.f32.mrf.mxu0
    %v5880 = vadd.f32 %v5759, %v5879
    %v5881 = vpop.f32.mrf.mxu0
    %v5882 = vadd.f32 %v5761, %v5881
    %5883 = vmatprep.mubr.bf16.mxu0 %v4665
    %5884 = vmatmul.mubr.bf16.gmra.mxu0 %v4664
    %v5885 = vpop.f32.mrf.mxu0
    %v5886 = vadd.f32 %v5765, %v5885
    %v5887 = vpop.f32.mrf.mxu0
    %v5888 = vadd.f32 %v5767, %v5887
    %v5889 = vpop.f32.mrf.mxu0
    %v5890 = vadd.f32 %v5769, %v5889
    %v5891 = vpop.f32.mrf.mxu0
    %v5892 = vadd.f32 %v5771, %v5891
    %5893 = vmatprep.mubr.bf16.mxu0 %v4669
    %5894 = vmatmul.mubr.bf16.gmra.mxu0 %v4668
    %v5895 = vpop.f32.mrf.mxu0
    %v5896 = vadd.f32 %v5775, %v5895
    %v5897 = vpop.f32.mrf.mxu0
    %v5898 = vadd.f32 %v5777, %v5897
    %v5899 = vpop.f32.mrf.mxu0
    %v5900 = vadd.f32 %v5779, %v5899
    %v5901 = vpop.f32.mrf.mxu0
    %v5902 = vadd.f32 %v5781, %v5901
    %5903 = vmatprep.mubr.bf16.mxu0 %v4673
    %5904 = vmatmul.mubr.bf16.gmra.mxu0 %v4672
    %v5905 = vpop.f32.mrf.mxu0
    %v5906 = vadd.f32 %v5785, %v5905
    %v5907 = vpop.f32.mrf.mxu0
    %v5908 = vadd.f32 %v5787, %v5907
    %v5909 = vpop.f32.mrf.mxu0
    %v5910 = vpop.f32.mrf.mxu0
    %5911 = vdwg.mxu0
    %5912 = vmatprep.subr.bf16.mxu0 %v5331
    %5913 = vmatpush1.bf16.msra.mxu0 %v5330
    %5914 = vmatprep.subr.bf16.mxu0 %v5325
    %5915 = vmatpush1.bf16.msra.mxu0 %v5324
    %5916 = vmatprep.subr.bf16.mxu0 %v5319
    %5917 = vmatpush1.bf16.msra.mxu0 %v5318
    %5918 = vmatprep.subr.bf16.mxu0 %v5313
    %5919 = vmatpush1.bf16.msra.mxu0 %v5312
    %5920 = vmatprep.subr.bf16.mxu0 %v5307
    %5921 = vmatpush1.bf16.msra.mxu0 %v5306
    %5922 = vmatprep.subr.bf16.mxu0 %v5301
    %5923 = vmatpush1.bf16.msra.mxu0 %v5300
    %5924 = vmatprep.subr.bf16.mxu0 %v5295
    %5925 = vmatpush1.bf16.msra.mxu0 %v5294
    %5926 = vmatprep.subr.bf16.mxu0 %v5289
    %5927 = vmatpush1.bf16.msra.mxu0 %v5288
    %5928 = vmatprep.subr.bf16.mxu0 %v5379
    %5929 = vmatpush2.bf16.msra.mxu0 %v5378
    %5930 = vmatprep.subr.bf16.mxu0 %v5373
    %5931 = vmatpush2.bf16.msra.mxu0 %v5372
    %5932 = vmatprep.subr.bf16.mxu0 %v5367
    %5933 = vmatpush2.bf16.msra.mxu0 %v5366
    %5934 = vmatprep.subr.bf16.mxu0 %v5361
    %5935 = vmatpush2.bf16.msra.mxu0 %v5360
    %5936 = vmatprep.subr.bf16.mxu0 %v5355
    %5937 = vmatpush2.bf16.msra.mxu0 %v5354
    %5938 = vmatprep.subr.bf16.mxu0 %v5349
    %5939 = vmatpush2.bf16.msra.mxu0 %v5348
    %5940 = vmatprep.subr.bf16.mxu0 %v5343
    %5941 = vmatpush2.bf16.msra.mxu0 %v5342
    %5942 = vmatprep.subr.bf16.mxu0 %v5337
    %5943 = vmatpush2.bf16.msra.mxu0 %v5336
    %5944 = vmatprep.mubr.bf16.mxu0 %v4639
    %5945 = vmatmul.mubr.bf16.gmra.mxu0 %v4638
    %v5946 = vpop.f32.mrf.mxu0
    %v5947 = vadd.f32 %v4523, %v5946
    %v5948 = vpop.f32.mrf.mxu0
    %v5949 = vadd.f32 %v4527, %v5948
    %v5950 = vpop.f32.mrf.mxu0
    %v5951 = vadd.f32 %v4523, %v5950
    %v5952 = vpop.f32.mrf.mxu0
    %v5953 = vadd.f32 %v4527, %v5952
    %5954 = vmatprep.mubr.bf16.mxu0 %v4643
    %5955 = vmatmul.mubr.bf16.gmra.mxu0 %v4642
    %v5956 = vpop.f32.mrf.mxu0
    %v5957 = vadd.f32 %v4523, %v5956
    %v5958 = vpop.f32.mrf.mxu0
    %v5959 = vadd.f32 %v4527, %v5958
    %v5960 = vpop.f32.mrf.mxu0
    %v5961 = vadd.f32 %v4523, %v5960
    %v5962 = vpop.f32.mrf.mxu0
    %v5963 = vadd.f32 %v4527, %v5962
    %5964 = vmatprep.mubr.bf16.mxu0 %v4647
    %5965 = vmatmul.mubr.bf16.gmra.mxu0 %v4646
    %v5966 = vpop.f32.mrf.mxu0
    %v5967 = vadd.f32 %v4523, %v5966
    %v5968 = vpop.f32.mrf.mxu0
    %v5969 = vadd.f32 %v4527, %v5968
    %v5970 = vpop.f32.mrf.mxu0
    %v5971 = vadd.f32 %v4523, %v5970
    %v5972 = vpop.f32.mrf.mxu0
    %v5973 = vadd.f32 %v4527, %v5972
    %5974 = vmatprep.mubr.bf16.mxu0 %v4651
    %5975 = vmatmul.mubr.bf16.gmra.mxu0 %v4650
    %v5976 = vpop.f32.mrf.mxu0
    %v5977 = vadd.f32 %v4523, %v5976
    %v5978 = vpop.f32.mrf.mxu0
    %v5979 = vadd.f32 %v4527, %v5978
    %v5980 = vpop.f32.mrf.mxu0
    %v5981 = vadd.f32 %v4523, %v5980
    %v5982 = vpop.f32.mrf.mxu0
    %v5983 = vadd.f32 %v4527, %v5982
    %5984 = vmatprep.mubr.bf16.mxu0 %v4655
    %5985 = vmatmul.mubr.bf16.gmra.mxu0 %v4654
    %v5986 = vpop.f32.mrf.mxu0
    %v5987 = vadd.f32 %v4523, %v5986
    %v5988 = vpop.f32.mrf.mxu0
    %v5989 = vadd.f32 %v4527, %v5988
    %v5990 = vpop.f32.mrf.mxu0
    %v5991 = vadd.f32 %v4523, %v5990
    %v5992 = vpop.f32.mrf.mxu0
    %v5993 = vadd.f32 %v4527, %v5992
    %5994 = vmatprep.mubr.bf16.mxu0 %v4659
    %5995 = vmatmul.mubr.bf16.gmra.mxu0 %v4658
    %v5996 = vpop.f32.mrf.mxu0
    %v5997 = vadd.f32 %v4523, %v5996
    %v5998 = vpop.f32.mrf.mxu0
    %v5999 = vadd.f32 %v4527, %v5998
    %v6000 = vpop.f32.mrf.mxu0
    %v6001 = vadd.f32 %v4523, %v6000
    %v6002 = vpop.f32.mrf.mxu0
    %v6003 = vadd.f32 %v4527, %v6002
    %6004 = vmatprep.mubr.bf16.mxu0 %v4663
    %6005 = vmatmul.mubr.bf16.gmra.mxu0 %v4662
    %v6006 = vpop.f32.mrf.mxu0
    %v6007 = vadd.f32 %v4523, %v6006
    %v6008 = vpop.f32.mrf.mxu0
    %v6009 = vadd.f32 %v4527, %v6008
    %v6010 = vpop.f32.mrf.mxu0
    %v6011 = vadd.f32 %v4523, %v6010
    %v6012 = vpop.f32.mrf.mxu0
    %v6013 = vadd.f32 %v4527, %v6012
    %6014 = vmatprep.mubr.bf16.mxu0 %v4667
    %6015 = vmatmul.mubr.bf16.gmra.mxu0 %v4666
    %v6016 = vpop.f32.mrf.mxu0
    %v6017 = vadd.f32 %v4523, %v6016
    %v6018 = vpop.f32.mrf.mxu0
    %v6019 = vadd.f32 %v4527, %v6018
    %v6020 = vpop.f32.mrf.mxu0
    %v6021 = vadd.f32 %v4523, %v6020
    %v6022 = vpop.f32.mrf.mxu0
    %v6023 = vadd.f32 %v4527, %v6022
    %6024 = vmatprep.mubr.bf16.mxu0 %v4671
    %6025 = vmatmul.mubr.bf16.gmra.mxu0 %v4670
    %v6026 = vpop.f32.mrf.mxu0
    %v6027 = vadd.f32 %v4523, %v6026
    %v6028 = vpop.f32.mrf.mxu0
    %v6029 = vadd.f32 %v4527, %v6028
    %v6030 = vpop.f32.mrf.mxu0
    %v6031 = vpop.f32.mrf.mxu0
    %6032 = vdwg.mxu0
    %6033 = vmatprep.subr.bf16.mxu0 %v5427
    %6034 = vmatpush1.bf16.msra.mxu0 %v5426
    %6035 = vmatprep.subr.bf16.mxu0 %v5421
    %6036 = vmatpush1.bf16.msra.mxu0 %v5420
    %6037 = vmatprep.subr.bf16.mxu0 %v5415
    %6038 = vmatpush1.bf16.msra.mxu0 %v5414
    %6039 = vmatprep.subr.bf16.mxu0 %v5409
    %6040 = vmatpush1.bf16.msra.mxu0 %v5408
    %6041 = vmatprep.subr.bf16.mxu0 %v5403
    %6042 = vmatpush1.bf16.msra.mxu0 %v5402
    %6043 = vmatprep.subr.bf16.mxu0 %v5397
    %6044 = vmatpush1.bf16.msra.mxu0 %v5396
    %6045 = vmatprep.subr.bf16.mxu0 %v5391
    %6046 = vmatpush1.bf16.msra.mxu0 %v5390
    %6047 = vmatprep.subr.bf16.mxu0 %v5385
    %6048 = vmatpush1.bf16.msra.mxu0 %v5384
    %6049 = vmatprep.subr.bf16.mxu0 %v5475
    %6050 = vmatpush2.bf16.msra.mxu0 %v5474
    %6051 = vmatprep.subr.bf16.mxu0 %v5469
    %6052 = vmatpush2.bf16.msra.mxu0 %v5468
    %6053 = vmatprep.subr.bf16.mxu0 %v5463
    %6054 = vmatpush2.bf16.msra.mxu0 %v5462
    %6055 = vmatprep.subr.bf16.mxu0 %v5457
    %6056 = vmatpush2.bf16.msra.mxu0 %v5456
    %6057 = vmatprep.subr.bf16.mxu0 %v5451
    %6058 = vmatpush2.bf16.msra.mxu0 %v5450
    %6059 = vmatprep.subr.bf16.mxu0 %v5445
    %6060 = vmatpush2.bf16.msra.mxu0 %v5444
    %6061 = vmatprep.subr.bf16.mxu0 %v5439
    %6062 = vmatpush2.bf16.msra.mxu0 %v5438
    %6063 = vmatprep.subr.bf16.mxu0 %v5433
    %6064 = vmatpush2.bf16.msra.mxu0 %v5432
    %6065 = vmatprep.mubr.bf16.mxu0 %v4641
    %6066 = vmatmul.mubr.bf16.gmra.mxu0 %v4640
    %v6067 = vpop.f32.mrf.mxu0
    %v6068 = vadd.f32 %v5947, %v6067
    %v6069 = vpop.f32.mrf.mxu0
    %v6070 = vadd.f32 %v5949, %v6069
    %v6071 = vpop.f32.mrf.mxu0
    %v6072 = vadd.f32 %v5951, %v6071
    %v6073 = vpop.f32.mrf.mxu0
    %v6074 = vadd.f32 %v5953, %v6073
    %6075 = vmatprep.mubr.bf16.mxu0 %v4645
    %6076 = vmatmul.mubr.bf16.gmra.mxu0 %v4644
    %v6077 = vpop.f32.mrf.mxu0
    %v6078 = vadd.f32 %v5957, %v6077
    %v6079 = vpop.f32.mrf.mxu0
    %v6080 = vadd.f32 %v5959, %v6079
    %v6081 = vpop.f32.mrf.mxu0
    %v6082 = vadd.f32 %v5961, %v6081
    %v6083 = vpop.f32.mrf.mxu0
    %v6084 = vadd.f32 %v5963, %v6083
    %6085 = vmatprep.mubr.bf16.mxu0 %v4649
    %6086 = vmatmul.mubr.bf16.gmra.mxu0 %v4648
    %v6087 = vpop.f32.mrf.mxu0
    %v6088 = vadd.f32 %v5967, %v6087
    %v6089 = vpop.f32.mrf.mxu0
    %v6090 = vadd.f32 %v5969, %v6089
    %v6091 = vpop.f32.mrf.mxu0
    %v6092 = vadd.f32 %v5971, %v6091
    %v6093 = vpop.f32.mrf.mxu0
    %v6094 = vadd.f32 %v5973, %v6093
    %6095 = vmatprep.mubr.bf16.mxu0 %v4653
    %6096 = vmatmul.mubr.bf16.gmra.mxu0 %v4652
    %v6097 = vpop.f32.mrf.mxu0
    %v6098 = vadd.f32 %v5977, %v6097
    %v6099 = vpop.f32.mrf.mxu0
    %v6100 = vadd.f32 %v5979, %v6099
    %v6101 = vpop.f32.mrf.mxu0
    %v6102 = vadd.f32 %v5981, %v6101
    %v6103 = vpop.f32.mrf.mxu0
    %v6104 = vadd.f32 %v5983, %v6103
    %6105 = vmatprep.mubr.bf16.mxu0 %v4657
    %6106 = vmatmul.mubr.bf16.gmra.mxu0 %v4656
    %v6107 = vpop.f32.mrf.mxu0
    %v6108 = vadd.f32 %v5987, %v6107
    %v6109 = vpop.f32.mrf.mxu0
    %v6110 = vadd.f32 %v5989, %v6109
    %v6111 = vpop.f32.mrf.mxu0
    %v6112 = vadd.f32 %v5991, %v6111
    %v6113 = vpop.f32.mrf.mxu0
    %v6114 = vadd.f32 %v5993, %v6113
    %6115 = vmatprep.mubr.bf16.mxu0 %v4661
    %6116 = vmatmul.mubr.bf16.gmra.mxu0 %v4660
    %v6117 = vpop.f32.mrf.mxu0
    %v6118 = vadd.f32 %v5997, %v6117
    %v6119 = vpop.f32.mrf.mxu0
    %v6120 = vadd.f32 %v5999, %v6119
    %v6121 = vpop.f32.mrf.mxu0
    %v6122 = vadd.f32 %v6001, %v6121
    %v6123 = vpop.f32.mrf.mxu0
    %v6124 = vadd.f32 %v6003, %v6123
    %6125 = vmatprep.mubr.bf16.mxu0 %v4665
    %6126 = vmatmul.mubr.bf16.gmra.mxu0 %v4664
    %v6127 = vpop.f32.mrf.mxu0
    %v6128 = vadd.f32 %v6007, %v6127
    %v6129 = vpop.f32.mrf.mxu0
    %v6130 = vadd.f32 %v6009, %v6129
    %v6131 = vpop.f32.mrf.mxu0
    %v6132 = vadd.f32 %v6011, %v6131
    %v6133 = vpop.f32.mrf.mxu0
    %v6134 = vadd.f32 %v6013, %v6133
    %6135 = vmatprep.mubr.bf16.mxu0 %v4669
    %6136 = vmatmul.mubr.bf16.gmra.mxu0 %v4668
    %v6137 = vpop.f32.mrf.mxu0
    %v6138 = vadd.f32 %v6017, %v6137
    %v6139 = vpop.f32.mrf.mxu0
    %v6140 = vadd.f32 %v6019, %v6139
    %v6141 = vpop.f32.mrf.mxu0
    %v6142 = vadd.f32 %v6021, %v6141
    %v6143 = vpop.f32.mrf.mxu0
    %v6144 = vadd.f32 %v6023, %v6143
    %6145 = vmatprep.mubr.bf16.mxu0 %v4673
    %6146 = vmatmul.mubr.bf16.gmra.mxu0 %v4672
    %v6147 = vpop.f32.mrf.mxu0
    %v6148 = vadd.f32 %v6027, %v6147
    %v6149 = vpop.f32.mrf.mxu0
    %v6150 = vadd.f32 %v6029, %v6149
    %v6151 = vpop.f32.mrf.mxu0
    %v6152 = vpop.f32.mrf.mxu0
    %6153 = vdwg.mxu0
    %6154 = vmatprep.subr.bf16.mxu0 %v5333
    %6155 = vmatpush1.bf16.msra.mxu0 %v5332
    %6156 = vmatprep.subr.bf16.mxu0 %v5327
    %6157 = vmatpush1.bf16.msra.mxu0 %v5326
    %6158 = vmatprep.subr.bf16.mxu0 %v5321
    %6159 = vmatpush1.bf16.msra.mxu0 %v5320
    %6160 = vmatprep.subr.bf16.mxu0 %v5315
    %6161 = vmatpush1.bf16.msra.mxu0 %v5314
    %6162 = vmatprep.subr.bf16.mxu0 %v5309
    %6163 = vmatpush1.bf16.msra.mxu0 %v5308
    %6164 = vmatprep.subr.bf16.mxu0 %v5303
    %6165 = vmatpush1.bf16.msra.mxu0 %v5302
    %6166 = vmatprep.subr.bf16.mxu0 %v5297
    %6167 = vmatpush1.bf16.msra.mxu0 %v5296
    %6168 = vmatprep.subr.bf16.mxu0 %v5291
    %6169 = vmatpush1.bf16.msra.mxu0 %v5290
    %6170 = vmatprep.subr.bf16.mxu0 %v5381
    %6171 = vmatpush2.bf16.msra.mxu0 %v5380
    %6172 = vmatprep.subr.bf16.mxu0 %v5375
    %6173 = vmatpush2.bf16.msra.mxu0 %v5374
    %6174 = vmatprep.subr.bf16.mxu0 %v5369
    %6175 = vmatpush2.bf16.msra.mxu0 %v5368
    %6176 = vmatprep.subr.bf16.mxu0 %v5363
    %6177 = vmatpush2.bf16.msra.mxu0 %v5362
    %6178 = vmatprep.subr.bf16.mxu0 %v5357
    %6179 = vmatpush2.bf16.msra.mxu0 %v5356
    %6180 = vmatprep.subr.bf16.mxu0 %v5351
    %6181 = vmatpush2.bf16.msra.mxu0 %v5350
    %6182 = vmatprep.subr.bf16.mxu0 %v5345
    %6183 = vmatpush2.bf16.msra.mxu0 %v5344
    %6184 = vmatprep.subr.bf16.mxu0 %v5339
    %6185 = vmatpush2.bf16.msra.mxu0 %v5338
    %6186 = vmatprep.mubr.bf16.mxu0 %v4639
    %6187 = vmatmul.mubr.bf16.gmra.mxu0 %v4638
    %v6188 = vpop.f32.mrf.mxu0
    %v6189 = vadd.f32 %v4531, %v6188
    %v6190 = vpop.f32.mrf.mxu0
    %v6191 = vadd.f32 %v4535, %v6190
    %v6192 = vpop.f32.mrf.mxu0
    %v6193 = vadd.f32 %v4531, %v6192
    %v6194 = vpop.f32.mrf.mxu0
    %v6195 = vadd.f32 %v4535, %v6194
    %6196 = vmatprep.mubr.bf16.mxu0 %v4643
    %6197 = vmatmul.mubr.bf16.gmra.mxu0 %v4642
    %v6198 = vpop.f32.mrf.mxu0
    %v6199 = vadd.f32 %v4531, %v6198
    %v6200 = vpop.f32.mrf.mxu0
    %v6201 = vadd.f32 %v4535, %v6200
    %v6202 = vpop.f32.mrf.mxu0
    %v6203 = vadd.f32 %v4531, %v6202
    %v6204 = vpop.f32.mrf.mxu0
    %v6205 = vadd.f32 %v4535, %v6204
    %6206 = vmatprep.mubr.bf16.mxu0 %v4647
    %6207 = vmatmul.mubr.bf16.gmra.mxu0 %v4646
    %v6208 = vpop.f32.mrf.mxu0
    %v6209 = vadd.f32 %v4531, %v6208
    %v6210 = vpop.f32.mrf.mxu0
    %v6211 = vadd.f32 %v4535, %v6210
    %v6212 = vpop.f32.mrf.mxu0
    %v6213 = vadd.f32 %v4531, %v6212
    %v6214 = vpop.f32.mrf.mxu0
    %v6215 = vadd.f32 %v4535, %v6214
    %6216 = vmatprep.mubr.bf16.mxu0 %v4651
    %6217 = vmatmul.mubr.bf16.gmra.mxu0 %v4650
    %v6218 = vpop.f32.mrf.mxu0
    %v6219 = vadd.f32 %v4531, %v6218
    %v6220 = vpop.f32.mrf.mxu0
    %v6221 = vadd.f32 %v4535, %v6220
    %v6222 = vpop.f32.mrf.mxu0
    %v6223 = vadd.f32 %v4531, %v6222
    %v6224 = vpop.f32.mrf.mxu0
    %v6225 = vadd.f32 %v4535, %v6224
    %6226 = vmatprep.mubr.bf16.mxu0 %v4655
    %6227 = vmatmul.mubr.bf16.gmra.mxu0 %v4654
    %v6228 = vpop.f32.mrf.mxu0
    %v6229 = vadd.f32 %v4531, %v6228
    %v6230 = vpop.f32.mrf.mxu0
    %v6231 = vadd.f32 %v4535, %v6230
    %v6232 = vpop.f32.mrf.mxu0
    %v6233 = vadd.f32 %v4531, %v6232
    %v6234 = vpop.f32.mrf.mxu0
    %v6235 = vadd.f32 %v4535, %v6234
    %6236 = vmatprep.mubr.bf16.mxu0 %v4659
    %6237 = vmatmul.mubr.bf16.gmra.mxu0 %v4658
    %v6238 = vpop.f32.mrf.mxu0
    %v6239 = vadd.f32 %v4531, %v6238
    %v6240 = vpop.f32.mrf.mxu0
    %v6241 = vadd.f32 %v4535, %v6240
    %v6242 = vpop.f32.mrf.mxu0
    %v6243 = vadd.f32 %v4531, %v6242
    %v6244 = vpop.f32.mrf.mxu0
    %v6245 = vadd.f32 %v4535, %v6244
    %6246 = vmatprep.mubr.bf16.mxu0 %v4663
    %6247 = vmatmul.mubr.bf16.gmra.mxu0 %v4662
    %v6248 = vpop.f32.mrf.mxu0
    %v6249 = vadd.f32 %v4531, %v6248
    %v6250 = vpop.f32.mrf.mxu0
    %v6251 = vadd.f32 %v4535, %v6250
    %v6252 = vpop.f32.mrf.mxu0
    %v6253 = vadd.f32 %v4531, %v6252
    %v6254 = vpop.f32.mrf.mxu0
    %v6255 = vadd.f32 %v4535, %v6254
    %6256 = vmatprep.mubr.bf16.mxu0 %v4667
    %6257 = vmatmul.mubr.bf16.gmra.mxu0 %v4666
    %v6258 = vpop.f32.mrf.mxu0
    %v6259 = vadd.f32 %v4531, %v6258
    %v6260 = vpop.f32.mrf.mxu0
    %v6261 = vadd.f32 %v4535, %v6260
    %v6262 = vpop.f32.mrf.mxu0
    %v6263 = vadd.f32 %v4531, %v6262
    %v6264 = vpop.f32.mrf.mxu0
    %v6265 = vadd.f32 %v4535, %v6264
    %6266 = vmatprep.mubr.bf16.mxu0 %v4671
    %6267 = vmatmul.mubr.bf16.gmra.mxu0 %v4670
    %v6268 = vpop.f32.mrf.mxu0
    %v6269 = vadd.f32 %v4531, %v6268
    %v6270 = vpop.f32.mrf.mxu0
    %v6271 = vadd.f32 %v4535, %v6270
    %v6272 = vpop.f32.mrf.mxu0
    %v6273 = vpop.f32.mrf.mxu0
    %6274 = vdwg.mxu0
    %6275 = vmatprep.subr.bf16.mxu0 %v5429
    %6276 = vmatpush1.bf16.msra.mxu0 %v5428
    %6277 = vmatprep.subr.bf16.mxu0 %v5423
    %6278 = vmatpush1.bf16.msra.mxu0 %v5422
    %6279 = vmatprep.subr.bf16.mxu0 %v5417
    %6280 = vmatpush1.bf16.msra.mxu0 %v5416
    %6281 = vmatprep.subr.bf16.mxu0 %v5411
    %6282 = vmatpush1.bf16.msra.mxu0 %v5410
    %6283 = vmatprep.subr.bf16.mxu0 %v5405
    %6284 = vmatpush1.bf16.msra.mxu0 %v5404
    %6285 = vmatprep.subr.bf16.mxu0 %v5399
    %6286 = vmatpush1.bf16.msra.mxu0 %v5398
    %6287 = vmatprep.subr.bf16.mxu0 %v5393
    %6288 = vmatpush1.bf16.msra.mxu0 %v5392
    %6289 = vmatprep.subr.bf16.mxu0 %v5387
    %6290 = vmatpush1.bf16.msra.mxu0 %v5386
    %6291 = vmatprep.subr.bf16.mxu0 %v5477
    %6292 = vmatpush2.bf16.msra.mxu0 %v5476
    %6293 = vmatprep.subr.bf16.mxu0 %v5471
    %6294 = vmatpush2.bf16.msra.mxu0 %v5470
    %6295 = vmatprep.subr.bf16.mxu0 %v5465
    %6296 = vmatpush2.bf16.msra.mxu0 %v5464
    %6297 = vmatprep.subr.bf16.mxu0 %v5459
    %6298 = vmatpush2.bf16.msra.mxu0 %v5458
    %6299 = vmatprep.subr.bf16.mxu0 %v5453
    %6300 = vmatpush2.bf16.msra.mxu0 %v5452
    %6301 = vmatprep.subr.bf16.mxu0 %v5447
    %6302 = vmatpush2.bf16.msra.mxu0 %v5446
    %6303 = vmatprep.subr.bf16.mxu0 %v5441
    %6304 = vmatpush2.bf16.msra.mxu0 %v5440
    %6305 = vmatprep.subr.bf16.mxu0 %v5435
    %6306 = vmatpush2.bf16.msra.mxu0 %v5434
    %6307 = vmatprep.mubr.bf16.mxu0 %v4641
    %6308 = vmatmul.mubr.bf16.gmra.mxu0 %v4640
    %v6309 = vpop.f32.mrf.mxu0
    %v6310 = vadd.f32 %v6189, %v6309
    %v6311 = vpop.f32.mrf.mxu0
    %v6312 = vadd.f32 %v6191, %v6311
    %v6313 = vpop.f32.mrf.mxu0
    %v6314 = vadd.f32 %v6193, %v6313
    %v6315 = vpop.f32.mrf.mxu0
    %v6316 = vadd.f32 %v6195, %v6315
    %6317 = vmatprep.mubr.bf16.mxu0 %v4645
    %6318 = vmatmul.mubr.bf16.gmra.mxu0 %v4644
    %v6319 = vpop.f32.mrf.mxu0
    %v6320 = vadd.f32 %v6199, %v6319
    %v6321 = vpop.f32.mrf.mxu0
    %v6322 = vadd.f32 %v6201, %v6321
    %v6323 = vpop.f32.mrf.mxu0
    %v6324 = vadd.f32 %v6203, %v6323
    %v6325 = vpop.f32.mrf.mxu0
    %v6326 = vadd.f32 %v6205, %v6325
    %6327 = vmatprep.mubr.bf16.mxu0 %v4649
    %6328 = vmatmul.mubr.bf16.gmra.mxu0 %v4648
    %v6329 = vpop.f32.mrf.mxu0
    %v6330 = vadd.f32 %v6209, %v6329
    %v6331 = vpop.f32.mrf.mxu0
    %v6332 = vadd.f32 %v6211, %v6331
    %v6333 = vpop.f32.mrf.mxu0
    %v6334 = vadd.f32 %v6213, %v6333
    %v6335 = vpop.f32.mrf.mxu0
    %v6336 = vadd.f32 %v6215, %v6335
    %6337 = vmatprep.mubr.bf16.mxu0 %v4653
    %6338 = vmatmul.mubr.bf16.gmra.mxu0 %v4652
    %v6339 = vpop.f32.mrf.mxu0
    %v6340 = vadd.f32 %v6219, %v6339
    %v6341 = vpop.f32.mrf.mxu0
    %v6342 = vadd.f32 %v6221, %v6341
    %v6343 = vpop.f32.mrf.mxu0
    %v6344 = vadd.f32 %v6223, %v6343
    %v6345 = vpop.f32.mrf.mxu0
    %v6346 = vadd.f32 %v6225, %v6345
    %6347 = vmatprep.mubr.bf16.mxu0 %v4657
    %6348 = vmatmul.mubr.bf16.gmra.mxu0 %v4656
    %v6349 = vpop.f32.mrf.mxu0
    %v6350 = vadd.f32 %v6229, %v6349
    %v6351 = vpop.f32.mrf.mxu0
    %v6352 = vadd.f32 %v6231, %v6351
    %v6353 = vpop.f32.mrf.mxu0
    %v6354 = vadd.f32 %v6233, %v6353
    %v6355 = vpop.f32.mrf.mxu0
    %v6356 = vadd.f32 %v6235, %v6355
    %6357 = vmatprep.mubr.bf16.mxu0 %v4661
    %6358 = vmatmul.mubr.bf16.gmra.mxu0 %v4660
    %v6359 = vpop.f32.mrf.mxu0
    %v6360 = vadd.f32 %v6239, %v6359
    %v6361 = vpop.f32.mrf.mxu0
    %v6362 = vadd.f32 %v6241, %v6361
    %v6363 = vpop.f32.mrf.mxu0
    %v6364 = vadd.f32 %v6243, %v6363
    %v6365 = vpop.f32.mrf.mxu0
    %v6366 = vadd.f32 %v6245, %v6365
    %6367 = vmatprep.mubr.bf16.mxu0 %v4665
    %6368 = vmatmul.mubr.bf16.gmra.mxu0 %v4664
    %v6369 = vpop.f32.mrf.mxu0
    %v6370 = vadd.f32 %v6249, %v6369
    %v6371 = vpop.f32.mrf.mxu0
    %v6372 = vadd.f32 %v6251, %v6371
    %v6373 = vpop.f32.mrf.mxu0
    %v6374 = vadd.f32 %v6253, %v6373
    %v6375 = vpop.f32.mrf.mxu0
    %v6376 = vadd.f32 %v6255, %v6375
    %6377 = vmatprep.mubr.bf16.mxu0 %v4669
    %6378 = vmatmul.mubr.bf16.gmra.mxu0 %v4668
    %v6379 = vpop.f32.mrf.mxu0
    %v6380 = vadd.f32 %v6259, %v6379
    %v6381 = vpop.f32.mrf.mxu0
    %v6382 = vadd.f32 %v6261, %v6381
    %v6383 = vpop.f32.mrf.mxu0
    %v6384 = vadd.f32 %v6263, %v6383
    %v6385 = vpop.f32.mrf.mxu0
    %v6386 = vadd.f32 %v6265, %v6385
    %6387 = vmatprep.mubr.bf16.mxu0 %v4673
    %6388 = vmatmul.mubr.bf16.gmra.mxu0 %v4672
    %v6389 = vpop.f32.mrf.mxu0
    %v6390 = vadd.f32 %v6269, %v6389
    %v6391 = vpop.f32.mrf.mxu0
    %v6392 = vadd.f32 %v6271, %v6391
    %v6393 = vpop.f32.mrf.mxu0
    %v6394 = vpop.f32.mrf.mxu0
    %6395 = vdwg.mxu0
    %v6396 = vadd.f32 %v5826, %v5830
    %v6397 = vadd.f32 %v6396, %v5836
    %v6398 = vadd.f32 %v6397, %v5840
    %v6399 = vadd.f32 %v6398, %v5846
    %v6400 = vadd.f32 %v6399, %v5850
    %v6401 = vadd.f32 %v6400, %v5856
    %v6402 = vadd.f32 %v6401, %v5860
    %v6403 = vadd.f32 %v6402, %v5866
    %v6404 = vadd.f32 %v6403, %v5870
    %v6405 = vadd.f32 %v6404, %v5876
    %v6406 = vadd.f32 %v6405, %v5880
    %v6407 = vadd.f32 %v6406, %v5886
    %v6408 = vadd.f32 %v6407, %v5890
    %v6409 = vadd.f32 %v6408, %v5896
    %v6410 = vadd.f32 %v6409, %v5900
    %v6411 = vadd.f32 %v6410, %v5906
    %v6412 = vrot.slane %v6411, 4
    %v6413 = vadd.f32 %v6411, %v6412
    %v6414 = vrot.slane %v6413, 2
    %v6415 = vadd.f32 %v6413, %v6414
    %v6416 = vrot.slane %v6415, 1
    %v6417 = vadd.f32 %v6415, %v6416
    %v6418 = vadd.f32 %v5828, %v5832
    %v6419 = vadd.f32 %v6418, %v5838
    %v6420 = vadd.f32 %v6419, %v5842
    %v6421 = vadd.f32 %v6420, %v5848
    %v6422 = vadd.f32 %v6421, %v5852
    %v6423 = vadd.f32 %v6422, %v5858
    %v6424 = vadd.f32 %v6423, %v5862
    %v6425 = vadd.f32 %v6424, %v5868
    %v6426 = vadd.f32 %v6425, %v5872
    %v6427 = vadd.f32 %v6426, %v5878
    %v6428 = vadd.f32 %v6427, %v5882
    %v6429 = vadd.f32 %v6428, %v5888
    %v6430 = vadd.f32 %v6429, %v5892
    %v6431 = vadd.f32 %v6430, %v5898
    %v6432 = vadd.f32 %v6431, %v5902
    %v6433 = vadd.f32 %v6432, %v5908
    %v6434 = vrot.slane %v6433, 4
    %v6435 = vadd.f32 %v6433, %v6434
    %v6436 = vrot.slane %v6435, 2
    %v6437 = vadd.f32 %v6435, %v6436
    %v6438 = vrot.slane %v6437, 1
    %v6439 = vadd.f32 %v6437, %v6438
    %v6440 = vadd.f32 %v6068, %v6072
    %v6441 = vadd.f32 %v6440, %v6078
    %v6442 = vadd.f32 %v6441, %v6082
    %v6443 = vadd.f32 %v6442, %v6088
    %v6444 = vadd.f32 %v6443, %v6092
    %v6445 = vadd.f32 %v6444, %v6098
    %v6446 = vadd.f32 %v6445, %v6102
    %v6447 = vadd.f32 %v6446, %v6108
    %v6448 = vadd.f32 %v6447, %v6112
    %v6449 = vadd.f32 %v6448, %v6118
    %v6450 = vadd.f32 %v6449, %v6122
    %v6451 = vadd.f32 %v6450, %v6128
    %v6452 = vadd.f32 %v6451, %v6132
    %v6453 = vadd.f32 %v6452, %v6138
    %v6454 = vadd.f32 %v6453, %v6142
    %v6455 = vadd.f32 %v6454, %v6148
    %v6456 = vrot.slane %v6455, 4
    %v6457 = vadd.f32 %v6455, %v6456
    %v6458 = vrot.slane %v6457, 2
    %v6459 = vadd.f32 %v6457, %v6458
    %v6460 = vrot.slane %v6459, 1
    %v6461 = vadd.f32 %v6459, %v6460
    %v6462 = vadd.f32 %v6070, %v6074
    %v6463 = vadd.f32 %v6462, %v6080
    %v6464 = vadd.f32 %v6463, %v6084
    %v6465 = vadd.f32 %v6464, %v6090
    %v6466 = vadd.f32 %v6465, %v6094
    %v6467 = vadd.f32 %v6466, %v6100
    %v6468 = vadd.f32 %v6467, %v6104
    %v6469 = vadd.f32 %v6468, %v6110
    %v6470 = vadd.f32 %v6469, %v6114
    %v6471 = vadd.f32 %v6470, %v6120
    %v6472 = vadd.f32 %v6471, %v6124
    %v6473 = vadd.f32 %v6472, %v6130
    %v6474 = vadd.f32 %v6473, %v6134
    %v6475 = vadd.f32 %v6474, %v6140
    %v6476 = vadd.f32 %v6475, %v6144
    %v6477 = vadd.f32 %v6476, %v6150
    %v6478 = vrot.slane %v6477, 4
    %v6479 = vadd.f32 %v6477, %v6478
    %v6480 = vrot.slane %v6479, 2
    %v6481 = vadd.f32 %v6479, %v6480
    %v6482 = vrot.slane %v6481, 1
    %v6483 = vadd.f32 %v6481, %v6482
    %v6484 = vadd.f32 %v6310, %v6314
    %v6485 = vadd.f32 %v6484, %v6320
    %v6486 = vadd.f32 %v6485, %v6324
    %v6487 = vadd.f32 %v6486, %v6330
    %v6488 = vadd.f32 %v6487, %v6334
    %v6489 = vadd.f32 %v6488, %v6340
    %v6490 = vadd.f32 %v6489, %v6344
    %v6491 = vadd.f32 %v6490, %v6350
    %v6492 = vadd.f32 %v6491, %v6354
    %v6493 = vadd.f32 %v6492, %v6360
    %v6494 = vadd.f32 %v6493, %v6364
    %v6495 = vadd.f32 %v6494, %v6370
    %v6496 = vadd.f32 %v6495, %v6374
    %v6497 = vadd.f32 %v6496, %v6380
    %v6498 = vadd.f32 %v6497, %v6384
    %v6499 = vadd.f32 %v6498, %v6390
    %v6500 = vrot.slane %v6499, 4
    %v6501 = vadd.f32 %v6499, %v6500
    %v6502 = vrot.slane %v6501, 2
    %v6503 = vadd.f32 %v6501, %v6502
    %v6504 = vrot.slane %v6503, 1
    %v6505 = vadd.f32 %v6503, %v6504
    %v6506 = vadd.f32 %v6312, %v6316
    %v6507 = vadd.f32 %v6506, %v6322
    %v6508 = vadd.f32 %v6507, %v6326
    %v6509 = vadd.f32 %v6508, %v6332
    %v6510 = vadd.f32 %v6509, %v6336
    %v6511 = vadd.f32 %v6510, %v6342
    %v6512 = vadd.f32 %v6511, %v6346
    %v6513 = vadd.f32 %v6512, %v6352
    %v6514 = vadd.f32 %v6513, %v6356
    %v6515 = vadd.f32 %v6514, %v6362
    %v6516 = vadd.f32 %v6515, %v6366
    %v6517 = vadd.f32 %v6516, %v6372
    %v6518 = vadd.f32 %v6517, %v6376
    %v6519 = vadd.f32 %v6518, %v6382
    %v6520 = vadd.f32 %v6519, %v6386
    %v6521 = vadd.f32 %v6520, %v6392
    %v6522 = vrot.slane %v6521, 4
    %v6523 = vadd.f32 %v6521, %v6522
    %v6524 = vrot.slane %v6523, 2
    %v6525 = vadd.f32 %v6523, %v6524
    %v6526 = vrot.slane %v6525, 1
    %v6527 = vadd.f32 %v6525, %v6526
    %v6528 = vrcp.pop 136.0
    %v6529 = vmul.f32 %v6417, %v6528
    %v6530 = vmul.f32 %v6439, %v6528
    %v6531 = vmul.f32 %v6461, %v6528
    %v6532 = vmul.f32 %v6483, %v6528
    %v6533 = vmul.f32 %v6505, %v6528
    %v6534 = vmul.f32 %v6527, %v6528
    %v6535 = vsub.f32 %v5826, %v6529
    %v6536 = vsub.f32 %v5828, %v6530
    %v6537 = vsub.f32 %v6068, %v6531
    %v6538 = vsub.f32 %v6070, %v6532
    %v6539 = vsub.f32 %v6310, %v6533
    %v6540 = vsub.f32 %v6312, %v6534
    %v6541 = vsub.f32 %v5830, %v6529
    %v6542 = vsub.f32 %v5832, %v6530
    %v6543 = vsub.f32 %v6072, %v6531
    %v6544 = vsub.f32 %v6074, %v6532
    %v6545 = vsub.f32 %v6314, %v6533
    %v6546 = vsub.f32 %v6316, %v6534
    %v6547 = vsub.f32 %v5836, %v6529
    %v6548 = vsub.f32 %v5838, %v6530
    %v6549 = vsub.f32 %v6078, %v6531
    %v6550 = vsub.f32 %v6080, %v6532
    %v6551 = vsub.f32 %v6320, %v6533
    %v6552 = vsub.f32 %v6322, %v6534
    %v6553 = vsub.f32 %v5840, %v6529
    %v6554 = vsub.f32 %v5842, %v6530
    %v6555 = vsub.f32 %v6082, %v6531
    %v6556 = vsub.f32 %v6084, %v6532
    %v6557 = vsub.f32 %v6324, %v6533
    %v6558 = vsub.f32 %v6326, %v6534
    %v6559 = vsub.f32 %v5846, %v6529
    %v6560 = vsub.f32 %v5848, %v6530
    %v6561 = vsub.f32 %v6088, %v6531
    %v6562 = vsub.f32 %v6090, %v6532
    %v6563 = vsub.f32 %v6330, %v6533
    %v6564 = vsub.f32 %v6332, %v6534
    %v6565 = vsub.f32 %v5850, %v6529
    %v6566 = vsub.f32 %v5852, %v6530
    %v6567 = vsub.f32 %v6092, %v6531
    %v6568 = vsub.f32 %v6094, %v6532
    %v6569 = vsub.f32 %v6334, %v6533
    %v6570 = vsub.f32 %v6336, %v6534
    %v6571 = vsub.f32 %v5856, %v6529
    %v6572 = vsub.f32 %v5858, %v6530
    %v6573 = vsub.f32 %v6098, %v6531
    %v6574 = vsub.f32 %v6100, %v6532
    %v6575 = vsub.f32 %v6340, %v6533
    %v6576 = vsub.f32 %v6342, %v6534
    %v6577 = vsub.f32 %v5860, %v6529
    %v6578 = vsub.f32 %v5862, %v6530
    %v6579 = vsub.f32 %v6102, %v6531
    %v6580 = vsub.f32 %v6104, %v6532
    %v6581 = vsub.f32 %v6344, %v6533
    %v6582 = vsub.f32 %v6346, %v6534
    %v6583 = vsub.f32 %v5866, %v6529
    %v6584 = vsub.f32 %v5868, %v6530
    %v6585 = vsub.f32 %v6108, %v6531
    %v6586 = vsub.f32 %v6110, %v6532
    %v6587 = vsub.f32 %v6350, %v6533
    %v6588 = vsub.f32 %v6352, %v6534
    %v6589 = vsub.f32 %v5870, %v6529
    %v6590 = vsub.f32 %v5872, %v6530
    %v6591 = vsub.f32 %v6112, %v6531
    %v6592 = vsub.f32 %v6114, %v6532
    %v6593 = vsub.f32 %v6354, %v6533
    %v6594 = vsub.f32 %v6356, %v6534
    %v6595 = vsub.f32 %v5876, %v6529
    %v6596 = vsub.f32 %v5878, %v6530
    %v6597 = vsub.f32 %v6118, %v6531
    %v6598 = vsub.f32 %v6120, %v6532
    %v6599 = vsub.f32 %v6360, %v6533
    %v6600 = vsub.f32 %v6362, %v6534
    %v6601 = vsub.f32 %v5880, %v6529
    %v6602 = vsub.f32 %v5882, %v6530
    %v6603 = vsub.f32 %v6122, %v6531
    %v6604 = vsub.f32 %v6124, %v6532
    %v6605 = vsub.f32 %v6364, %v6533
    %v6606 = vsub.f32 %v6366, %v6534
    %v6607 = vsub.f32 %v5886, %v6529
    %v6608 = vsub.f32 %v5888, %v6530
    %v6609 = vsub.f32 %v6128, %v6531
    %v6610 = vsub.f32 %v6130, %v6532
    %v6611 = vsub.f32 %v6370, %v6533
    %v6612 = vsub.f32 %v6372, %v6534
    %v6613 = vsub.f32 %v5890, %v6529
    %v6614 = vsub.f32 %v5892, %v6530
    %v6615 = vsub.f32 %v6132, %v6531
    %v6616 = vsub.f32 %v6134, %v6532
    %v6617 = vsub.f32 %v6374, %v6533
    %v6618 = vsub.f32 %v6376, %v6534
    %v6619 = vsub.f32 %v5896, %v6529
    %v6620 = vsub.f32 %v5898, %v6530
    %v6621 = vsub.f32 %v6138, %v6531
    %v6622 = vsub.f32 %v6140, %v6532
    %v6623 = vsub.f32 %v6380, %v6533
    %v6624 = vsub.f32 %v6382, %v6534
    %v6625 = vsub.f32 %v5900, %v6529
    %v6626 = vsub.f32 %v5902, %v6530
    %v6627 = vsub.f32 %v6142, %v6531
    %v6628 = vsub.f32 %v6144, %v6532
    %v6629 = vsub.f32 %v6384, %v6533
    %v6630 = vsub.f32 %v6386, %v6534
    %v6631 = vsub.f32 %v5906, %v6529
    %v6632 = vsub.f32 %v5908, %v6530
    %v6633 = vsub.f32 %v6148, %v6531
    %v6634 = vsub.f32 %v6150, %v6532
    %v6635 = vsub.f32 %v6390, %v6533
    %v6636 = vsub.f32 %v6392, %v6534
    %v6637 = vmul.f32 %v6535, %v6535
    %v6638 = vmul.f32 %v6536, %v6536
    %v6639 = vmul.f32 %v6537, %v6537
    %v6640 = vmul.f32 %v6538, %v6538
    %v6641 = vmul.f32 %v6539, %v6539
    %v6642 = vmul.f32 %v6540, %v6540
    %v6643 = vmul.f32 %v6541, %v6541
    %v6644 = vmul.f32 %v6542, %v6542
    %v6645 = vmul.f32 %v6543, %v6543
    %v6646 = vmul.f32 %v6544, %v6544
    %v6647 = vmul.f32 %v6545, %v6545
    %v6648 = vmul.f32 %v6546, %v6546
    %v6649 = vmul.f32 %v6547, %v6547
    %v6650 = vmul.f32 %v6548, %v6548
    %v6651 = vmul.f32 %v6549, %v6549
    %v6652 = vmul.f32 %v6550, %v6550
    %v6653 = vmul.f32 %v6551, %v6551
    %v6654 = vmul.f32 %v6552, %v6552
    %v6655 = vmul.f32 %v6553, %v6553
    %v6656 = vmul.f32 %v6554, %v6554
    %v6657 = vmul.f32 %v6555, %v6555
    %v6658 = vmul.f32 %v6556, %v6556
    %v6659 = vmul.f32 %v6557, %v6557
    %v6660 = vmul.f32 %v6558, %v6558
    %v6661 = vmul.f32 %v6559, %v6559
    %v6662 = vmul.f32 %v6560, %v6560
    %v6663 = vmul.f32 %v6561, %v6561
    %v6664 = vmul.f32 %v6562, %v6562
    %v6665 = vmul.f32 %v6563, %v6563
    %v6666 = vmul.f32 %v6564, %v6564
    %v6667 = vmul.f32 %v6565, %v6565
    %v6668 = vmul.f32 %v6566, %v6566
    %v6669 = vmul.f32 %v6567, %v6567
    %v6670 = vmul.f32 %v6568, %v6568
    %v6671 = vmul.f32 %v6569, %v6569
    %v6672 = vmul.f32 %v6570, %v6570
    %v6673 = vmul.f32 %v6571, %v6571
    %v6674 = vmul.f32 %v6572, %v6572
    %v6675 = vmul.f32 %v6573, %v6573
    %v6676 = vmul.f32 %v6574, %v6574
    %v6677 = vmul.f32 %v6575, %v6575
    %v6678 = vmul.f32 %v6576, %v6576
    %v6679 = vmul.f32 %v6577, %v6577
    %v6680 = vmul.f32 %v6578, %v6578
    %v6681 = vmul.f32 %v6579, %v6579
    %v6682 = vmul.f32 %v6580, %v6580
    %v6683 = vmul.f32 %v6581, %v6581
    %v6684 = vmul.f32 %v6582, %v6582
    %v6685 = vmul.f32 %v6583, %v6583
    %v6686 = vmul.f32 %v6584, %v6584
    %v6687 = vmul.f32 %v6585, %v6585
    %v6688 = vmul.f32 %v6586, %v6586
    %v6689 = vmul.f32 %v6587, %v6587
    %v6690 = vmul.f32 %v6588, %v6588
    %v6691 = vmul.f32 %v6589, %v6589
    %v6692 = vmul.f32 %v6590, %v6590
    %v6693 = vmul.f32 %v6591, %v6591
    %v6694 = vmul.f32 %v6592, %v6592
    %v6695 = vmul.f32 %v6593, %v6593
    %v6696 = vmul.f32 %v6594, %v6594
    %v6697 = vmul.f32 %v6595, %v6595
    %v6698 = vmul.f32 %v6596, %v6596
    %v6699 = vmul.f32 %v6597, %v6597
    %v6700 = vmul.f32 %v6598, %v6598
    %v6701 = vmul.f32 %v6599, %v6599
    %v6702 = vmul.f32 %v6600, %v6600
    %v6703 = vmul.f32 %v6601, %v6601
    %v6704 = vmul.f32 %v6602, %v6602
    %v6705 = vmul.f32 %v6603, %v6603
    %v6706 = vmul.f32 %v6604, %v6604
    %v6707 = vmul.f32 %v6605, %v6605
    %v6708 = vmul.f32 %v6606, %v6606
    %v6709 = vmul.f32 %v6607, %v6607
    %v6710 = vmul.f32 %v6608, %v6608
    %v6711 = vmul.f32 %v6609, %v6609
    %v6712 = vmul.f32 %v6610, %v6610
    %v6713 = vmul.f32 %v6611, %v6611
    %v6714 = vmul.f32 %v6612, %v6612
    %v6715 = vmul.f32 %v6613, %v6613
    %v6716 = vmul.f32 %v6614, %v6614
    %v6717 = vmul.f32 %v6615, %v6615
    %v6718 = vmul.f32 %v6616, %v6616
    %v6719 = vmul.f32 %v6617, %v6617
    %v6720 = vmul.f32 %v6618, %v6618
    %v6721 = vmul.f32 %v6619, %v6619
    %v6722 = vmul.f32 %v6620, %v6620
    %v6723 = vmul.f32 %v6621, %v6621
    %v6724 = vmul.f32 %v6622, %v6622
    %v6725 = vmul.f32 %v6623, %v6623
    %v6726 = vmul.f32 %v6624, %v6624
    %v6727 = vmul.f32 %v6625, %v6625
    %v6728 = vmul.f32 %v6626, %v6626
    %v6729 = vmul.f32 %v6627, %v6627
    %v6730 = vmul.f32 %v6628, %v6628
    %v6731 = vmul.f32 %v6629, %v6629
    %v6732 = vmul.f32 %v6630, %v6630
    %v6733 = vmul.f32 %v6631, %v6631
    %v6734 = vmul.f32 %v6632, %v6632
    %v6735 = vmul.f32 %v6633, %v6633
    %v6736 = vmul.f32 %v6634, %v6634
    %v6737 = vmul.f32 %v6635, %v6635
    %v6738 = vmul.f32 %v6636, %v6636
    %v6739 = vadd.f32 %v6637, %v6643
    %v6740 = vadd.f32 %v6739, %v6649
    %v6741 = vadd.f32 %v6740, %v6655
    %v6742 = vadd.f32 %v6741, %v6661
    %v6743 = vadd.f32 %v6742, %v6667
    %v6744 = vadd.f32 %v6743, %v6673
    %v6745 = vadd.f32 %v6744, %v6679
    %v6746 = vadd.f32 %v6745, %v6685
    %v6747 = vadd.f32 %v6746, %v6691
    %v6748 = vadd.f32 %v6747, %v6697
    %v6749 = vadd.f32 %v6748, %v6703
    %v6750 = vadd.f32 %v6749, %v6709
    %v6751 = vadd.f32 %v6750, %v6715
    %v6752 = vadd.f32 %v6751, %v6721
    %v6753 = vadd.f32 %v6752, %v6727
    %v6754 = vadd.f32 %v6753, %v6733
    %v6755 = vrot.slane %v6754, 4
    %v6756 = vadd.f32 %v6754, %v6755
    %v6757 = vrot.slane %v6756, 2
    %v6758 = vadd.f32 %v6756, %v6757
    %v6759 = vrot.slane %v6758, 1
    %v6760 = vadd.f32 %v6758, %v6759
    %v6761 = vadd.f32 %v6638, %v6644
    %v6762 = vadd.f32 %v6761, %v6650
    %v6763 = vadd.f32 %v6762, %v6656
    %v6764 = vadd.f32 %v6763, %v6662
    %v6765 = vadd.f32 %v6764, %v6668
    %v6766 = vadd.f32 %v6765, %v6674
    %v6767 = vadd.f32 %v6766, %v6680
    %v6768 = vadd.f32 %v6767, %v6686
    %v6769 = vadd.f32 %v6768, %v6692
    %v6770 = vadd.f32 %v6769, %v6698
    %v6771 = vadd.f32 %v6770, %v6704
    %v6772 = vadd.f32 %v6771, %v6710
    %v6773 = vadd.f32 %v6772, %v6716
    %v6774 = vadd.f32 %v6773, %v6722
    %v6775 = vadd.f32 %v6774, %v6728
    %v6776 = vadd.f32 %v6775, %v6734
    %v6777 = vrot.slane %v6776, 4
    %v6778 = vadd.f32 %v6776, %v6777
    %v6779 = vrot.slane %v6778, 2
    %v6780 = vadd.f32 %v6778, %v6779
    %v6781 = vrot.slane %v6780, 1
    %v6782 = vadd.f32 %v6780, %v6781
    %v6783 = vadd.f32 %v6639, %v6645
    %v6784 = vadd.f32 %v6783, %v6651
    %v6785 = vadd.f32 %v6784, %v6657
    %v6786 = vadd.f32 %v6785, %v6663
    %v6787 = vadd.f32 %v6786, %v6669
    %v6788 = vadd.f32 %v6787, %v6675
    %v6789 = vadd.f32 %v6788, %v6681
    %v6790 = vadd.f32 %v6789, %v6687
    %v6791 = vadd.f32 %v6790, %v6693
    %v6792 = vadd.f32 %v6791, %v6699
    %v6793 = vadd.f32 %v6792, %v6705
    %v6794 = vadd.f32 %v6793, %v6711
    %v6795 = vadd.f32 %v6794, %v6717
    %v6796 = vadd.f32 %v6795, %v6723
    %v6797 = vadd.f32 %v6796, %v6729
    %v6798 = vadd.f32 %v6797, %v6735
    %v6799 = vrot.slane %v6798, 4
    %v6800 = vadd.f32 %v6798, %v6799
    %v6801 = vrot.slane %v6800, 2
    %v6802 = vadd.f32 %v6800, %v6801
    %v6803 = vrot.slane %v6802, 1
    %v6804 = vadd.f32 %v6802, %v6803
    %v6805 = vadd.f32 %v6640, %v6646
    %v6806 = vadd.f32 %v6805, %v6652
    %v6807 = vadd.f32 %v6806, %v6658
    %v6808 = vadd.f32 %v6807, %v6664
    %v6809 = vadd.f32 %v6808, %v6670
    %v6810 = vadd.f32 %v6809, %v6676
    %v6811 = vadd.f32 %v6810, %v6682
    %v6812 = vadd.f32 %v6811, %v6688
    %v6813 = vadd.f32 %v6812, %v6694
    %v6814 = vadd.f32 %v6813, %v6700
    %v6815 = vadd.f32 %v6814, %v6706
    %v6816 = vadd.f32 %v6815, %v6712
    %v6817 = vadd.f32 %v6816, %v6718
    %v6818 = vadd.f32 %v6817, %v6724
    %v6819 = vadd.f32 %v6818, %v6730
    %v6820 = vadd.f32 %v6819, %v6736
    %v6821 = vrot.slane %v6820, 4
    %v6822 = vadd.f32 %v6820, %v6821
    %v6823 = vrot.slane %v6822, 2
    %v6824 = vadd.f32 %v6822, %v6823
    %v6825 = vrot.slane %v6824, 1
    %v6826 = vadd.f32 %v6824, %v6825
    %v6827 = vadd.f32 %v6641, %v6647
    %v6828 = vadd.f32 %v6827, %v6653
    %v6829 = vadd.f32 %v6828, %v6659
    %v6830 = vadd.f32 %v6829, %v6665
    %v6831 = vadd.f32 %v6830, %v6671
    %v6832 = vadd.f32 %v6831, %v6677
    %v6833 = vadd.f32 %v6832, %v6683
    %v6834 = vadd.f32 %v6833, %v6689
    %v6835 = vadd.f32 %v6834, %v6695
    %v6836 = vadd.f32 %v6835, %v6701
    %v6837 = vadd.f32 %v6836, %v6707
    %v6838 = vadd.f32 %v6837, %v6713
    %v6839 = vadd.f32 %v6838, %v6719
    %v6840 = vadd.f32 %v6839, %v6725
    %v6841 = vadd.f32 %v6840, %v6731
    %v6842 = vadd.f32 %v6841, %v6737
    %v6843 = vrot.slane %v6842, 4
    %v6844 = vadd.f32 %v6842, %v6843
    %v6845 = vrot.slane %v6844, 2
    %v6846 = vadd.f32 %v6844, %v6845
    %v6847 = vrot.slane %v6846, 1
    %v6848 = vadd.f32 %v6846, %v6847
    %v6849 = vadd.f32 %v6642, %v6648
    %v6850 = vadd.f32 %v6849, %v6654
    %v6851 = vadd.f32 %v6850, %v6660
    %v6852 = vadd.f32 %v6851, %v6666
    %v6853 = vadd.f32 %v6852, %v6672
    %v6854 = vadd.f32 %v6853, %v6678
    %v6855 = vadd.f32 %v6854, %v6684
    %v6856 = vadd.f32 %v6855, %v6690
    %v6857 = vadd.f32 %v6856, %v6696
    %v6858 = vadd.f32 %v6857, %v6702
    %v6859 = vadd.f32 %v6858, %v6708
    %v6860 = vadd.f32 %v6859, %v6714
    %v6861 = vadd.f32 %v6860, %v6720
    %v6862 = vadd.f32 %v6861, %v6726
    %v6863 = vadd.f32 %v6862, %v6732
    %v6864 = vadd.f32 %v6863, %v6738
    %v6865 = vrot.slane %v6864, 4
    %v6866 = vadd.f32 %v6864, %v6865
    %v6867 = vrot.slane %v6866, 2
    %v6868 = vadd.f32 %v6866, %v6867
    %v6869 = vrot.slane %v6868, 1
    %v6870 = vadd.f32 %v6868, %v6869
    %v6871 = vmul.f32 %v6760, %v6528
    %v6872 = vmul.f32 %v6782, %v6528
    %v6873 = vmul.f32 %v6804, %v6528
    %v6874 = vmul.f32 %v6826, %v6528
    %v6875 = vmul.f32 %v6848, %v6528
    %v6876 = vmul.f32 %v6870, %v6528
    %v6877 = vadd.f32 %v6871, 1e-05
    %v6878 = vadd.f32 %v6872, 1e-05
    %v6879 = vadd.f32 %v6873, 1e-05
    %v6880 = vadd.f32 %v6874, 1e-05
    %v6881 = vadd.f32 %v6875, 1e-05
    %v6882 = vadd.f32 %v6876, 1e-05
    %v6883 = vrsqrt.pop %v6877
    %v6884 = vrsqrt.pop %v6878
    %v6885 = vrsqrt.pop %v6879
    %v6886 = vrsqrt.pop %v6880
    %v6887 = vrsqrt.pop %v6881
    %v6888 = vrsqrt.pop %v6882
    %v6889 = vmul.f32 %v6535, %v6883
    %v6890 = vmul.f32 %v6536, %v6884
    %v6891 = vmul.f32 %v6537, %v6885
    %v6892 = vmul.f32 %v6538, %v6886
    %v6893 = vmul.f32 %v6539, %v6887
    %v6894 = vmul.f32 %v6540, %v6888
    %v6895 = vmul.f32 %v6541, %v6883
    %v6896 = vmul.f32 %v6542, %v6884
    %v6897 = vmul.f32 %v6543, %v6885
    %v6898 = vmul.f32 %v6544, %v6886
    %v6899 = vmul.f32 %v6545, %v6887
    %v6900 = vmul.f32 %v6546, %v6888
    %v6901 = vmul.f32 %v6547, %v6883
    %v6902 = vmul.f32 %v6548, %v6884
    %v6903 = vmul.f32 %v6549, %v6885
    %v6904 = vmul.f32 %v6550, %v6886
    %v6905 = vmul.f32 %v6551, %v6887
    %v6906 = vmul.f32 %v6552, %v6888
    %v6907 = vmul.f32 %v6553, %v6883
    %v6908 = vmul.f32 %v6554, %v6884
    %v6909 = vmul.f32 %v6555, %v6885
    %v6910 = vmul.f32 %v6556, %v6886
    %v6911 = vmul.f32 %v6557, %v6887
    %v6912 = vmul.f32 %v6558, %v6888
    %v6913 = vmul.f32 %v6559, %v6883
    %v6914 = vmul.f32 %v6560, %v6884
    %v6915 = vmul.f32 %v6561, %v6885
    %v6916 = vmul.f32 %v6562, %v6886
    %v6917 = vmul.f32 %v6563, %v6887
    %v6918 = vmul.f32 %v6564, %v6888
    %v6919 = vmul.f32 %v6565, %v6883
    %v6920 = vmul.f32 %v6566, %v6884
    %v6921 = vmul.f32 %v6567, %v6885
    %v6922 = vmul.f32 %v6568, %v6886
    %v6923 = vmul.f32 %v6569, %v6887
    %v6924 = vmul.f32 %v6570, %v6888
    %v6925 = vmul.f32 %v6571, %v6883
    %v6926 = vmul.f32 %v6572, %v6884
    %v6927 = vmul.f32 %v6573, %v6885
    %v6928 = vmul.f32 %v6574, %v6886
    %v6929 = vmul.f32 %v6575, %v6887
    %v6930 = vmul.f32 %v6576, %v6888
    %v6931 = vmul.f32 %v6577, %v6883
    %v6932 = vmul.f32 %v6578, %v6884
    %v6933 = vmul.f32 %v6579, %v6885
    %v6934 = vmul.f32 %v6580, %v6886
    %v6935 = vmul.f32 %v6581, %v6887
    %v6936 = vmul.f32 %v6582, %v6888
    %v6937 = vmul.f32 %v6583, %v6883
    %v6938 = vmul.f32 %v6584, %v6884
    %v6939 = vmul.f32 %v6585, %v6885
    %v6940 = vmul.f32 %v6586, %v6886
    %v6941 = vmul.f32 %v6587, %v6887
    %v6942 = vmul.f32 %v6588, %v6888
    %v6943 = vmul.f32 %v6589, %v6883
    %v6944 = vmul.f32 %v6590, %v6884
    %v6945 = vmul.f32 %v6591, %v6885
    %v6946 = vmul.f32 %v6592, %v6886
    %v6947 = vmul.f32 %v6593, %v6887
    %v6948 = vmul.f32 %v6594, %v6888
    %v6949 = vmul.f32 %v6595, %v6883
    %v6950 = vmul.f32 %v6596, %v6884
    %v6951 = vmul.f32 %v6597, %v6885
    %v6952 = vmul.f32 %v6598, %v6886
    %v6953 = vmul.f32 %v6599, %v6887
    %v6954 = vmul.f32 %v6600, %v6888
    %v6955 = vmul.f32 %v6601, %v6883
    %v6956 = vmul.f32 %v6602, %v6884
    %v6957 = vmul.f32 %v6603, %v6885
    %v6958 = vmul.f32 %v6604, %v6886
    %v6959 = vmul.f32 %v6605, %v6887
    %v6960 = vmul.f32 %v6606, %v6888
    %v6961 = vmul.f32 %v6607, %v6883
    %v6962 = vmul.f32 %v6608, %v6884
    %v6963 = vmul.f32 %v6609, %v6885
    %v6964 = vmul.f32 %v6610, %v6886
    %v6965 = vmul.f32 %v6611, %v6887
    %v6966 = vmul.f32 %v6612, %v6888
    %v6967 = vmul.f32 %v6613, %v6883
    %v6968 = vmul.f32 %v6614, %v6884
    %v6969 = vmul.f32 %v6615, %v6885
    %v6970 = vmul.f32 %v6616, %v6886
    %v6971 = vmul.f32 %v6617, %v6887
    %v6972 = vmul.f32 %v6618, %v6888
    %v6973 = vmul.f32 %v6619, %v6883
    %v6974 = vmul.f32 %v6620, %v6884
    %v6975 = vmul.f32 %v6621, %v6885
    %v6976 = vmul.f32 %v6622, %v6886
    %v6977 = vmul.f32 %v6623, %v6887
    %v6978 = vmul.f32 %v6624, %v6888
    %v6979 = vmul.f32 %v6625, %v6883
    %v6980 = vmul.f32 %v6626, %v6884
    %v6981 = vmul.f32 %v6627, %v6885
    %v6982 = vmul.f32 %v6628, %v6886
    %v6983 = vmul.f32 %v6629, %v6887
    %v6984 = vmul.f32 %v6630, %v6888
    %v6985 = vmul.f32 %v6631, %v6883
    %v6986 = vmul.f32 %v6632, %v6884
    %v6987 = vmul.f32 %v6633, %v6885
    %v6988 = vmul.f32 %v6634, %v6886
    %v6989 = vmul.f32 %v6635, %v6887
    %v6990 = vmul.f32 %v6636, %v6888
    %v6991 = vlaneseq
    %v6992 = vshrl.u32 %v6991, 7
    %v6993 = vsub.s32 1, %v6992
    %v6994 = vrot.slane %v4188, %v6993
    %v6995 = vlaneseq
    %v6996 = vshrl.u32 %v6995, 7
    %v6997 = vsub.s32 5, %v6996
    %v6998 = vrot.slane %v4188, %v6997
    %v6999 = vlaneseq
    %v7000 = vshrl.u32 %v6999, 7
    %v7001 = vsub.s32 1, %v7000
    %v7002 = vrot.slane %v4189, %v7001
    %v7003 = vlaneseq
    %v7004 = vshrl.u32 %v7003, 7
    %v7005 = vsub.s32 5, %v7004
    %v7006 = vrot.slane %v4189, %v7005
    %v7007 = vlaneseq
    %v7008 = vshrl.u32 %v7007, 7
    %v7009 = vsub.s32 1, %v7008
    %v7010 = vrot.slane %v4190, %v7009
    %v7011 = vlaneseq
    %v7012 = vshrl.u32 %v7011, 7
    %v7013 = vsub.s32 5, %v7012
    %v7014 = vrot.slane %v4190, %v7013
    %v7021 = vlaneseq
    %v7022 = vshrl.u32 %v7021, 7
    %v7023 = vsub.s32 1, %v7022
    %v7024 = vrot.slane %v6994, %v7023
    %v7025 = vlaneseq
    %v7026 = vshrl.u32 %v7025, 7
    %v7027 = vsub.s32 1, %v7026
    %v7028 = vrot.slane %v6998, %v7027
    %v7029 = vlaneseq
    %v7030 = vshrl.u32 %v7029, 7
    %v7031 = vsub.s32 1, %v7030
    %v7032 = vrot.slane %v7002, %v7031
    %v7033 = vlaneseq
    %v7034 = vshrl.u32 %v7033, 7
    %v7035 = vsub.s32 1, %v7034
    %v7036 = vrot.slane %v7006, %v7035
    %v7037 = vlaneseq
    %v7038 = vshrl.u32 %v7037, 7
    %v7039 = vsub.s32 1, %v7038
    %v7040 = vrot.slane %v7010, %v7039
    %v7041 = vlaneseq
    %v7042 = vshrl.u32 %v7041, 7
    %v7043 = vsub.s32 1, %v7042
    %v7044 = vrot.slane %v7014, %v7043
    %v7045 = vmul.f32 %v6889, %v7024
    %v7046 = vmul.f32 %v6890, %v7028
    %v7047 = vmul.f32 %v6891, %v7032
    %v7048 = vmul.f32 %v6892, %v7036
    %v7049 = vmul.f32 %v6893, %v7040
    %v7050 = vmul.f32 %v6894, %v7044
    %v7051 = vmul.f32 %v6895, %v7024
    %v7052 = vmul.f32 %v6896, %v7028
    %v7053 = vmul.f32 %v6897, %v7032
    %v7054 = vmul.f32 %v6898, %v7036
    %v7055 = vmul.f32 %v6899, %v7040
    %v7056 = vmul.f32 %v6900, %v7044
    %v7057 = vmul.f32 %v6901, %v7024
    %v7058 = vmul.f32 %v6902, %v7028
    %v7059 = vmul.f32 %v6903, %v7032
    %v7060 = vmul.f32 %v6904, %v7036
    %v7061 = vmul.f32 %v6905, %v7040
    %v7062 = vmul.f32 %v6906, %v7044
    %v7063 = vmul.f32 %v6907, %v7024
    %v7064 = vmul.f32 %v6908, %v7028
    %v7065 = vmul.f32 %v6909, %v7032
    %v7066 = vmul.f32 %v6910, %v7036
    %v7067 = vmul.f32 %v6911, %v7040
    %v7068 = vmul.f32 %v6912, %v7044
    %v7069 = vmul.f32 %v6913, %v7024
    %v7070 = vmul.f32 %v6914, %v7028
    %v7071 = vmul.f32 %v6915, %v7032
    %v7072 = vmul.f32 %v6916, %v7036
    %v7073 = vmul.f32 %v6917, %v7040
    %v7074 = vmul.f32 %v6918, %v7044
    %v7075 = vmul.f32 %v6919, %v7024
    %v7076 = vmul.f32 %v6920, %v7028
    %v7077 = vmul.f32 %v6921, %v7032
    %v7078 = vmul.f32 %v6922, %v7036
    %v7079 = vmul.f32 %v6923, %v7040
    %v7080 = vmul.f32 %v6924, %v7044
    %v7081 = vmul.f32 %v6925, %v7024
    %v7082 = vmul.f32 %v6926, %v7028
    %v7083 = vmul.f32 %v6927, %v7032
    %v7084 = vmul.f32 %v6928, %v7036
    %v7085 = vmul.f32 %v6929, %v7040
    %v7086 = vmul.f32 %v6930, %v7044
    %v7087 = vmul.f32 %v6931, %v7024
    %v7088 = vmul.f32 %v6932, %v7028
    %v7089 = vmul.f32 %v6933, %v7032
    %v7090 = vmul.f32 %v6934, %v7036
    %v7091 = vmul.f32 %v6935, %v7040
    %v7092 = vmul.f32 %v6936, %v7044
    %v7093 = vmul.f32 %v6937, %v7024
    %v7094 = vmul.f32 %v6938, %v7028
    %v7095 = vmul.f32 %v6939, %v7032
    %v7096 = vmul.f32 %v6940, %v7036
    %v7097 = vmul.f32 %v6941, %v7040
    %v7098 = vmul.f32 %v6942, %v7044
    %v7099 = vmul.f32 %v6943, %v7024
    %v7100 = vmul.f32 %v6944, %v7028
    %v7101 = vmul.f32 %v6945, %v7032
    %v7102 = vmul.f32 %v6946, %v7036
    %v7103 = vmul.f32 %v6947, %v7040
    %v7104 = vmul.f32 %v6948, %v7044
    %v7105 = vmul.f32 %v6949, %v7024
    %v7106 = vmul.f32 %v6950, %v7028
    %v7107 = vmul.f32 %v6951, %v7032
    %v7108 = vmul.f32 %v6952, %v7036
    %v7109 = vmul.f32 %v6953, %v7040
    %v7110 = vmul.f32 %v6954, %v7044
    %v7111 = vmul.f32 %v6955, %v7024
    %v7112 = vmul.f32 %v6956, %v7028
    %v7113 = vmul.f32 %v6957, %v7032
    %v7114 = vmul.f32 %v6958, %v7036
    %v7115 = vmul.f32 %v6959, %v7040
    %v7116 = vmul.f32 %v6960, %v7044
    %v7117 = vmul.f32 %v6961, %v7024
    %v7118 = vmul.f32 %v6962, %v7028
    %v7119 = vmul.f32 %v6963, %v7032
    %v7120 = vmul.f32 %v6964, %v7036
    %v7121 = vmul.f32 %v6965, %v7040
    %v7122 = vmul.f32 %v6966, %v7044
    %v7123 = vmul.f32 %v6967, %v7024
    %v7124 = vmul.f32 %v6968, %v7028
    %v7125 = vmul.f32 %v6969, %v7032
    %v7126 = vmul.f32 %v6970, %v7036
    %v7127 = vmul.f32 %v6971, %v7040
    %v7128 = vmul.f32 %v6972, %v7044
    %v7129 = vmul.f32 %v6973, %v7024
    %v7130 = vmul.f32 %v6974, %v7028
    %v7131 = vmul.f32 %v6975, %v7032
    %v7132 = vmul.f32 %v6976, %v7036
    %v7133 = vmul.f32 %v6977, %v7040
    %v7134 = vmul.f32 %v6978, %v7044
    %v7135 = vmul.f32 %v6979, %v7024
    %v7136 = vmul.f32 %v6980, %v7028
    %v7137 = vmul.f32 %v6981, %v7032
    %v7138 = vmul.f32 %v6982, %v7036
    %v7139 = vmul.f32 %v6983, %v7040
    %v7140 = vmul.f32 %v6984, %v7044
    %v7141 = vmul.f32 %v6985, %v7024
    %v7142 = vmul.f32 %v6986, %v7028
    %v7143 = vmul.f32 %v6987, %v7032
    %v7144 = vmul.f32 %v6988, %v7036
    %v7145 = vmul.f32 %v6989, %v7040
    %v7146 = vmul.f32 %v6990, %v7044
    %v7147 = vlaneseq
    %v7148 = vshrl.u32 %v7147, 7
    %v7149 = vsub.s32 2, %v7148
    %v7150 = vrot.slane %v4188, %v7149
    %v7151 = vlaneseq
    %v7152 = vshrl.u32 %v7151, 7
    %v7153 = vsub.s32 6, %v7152
    %v7154 = vrot.slane %v4188, %v7153
    %v7155 = vlaneseq
    %v7156 = vshrl.u32 %v7155, 7
    %v7157 = vsub.s32 2, %v7156
    %v7158 = vrot.slane %v4189, %v7157
    %v7159 = vlaneseq
    %v7160 = vshrl.u32 %v7159, 7
    %v7161 = vsub.s32 6, %v7160
    %v7162 = vrot.slane %v4189, %v7161
    %v7163 = vlaneseq
    %v7164 = vshrl.u32 %v7163, 7
    %v7165 = vsub.s32 2, %v7164
    %v7166 = vrot.slane %v4190, %v7165
    %v7167 = vlaneseq
    %v7168 = vshrl.u32 %v7167, 7
    %v7169 = vsub.s32 6, %v7168
    %v7170 = vrot.slane %v4190, %v7169
    %v7177 = vlaneseq
    %v7178 = vshrl.u32 %v7177, 7
    %v7179 = vsub.s32 2, %v7178
    %v7180 = vrot.slane %v7150, %v7179
    %v7181 = vlaneseq
    %v7182 = vshrl.u32 %v7181, 7
    %v7183 = vsub.s32 2, %v7182
    %v7184 = vrot.slane %v7154, %v7183
    %v7185 = vlaneseq
    %v7186 = vshrl.u32 %v7185, 7
    %v7187 = vsub.s32 2, %v7186
    %v7188 = vrot.slane %v7158, %v7187
    %v7189 = vlaneseq
    %v7190 = vshrl.u32 %v7189, 7
    %v7191 = vsub.s32 2, %v7190
    %v7192 = vrot.slane %v7162, %v7191
    %v7193 = vlaneseq
    %v7194 = vshrl.u32 %v7193, 7
    %v7195 = vsub.s32 2, %v7194
    %v7196 = vrot.slane %v7166, %v7195
    %v7197 = vlaneseq
    %v7198 = vshrl.u32 %v7197, 7
    %v7199 = vsub.s32 2, %v7198
    %v7200 = vrot.slane %v7170, %v7199
    %v7201 = vadd.f32 %v7045, %v7180
    %v7202 = vadd.f32 %v7046, %v7184
    %v7203 = vadd.f32 %v7047, %v7188
    %v7204 = vadd.f32 %v7048, %v7192
    %v7205 = vadd.f32 %v7049, %v7196
    %v7206 = vadd.f32 %v7050, %v7200
    %v7207 = vadd.f32 %v7051, %v7180
    %v7208 = vadd.f32 %v7052, %v7184
    %v7209 = vadd.f32 %v7053, %v7188
    %v7210 = vadd.f32 %v7054, %v7192
    %v7211 = vadd.f32 %v7055, %v7196
    %v7212 = vadd.f32 %v7056, %v7200
    %v7213 = vadd.f32 %v7057, %v7180
    %v7214 = vadd.f32 %v7058, %v7184
    %v7215 = vadd.f32 %v7059, %v7188
    %v7216 = vadd.f32 %v7060, %v7192
    %v7217 = vadd.f32 %v7061, %v7196
    %v7218 = vadd.f32 %v7062, %v7200
    %v7219 = vadd.f32 %v7063, %v7180
    %v7220 = vadd.f32 %v7064, %v7184
    %v7221 = vadd.f32 %v7065, %v7188
    %v7222 = vadd.f32 %v7066, %v7192
    %v7223 = vadd.f32 %v7067, %v7196
    %v7224 = vadd.f32 %v7068, %v7200
    %v7225 = vadd.f32 %v7069, %v7180
    %v7226 = vadd.f32 %v7070, %v7184
    %v7227 = vadd.f32 %v7071, %v7188
    %v7228 = vadd.f32 %v7072, %v7192
    %v7229 = vadd.f32 %v7073, %v7196
    %v7230 = vadd.f32 %v7074, %v7200
    %v7231 = vadd.f32 %v7075, %v7180
    %v7232 = vadd.f32 %v7076, %v7184
    %v7233 = vadd.f32 %v7077, %v7188
    %v7234 = vadd.f32 %v7078, %v7192
    %v7235 = vadd.f32 %v7079, %v7196
    %v7236 = vadd.f32 %v7080, %v7200
    %v7237 = vadd.f32 %v7081, %v7180
    %v7238 = vadd.f32 %v7082, %v7184
    %v7239 = vadd.f32 %v7083, %v7188
    %v7240 = vadd.f32 %v7084, %v7192
    %v7241 = vadd.f32 %v7085, %v7196
    %v7242 = vadd.f32 %v7086, %v7200
    %v7243 = vadd.f32 %v7087, %v7180
    %v7244 = vadd.f32 %v7088, %v7184
    %v7245 = vadd.f32 %v7089, %v7188
    %v7246 = vadd.f32 %v7090, %v7192
    %v7247 = vadd.f32 %v7091, %v7196
    %v7248 = vadd.f32 %v7092, %v7200
    %v7249 = vadd.f32 %v7093, %v7180
    %v7250 = vadd.f32 %v7094, %v7184
    %v7251 = vadd.f32 %v7095, %v7188
    %v7252 = vadd.f32 %v7096, %v7192
    %v7253 = vadd.f32 %v7097, %v7196
    %v7254 = vadd.f32 %v7098, %v7200
    %v7255 = vadd.f32 %v7099, %v7180
    %v7256 = vadd.f32 %v7100, %v7184
    %v7257 = vadd.f32 %v7101, %v7188
    %v7258 = vadd.f32 %v7102, %v7192
    %v7259 = vadd.f32 %v7103, %v7196
    %v7260 = vadd.f32 %v7104, %v7200
    %v7261 = vadd.f32 %v7105, %v7180
    %v7262 = vadd.f32 %v7106, %v7184
    %v7263 = vadd.f32 %v7107, %v7188
    %v7264 = vadd.f32 %v7108, %v7192
    %v7265 = vadd.f32 %v7109, %v7196
    %v7266 = vadd.f32 %v7110, %v7200
    %v7267 = vadd.f32 %v7111, %v7180
    %v7268 = vadd.f32 %v7112, %v7184
    %v7269 = vadd.f32 %v7113, %v7188
    %v7270 = vadd.f32 %v7114, %v7192
    %v7271 = vadd.f32 %v7115, %v7196
    %v7272 = vadd.f32 %v7116, %v7200
    %v7273 = vadd.f32 %v7117, %v7180
    %v7274 = vadd.f32 %v7118, %v7184
    %v7275 = vadd.f32 %v7119, %v7188
    %v7276 = vadd.f32 %v7120, %v7192
    %v7277 = vadd.f32 %v7121, %v7196
    %v7278 = vadd.f32 %v7122, %v7200
    %v7279 = vadd.f32 %v7123, %v7180
    %v7280 = vadd.f32 %v7124, %v7184
    %v7281 = vadd.f32 %v7125, %v7188
    %v7282 = vadd.f32 %v7126, %v7192
    %v7283 = vadd.f32 %v7127, %v7196
    %v7284 = vadd.f32 %v7128, %v7200
    %v7285 = vadd.f32 %v7129, %v7180
    %v7286 = vadd.f32 %v7130, %v7184
    %v7287 = vadd.f32 %v7131, %v7188
    %v7288 = vadd.f32 %v7132, %v7192
    %v7289 = vadd.f32 %v7133, %v7196
    %v7290 = vadd.f32 %v7134, %v7200
    %v7291 = vadd.f32 %v7135, %v7180
    %v7292 = vadd.f32 %v7136, %v7184
    %v7293 = vadd.f32 %v7137, %v7188
    %v7294 = vadd.f32 %v7138, %v7192
    %v7295 = vadd.f32 %v7139, %v7196
    %v7296 = vadd.f32 %v7140, %v7200
    %v7297 = vadd.f32 %v7141, %v7180
    %v7298 = vadd.f32 %v7142, %v7184
    %v7299 = vadd.f32 %v7143, %v7188
    %v7300 = vadd.f32 %v7144, %v7192
    %v7301 = vadd.f32 %v7145, %v7196
    %v7302 = vadd.f32 %v7146, %v7200
    %v7303 = vmax.f32 %v7201, 0.0
    %v7304 = vmax.f32 %v7202, 0.0
    %v7305 = vmax.f32 %v7203, 0.0
    %v7306 = vmax.f32 %v7204, 0.0
    %v7307 = vmax.f32 %v7205, 0.0
    %v7308 = vmax.f32 %v7206, 0.0
    %v7309 = vmax.f32 %v7207, 0.0
    %v7310 = vmax.f32 %v7208, 0.0
    %v7311 = vmax.f32 %v7209, 0.0
    %v7312 = vmax.f32 %v7210, 0.0
    %v7313 = vmax.f32 %v7211, 0.0
    %v7314 = vmax.f32 %v7212, 0.0
    %v7315 = vmax.f32 %v7213, 0.0
    %v7316 = vmax.f32 %v7214, 0.0
    %v7317 = vmax.f32 %v7215, 0.0
    %v7318 = vmax.f32 %v7216, 0.0
    %v7319 = vmax.f32 %v7217, 0.0
    %v7320 = vmax.f32 %v7218, 0.0
    %v7321 = vmax.f32 %v7219, 0.0
    %v7322 = vmax.f32 %v7220, 0.0
    %v7323 = vmax.f32 %v7221, 0.0
    %v7324 = vmax.f32 %v7222, 0.0
    %v7325 = vmax.f32 %v7223, 0.0
    %v7326 = vmax.f32 %v7224, 0.0
    %v7327 = vmax.f32 %v7225, 0.0
    %v7328 = vmax.f32 %v7226, 0.0
    %v7329 = vmax.f32 %v7227, 0.0
    %v7330 = vmax.f32 %v7228, 0.0
    %v7331 = vmax.f32 %v7229, 0.0
    %v7332 = vmax.f32 %v7230, 0.0
    %v7333 = vmax.f32 %v7231, 0.0
    %v7334 = vmax.f32 %v7232, 0.0
    %v7335 = vmax.f32 %v7233, 0.0
    %v7336 = vmax.f32 %v7234, 0.0
    %v7337 = vmax.f32 %v7235, 0.0
    %v7338 = vmax.f32 %v7236, 0.0
    %v7339 = vmax.f32 %v7237, 0.0
    %v7340 = vmax.f32 %v7238, 0.0
    %v7341 = vmax.f32 %v7239, 0.0
    %v7342 = vmax.f32 %v7240, 0.0
    %v7343 = vmax.f32 %v7241, 0.0
    %v7344 = vmax.f32 %v7242, 0.0
    %v7345 = vmax.f32 %v7243, 0.0
    %v7346 = vmax.f32 %v7244, 0.0
    %v7347 = vmax.f32 %v7245, 0.0
    %v7348 = vmax.f32 %v7246, 0.0
    %v7349 = vmax.f32 %v7247, 0.0
    %v7350 = vmax.f32 %v7248, 0.0
    %v7351 = vmax.f32 %v7249, 0.0
    %v7352 = vmax.f32 %v7250, 0.0
    %v7353 = vmax.f32 %v7251, 0.0
    %v7354 = vmax.f32 %v7252, 0.0
    %v7355 = vmax.f32 %v7253, 0.0
    %v7356 = vmax.f32 %v7254, 0.0
    %v7357 = vmax.f32 %v7255, 0.0
    %v7358 = vmax.f32 %v7256, 0.0
    %v7359 = vmax.f32 %v7257, 0.0
    %v7360 = vmax.f32 %v7258, 0.0
    %v7361 = vmax.f32 %v7259, 0.0
    %v7362 = vmax.f32 %v7260, 0.0
    %v7363 = vmax.f32 %v7261, 0.0
    %v7364 = vmax.f32 %v7262, 0.0
    %v7365 = vmax.f32 %v7263, 0.0
    %v7366 = vmax.f32 %v7264, 0.0
    %v7367 = vmax.f32 %v7265, 0.0
    %v7368 = vmax.f32 %v7266, 0.0
    %v7369 = vmax.f32 %v7267, 0.0
    %v7370 = vmax.f32 %v7268, 0.0
    %v7371 = vmax.f32 %v7269, 0.0
    %v7372 = vmax.f32 %v7270, 0.0
    %v7373 = vmax.f32 %v7271, 0.0
    %v7374 = vmax.f32 %v7272, 0.0
    %v7375 = vmax.f32 %v7273, 0.0
    %v7376 = vmax.f32 %v7274, 0.0
    %v7377 = vmax.f32 %v7275, 0.0
    %v7378 = vmax.f32 %v7276, 0.0
    %v7379 = vmax.f32 %v7277, 0.0
    %v7380 = vmax.f32 %v7278, 0.0
    %v7381 = vmax.f32 %v7279, 0.0
    %v7382 = vmax.f32 %v7280, 0.0
    %v7383 = vmax.f32 %v7281, 0.0
    %v7384 = vmax.f32 %v7282, 0.0
    %v7385 = vmax.f32 %v7283, 0.0
    %v7386 = vmax.f32 %v7284, 0.0
    %v7387 = vmax.f32 %v7285, 0.0
    %v7388 = vmax.f32 %v7286, 0.0
    %v7389 = vmax.f32 %v7287, 0.0
    %v7390 = vmax.f32 %v7288, 0.0
    %v7391 = vmax.f32 %v7289, 0.0
    %v7392 = vmax.f32 %v7290, 0.0
    %v7393 = vmax.f32 %v7291, 0.0
    %v7394 = vmax.f32 %v7292, 0.0
    %v7395 = vmax.f32 %v7293, 0.0
    %v7396 = vmax.f32 %v7294, 0.0
    %v7397 = vmax.f32 %v7295, 0.0
    %v7398 = vmax.f32 %v7296, 0.0
    %v7399 = vmax.f32 %v7297, 0.0
    %v7400 = vmax.f32 %v7298, 0.0
    %v7401 = vmax.f32 %v7299, 0.0
    %v7402 = vmax.f32 %v7300, 0.0
    %v7403 = vmax.f32 %v7301, 0.0
    %v7404 = vmax.f32 %v7302, 0.0
    %v7405 = vpack.c.bf16 %v7309, %v7303
    %v7406 = vpack.c.bf16 %v7310, %v7304
    %v7407 = vpack.c.bf16 %v7311, %v7305
    %v7408 = vpack.c.bf16 %v7312, %v7306
    %v7409 = vpack.c.bf16 %v7313, %v7307
    %v7410 = vpack.c.bf16 %v7314, %v7308
    %v7411 = vpack.c.bf16 %v7321, %v7315
    %v7412 = vpack.c.bf16 %v7322, %v7316
    %v7413 = vpack.c.bf16 %v7323, %v7317
    %v7414 = vpack.c.bf16 %v7324, %v7318
    %v7415 = vpack.c.bf16 %v7325, %v7319
    %v7416 = vpack.c.bf16 %v7326, %v7320
    %v7417 = vpack.c.bf16 %v7333, %v7327
    %v7418 = vpack.c.bf16 %v7334, %v7328
    %v7419 = vpack.c.bf16 %v7335, %v7329
    %v7420 = vpack.c.bf16 %v7336, %v7330
    %v7421 = vpack.c.bf16 %v7337, %v7331
    %v7422 = vpack.c.bf16 %v7338, %v7332
    %v7423 = vpack.c.bf16 %v7345, %v7339
    %v7424 = vpack.c.bf16 %v7346, %v7340
    %v7425 = vpack.c.bf16 %v7347, %v7341
    %v7426 = vpack.c.bf16 %v7348, %v7342
    %v7427 = vpack.c.bf16 %v7349, %v7343
    %v7428 = vpack.c.bf16 %v7350, %v7344
    %v7429 = vpack.c.bf16 %v7357, %v7351
    %v7430 = vpack.c.bf16 %v7358, %v7352
    %v7431 = vpack.c.bf16 %v7359, %v7353
    %v7432 = vpack.c.bf16 %v7360, %v7354
    %v7433 = vpack.c.bf16 %v7361, %v7355
    %v7434 = vpack.c.bf16 %v7362, %v7356
    %v7435 = vpack.c.bf16 %v7369, %v7363
    %v7436 = vpack.c.bf16 %v7370, %v7364
    %v7437 = vpack.c.bf16 %v7371, %v7365
    %v7438 = vpack.c.bf16 %v7372, %v7366
    %v7439 = vpack.c.bf16 %v7373, %v7367
    %v7440 = vpack.c.bf16 %v7374, %v7368
    %v7441 = vpack.c.bf16 %v7381, %v7375
    %v7442 = vpack.c.bf16 %v7382, %v7376
    %v7443 = vpack.c.bf16 %v7383, %v7377
    %v7444 = vpack.c.bf16 %v7384, %v7378
    %v7445 = vpack.c.bf16 %v7385, %v7379
    %v7446 = vpack.c.bf16 %v7386, %v7380
    %v7447 = vpack.c.bf16 %v7393, %v7387
    %v7448 = vpack.c.bf16 %v7394, %v7388
    %v7449 = vpack.c.bf16 %v7395, %v7389
    %v7450 = vpack.c.bf16 %v7396, %v7390
    %v7451 = vpack.c.bf16 %v7397, %v7391
    %v7452 = vpack.c.bf16 %v7398, %v7392
    %v7453 = vpack.c.bf16 %v7399, %v7399
    %v7454 = vpack.c.bf16 %v7400, %v7400
    %v7455 = vpack.c.bf16 %v7401, %v7401
    %v7456 = vpack.c.bf16 %v7402, %v7402
    %v7457 = vpack.c.bf16 %v7403, %v7403
    %v7458 = vpack.c.bf16 %v7404, %v7404
    %v7459 = vlaneseq
    %v7460 = vshrl.u32 %v7459, 7
    %v7461 = vsub.s32 3, %v7460
    %v7462 = vrot.slane %v4188, %v7461
    %v7463 = vlaneseq
    %v7464 = vshrl.u32 %v7463, 7
    %v7465 = vsub.s32 7, %v7464
    %v7466 = vrot.slane %v4188, %v7465
    %v7467 = vlaneseq
    %v7468 = vshrl.u32 %v7467, 7
    %v7469 = vsub.s32 3, %v7468
    %v7470 = vrot.slane %v4189, %v7469
    %v7471 = vlaneseq
    %v7472 = vshrl.u32 %v7471, 7
    %v7473 = vsub.s32 7, %v7472
    %v7474 = vrot.slane %v4189, %v7473
    %v7475 = vlaneseq
    %v7476 = vshrl.u32 %v7475, 7
    %v7477 = vsub.s32 3, %v7476
    %v7478 = vrot.slane %v4190, %v7477
    %v7479 = vlaneseq
    %v7480 = vshrl.u32 %v7479, 7
    %v7481 = vsub.s32 7, %v7480
    %v7482 = vrot.slane %v4190, %v7481
    %v7489 = vlaneseq
    %v7490 = vshrl.u32 %v7489, 7
    %v7491 = vsub.s32 3, %v7490
    %v7492 = vrot.slane %v7462, %v7491
    %v7493 = vlaneseq
    %v7494 = vshrl.u32 %v7493, 7
    %v7495 = vsub.s32 3, %v7494
    %v7496 = vrot.slane %v7466, %v7495
    %v7497 = vlaneseq
    %v7498 = vshrl.u32 %v7497, 7
    %v7499 = vsub.s32 3, %v7498
    %v7500 = vrot.slane %v7470, %v7499
    %v7501 = vlaneseq
    %v7502 = vshrl.u32 %v7501, 7
    %v7503 = vsub.s32 3, %v7502
    %v7504 = vrot.slane %v7474, %v7503
    %v7505 = vlaneseq
    %v7506 = vshrl.u32 %v7505, 7
    %v7507 = vsub.s32 3, %v7506
    %v7508 = vrot.slane %v7478, %v7507
    %v7509 = vlaneseq
    %v7510 = vshrl.u32 %v7509, 7
    %v7511 = vsub.s32 3, %v7510
    %v7512 = vrot.slane %v7482, %v7511
    %v7801 = vunpack.c.l.b16 %v4191
    %v7802 = vunpack.c.h.b16 %v4191
    %v7803 = vunpack.c.l.b16 %v4192
    %v7804 = vunpack.c.h.b16 %v4192
    %v7805 = vunpack.c.l.b16 %v4193
    %v7806 = vunpack.c.h.b16 %v4193
    %v7807 = vunpack.c.l.b16 %v4194
    %v7808 = vunpack.c.h.b16 %v4194
    %v7809 = vunpack.c.l.b16 %v4195
    %v7810 = vunpack.c.h.b16 %v4195
    %v7811 = vunpack.c.l.b16 %v4196
    %v7812 = vunpack.c.h.b16 %v4196
    %v7813 = vunpack.c.l.b16 %v4197
    %v7814 = vunpack.c.h.b16 %v4197
    %v7815 = vunpack.c.l.b16 %v4198
    %v7816 = vunpack.c.h.b16 %v4198
    %v7817 = vunpack.c.l.b16 %v4199
    %v7818 = vunpack.c.h.b16 %v4199
    %v7819 = vunpack.c.l.b16 %v4200
    %v7820 = vunpack.c.h.b16 %v4200
    %v7821 = vunpack.c.l.b16 %v4201
    %v7822 = vunpack.c.h.b16 %v4201
    %v7823 = vunpack.c.l.b16 %v4202
    %v7824 = vunpack.c.h.b16 %v4202
    %v7825 = vunpack.c.l.b16 %v4203
    %v7826 = vunpack.c.h.b16 %v4203
    %v7827 = vunpack.c.l.b16 %v4204
    %v7828 = vunpack.c.h.b16 %v4204
    %v7829 = vunpack.c.l.b16 %v4205
    %v7830 = vunpack.c.h.b16 %v4205
    %v7831 = vunpack.c.l.b16 %v4206
    %v7832 = vunpack.c.h.b16 %v4206
    %v7833 = vunpack.c.l.b16 %v4207
    %v7834 = vunpack.c.h.b16 %v4207
    %v7835 = vunpack.c.l.b16 %v4208
    %v7836 = vunpack.c.h.b16 %v4208
    %v7837 = vunpack.c.l.b16 %v4209
    %v7838 = vunpack.c.h.b16 %v4209
    %v7839 = vunpack.c.l.b16 %v4210
    %v7840 = vunpack.c.h.b16 %v4210
    %v7841 = vunpack.c.l.b16 %v4211
    %v7842 = vunpack.c.h.b16 %v4211
    %v7843 = vunpack.c.l.b16 %v4212
    %v7844 = vunpack.c.h.b16 %v4212
    %v7845 = vunpack.c.l.b16 %v4213
    %v7846 = vunpack.c.h.b16 %v4213
    %v7847 = vunpack.c.l.b16 %v4214
    %v7848 = vunpack.c.h.b16 %v4214
    %v7849 = vunpack.c.l.b16 %v4215
    %v7850 = vunpack.c.h.b16 %v4215
    %v7851 = vunpack.c.l.b16 %v4216
    %v7852 = vunpack.c.h.b16 %v4216
    %v7853 = vunpack.c.l.b16 %v4217
    %v7854 = vunpack.c.h.b16 %v4217
    %v7855 = vunpack.c.l.b16 %v4218
    %v7856 = vunpack.c.h.b16 %v4218
    %v7857 = vunpack.c.l.b16 %v4219
    %v7858 = vunpack.c.h.b16 %v4219
    %v7859 = vunpack.c.l.b16 %v4220
    %v7860 = vunpack.c.h.b16 %v4220
    %v7861 = vunpack.c.l.b16 %v4221
    %v7862 = vunpack.c.h.b16 %v4221
    %v7863 = vunpack.c.l.b16 %v4222
    %v7864 = vunpack.c.h.b16 %v4222
    %v7865 = vunpack.c.l.b16 %v4223
    %v7866 = vunpack.c.h.b16 %v4223
    %v7867 = vunpack.c.l.b16 %v4224
    %v7868 = vunpack.c.h.b16 %v4224
    %v7869 = vunpack.c.l.b16 %v4225
    %v7870 = vunpack.c.h.b16 %v4225
    %v7871 = vunpack.c.l.b16 %v4226
    %v7872 = vunpack.c.h.b16 %v4226
    %v7873 = vunpack.c.l.b16 %v4227
    %v7874 = vunpack.c.h.b16 %v4227
    %v7875 = vunpack.c.l.b16 %v4228
    %v7876 = vunpack.c.h.b16 %v4228
    %v7877 = vunpack.c.l.b16 %v4229
    %v7878 = vunpack.c.h.b16 %v4229
    %v7879 = vunpack.c.l.b16 %v4230
    %v7880 = vunpack.c.h.b16 %v4230
    %v7881 = vunpack.c.l.b16 %v4231
    %v7882 = vunpack.c.h.b16 %v4231
    %v7883 = vunpack.c.l.b16 %v4232
    %v7884 = vunpack.c.h.b16 %v4232
    %v7885 = vunpack.c.l.b16 %v4233
    %v7886 = vunpack.c.h.b16 %v4233
    %v7887 = vunpack.c.l.b16 %v4234
    %v7888 = vunpack.c.h.b16 %v4234
    %v7889 = vunpack.c.l.b16 %v4235
    %v7890 = vunpack.c.h.b16 %v4235
    %v7891 = vunpack.c.l.b16 %v4236
    %v7892 = vunpack.c.h.b16 %v4236
    %v7893 = vunpack.c.l.b16 %v4237
    %v7894 = vunpack.c.h.b16 %v4237
    %v7895 = vunpack.c.l.b16 %v4238
    %v7896 = vunpack.c.h.b16 %v4238
    %v7897 = vunpack.c.l.b16 %v4239
    %v7898 = vunpack.c.h.b16 %v4239
    %v7899 = vunpack.c.l.b16 %v4240
    %v7900 = vunpack.c.h.b16 %v4240
    %v7901 = vunpack.c.l.b16 %v4241
    %v7902 = vunpack.c.h.b16 %v4241
    %v7903 = vunpack.c.l.b16 %v4242
    %v7904 = vunpack.c.h.b16 %v4242
    %v7905 = vunpack.c.l.b16 %v4243
    %v7906 = vunpack.c.h.b16 %v4243
    %v7907 = vunpack.c.l.b16 %v4244
    %v7908 = vunpack.c.h.b16 %v4244
    %v7909 = vunpack.c.l.b16 %v4245
    %v7910 = vunpack.c.h.b16 %v4245
    %v7911 = vunpack.c.l.b16 %v4246
    %v7912 = vunpack.c.h.b16 %v4246
    %v7913 = vunpack.c.l.b16 %v4247
    %v7914 = vunpack.c.h.b16 %v4247
    %v7915 = vunpack.c.l.b16 %v4248
    %v7916 = vunpack.c.h.b16 %v4248
    %v7917 = vunpack.c.l.b16 %v4249
    %v7918 = vunpack.c.h.b16 %v4249
    %v7919 = vunpack.c.l.b16 %v4250
    %v7920 = vunpack.c.h.b16 %v4250
    %v7921 = vunpack.c.l.b16 %v4251
    %v7922 = vunpack.c.h.b16 %v4251
    %v7923 = vunpack.c.l.b16 %v4252
    %v7924 = vunpack.c.h.b16 %v4252
    %v7925 = vunpack.c.l.b16 %v4253
    %v7926 = vunpack.c.h.b16 %v4253
    %v7927 = vunpack.c.l.b16 %v4254
    %v7928 = vunpack.c.h.b16 %v4254
    %v7929 = vunpack.c.l.b16 %v4255
    %v7930 = vunpack.c.h.b16 %v4255
    %v7931 = vunpack.c.l.b16 %v4256
    %v7932 = vunpack.c.h.b16 %v4256
    %v7933 = vunpack.c.l.b16 %v4257
    %v7934 = vunpack.c.h.b16 %v4257
    %v7935 = vunpack.c.l.b16 %v4258
    %v7936 = vunpack.c.h.b16 %v4258
    %v7937 = vunpack.c.l.b16 %v4259
    %v7938 = vunpack.c.h.b16 %v4259
    %v7939 = vunpack.c.l.b16 %v4260
    %v7940 = vunpack.c.h.b16 %v4260
    %v7941 = vunpack.c.l.b16 %v4261
    %v7942 = vunpack.c.h.b16 %v4261
    %v7943 = vunpack.c.l.b16 %v4262
    %v7944 = vunpack.c.h.b16 %v4262
    %v7945 = vunpack.c.l.b16 %v4263
    %v7946 = vunpack.c.h.b16 %v4263
    %v7947 = vunpack.c.l.b16 %v4264
    %v7948 = vunpack.c.h.b16 %v4264
    %v7949 = vunpack.c.l.b16 %v4265
    %v7950 = vunpack.c.h.b16 %v4265
    %v7951 = vunpack.c.l.b16 %v4266
    %v7952 = vunpack.c.h.b16 %v4266
    %v7953 = vunpack.c.l.b16 %v4267
    %v7954 = vunpack.c.h.b16 %v4267
    %v7955 = vunpack.c.l.b16 %v4268
    %v7956 = vunpack.c.h.b16 %v4268
    %v7957 = vunpack.c.l.b16 %v4269
    %v7958 = vunpack.c.h.b16 %v4269
    %v7959 = vunpack.c.l.b16 %v4270
    %v7960 = vunpack.c.h.b16 %v4270
    %v7961 = vunpack.c.l.b16 %v4271
    %v7962 = vunpack.c.h.b16 %v4271
    %v7963 = vunpack.c.l.b16 %v4272
    %v7964 = vunpack.c.h.b16 %v4272
    %v7965 = vunpack.c.l.b16 %v4273
    %v7966 = vunpack.c.h.b16 %v4273
    %v7967 = vunpack.c.l.b16 %v4274
    %v7968 = vunpack.c.h.b16 %v4274
    %v7969 = vunpack.c.l.b16 %v4275
    %v7970 = vunpack.c.h.b16 %v4275
    %v7971 = vunpack.c.l.b16 %v4276
    %v7972 = vunpack.c.h.b16 %v4276
    %v7973 = vunpack.c.l.b16 %v4277
    %v7974 = vunpack.c.h.b16 %v4277
    %v7975 = vunpack.c.l.b16 %v4278
    %v7976 = vunpack.c.h.b16 %v4278
    %v7977 = vunpack.c.l.b16 %v4279
    %v7978 = vunpack.c.h.b16 %v4279
    %v7979 = vunpack.c.l.b16 %v4280
    %v7980 = vunpack.c.h.b16 %v4280
    %v7981 = vunpack.c.l.b16 %v4281
    %v7982 = vunpack.c.h.b16 %v4281
    %v7983 = vunpack.c.l.b16 %v4282
    %v7984 = vunpack.c.h.b16 %v4282
    %v7985 = vunpack.c.l.b16 %v4283
    %v7986 = vunpack.c.h.b16 %v4283
    %v7987 = vunpack.c.l.b16 %v4284
    %v7988 = vunpack.c.h.b16 %v4284
    %v7989 = vunpack.c.l.b16 %v4285
    %v7990 = vunpack.c.h.b16 %v4285
    %v7991 = vunpack.c.l.b16 %v4286
    %v7992 = vunpack.c.h.b16 %v4286
    %v7993 = vunpack.c.l.b16 %v4287
    %v7994 = vunpack.c.h.b16 %v4287
    %v7995 = vunpack.c.l.b16 %v4288
    %v7996 = vunpack.c.h.b16 %v4288
    %v7997 = vunpack.c.l.b16 %v4289
    %v7998 = vunpack.c.h.b16 %v4289
    %v7999 = vunpack.c.l.b16 %v4290
    %v8000 = vunpack.c.h.b16 %v4290
    %v8001 = vunpack.c.l.b16 %v4291
    %v8002 = vunpack.c.h.b16 %v4291
    %v8003 = vunpack.c.l.b16 %v4292
    %v8004 = vunpack.c.h.b16 %v4292
    %v8005 = vunpack.c.l.b16 %v4293
    %v8006 = vunpack.c.h.b16 %v4293
    %v8007 = vunpack.c.l.b16 %v4294
    %v8008 = vunpack.c.h.b16 %v4294
    %v8009 = vunpack.c.l.b16 %v4295
    %v8010 = vunpack.c.h.b16 %v4295
    %v8011 = vunpack.c.l.b16 %v4296
    %v8012 = vunpack.c.h.b16 %v4296
    %v8013 = vunpack.c.l.b16 %v4297
    %v8014 = vunpack.c.h.b16 %v4297
    %v8015 = vunpack.c.l.b16 %v4298
    %v8016 = vunpack.c.h.b16 %v4298
    %v8017 = vunpack.c.l.b16 %v4299
    %v8018 = vunpack.c.h.b16 %v4299
    %v8019 = vunpack.c.l.b16 %v4300
    %v8020 = vunpack.c.h.b16 %v4300
    %v8021 = vunpack.c.l.b16 %v4301
    %v8022 = vunpack.c.h.b16 %v4301
    %v8023 = vunpack.c.l.b16 %v4302
    %v8024 = vunpack.c.h.b16 %v4302
    %v8025 = vunpack.c.l.b16 %v4303
    %v8026 = vunpack.c.h.b16 %v4303
    %v8027 = vunpack.c.l.b16 %v4304
    %v8028 = vunpack.c.h.b16 %v4304
    %v8029 = vunpack.c.l.b16 %v4305
    %v8030 = vunpack.c.h.b16 %v4305
    %v8031 = vunpack.c.l.b16 %v4306
    %v8032 = vunpack.c.h.b16 %v4306
    %v8033 = vunpack.c.l.b16 %v4307
    %v8034 = vunpack.c.h.b16 %v4307
    %v8035 = vunpack.c.l.b16 %v4308
    %v8036 = vunpack.c.h.b16 %v4308
    %v8037 = vunpack.c.l.b16 %v4309
    %v8038 = vunpack.c.h.b16 %v4309
    %v8039 = vunpack.c.l.b16 %v4310
    %v8040 = vunpack.c.h.b16 %v4310
    %v8041 = vunpack.c.l.b16 %v4311
    %v8042 = vunpack.c.h.b16 %v4311
    %v8043 = vunpack.c.l.b16 %v4312
    %v8044 = vunpack.c.h.b16 %v4312
    %v8045 = vunpack.c.l.b16 %v4313
    %v8046 = vunpack.c.h.b16 %v4313
    %v8047 = vunpack.c.l.b16 %v4314
    %v8048 = vunpack.c.h.b16 %v4314
    %v8049 = vunpack.c.l.b16 %v4315
    %v8050 = vunpack.c.h.b16 %v4315
    %v8051 = vunpack.c.l.b16 %v4316
    %v8052 = vunpack.c.h.b16 %v4316
    %v8053 = vunpack.c.l.b16 %v4317
    %v8054 = vunpack.c.h.b16 %v4317
    %v8055 = vunpack.c.l.b16 %v4318
    %v8056 = vunpack.c.h.b16 %v4318
    %v8057 = vunpack.c.l.b16 %v4319
    %v8058 = vunpack.c.h.b16 %v4319
    %v8059 = vunpack.c.l.b16 %v4320
    %v8060 = vunpack.c.h.b16 %v4320
    %v8061 = vunpack.c.l.b16 %v4321
    %v8062 = vunpack.c.h.b16 %v4321
    %v8063 = vunpack.c.l.b16 %v4322
    %v8064 = vunpack.c.h.b16 %v4322
    %v8065 = vunpack.c.l.b16 %v4323
    %v8066 = vunpack.c.h.b16 %v4323
    %v8067 = vunpack.c.l.b16 %v4324
    %v8068 = vunpack.c.h.b16 %v4324
    %v8069 = vunpack.c.l.b16 %v4325
    %v8070 = vunpack.c.h.b16 %v4325
    %v8071 = vunpack.c.l.b16 %v4326
    %v8072 = vunpack.c.h.b16 %v4326
    %v8073 = vunpack.c.l.b16 %v4327
    %v8074 = vunpack.c.h.b16 %v4327
    %v8075 = vunpack.c.l.b16 %v4328
    %v8076 = vunpack.c.h.b16 %v4328
    %v8077 = vunpack.c.l.b16 %v4329
    %v8078 = vunpack.c.h.b16 %v4329
    %v8079 = vunpack.c.l.b16 %v4330
    %v8080 = vunpack.c.h.b16 %v4330
    %v8081 = vunpack.c.l.b16 %v4331
    %v8082 = vunpack.c.h.b16 %v4331
    %v8083 = vunpack.c.l.b16 %v4332
    %v8084 = vunpack.c.h.b16 %v4332
    %v8085 = vunpack.c.l.b16 %v4333
    %v8086 = vunpack.c.h.b16 %v4333
    %v8087 = vunpack.c.l.b16 %v4334
    %v8088 = vunpack.c.h.b16 %v4334
    %v8089 = vunpack.c.l.b16 %v4335
    %v8090 = vunpack.c.h.b16 %v4335
    %v8091 = vunpack.c.l.b16 %v4336
    %v8092 = vunpack.c.h.b16 %v4336
    %v8093 = vunpack.c.l.b16 %v4337
    %v8094 = vunpack.c.h.b16 %v4337
    %v8095 = vunpack.c.l.b16 %v4338
    %v8096 = vunpack.c.h.b16 %v4338
    %v8097 = vunpack.c.l.b16 %v4339
    %v8098 = vunpack.c.h.b16 %v4339
    %v8099 = vunpack.c.l.b16 %v4340
    %v8100 = vunpack.c.h.b16 %v4340
    %v8101 = vunpack.c.l.b16 %v4341
    %v8102 = vunpack.c.h.b16 %v4341
    %v8103 = vunpack.c.l.b16 %v4342
    %v8104 = vunpack.c.h.b16 %v4342
    %v8105 = vunpack.c.l.b16 %v4343
    %v8106 = vunpack.c.h.b16 %v4343
    %v8107 = vunpack.c.l.b16 %v4344
    %v8108 = vunpack.c.h.b16 %v4344
    %v8109 = vunpack.c.l.b16 %v4345
    %v8110 = vunpack.c.h.b16 %v4345
    %v8111 = vunpack.c.l.b16 %v4346
    %v8112 = vunpack.c.h.b16 %v4346
    %v8113 = vunpack.c.l.b16 %v4347
    %v8114 = vunpack.c.h.b16 %v4347
    %v8115 = vunpack.c.l.b16 %v4348
    %v8116 = vunpack.c.h.b16 %v4348
    %v8117 = vunpack.c.l.b16 %v4349
    %v8118 = vunpack.c.h.b16 %v4349
    %v8119 = vunpack.c.l.b16 %v4350
    %v8120 = vunpack.c.h.b16 %v4350
    %v8121 = vunpack.c.l.b16 %v4351
    %v8122 = vunpack.c.h.b16 %v4351
    %v8123 = vunpack.c.l.b16 %v4352
    %v8124 = vunpack.c.h.b16 %v4352
    %v8125 = vunpack.c.l.b16 %v4353
    %v8126 = vunpack.c.h.b16 %v4353
    %v8127 = vunpack.c.l.b16 %v4354
    %v8128 = vunpack.c.h.b16 %v4354
    %v8129 = vunpack.c.l.b16 %v4355
    %v8130 = vunpack.c.h.b16 %v4355
    %v8131 = vunpack.c.l.b16 %v4356
    %v8132 = vunpack.c.h.b16 %v4356
    %v8133 = vunpack.c.l.b16 %v4357
    %v8134 = vunpack.c.h.b16 %v4357
    %v8135 = vunpack.c.l.b16 %v4358
    %v8136 = vunpack.c.h.b16 %v4358
    %v8137 = vunpack.c.l.b16 %v4359
    %v8138 = vunpack.c.h.b16 %v4359
    %v8139 = vunpack.c.l.b16 %v4360
    %v8140 = vunpack.c.h.b16 %v4360
    %v8141 = vunpack.c.l.b16 %v4361
    %v8142 = vunpack.c.h.b16 %v4361
    %v8143 = vunpack.c.l.b16 %v4362
    %v8144 = vunpack.c.h.b16 %v4362
    %v8145 = vunpack.c.l.b16 %v4363
    %v8146 = vunpack.c.h.b16 %v4363
    %v8147 = vunpack.c.l.b16 %v4364
    %v8148 = vunpack.c.h.b16 %v4364
    %v8149 = vunpack.c.l.b16 %v4365
    %v8150 = vunpack.c.h.b16 %v4365
    %v8151 = vunpack.c.l.b16 %v4366
    %v8152 = vunpack.c.h.b16 %v4366
    %v8153 = vunpack.c.l.b16 %v4367
    %v8154 = vunpack.c.h.b16 %v4367
    %v8155 = vunpack.c.l.b16 %v4368
    %v8156 = vunpack.c.h.b16 %v4368
    %v8157 = vunpack.c.l.b16 %v4369
    %v8158 = vunpack.c.h.b16 %v4369
    %v8159 = vunpack.c.l.b16 %v4370
    %v8160 = vunpack.c.h.b16 %v4370
    %v8161 = vunpack.c.l.b16 %v4371
    %v8162 = vunpack.c.h.b16 %v4371
    %v8163 = vunpack.c.l.b16 %v4372
    %v8164 = vunpack.c.h.b16 %v4372
    %v8165 = vunpack.c.l.b16 %v4373
    %v8166 = vunpack.c.h.b16 %v4373
    %v8167 = vunpack.c.l.b16 %v4374
    %v8168 = vunpack.c.h.b16 %v4374
    %v8169 = vunpack.c.l.b16 %v4375
    %v8170 = vunpack.c.h.b16 %v4375
    %v8171 = vunpack.c.l.b16 %v4376
    %v8172 = vunpack.c.h.b16 %v4376
    %v8173 = vunpack.c.l.b16 %v4377
    %v8174 = vunpack.c.h.b16 %v4377
    %v8175 = vunpack.c.l.b16 %v4378
    %v8176 = vunpack.c.h.b16 %v4378
    %v8177 = vunpack.c.l.b16 %v4379
    %v8178 = vunpack.c.h.b16 %v4379
    %v8179 = vunpack.c.l.b16 %v4380
    %v8180 = vunpack.c.h.b16 %v4380
    %v8181 = vunpack.c.l.b16 %v4381
    %v8182 = vunpack.c.h.b16 %v4381
    %v8183 = vunpack.c.l.b16 %v4382
    %v8184 = vunpack.c.h.b16 %v4382
    %v8185 = vunpack.c.l.b16 %v4383
    %v8186 = vunpack.c.h.b16 %v4383
    %v8187 = vunpack.c.l.b16 %v4384
    %v8188 = vunpack.c.h.b16 %v4384
    %v8189 = vunpack.c.l.b16 %v4385
    %v8190 = vunpack.c.h.b16 %v4385
    %v8191 = vunpack.c.l.b16 %v4386
    %v8192 = vunpack.c.h.b16 %v4386
    %v8193 = vunpack.c.l.b16 %v4387
    %v8194 = vunpack.c.h.b16 %v4387
    %v8195 = vunpack.c.l.b16 %v4388
    %v8196 = vunpack.c.h.b16 %v4388
    %v8197 = vunpack.c.l.b16 %v4389
    %v8198 = vunpack.c.h.b16 %v4389
    %v8199 = vunpack.c.l.b16 %v4390
    %v8200 = vunpack.c.h.b16 %v4390
    %v8201 = vunpack.c.l.b16 %v4391
    %v8202 = vunpack.c.h.b16 %v4391
    %v8203 = vunpack.c.l.b16 %v4392
    %v8204 = vunpack.c.h.b16 %v4392
    %v8205 = vunpack.c.l.b16 %v4393
    %v8206 = vunpack.c.h.b16 %v4393
    %v8207 = vunpack.c.l.b16 %v4394
    %v8208 = vunpack.c.h.b16 %v4394
    %v8209 = vunpack.c.l.b16 %v4395
    %v8210 = vunpack.c.h.b16 %v4395
    %v8211 = vunpack.c.l.b16 %v4396
    %v8212 = vunpack.c.h.b16 %v4396
    %v8213 = vunpack.c.l.b16 %v4397
    %v8214 = vunpack.c.h.b16 %v4397
    %v8215 = vunpack.c.l.b16 %v4398
    %v8216 = vunpack.c.h.b16 %v4398
    %v8217 = vunpack.c.l.b16 %v4399
    %v8218 = vunpack.c.h.b16 %v4399
    %v8219 = vunpack.c.l.b16 %v4400
    %v8220 = vunpack.c.h.b16 %v4400
    %v8221 = vunpack.c.l.b16 %v4401
    %v8222 = vunpack.c.h.b16 %v4401
    %v8223 = vunpack.c.l.b16 %v4402
    %v8224 = vunpack.c.h.b16 %v4402
    %v8225 = vunpack.c.l.b16 %v4403
    %v8226 = vunpack.c.h.b16 %v4403
    %v8227 = vunpack.c.l.b16 %v4404
    %v8228 = vunpack.c.h.b16 %v4404
    %v8229 = vunpack.c.l.b16 %v4405
    %v8230 = vunpack.c.h.b16 %v4405
    %v8231 = vunpack.c.l.b16 %v4406
    %v8232 = vunpack.c.h.b16 %v4406
    %v8233 = vunpack.c.l.b16 %v4407
    %v8234 = vunpack.c.h.b16 %v4407
    %v8235 = vunpack.c.l.b16 %v4408
    %v8236 = vunpack.c.h.b16 %v4408
    %v8237 = vunpack.c.l.b16 %v4409
    %v8238 = vunpack.c.h.b16 %v4409
    %v8239 = vunpack.c.l.b16 %v4410
    %v8240 = vunpack.c.h.b16 %v4410
    %v8241 = vunpack.c.l.b16 %v4411
    %v8242 = vunpack.c.h.b16 %v4411
    %v8243 = vunpack.c.l.b16 %v4412
    %v8244 = vunpack.c.h.b16 %v4412
    %v8245 = vunpack.c.l.b16 %v4413
    %v8246 = vunpack.c.h.b16 %v4413
    %v8247 = vunpack.c.l.b16 %v4414
    %v8248 = vunpack.c.h.b16 %v4414
    %v8249 = vunpack.c.l.b16 %v4415
    %v8250 = vunpack.c.h.b16 %v4415
    %v8251 = vunpack.c.l.b16 %v4416
    %v8252 = vunpack.c.h.b16 %v4416
    %v8253 = vunpack.c.l.b16 %v4417
    %v8254 = vunpack.c.h.b16 %v4417
    %v8255 = vunpack.c.l.b16 %v4418
    %v8256 = vunpack.c.h.b16 %v4418
    %v8257 = vunpack.c.l.b16 %v4419
    %v8258 = vunpack.c.h.b16 %v4419
    %v8259 = vunpack.c.l.b16 %v4420
    %v8260 = vunpack.c.h.b16 %v4420
    %v8261 = vunpack.c.l.b16 %v4421
    %v8262 = vunpack.c.h.b16 %v4421
    %v8263 = vunpack.c.l.b16 %v4422
    %v8264 = vunpack.c.h.b16 %v4422
    %v8265 = vunpack.c.l.b16 %v4423
    %v8266 = vunpack.c.h.b16 %v4423
    %v8267 = vunpack.c.l.b16 %v4424
    %v8268 = vunpack.c.h.b16 %v4424
    %v8269 = vunpack.c.l.b16 %v4425
    %v8270 = vunpack.c.h.b16 %v4425
    %v8271 = vunpack.c.l.b16 %v4426
    %v8272 = vunpack.c.h.b16 %v4426
    %v8273 = vunpack.c.l.b16 %v4427
    %v8274 = vunpack.c.h.b16 %v4427
    %v8275 = vunpack.c.l.b16 %v4428
    %v8276 = vunpack.c.h.b16 %v4428
    %v8277 = vunpack.c.l.b16 %v4429
    %v8278 = vunpack.c.h.b16 %v4429
    %v8279 = vunpack.c.l.b16 %v4430
    %v8280 = vunpack.c.h.b16 %v4430
    %v8281 = vunpack.c.l.b16 %v4431
    %v8282 = vunpack.c.h.b16 %v4431
    %v8283 = vunpack.c.l.b16 %v4432
    %v8284 = vunpack.c.h.b16 %v4432
    %v8285 = vunpack.c.l.b16 %v4433
    %v8286 = vunpack.c.h.b16 %v4433
    %v8287 = vunpack.c.l.b16 %v4434
    %v8288 = vunpack.c.h.b16 %v4434
    %v8289 = vunpack.c.l.b16 %v4435
    %v8290 = vunpack.c.h.b16 %v4435
    %v8291 = vunpack.c.l.b16 %v4436
    %v8292 = vunpack.c.h.b16 %v4436
    %v8293 = vunpack.c.l.b16 %v4437
    %v8294 = vunpack.c.h.b16 %v4437
    %v8295 = vunpack.c.l.b16 %v4438
    %v8296 = vunpack.c.h.b16 %v4438
    %v8297 = vunpack.c.l.b16 %v4439
    %v8298 = vunpack.c.h.b16 %v4439
    %v8299 = vunpack.c.l.b16 %v4440
    %v8300 = vunpack.c.h.b16 %v4440
    %v8301 = vunpack.c.l.b16 %v4441
    %v8302 = vunpack.c.h.b16 %v4441
    %v8303 = vunpack.c.l.b16 %v4442
    %v8304 = vunpack.c.h.b16 %v4442
    %v8305 = vunpack.c.l.b16 %v4443
    %v8306 = vunpack.c.h.b16 %v4443
    %v8307 = vunpack.c.l.b16 %v4444
    %v8308 = vunpack.c.h.b16 %v4444
    %v8309 = vunpack.c.l.b16 %v4445
    %v8310 = vunpack.c.h.b16 %v4445
    %v8311 = vunpack.c.l.b16 %v4446
    %v8312 = vunpack.c.h.b16 %v4446
    %v8313 = vunpack.c.l.b16 %v4447
    %v8314 = vunpack.c.h.b16 %v4447
    %v8315 = vunpack.c.l.b16 %v4448
    %v8316 = vunpack.c.h.b16 %v4448
    %v8317 = vunpack.c.l.b16 %v4449
    %v8318 = vunpack.c.h.b16 %v4449
    %v8319 = vunpack.c.l.b16 %v4450
    %v8320 = vunpack.c.h.b16 %v4450
    %v8321 = vunpack.c.l.b16 %v4451
    %v8322 = vunpack.c.h.b16 %v4451
    %v8323 = vunpack.c.l.b16 %v4452
    %v8324 = vunpack.c.h.b16 %v4452
    %v8325 = vunpack.c.l.b16 %v4453
    %v8326 = vunpack.c.h.b16 %v4453
    %v8327 = vunpack.c.l.b16 %v4454
    %v8328 = vunpack.c.h.b16 %v4454
    %v8329 = vunpack.c.l.b16 %v4455
    %v8330 = vunpack.c.h.b16 %v4455
    %v8331 = vunpack.c.l.b16 %v4456
    %v8332 = vunpack.c.h.b16 %v4456
    %v8333 = vunpack.c.l.b16 %v4457
    %v8334 = vunpack.c.h.b16 %v4457
    %v8335 = vunpack.c.l.b16 %v4458
    %v8336 = vunpack.c.h.b16 %v4458
    %v8337 = vunpack.c.l.b16 %v4459
    %v8338 = vunpack.c.h.b16 %v4459
    %v8339 = vunpack.c.l.b16 %v4460
    %v8340 = vunpack.c.h.b16 %v4460
    %v8341 = vunpack.c.l.b16 %v4461
    %v8342 = vunpack.c.h.b16 %v4461
    %v8343 = vunpack.c.l.b16 %v4462
    %v8344 = vunpack.c.h.b16 %v4462
    %v8345 = vunpack.c.l.b16 %v4463
    %v8346 = vunpack.c.h.b16 %v4463
    %v8347 = vunpack.c.l.b16 %v4464
    %v8348 = vunpack.c.h.b16 %v4464
    %v8349 = vunpack.c.l.b16 %v4465
    %v8350 = vunpack.c.h.b16 %v4465
    %v8351 = vunpack.c.l.b16 %v4466
    %v8352 = vunpack.c.h.b16 %v4466
    %v8353 = vunpack.c.l.b16 %v4467
    %v8354 = vunpack.c.h.b16 %v4467
    %v8355 = vunpack.c.l.b16 %v4468
    %v8356 = vunpack.c.h.b16 %v4468
    %v8357 = vunpack.c.l.b16 %v4469
    %v8358 = vunpack.c.h.b16 %v4469
    %v8359 = vunpack.c.l.b16 %v4470
    %v8360 = vunpack.c.h.b16 %v4470
    %v8361 = vunpack.c.l.b16 %v4471
    %v8362 = vunpack.c.h.b16 %v4471
    %v8363 = vunpack.c.l.b16 %v4472
    %v8364 = vunpack.c.h.b16 %v4472
    %v8365 = vunpack.c.l.b16 %v4473
    %v8366 = vunpack.c.h.b16 %v4473
    %v8367 = vunpack.c.l.b16 %v4474
    %v8368 = vunpack.c.h.b16 %v4474
    %v8369 = vunpack.c.l.b16 %v4475
    %v8370 = vunpack.c.h.b16 %v4475
    %v8371 = vunpack.c.l.b16 %v4476
    %v8372 = vunpack.c.h.b16 %v4476
    %v8373 = vunpack.c.l.b16 %v4477
    %v8374 = vunpack.c.h.b16 %v4477
    %v8375 = vunpack.c.l.b16 %v4478
    %v8376 = vunpack.c.h.b16 %v4478
    %v8377 = vpack.c.b16 %v7807, %v7801
    %v8378 = vpack.c.b16 %v7808, %v7802
    %v8379 = vpack.c.b16 %v7809, %v7803
    %v8380 = vpack.c.b16 %v7810, %v7804
    %v8381 = vpack.c.b16 %v7811, %v7805
    %v8382 = vpack.c.b16 %v7812, %v7806
    %v8383 = vpack.c.b16 %v7819, %v7813
    %v8384 = vpack.c.b16 %v7820, %v7814
    %v8385 = vpack.c.b16 %v7821, %v7815
    %v8386 = vpack.c.b16 %v7822, %v7816
    %v8387 = vpack.c.b16 %v7823, %v7817
    %v8388 = vpack.c.b16 %v7824, %v7818
    %v8389 = vpack.c.b16 %v7831, %v7825
    %v8390 = vpack.c.b16 %v7832, %v7826
    %v8391 = vpack.c.b16 %v7833, %v7827
    %v8392 = vpack.c.b16 %v7834, %v7828
    %v8393 = vpack.c.b16 %v7835, %v7829
    %v8394 = vpack.c.b16 %v7836, %v7830
    %v8395 = vpack.c.b16 %v7843, %v7837
    %v8396 = vpack.c.b16 %v7844, %v7838
    %v8397 = vpack.c.b16 %v7845, %v7839
    %v8398 = vpack.c.b16 %v7846, %v7840
    %v8399 = vpack.c.b16 %v7847, %v7841
    %v8400 = vpack.c.b16 %v7848, %v7842
    %v8401 = vpack.c.b16 %v7855, %v7849
    %v8402 = vpack.c.b16 %v7856, %v7850
    %v8403 = vpack.c.b16 %v7857, %v7851
    %v8404 = vpack.c.b16 %v7858, %v7852
    %v8405 = vpack.c.b16 %v7859, %v7853
    %v8406 = vpack.c.b16 %v7860, %v7854
    %v8407 = vpack.c.b16 %v7867, %v7861
    %v8408 = vpack.c.b16 %v7868, %v7862
    %v8409 = vpack.c.b16 %v7869, %v7863
    %v8410 = vpack.c.b16 %v7870, %v7864
    %v8411 = vpack.c.b16 %v7871, %v7865
    %v8412 = vpack.c.b16 %v7872, %v7866
    %v8413 = vpack.c.b16 %v7879, %v7873
    %v8414 = vpack.c.b16 %v7880, %v7874
    %v8415 = vpack.c.b16 %v7881, %v7875
    %v8416 = vpack.c.b16 %v7882, %v7876
    %v8417 = vpack.c.b16 %v7883, %v7877
    %v8418 = vpack.c.b16 %v7884, %v7878
    %v8419 = vpack.c.b16 %v7891, %v7885
    %v8420 = vpack.c.b16 %v7892, %v7886
    %v8421 = vpack.c.b16 %v7893, %v7887
    %v8422 = vpack.c.b16 %v7894, %v7888
    %v8423 = vpack.c.b16 %v7895, %v7889
    %v8424 = vpack.c.b16 %v7896, %v7890
    %v8425 = vpack.c.b16 %v7903, %v7897
    %v8426 = vpack.c.b16 %v7904, %v7898
    %v8427 = vpack.c.b16 %v7905, %v7899
    %v8428 = vpack.c.b16 %v7906, %v7900
    %v8429 = vpack.c.b16 %v7907, %v7901
    %v8430 = vpack.c.b16 %v7908, %v7902
    %v8431 = vpack.c.b16 %v7915, %v7909
    %v8432 = vpack.c.b16 %v7916, %v7910
    %v8433 = vpack.c.b16 %v7917, %v7911
    %v8434 = vpack.c.b16 %v7918, %v7912
    %v8435 = vpack.c.b16 %v7919, %v7913
    %v8436 = vpack.c.b16 %v7920, %v7914
    %v8437 = vpack.c.b16 %v7927, %v7921
    %v8438 = vpack.c.b16 %v7928, %v7922
    %v8439 = vpack.c.b16 %v7929, %v7923
    %v8440 = vpack.c.b16 %v7930, %v7924
    %v8441 = vpack.c.b16 %v7931, %v7925
    %v8442 = vpack.c.b16 %v7932, %v7926
    %v8443 = vpack.c.b16 %v7939, %v7933
    %v8444 = vpack.c.b16 %v7940, %v7934
    %v8445 = vpack.c.b16 %v7941, %v7935
    %v8446 = vpack.c.b16 %v7942, %v7936
    %v8447 = vpack.c.b16 %v7943, %v7937
    %v8448 = vpack.c.b16 %v7944, %v7938
    %v8449 = vpack.c.b16 %v7951, %v7945
    %v8450 = vpack.c.b16 %v7952, %v7946
    %v8451 = vpack.c.b16 %v7953, %v7947
    %v8452 = vpack.c.b16 %v7954, %v7948
    %v8453 = vpack.c.b16 %v7955, %v7949
    %v8454 = vpack.c.b16 %v7956, %v7950
    %v8455 = vpack.c.b16 %v7963, %v7957
    %v8456 = vpack.c.b16 %v7964, %v7958
    %v8457 = vpack.c.b16 %v7965, %v7959
    %v8458 = vpack.c.b16 %v7966, %v7960
    %v8459 = vpack.c.b16 %v7967, %v7961
    %v8460 = vpack.c.b16 %v7968, %v7962
    %v8461 = vpack.c.b16 %v7975, %v7969
    %v8462 = vpack.c.b16 %v7976, %v7970
    %v8463 = vpack.c.b16 %v7977, %v7971
    %v8464 = vpack.c.b16 %v7978, %v7972
    %v8465 = vpack.c.b16 %v7979, %v7973
    %v8466 = vpack.c.b16 %v7980, %v7974
    %v8467 = vpack.c.b16 %v7987, %v7981
    %v8468 = vpack.c.b16 %v7988, %v7982
    %v8469 = vpack.c.b16 %v7989, %v7983
    %v8470 = vpack.c.b16 %v7990, %v7984
    %v8471 = vpack.c.b16 %v7991, %v7985
    %v8472 = vpack.c.b16 %v7992, %v7986
    %v8473 = vpack.c.b16 %v7999, %v7993
    %v8474 = vpack.c.b16 %v8000, %v7994
    %v8475 = vpack.c.b16 %v8001, %v7995
    %v8476 = vpack.c.b16 %v8002, %v7996
    %v8477 = vpack.c.b16 %v8003, %v7997
    %v8478 = vpack.c.b16 %v8004, %v7998
    %v8479 = vpack.c.b16 %v8011, %v8005
    %v8480 = vpack.c.b16 %v8012, %v8006
    %v8481 = vpack.c.b16 %v8013, %v8007
    %v8482 = vpack.c.b16 %v8014, %v8008
    %v8483 = vpack.c.b16 %v8015, %v8009
    %v8484 = vpack.c.b16 %v8016, %v8010
    %v8485 = vpack.c.b16 %v8023, %v8017
    %v8486 = vpack.c.b16 %v8024, %v8018
    %v8487 = vpack.c.b16 %v8025, %v8019
    %v8488 = vpack.c.b16 %v8026, %v8020
    %v8489 = vpack.c.b16 %v8027, %v8021
    %v8490 = vpack.c.b16 %v8028, %v8022
    %v8491 = vpack.c.b16 %v8035, %v8029
    %v8492 = vpack.c.b16 %v8036, %v8030
    %v8493 = vpack.c.b16 %v8037, %v8031
    %v8494 = vpack.c.b16 %v8038, %v8032
    %v8495 = vpack.c.b16 %v8039, %v8033
    %v8496 = vpack.c.b16 %v8040, %v8034
    %v8497 = vpack.c.b16 %v8047, %v8041
    %v8498 = vpack.c.b16 %v8048, %v8042
    %v8499 = vpack.c.b16 %v8049, %v8043
    %v8500 = vpack.c.b16 %v8050, %v8044
    %v8501 = vpack.c.b16 %v8051, %v8045
    %v8502 = vpack.c.b16 %v8052, %v8046
    %v8503 = vpack.c.b16 %v8059, %v8053
    %v8504 = vpack.c.b16 %v8060, %v8054
    %v8505 = vpack.c.b16 %v8061, %v8055
    %v8506 = vpack.c.b16 %v8062, %v8056
    %v8507 = vpack.c.b16 %v8063, %v8057
    %v8508 = vpack.c.b16 %v8064, %v8058
    %v8509 = vpack.c.b16 %v8071, %v8065
    %v8510 = vpack.c.b16 %v8072, %v8066
    %v8511 = vpack.c.b16 %v8073, %v8067
    %v8512 = vpack.c.b16 %v8074, %v8068
    %v8513 = vpack.c.b16 %v8075, %v8069
    %v8514 = vpack.c.b16 %v8076, %v8070
    %v8515 = vpack.c.b16 %v8083, %v8077
    %v8516 = vpack.c.b16 %v8084, %v8078
    %v8517 = vpack.c.b16 %v8085, %v8079
    %v8518 = vpack.c.b16 %v8086, %v8080
    %v8519 = vpack.c.b16 %v8087, %v8081
    %v8520 = vpack.c.b16 %v8088, %v8082
    %v8521 = vpack.c.b16 %v8095, %v8089
    %v8522 = vpack.c.b16 %v8096, %v8090
    %v8523 = vpack.c.b16 %v8097, %v8091
    %v8524 = vpack.c.b16 %v8098, %v8092
    %v8525 = vpack.c.b16 %v8099, %v8093
    %v8526 = vpack.c.b16 %v8100, %v8094
    %v8527 = vpack.c.b16 %v8107, %v8101
    %v8528 = vpack.c.b16 %v8108, %v8102
    %v8529 = vpack.c.b16 %v8109, %v8103
    %v8530 = vpack.c.b16 %v8110, %v8104
    %v8531 = vpack.c.b16 %v8111, %v8105
    %v8532 = vpack.c.b16 %v8112, %v8106
    %v8533 = vpack.c.b16 %v8119, %v8113
    %v8534 = vpack.c.b16 %v8120, %v8114
    %v8535 = vpack.c.b16 %v8121, %v8115
    %v8536 = vpack.c.b16 %v8122, %v8116
    %v8537 = vpack.c.b16 %v8123, %v8117
    %v8538 = vpack.c.b16 %v8124, %v8118
    %v8539 = vpack.c.b16 %v8131, %v8125
    %v8540 = vpack.c.b16 %v8132, %v8126
    %v8541 = vpack.c.b16 %v8133, %v8127
    %v8542 = vpack.c.b16 %v8134, %v8128
    %v8543 = vpack.c.b16 %v8135, %v8129
    %v8544 = vpack.c.b16 %v8136, %v8130
    %v8545 = vpack.c.b16 %v8143, %v8137
    %v8546 = vpack.c.b16 %v8144, %v8138
    %v8547 = vpack.c.b16 %v8145, %v8139
    %v8548 = vpack.c.b16 %v8146, %v8140
    %v8549 = vpack.c.b16 %v8147, %v8141
    %v8550 = vpack.c.b16 %v8148, %v8142
    %v8551 = vpack.c.b16 %v8155, %v8149
    %v8552 = vpack.c.b16 %v8156, %v8150
    %v8553 = vpack.c.b16 %v8157, %v8151
    %v8554 = vpack.c.b16 %v8158, %v8152
    %v8555 = vpack.c.b16 %v8159, %v8153
    %v8556 = vpack.c.b16 %v8160, %v8154
    %v8557 = vpack.c.b16 %v8167, %v8161
    %v8558 = vpack.c.b16 %v8168, %v8162
    %v8559 = vpack.c.b16 %v8169, %v8163
    %v8560 = vpack.c.b16 %v8170, %v8164
    %v8561 = vpack.c.b16 %v8171, %v8165
    %v8562 = vpack.c.b16 %v8172, %v8166
    %v8563 = vpack.c.b16 %v8179, %v8173
    %v8564 = vpack.c.b16 %v8180, %v8174
    %v8565 = vpack.c.b16 %v8181, %v8175
    %v8566 = vpack.c.b16 %v8182, %v8176
    %v8567 = vpack.c.b16 %v8183, %v8177
    %v8568 = vpack.c.b16 %v8184, %v8178
    %v8569 = vpack.c.b16 %v8191, %v8185
    %v8570 = vpack.c.b16 %v8192, %v8186
    %v8571 = vpack.c.b16 %v8193, %v8187
    %v8572 = vpack.c.b16 %v8194, %v8188
    %v8573 = vpack.c.b16 %v8195, %v8189
    %v8574 = vpack.c.b16 %v8196, %v8190
    %v8575 = vpack.c.b16 %v8203, %v8197
    %v8576 = vpack.c.b16 %v8204, %v8198
    %v8577 = vpack.c.b16 %v8205, %v8199
    %v8578 = vpack.c.b16 %v8206, %v8200
    %v8579 = vpack.c.b16 %v8207, %v8201
    %v8580 = vpack.c.b16 %v8208, %v8202
    %v8581 = vpack.c.b16 %v8215, %v8209
    %v8582 = vpack.c.b16 %v8216, %v8210
    %v8583 = vpack.c.b16 %v8217, %v8211
    %v8584 = vpack.c.b16 %v8218, %v8212
    %v8585 = vpack.c.b16 %v8219, %v8213
    %v8586 = vpack.c.b16 %v8220, %v8214
    %v8587 = vpack.c.b16 %v8227, %v8221
    %v8588 = vpack.c.b16 %v8228, %v8222
    %v8589 = vpack.c.b16 %v8229, %v8223
    %v8590 = vpack.c.b16 %v8230, %v8224
    %v8591 = vpack.c.b16 %v8231, %v8225
    %v8592 = vpack.c.b16 %v8232, %v8226
    %v8593 = vpack.c.b16 %v8239, %v8233
    %v8594 = vpack.c.b16 %v8240, %v8234
    %v8595 = vpack.c.b16 %v8241, %v8235
    %v8596 = vpack.c.b16 %v8242, %v8236
    %v8597 = vpack.c.b16 %v8243, %v8237
    %v8598 = vpack.c.b16 %v8244, %v8238
    %v8599 = vpack.c.b16 %v8251, %v8245
    %v8600 = vpack.c.b16 %v8252, %v8246
    %v8601 = vpack.c.b16 %v8253, %v8247
    %v8602 = vpack.c.b16 %v8254, %v8248
    %v8603 = vpack.c.b16 %v8255, %v8249
    %v8604 = vpack.c.b16 %v8256, %v8250
    %v8605 = vpack.c.b16 %v8263, %v8257
    %v8606 = vpack.c.b16 %v8264, %v8258
    %v8607 = vpack.c.b16 %v8265, %v8259
    %v8608 = vpack.c.b16 %v8266, %v8260
    %v8609 = vpack.c.b16 %v8267, %v8261
    %v8610 = vpack.c.b16 %v8268, %v8262
    %v8611 = vpack.c.b16 %v8275, %v8269
    %v8612 = vpack.c.b16 %v8276, %v8270
    %v8613 = vpack.c.b16 %v8277, %v8271
    %v8614 = vpack.c.b16 %v8278, %v8272
    %v8615 = vpack.c.b16 %v8279, %v8273
    %v8616 = vpack.c.b16 %v8280, %v8274
    %v8617 = vpack.c.b16 %v8287, %v8281
    %v8618 = vpack.c.b16 %v8288, %v8282
    %v8619 = vpack.c.b16 %v8289, %v8283
    %v8620 = vpack.c.b16 %v8290, %v8284
    %v8621 = vpack.c.b16 %v8291, %v8285
    %v8622 = vpack.c.b16 %v8292, %v8286
    %v8623 = vpack.c.b16 %v8299, %v8293
    %v8624 = vpack.c.b16 %v8300, %v8294
    %v8625 = vpack.c.b16 %v8301, %v8295
    %v8626 = vpack.c.b16 %v8302, %v8296
    %v8627 = vpack.c.b16 %v8303, %v8297
    %v8628 = vpack.c.b16 %v8304, %v8298
    %v8629 = vpack.c.b16 %v8311, %v8305
    %v8630 = vpack.c.b16 %v8312, %v8306
    %v8631 = vpack.c.b16 %v8313, %v8307
    %v8632 = vpack.c.b16 %v8314, %v8308
    %v8633 = vpack.c.b16 %v8315, %v8309
    %v8634 = vpack.c.b16 %v8316, %v8310
    %v8635 = vpack.c.b16 %v8323, %v8317
    %v8636 = vpack.c.b16 %v8324, %v8318
    %v8637 = vpack.c.b16 %v8325, %v8319
    %v8638 = vpack.c.b16 %v8326, %v8320
    %v8639 = vpack.c.b16 %v8327, %v8321
    %v8640 = vpack.c.b16 %v8328, %v8322
    %v8641 = vpack.c.b16 %v8335, %v8329
    %v8642 = vpack.c.b16 %v8336, %v8330
    %v8643 = vpack.c.b16 %v8337, %v8331
    %v8644 = vpack.c.b16 %v8338, %v8332
    %v8645 = vpack.c.b16 %v8339, %v8333
    %v8646 = vpack.c.b16 %v8340, %v8334
    %v8647 = vpack.c.b16 %v8347, %v8341
    %v8648 = vpack.c.b16 %v8348, %v8342
    %v8649 = vpack.c.b16 %v8349, %v8343
    %v8650 = vpack.c.b16 %v8350, %v8344
    %v8651 = vpack.c.b16 %v8351, %v8345
    %v8652 = vpack.c.b16 %v8352, %v8346
    %v8653 = vpack.c.b16 %v8359, %v8353
    %v8654 = vpack.c.b16 %v8360, %v8354
    %v8655 = vpack.c.b16 %v8361, %v8355
    %v8656 = vpack.c.b16 %v8362, %v8356
    %v8657 = vpack.c.b16 %v8363, %v8357
    %v8658 = vpack.c.b16 %v8364, %v8358
    %v8659 = vpack.c.b16 %v8371, %v8365
    %v8660 = vpack.c.b16 %v8372, %v8366
    %v8661 = vpack.c.b16 %v8373, %v8367
    %v8662 = vpack.c.b16 %v8374, %v8368
    %v8663 = vpack.c.b16 %v8375, %v8369
    %v8664 = vpack.c.b16 %v8376, %v8370
    %8953 = vmatprep.subr.bf16.mxu0 %v8420
    %8954 = vmatpush1.bf16.msra.mxu0 %v8419
    %8955 = vmatprep.subr.bf16.mxu0 %v8414
    %8956 = vmatpush1.bf16.msra.mxu0 %v8413
    %8957 = vmatprep.subr.bf16.mxu0 %v8408
    %8958 = vmatpush1.bf16.msra.mxu0 %v8407
    %8959 = vmatprep.subr.bf16.mxu0 %v8402
    %8960 = vmatpush1.bf16.msra.mxu0 %v8401
    %8961 = vmatprep.subr.bf16.mxu0 %v8396
    %8962 = vmatpush1.bf16.msra.mxu0 %v8395
    %8963 = vmatprep.subr.bf16.mxu0 %v8390
    %8964 = vmatpush1.bf16.msra.mxu0 %v8389
    %8965 = vmatprep.subr.bf16.mxu0 %v8384
    %8966 = vmatpush1.bf16.msra.mxu0 %v8383
    %8967 = vmatprep.subr.bf16.mxu0 %v8378
    %8968 = vmatpush1.bf16.msra.mxu0 %v8377
    %8969 = vmatprep.subr.bf16.mxu0 %v8468
    %8970 = vmatpush2.bf16.msra.mxu0 %v8467
    %8971 = vmatprep.subr.bf16.mxu0 %v8462
    %8972 = vmatpush2.bf16.msra.mxu0 %v8461
    %8973 = vmatprep.subr.bf16.mxu0 %v8456
    %8974 = vmatpush2.bf16.msra.mxu0 %v8455
    %8975 = vmatprep.subr.bf16.mxu0 %v8450
    %8976 = vmatpush2.bf16.msra.mxu0 %v8449
    %8977 = vmatprep.subr.bf16.mxu0 %v8444
    %8978 = vmatpush2.bf16.msra.mxu0 %v8443
    %8979 = vmatprep.subr.bf16.mxu0 %v8438
    %8980 = vmatpush2.bf16.msra.mxu0 %v8437
    %8981 = vmatprep.subr.bf16.mxu0 %v8432
    %8982 = vmatpush2.bf16.msra.mxu0 %v8431
    %8983 = vmatprep.subr.bf16.mxu0 %v8426
    %8984 = vmatpush2.bf16.msra.mxu0 %v8425
    %8985 = vmatprep.mubr.bf16.mxu0 %v7406
    %8986 = vmatmul.mubr.bf16.gmra.mxu0 %v7405
    %v8987 = vpop.f32.mrf.mxu0
    %v8988 = vadd.f32 %v7492, %v8987
    %v8989 = vpop.f32.mrf.mxu0
    %v8990 = vadd.f32 %v7496, %v8989
    %v8991 = vpop.f32.mrf.mxu0
    %v8992 = vadd.f32 %v7492, %v8991
    %v8993 = vpop.f32.mrf.mxu0
    %v8994 = vadd.f32 %v7496, %v8993
    %8995 = vmatprep.mubr.bf16.mxu0 %v7412
    %8996 = vmatmul.mubr.bf16.gmra.mxu0 %v7411
    %v8997 = vpop.f32.mrf.mxu0
    %v8998 = vadd.f32 %v7492, %v8997
    %v8999 = vpop.f32.mrf.mxu0
    %v9000 = vadd.f32 %v7496, %v8999
    %v9001 = vpop.f32.mrf.mxu0
    %v9002 = vadd.f32 %v7492, %v9001
    %v9003 = vpop.f32.mrf.mxu0
    %v9004 = vadd.f32 %v7496, %v9003
    %9005 = vmatprep.mubr.bf16.mxu0 %v7418
    %9006 = vmatmul.mubr.bf16.gmra.mxu0 %v7417
    %v9007 = vpop.f32.mrf.mxu0
    %v9008 = vadd.f32 %v7492, %v9007
    %v9009 = vpop.f32.mrf.mxu0
    %v9010 = vadd.f32 %v7496, %v9009
    %v9011 = vpop.f32.mrf.mxu0
    %v9012 = vadd.f32 %v7492, %v9011
    %v9013 = vpop.f32.mrf.mxu0
    %v9014 = vadd.f32 %v7496, %v9013
    %9015 = vmatprep.mubr.bf16.mxu0 %v7424
    %9016 = vmatmul.mubr.bf16.gmra.mxu0 %v7423
    %v9017 = vpop.f32.mrf.mxu0
    %v9018 = vadd.f32 %v7492, %v9017
    %v9019 = vpop.f32.mrf.mxu0
    %v9020 = vadd.f32 %v7496, %v9019
    %v9021 = vpop.f32.mrf.mxu0
    %v9022 = vadd.f32 %v7492, %v9021
    %v9023 = vpop.f32.mrf.mxu0
    %v9024 = vadd.f32 %v7496, %v9023
    %9025 = vmatprep.mubr.bf16.mxu0 %v7430
    %9026 = vmatmul.mubr.bf16.gmra.mxu0 %v7429
    %v9027 = vpop.f32.mrf.mxu0
    %v9028 = vadd.f32 %v7492, %v9027
    %v9029 = vpop.f32.mrf.mxu0
    %v9030 = vadd.f32 %v7496, %v9029
    %v9031 = vpop.f32.mrf.mxu0
    %v9032 = vadd.f32 %v7492, %v9031
    %v9033 = vpop.f32.mrf.mxu0
    %v9034 = vadd.f32 %v7496, %v9033
    %9035 = vmatprep.mubr.bf16.mxu0 %v7436
    %9036 = vmatmul.mubr.bf16.gmra.mxu0 %v7435
    %v9037 = vpop.f32.mrf.mxu0
    %v9038 = vadd.f32 %v7492, %v9037
    %v9039 = vpop.f32.mrf.mxu0
    %v9040 = vadd.f32 %v7496, %v9039
    %v9041 = vpop.f32.mrf.mxu0
    %v9042 = vadd.f32 %v7492, %v9041
    %v9043 = vpop.f32.mrf.mxu0
    %v9044 = vadd.f32 %v7496, %v9043
    %9045 = vmatprep.mubr.bf16.mxu0 %v7442
    %9046 = vmatmul.mubr.bf16.gmra.mxu0 %v7441
    %v9047 = vpop.f32.mrf.mxu0
    %v9048 = vadd.f32 %v7492, %v9047
    %v9049 = vpop.f32.mrf.mxu0
    %v9050 = vadd.f32 %v7496, %v9049
    %v9051 = vpop.f32.mrf.mxu0
    %v9052 = vadd.f32 %v7492, %v9051
    %v9053 = vpop.f32.mrf.mxu0
    %v9054 = vadd.f32 %v7496, %v9053
    %9055 = vmatprep.mubr.bf16.mxu0 %v7448
    %9056 = vmatmul.mubr.bf16.gmra.mxu0 %v7447
    %v9057 = vpop.f32.mrf.mxu0
    %v9058 = vadd.f32 %v7492, %v9057
    %v9059 = vpop.f32.mrf.mxu0
    %v9060 = vadd.f32 %v7496, %v9059
    %v9061 = vpop.f32.mrf.mxu0
    %v9062 = vadd.f32 %v7492, %v9061
    %v9063 = vpop.f32.mrf.mxu0
    %v9064 = vadd.f32 %v7496, %v9063
    %9065 = vmatprep.mubr.bf16.mxu0 %v7454
    %9066 = vmatmul.mubr.bf16.gmra.mxu0 %v7453
    %v9067 = vpop.f32.mrf.mxu0
    %v9068 = vadd.f32 %v7492, %v9067
    %v9069 = vpop.f32.mrf.mxu0
    %v9070 = vadd.f32 %v7496, %v9069
    %v9071 = vpop.f32.mrf.mxu0
    %v9072 = vpop.f32.mrf.mxu0
    %9073 = vdwg.mxu0
    %9074 = vmatprep.subr.bf16.mxu0 %v8516
    %9075 = vmatpush1.bf16.msra.mxu0 %v8515
    %9076 = vmatprep.subr.bf16.mxu0 %v8510
    %9077 = vmatpush1.bf16.msra.mxu0 %v8509
    %9078 = vmatprep.subr.bf16.mxu0 %v8504
    %9079 = vmatpush1.bf16.msra.mxu0 %v8503
    %9080 = vmatprep.subr.bf16.mxu0 %v8498
    %9081 = vmatpush1.bf16.msra.mxu0 %v8497
    %9082 = vmatprep.subr.bf16.mxu0 %v8492
    %9083 = vmatpush1.bf16.msra.mxu0 %v8491
    %9084 = vmatprep.subr.bf16.mxu0 %v8486
    %9085 = vmatpush1.bf16.msra.mxu0 %v8485
    %9086 = vmatprep.subr.bf16.mxu0 %v8480
    %9087 = vmatpush1.bf16.msra.mxu0 %v8479
    %9088 = vmatprep.subr.bf16.mxu0 %v8474
    %9089 = vmatpush1.bf16.msra.mxu0 %v8473
    %9090 = vmatprep.subr.bf16.mxu0 %v8564
    %9091 = vmatpush2.bf16.msra.mxu0 %v8563
    %9092 = vmatprep.subr.bf16.mxu0 %v8558
    %9093 = vmatpush2.bf16.msra.mxu0 %v8557
    %9094 = vmatprep.subr.bf16.mxu0 %v8552
    %9095 = vmatpush2.bf16.msra.mxu0 %v8551
    %9096 = vmatprep.subr.bf16.mxu0 %v8546
    %9097 = vmatpush2.bf16.msra.mxu0 %v8545
    %9098 = vmatprep.subr.bf16.mxu0 %v8540
    %9099 = vmatpush2.bf16.msra.mxu0 %v8539
    %9100 = vmatprep.subr.bf16.mxu0 %v8534
    %9101 = vmatpush2.bf16.msra.mxu0 %v8533
    %9102 = vmatprep.subr.bf16.mxu0 %v8528
    %9103 = vmatpush2.bf16.msra.mxu0 %v8527
    %9104 = vmatprep.subr.bf16.mxu0 %v8522
    %9105 = vmatpush2.bf16.msra.mxu0 %v8521
    %9106 = vmatprep.mubr.bf16.mxu0 %v7408
    %9107 = vmatmul.mubr.bf16.gmra.mxu0 %v7407
    %v9108 = vpop.f32.mrf.mxu0
    %v9109 = vadd.f32 %v8988, %v9108
    %v9110 = vpop.f32.mrf.mxu0
    %v9111 = vadd.f32 %v8990, %v9110
    %v9112 = vpop.f32.mrf.mxu0
    %v9113 = vadd.f32 %v8992, %v9112
    %v9114 = vpop.f32.mrf.mxu0
    %v9115 = vadd.f32 %v8994, %v9114
    %9116 = vmatprep.mubr.bf16.mxu0 %v7414
    %9117 = vmatmul.mubr.bf16.gmra.mxu0 %v7413
    %v9118 = vpop.f32.mrf.mxu0
    %v9119 = vadd.f32 %v8998, %v9118
    %v9120 = vpop.f32.mrf.mxu0
    %v9121 = vadd.f32 %v9000, %v9120
    %v9122 = vpop.f32.mrf.mxu0
    %v9123 = vadd.f32 %v9002, %v9122
    %v9124 = vpop.f32.mrf.mxu0
    %v9125 = vadd.f32 %v9004, %v9124
    %9126 = vmatprep.mubr.bf16.mxu0 %v7420
    %9127 = vmatmul.mubr.bf16.gmra.mxu0 %v7419
    %v9128 = vpop.f32.mrf.mxu0
    %v9129 = vadd.f32 %v9008, %v9128
    %v9130 = vpop.f32.mrf.mxu0
    %v9131 = vadd.f32 %v9010, %v9130
    %v9132 = vpop.f32.mrf.mxu0
    %v9133 = vadd.f32 %v9012, %v9132
    %v9134 = vpop.f32.mrf.mxu0
    %v9135 = vadd.f32 %v9014, %v9134
    %9136 = vmatprep.mubr.bf16.mxu0 %v7426
    %9137 = vmatmul.mubr.bf16.gmra.mxu0 %v7425
    %v9138 = vpop.f32.mrf.mxu0
    %v9139 = vadd.f32 %v9018, %v9138
    %v9140 = vpop.f32.mrf.mxu0
    %v9141 = vadd.f32 %v9020, %v9140
    %v9142 = vpop.f32.mrf.mxu0
    %v9143 = vadd.f32 %v9022, %v9142
    %v9144 = vpop.f32.mrf.mxu0
    %v9145 = vadd.f32 %v9024, %v9144
    %9146 = vmatprep.mubr.bf16.mxu0 %v7432
    %9147 = vmatmul.mubr.bf16.gmra.mxu0 %v7431
    %v9148 = vpop.f32.mrf.mxu0
    %v9149 = vadd.f32 %v9028, %v9148
    %v9150 = vpop.f32.mrf.mxu0
    %v9151 = vadd.f32 %v9030, %v9150
    %v9152 = vpop.f32.mrf.mxu0
    %v9153 = vadd.f32 %v9032, %v9152
    %v9154 = vpop.f32.mrf.mxu0
    %v9155 = vadd.f32 %v9034, %v9154
    %9156 = vmatprep.mubr.bf16.mxu0 %v7438
    %9157 = vmatmul.mubr.bf16.gmra.mxu0 %v7437
    %v9158 = vpop.f32.mrf.mxu0
    %v9159 = vadd.f32 %v9038, %v9158
    %v9160 = vpop.f32.mrf.mxu0
    %v9161 = vadd.f32 %v9040, %v9160
    %v9162 = vpop.f32.mrf.mxu0
    %v9163 = vadd.f32 %v9042, %v9162
    %v9164 = vpop.f32.mrf.mxu0
    %v9165 = vadd.f32 %v9044, %v9164
    %9166 = vmatprep.mubr.bf16.mxu0 %v7444
    %9167 = vmatmul.mubr.bf16.gmra.mxu0 %v7443
    %v9168 = vpop.f32.mrf.mxu0
    %v9169 = vadd.f32 %v9048, %v9168
    %v9170 = vpop.f32.mrf.mxu0
    %v9171 = vadd.f32 %v9050, %v9170
    %v9172 = vpop.f32.mrf.mxu0
    %v9173 = vadd.f32 %v9052, %v9172
    %v9174 = vpop.f32.mrf.mxu0
    %v9175 = vadd.f32 %v9054, %v9174
    %9176 = vmatprep.mubr.bf16.mxu0 %v7450
    %9177 = vmatmul.mubr.bf16.gmra.mxu0 %v7449
    %v9178 = vpop.f32.mrf.mxu0
    %v9179 = vadd.f32 %v9058, %v9178
    %v9180 = vpop.f32.mrf.mxu0
    %v9181 = vadd.f32 %v9060, %v9180
    %v9182 = vpop.f32.mrf.mxu0
    %v9183 = vadd.f32 %v9062, %v9182
    %v9184 = vpop.f32.mrf.mxu0
    %v9185 = vadd.f32 %v9064, %v9184
    %9186 = vmatprep.mubr.bf16.mxu0 %v7456
    %9187 = vmatmul.mubr.bf16.gmra.mxu0 %v7455
    %v9188 = vpop.f32.mrf.mxu0
    %v9189 = vadd.f32 %v9068, %v9188
    %v9190 = vpop.f32.mrf.mxu0
    %v9191 = vadd.f32 %v9070, %v9190
    %v9192 = vpop.f32.mrf.mxu0
    %v9193 = vpop.f32.mrf.mxu0
    %9194 = vdwg.mxu0
    %9195 = vmatprep.subr.bf16.mxu0 %v8612
    %9196 = vmatpush1.bf16.msra.mxu0 %v8611
    %9197 = vmatprep.subr.bf16.mxu0 %v8606
    %9198 = vmatpush1.bf16.msra.mxu0 %v8605
    %9199 = vmatprep.subr.bf16.mxu0 %v8600
    %9200 = vmatpush1.bf16.msra.mxu0 %v8599
    %9201 = vmatprep.subr.bf16.mxu0 %v8594
    %9202 = vmatpush1.bf16.msra.mxu0 %v8593
    %9203 = vmatprep.subr.bf16.mxu0 %v8588
    %9204 = vmatpush1.bf16.msra.mxu0 %v8587
    %9205 = vmatprep.subr.bf16.mxu0 %v8582
    %9206 = vmatpush1.bf16.msra.mxu0 %v8581
    %9207 = vmatprep.subr.bf16.mxu0 %v8576
    %9208 = vmatpush1.bf16.msra.mxu0 %v8575
    %9209 = vmatprep.subr.bf16.mxu0 %v8570
    %9210 = vmatpush1.bf16.msra.mxu0 %v8569
    %9211 = vmatprep.subr.bf16.mxu0 %v8660
    %9212 = vmatpush2.bf16.msra.mxu0 %v8659
    %9213 = vmatprep.subr.bf16.mxu0 %v8654
    %9214 = vmatpush2.bf16.msra.mxu0 %v8653
    %9215 = vmatprep.subr.bf16.mxu0 %v8648
    %9216 = vmatpush2.bf16.msra.mxu0 %v8647
    %9217 = vmatprep.subr.bf16.mxu0 %v8642
    %9218 = vmatpush2.bf16.msra.mxu0 %v8641
    %9219 = vmatprep.subr.bf16.mxu0 %v8636
    %9220 = vmatpush2.bf16.msra.mxu0 %v8635
    %9221 = vmatprep.subr.bf16.mxu0 %v8630
    %9222 = vmatpush2.bf16.msra.mxu0 %v8629
    %9223 = vmatprep.subr.bf16.mxu0 %v8624
    %9224 = vmatpush2.bf16.msra.mxu0 %v8623
    %9225 = vmatprep.subr.bf16.mxu0 %v8618
    %9226 = vmatpush2.bf16.msra.mxu0 %v8617
    %9227 = vmatprep.mubr.bf16.mxu0 %v7410
    %9228 = vmatmul.mubr.bf16.gmra.mxu0 %v7409
    %v9229 = vpop.f32.mrf.mxu0
    %v9230 = vadd.f32 %v9109, %v9229
    %v9231 = vpop.f32.mrf.mxu0
    %v9232 = vadd.f32 %v9111, %v9231
    %v9233 = vpop.f32.mrf.mxu0
    %v9234 = vadd.f32 %v9113, %v9233
    %v9235 = vpop.f32.mrf.mxu0
    %v9236 = vadd.f32 %v9115, %v9235
    %9237 = vmatprep.mubr.bf16.mxu0 %v7416
    %9238 = vmatmul.mubr.bf16.gmra.mxu0 %v7415
    %v9239 = vpop.f32.mrf.mxu0
    %v9240 = vadd.f32 %v9119, %v9239
    %v9241 = vpop.f32.mrf.mxu0
    %v9242 = vadd.f32 %v9121, %v9241
    %v9243 = vpop.f32.mrf.mxu0
    %v9244 = vadd.f32 %v9123, %v9243
    %v9245 = vpop.f32.mrf.mxu0
    %v9246 = vadd.f32 %v9125, %v9245
    %9247 = vmatprep.mubr.bf16.mxu0 %v7422
    %9248 = vmatmul.mubr.bf16.gmra.mxu0 %v7421
    %v9249 = vpop.f32.mrf.mxu0
    %v9250 = vadd.f32 %v9129, %v9249
    %v9251 = vpop.f32.mrf.mxu0
    %v9252 = vadd.f32 %v9131, %v9251
    %v9253 = vpop.f32.mrf.mxu0
    %v9254 = vadd.f32 %v9133, %v9253
    %v9255 = vpop.f32.mrf.mxu0
    %v9256 = vadd.f32 %v9135, %v9255
    %9257 = vmatprep.mubr.bf16.mxu0 %v7428
    %9258 = vmatmul.mubr.bf16.gmra.mxu0 %v7427
    %v9259 = vpop.f32.mrf.mxu0
    %v9260 = vadd.f32 %v9139, %v9259
    %v9261 = vpop.f32.mrf.mxu0
    %v9262 = vadd.f32 %v9141, %v9261
    %v9263 = vpop.f32.mrf.mxu0
    %v9264 = vadd.f32 %v9143, %v9263
    %v9265 = vpop.f32.mrf.mxu0
    %v9266 = vadd.f32 %v9145, %v9265
    %9267 = vmatprep.mubr.bf16.mxu0 %v7434
    %9268 = vmatmul.mubr.bf16.gmra.mxu0 %v7433
    %v9269 = vpop.f32.mrf.mxu0
    %v9270 = vadd.f32 %v9149, %v9269
    %v9271 = vpop.f32.mrf.mxu0
    %v9272 = vadd.f32 %v9151, %v9271
    %v9273 = vpop.f32.mrf.mxu0
    %v9274 = vadd.f32 %v9153, %v9273
    %v9275 = vpop.f32.mrf.mxu0
    %v9276 = vadd.f32 %v9155, %v9275
    %9277 = vmatprep.mubr.bf16.mxu0 %v7440
    %9278 = vmatmul.mubr.bf16.gmra.mxu0 %v7439
    %v9279 = vpop.f32.mrf.mxu0
    %v9280 = vadd.f32 %v9159, %v9279
    %v9281 = vpop.f32.mrf.mxu0
    %v9282 = vadd.f32 %v9161, %v9281
    %v9283 = vpop.f32.mrf.mxu0
    %v9284 = vadd.f32 %v9163, %v9283
    %v9285 = vpop.f32.mrf.mxu0
    %v9286 = vadd.f32 %v9165, %v9285
    %9287 = vmatprep.mubr.bf16.mxu0 %v7446
    %9288 = vmatmul.mubr.bf16.gmra.mxu0 %v7445
    %v9289 = vpop.f32.mrf.mxu0
    %v9290 = vadd.f32 %v9169, %v9289
    %v9291 = vpop.f32.mrf.mxu0
    %v9292 = vadd.f32 %v9171, %v9291
    %v9293 = vpop.f32.mrf.mxu0
    %v9294 = vadd.f32 %v9173, %v9293
    %v9295 = vpop.f32.mrf.mxu0
    %v9296 = vadd.f32 %v9175, %v9295
    %9297 = vmatprep.mubr.bf16.mxu0 %v7452
    %9298 = vmatmul.mubr.bf16.gmra.mxu0 %v7451
    %v9299 = vpop.f32.mrf.mxu0
    %v9300 = vadd.f32 %v9179, %v9299
    %v9301 = vpop.f32.mrf.mxu0
    %v9302 = vadd.f32 %v9181, %v9301
    %v9303 = vpop.f32.mrf.mxu0
    %v9304 = vadd.f32 %v9183, %v9303
    %v9305 = vpop.f32.mrf.mxu0
    %v9306 = vadd.f32 %v9185, %v9305
    %9307 = vmatprep.mubr.bf16.mxu0 %v7458
    %9308 = vmatmul.mubr.bf16.gmra.mxu0 %v7457
    %v9309 = vpop.f32.mrf.mxu0
    %v9310 = vadd.f32 %v9189, %v9309
    %v9311 = vpop.f32.mrf.mxu0
    %v9312 = vadd.f32 %v9191, %v9311
    %v9313 = vpop.f32.mrf.mxu0
    %v9314 = vpop.f32.mrf.mxu0
    %9315 = vdwg.mxu0
    %9316 = vmatprep.subr.bf16.mxu0 %v8422
    %9317 = vmatpush1.bf16.msra.mxu0 %v8421
    %9318 = vmatprep.subr.bf16.mxu0 %v8416
    %9319 = vmatpush1.bf16.msra.mxu0 %v8415
    %9320 = vmatprep.subr.bf16.mxu0 %v8410
    %9321 = vmatpush1.bf16.msra.mxu0 %v8409
    %9322 = vmatprep.subr.bf16.mxu0 %v8404
    %9323 = vmatpush1.bf16.msra.mxu0 %v8403
    %9324 = vmatprep.subr.bf16.mxu0 %v8398
    %9325 = vmatpush1.bf16.msra.mxu0 %v8397
    %9326 = vmatprep.subr.bf16.mxu0 %v8392
    %9327 = vmatpush1.bf16.msra.mxu0 %v8391
    %9328 = vmatprep.subr.bf16.mxu0 %v8386
    %9329 = vmatpush1.bf16.msra.mxu0 %v8385
    %9330 = vmatprep.subr.bf16.mxu0 %v8380
    %9331 = vmatpush1.bf16.msra.mxu0 %v8379
    %9332 = vmatprep.subr.bf16.mxu0 %v8470
    %9333 = vmatpush2.bf16.msra.mxu0 %v8469
    %9334 = vmatprep.subr.bf16.mxu0 %v8464
    %9335 = vmatpush2.bf16.msra.mxu0 %v8463
    %9336 = vmatprep.subr.bf16.mxu0 %v8458
    %9337 = vmatpush2.bf16.msra.mxu0 %v8457
    %9338 = vmatprep.subr.bf16.mxu0 %v8452
    %9339 = vmatpush2.bf16.msra.mxu0 %v8451
    %9340 = vmatprep.subr.bf16.mxu0 %v8446
    %9341 = vmatpush2.bf16.msra.mxu0 %v8445
    %9342 = vmatprep.subr.bf16.mxu0 %v8440
    %9343 = vmatpush2.bf16.msra.mxu0 %v8439
    %9344 = vmatprep.subr.bf16.mxu0 %v8434
    %9345 = vmatpush2.bf16.msra.mxu0 %v8433
    %9346 = vmatprep.subr.bf16.mxu0 %v8428
    %9347 = vmatpush2.bf16.msra.mxu0 %v8427
    %9348 = vmatprep.mubr.bf16.mxu0 %v7406
    %9349 = vmatmul.mubr.bf16.gmra.mxu0 %v7405
    %v9350 = vpop.f32.mrf.mxu0
    %v9351 = vadd.f32 %v7500, %v9350
    %v9352 = vpop.f32.mrf.mxu0
    %v9353 = vadd.f32 %v7504, %v9352
    %v9354 = vpop.f32.mrf.mxu0
    %v9355 = vadd.f32 %v7500, %v9354
    %v9356 = vpop.f32.mrf.mxu0
    %v9357 = vadd.f32 %v7504, %v9356
    %9358 = vmatprep.mubr.bf16.mxu0 %v7412
    %9359 = vmatmul.mubr.bf16.gmra.mxu0 %v7411
    %v9360 = vpop.f32.mrf.mxu0
    %v9361 = vadd.f32 %v7500, %v9360
    %v9362 = vpop.f32.mrf.mxu0
    %v9363 = vadd.f32 %v7504, %v9362
    %v9364 = vpop.f32.mrf.mxu0
    %v9365 = vadd.f32 %v7500, %v9364
    %v9366 = vpop.f32.mrf.mxu0
    %v9367 = vadd.f32 %v7504, %v9366
    %9368 = vmatprep.mubr.bf16.mxu0 %v7418
    %9369 = vmatmul.mubr.bf16.gmra.mxu0 %v7417
    %v9370 = vpop.f32.mrf.mxu0
    %v9371 = vadd.f32 %v7500, %v9370
    %v9372 = vpop.f32.mrf.mxu0
    %v9373 = vadd.f32 %v7504, %v9372
    %v9374 = vpop.f32.mrf.mxu0
    %v9375 = vadd.f32 %v7500, %v9374
    %v9376 = vpop.f32.mrf.mxu0
    %v9377 = vadd.f32 %v7504, %v9376
    %9378 = vmatprep.mubr.bf16.mxu0 %v7424
    %9379 = vmatmul.mubr.bf16.gmra.mxu0 %v7423
    %v9380 = vpop.f32.mrf.mxu0
    %v9381 = vadd.f32 %v7500, %v9380
    %v9382 = vpop.f32.mrf.mxu0
    %v9383 = vadd.f32 %v7504, %v9382
    %v9384 = vpop.f32.mrf.mxu0
    %v9385 = vadd.f32 %v7500, %v9384
    %v9386 = vpop.f32.mrf.mxu0
    %v9387 = vadd.f32 %v7504, %v9386
    %9388 = vmatprep.mubr.bf16.mxu0 %v7430
    %9389 = vmatmul.mubr.bf16.gmra.mxu0 %v7429
    %v9390 = vpop.f32.mrf.mxu0
    %v9391 = vadd.f32 %v7500, %v9390
    %v9392 = vpop.f32.mrf.mxu0
    %v9393 = vadd.f32 %v7504, %v9392
    %v9394 = vpop.f32.mrf.mxu0
    %v9395 = vadd.f32 %v7500, %v9394
    %v9396 = vpop.f32.mrf.mxu0
    %v9397 = vadd.f32 %v7504, %v9396
    %9398 = vmatprep.mubr.bf16.mxu0 %v7436
    %9399 = vmatmul.mubr.bf16.gmra.mxu0 %v7435
    %v9400 = vpop.f32.mrf.mxu0
    %v9401 = vadd.f32 %v7500, %v9400
    %v9402 = vpop.f32.mrf.mxu0
    %v9403 = vadd.f32 %v7504, %v9402
    %v9404 = vpop.f32.mrf.mxu0
    %v9405 = vadd.f32 %v7500, %v9404
    %v9406 = vpop.f32.mrf.mxu0
    %v9407 = vadd.f32 %v7504, %v9406
    %9408 = vmatprep.mubr.bf16.mxu0 %v7442
    %9409 = vmatmul.mubr.bf16.gmra.mxu0 %v7441
    %v9410 = vpop.f32.mrf.mxu0
    %v9411 = vadd.f32 %v7500, %v9410
    %v9412 = vpop.f32.mrf.mxu0
    %v9413 = vadd.f32 %v7504, %v9412
    %v9414 = vpop.f32.mrf.mxu0
    %v9415 = vadd.f32 %v7500, %v9414
    %v9416 = vpop.f32.mrf.mxu0
    %v9417 = vadd.f32 %v7504, %v9416
    %9418 = vmatprep.mubr.bf16.mxu0 %v7448
    %9419 = vmatmul.mubr.bf16.gmra.mxu0 %v7447
    %v9420 = vpop.f32.mrf.mxu0
    %v9421 = vadd.f32 %v7500, %v9420
    %v9422 = vpop.f32.mrf.mxu0
    %v9423 = vadd.f32 %v7504, %v9422
    %v9424 = vpop.f32.mrf.mxu0
    %v9425 = vadd.f32 %v7500, %v9424
    %v9426 = vpop.f32.mrf.mxu0
    %v9427 = vadd.f32 %v7504, %v9426
    %9428 = vmatprep.mubr.bf16.mxu0 %v7454
    %9429 = vmatmul.mubr.bf16.gmra.mxu0 %v7453
    %v9430 = vpop.f32.mrf.mxu0
    %v9431 = vadd.f32 %v7500, %v9430
    %v9432 = vpop.f32.mrf.mxu0
    %v9433 = vadd.f32 %v7504, %v9432
    %v9434 = vpop.f32.mrf.mxu0
    %v9435 = vpop.f32.mrf.mxu0
    %9436 = vdwg.mxu0
    %9437 = vmatprep.subr.bf16.mxu0 %v8518
    %9438 = vmatpush1.bf16.msra.mxu0 %v8517
    %9439 = vmatprep.subr.bf16.mxu0 %v8512
    %9440 = vmatpush1.bf16.msra.mxu0 %v8511
    %9441 = vmatprep.subr.bf16.mxu0 %v8506
    %9442 = vmatpush1.bf16.msra.mxu0 %v8505
    %9443 = vmatprep.subr.bf16.mxu0 %v8500
    %9444 = vmatpush1.bf16.msra.mxu0 %v8499
    %9445 = vmatprep.subr.bf16.mxu0 %v8494
    %9446 = vmatpush1.bf16.msra.mxu0 %v8493
    %9447 = vmatprep.subr.bf16.mxu0 %v8488
    %9448 = vmatpush1.bf16.msra.mxu0 %v8487
    %9449 = vmatprep.subr.bf16.mxu0 %v8482
    %9450 = vmatpush1.bf16.msra.mxu0 %v8481
    %9451 = vmatprep.subr.bf16.mxu0 %v8476
    %9452 = vmatpush1.bf16.msra.mxu0 %v8475
    %9453 = vmatprep.subr.bf16.mxu0 %v8566
    %9454 = vmatpush2.bf16.msra.mxu0 %v8565
    %9455 = vmatprep.subr.bf16.mxu0 %v8560
    %9456 = vmatpush2.bf16.msra.mxu0 %v8559
    %9457 = vmatprep.subr.bf16.mxu0 %v8554
    %9458 = vmatpush2.bf16.msra.mxu0 %v8553
    %9459 = vmatprep.subr.bf16.mxu0 %v8548
    %9460 = vmatpush2.bf16.msra.mxu0 %v8547
    %9461 = vmatprep.subr.bf16.mxu0 %v8542
    %9462 = vmatpush2.bf16.msra.mxu0 %v8541
    %9463 = vmatprep.subr.bf16.mxu0 %v8536
    %9464 = vmatpush2.bf16.msra.mxu0 %v8535
    %9465 = vmatprep.subr.bf16.mxu0 %v8530
    %9466 = vmatpush2.bf16.msra.mxu0 %v8529
    %9467 = vmatprep.subr.bf16.mxu0 %v8524
    %9468 = vmatpush2.bf16.msra.mxu0 %v8523
    %9469 = vmatprep.mubr.bf16.mxu0 %v7408
    %9470 = vmatmul.mubr.bf16.gmra.mxu0 %v7407
    %v9471 = vpop.f32.mrf.mxu0
    %v9472 = vadd.f32 %v9351, %v9471
    %v9473 = vpop.f32.mrf.mxu0
    %v9474 = vadd.f32 %v9353, %v9473
    %v9475 = vpop.f32.mrf.mxu0
    %v9476 = vadd.f32 %v9355, %v9475
    %v9477 = vpop.f32.mrf.mxu0
    %v9478 = vadd.f32 %v9357, %v9477
    %9479 = vmatprep.mubr.bf16.mxu0 %v7414
    %9480 = vmatmul.mubr.bf16.gmra.mxu0 %v7413
    %v9481 = vpop.f32.mrf.mxu0
    %v9482 = vadd.f32 %v9361, %v9481
    %v9483 = vpop.f32.mrf.mxu0
    %v9484 = vadd.f32 %v9363, %v9483
    %v9485 = vpop.f32.mrf.mxu0
    %v9486 = vadd.f32 %v9365, %v9485
    %v9487 = vpop.f32.mrf.mxu0
    %v9488 = vadd.f32 %v9367, %v9487
    %9489 = vmatprep.mubr.bf16.mxu0 %v7420
    %9490 = vmatmul.mubr.bf16.gmra.mxu0 %v7419
    %v9491 = vpop.f32.mrf.mxu0
    %v9492 = vadd.f32 %v9371, %v9491
    %v9493 = vpop.f32.mrf.mxu0
    %v9494 = vadd.f32 %v9373, %v9493
    %v9495 = vpop.f32.mrf.mxu0
    %v9496 = vadd.f32 %v9375, %v9495
    %v9497 = vpop.f32.mrf.mxu0
    %v9498 = vadd.f32 %v9377, %v9497
    %9499 = vmatprep.mubr.bf16.mxu0 %v7426
    %9500 = vmatmul.mubr.bf16.gmra.mxu0 %v7425
    %v9501 = vpop.f32.mrf.mxu0
    %v9502 = vadd.f32 %v9381, %v9501
    %v9503 = vpop.f32.mrf.mxu0
    %v9504 = vadd.f32 %v9383, %v9503
    %v9505 = vpop.f32.mrf.mxu0
    %v9506 = vadd.f32 %v9385, %v9505
    %v9507 = vpop.f32.mrf.mxu0
    %v9508 = vadd.f32 %v9387, %v9507
    %9509 = vmatprep.mubr.bf16.mxu0 %v7432
    %9510 = vmatmul.mubr.bf16.gmra.mxu0 %v7431
    %v9511 = vpop.f32.mrf.mxu0
    %v9512 = vadd.f32 %v9391, %v9511
    %v9513 = vpop.f32.mrf.mxu0
    %v9514 = vadd.f32 %v9393, %v9513
    %v9515 = vpop.f32.mrf.mxu0
    %v9516 = vadd.f32 %v9395, %v9515
    %v9517 = vpop.f32.mrf.mxu0
    %v9518 = vadd.f32 %v9397, %v9517
    %9519 = vmatprep.mubr.bf16.mxu0 %v7438
    %9520 = vmatmul.mubr.bf16.gmra.mxu0 %v7437
    %v9521 = vpop.f32.mrf.mxu0
    %v9522 = vadd.f32 %v9401, %v9521
    %v9523 = vpop.f32.mrf.mxu0
    %v9524 = vadd.f32 %v9403, %v9523
    %v9525 = vpop.f32.mrf.mxu0
    %v9526 = vadd.f32 %v9405, %v9525
    %v9527 = vpop.f32.mrf.mxu0
    %v9528 = vadd.f32 %v9407, %v9527
    %9529 = vmatprep.mubr.bf16.mxu0 %v7444
    %9530 = vmatmul.mubr.bf16.gmra.mxu0 %v7443
    %v9531 = vpop.f32.mrf.mxu0
    %v9532 = vadd.f32 %v9411, %v9531
    %v9533 = vpop.f32.mrf.mxu0
    %v9534 = vadd.f32 %v9413, %v9533
    %v9535 = vpop.f32.mrf.mxu0
    %v9536 = vadd.f32 %v9415, %v9535
    %v9537 = vpop.f32.mrf.mxu0
    %v9538 = vadd.f32 %v9417, %v9537
    %9539 = vmatprep.mubr.bf16.mxu0 %v7450
    %9540 = vmatmul.mubr.bf16.gmra.mxu0 %v7449
    %v9541 = vpop.f32.mrf.mxu0
    %v9542 = vadd.f32 %v9421, %v9541
    %v9543 = vpop.f32.mrf.mxu0
    %v9544 = vadd.f32 %v9423, %v9543
    %v9545 = vpop.f32.mrf.mxu0
    %v9546 = vadd.f32 %v9425, %v9545
    %v9547 = vpop.f32.mrf.mxu0
    %v9548 = vadd.f32 %v9427, %v9547
    %9549 = vmatprep.mubr.bf16.mxu0 %v7456
    %9550 = vmatmul.mubr.bf16.gmra.mxu0 %v7455
    %v9551 = vpop.f32.mrf.mxu0
    %v9552 = vadd.f32 %v9431, %v9551
    %v9553 = vpop.f32.mrf.mxu0
    %v9554 = vadd.f32 %v9433, %v9553
    %v9555 = vpop.f32.mrf.mxu0
    %v9556 = vpop.f32.mrf.mxu0
    %9557 = vdwg.mxu0
    %9558 = vmatprep.subr.bf16.mxu0 %v8614
    %9559 = vmatpush1.bf16.msra.mxu0 %v8613
    %9560 = vmatprep.subr.bf16.mxu0 %v8608
    %9561 = vmatpush1.bf16.msra.mxu0 %v8607
    %9562 = vmatprep.subr.bf16.mxu0 %v8602
    %9563 = vmatpush1.bf16.msra.mxu0 %v8601
    %9564 = vmatprep.subr.bf16.mxu0 %v8596
    %9565 = vmatpush1.bf16.msra.mxu0 %v8595
    %9566 = vmatprep.subr.bf16.mxu0 %v8590
    %9567 = vmatpush1.bf16.msra.mxu0 %v8589
    %9568 = vmatprep.subr.bf16.mxu0 %v8584
    %9569 = vmatpush1.bf16.msra.mxu0 %v8583
    %9570 = vmatprep.subr.bf16.mxu0 %v8578
    %9571 = vmatpush1.bf16.msra.mxu0 %v8577
    %9572 = vmatprep.subr.bf16.mxu0 %v8572
    %9573 = vmatpush1.bf16.msra.mxu0 %v8571
    %9574 = vmatprep.subr.bf16.mxu0 %v8662
    %9575 = vmatpush2.bf16.msra.mxu0 %v8661
    %9576 = vmatprep.subr.bf16.mxu0 %v8656
    %9577 = vmatpush2.bf16.msra.mxu0 %v8655
    %9578 = vmatprep.subr.bf16.mxu0 %v8650
    %9579 = vmatpush2.bf16.msra.mxu0 %v8649
    %9580 = vmatprep.subr.bf16.mxu0 %v8644
    %9581 = vmatpush2.bf16.msra.mxu0 %v8643
    %9582 = vmatprep.subr.bf16.mxu0 %v8638
    %9583 = vmatpush2.bf16.msra.mxu0 %v8637
    %9584 = vmatprep.subr.bf16.mxu0 %v8632
    %9585 = vmatpush2.bf16.msra.mxu0 %v8631
    %9586 = vmatprep.subr.bf16.mxu0 %v8626
    %9587 = vmatpush2.bf16.msra.mxu0 %v8625
    %9588 = vmatprep.subr.bf16.mxu0 %v8620
    %9589 = vmatpush2.bf16.msra.mxu0 %v8619
    %9590 = vmatprep.mubr.bf16.mxu0 %v7410
    %9591 = vmatmul.mubr.bf16.gmra.mxu0 %v7409
    %v9592 = vpop.f32.mrf.mxu0
    %v9593 = vadd.f32 %v9472, %v9592
    %v9594 = vpop.f32.mrf.mxu0
    %v9595 = vadd.f32 %v9474, %v9594
    %v9596 = vpop.f32.mrf.mxu0
    %v9597 = vadd.f32 %v9476, %v9596
    %v9598 = vpop.f32.mrf.mxu0
    %v9599 = vadd.f32 %v9478, %v9598
    %9600 = vmatprep.mubr.bf16.mxu0 %v7416
    %9601 = vmatmul.mubr.bf16.gmra.mxu0 %v7415
    %v9602 = vpop.f32.mrf.mxu0
    %v9603 = vadd.f32 %v9482, %v9602
    %v9604 = vpop.f32.mrf.mxu0
    %v9605 = vadd.f32 %v9484, %v9604
    %v9606 = vpop.f32.mrf.mxu0
    %v9607 = vadd.f32 %v9486, %v9606
    %v9608 = vpop.f32.mrf.mxu0
    %v9609 = vadd.f32 %v9488, %v9608
    %9610 = vmatprep.mubr.bf16.mxu0 %v7422
    %9611 = vmatmul.mubr.bf16.gmra.mxu0 %v7421
    %v9612 = vpop.f32.mrf.mxu0
    %v9613 = vadd.f32 %v9492, %v9612
    %v9614 = vpop.f32.mrf.mxu0
    %v9615 = vadd.f32 %v9494, %v9614
    %v9616 = vpop.f32.mrf.mxu0
    %v9617 = vadd.f32 %v9496, %v9616
    %v9618 = vpop.f32.mrf.mxu0
    %v9619 = vadd.f32 %v9498, %v9618
    %9620 = vmatprep.mubr.bf16.mxu0 %v7428
    %9621 = vmatmul.mubr.bf16.gmra.mxu0 %v7427
    %v9622 = vpop.f32.mrf.mxu0
    %v9623 = vadd.f32 %v9502, %v9622
    %v9624 = vpop.f32.mrf.mxu0
    %v9625 = vadd.f32 %v9504, %v9624
    %v9626 = vpop.f32.mrf.mxu0
    %v9627 = vadd.f32 %v9506, %v9626
    %v9628 = vpop.f32.mrf.mxu0
    %v9629 = vadd.f32 %v9508, %v9628
    %9630 = vmatprep.mubr.bf16.mxu0 %v7434
    %9631 = vmatmul.mubr.bf16.gmra.mxu0 %v7433
    %v9632 = vpop.f32.mrf.mxu0
    %v9633 = vadd.f32 %v9512, %v9632
    %v9634 = vpop.f32.mrf.mxu0
    %v9635 = vadd.f32 %v9514, %v9634
    %v9636 = vpop.f32.mrf.mxu0
    %v9637 = vadd.f32 %v9516, %v9636
    %v9638 = vpop.f32.mrf.mxu0
    %v9639 = vadd.f32 %v9518, %v9638
    %9640 = vmatprep.mubr.bf16.mxu0 %v7440
    %9641 = vmatmul.mubr.bf16.gmra.mxu0 %v7439
    %v9642 = vpop.f32.mrf.mxu0
    %v9643 = vadd.f32 %v9522, %v9642
    %v9644 = vpop.f32.mrf.mxu0
    %v9645 = vadd.f32 %v9524, %v9644
    %v9646 = vpop.f32.mrf.mxu0
    %v9647 = vadd.f32 %v9526, %v9646
    %v9648 = vpop.f32.mrf.mxu0
    %v9649 = vadd.f32 %v9528, %v9648
    %9650 = vmatprep.mubr.bf16.mxu0 %v7446
    %9651 = vmatmul.mubr.bf16.gmra.mxu0 %v7445
    %v9652 = vpop.f32.mrf.mxu0
    %v9653 = vadd.f32 %v9532, %v9652
    %v9654 = vpop.f32.mrf.mxu0
    %v9655 = vadd.f32 %v9534, %v9654
    %v9656 = vpop.f32.mrf.mxu0
    %v9657 = vadd.f32 %v9536, %v9656
    %v9658 = vpop.f32.mrf.mxu0
    %v9659 = vadd.f32 %v9538, %v9658
    %9660 = vmatprep.mubr.bf16.mxu0 %v7452
    %9661 = vmatmul.mubr.bf16.gmra.mxu0 %v7451
    %v9662 = vpop.f32.mrf.mxu0
    %v9663 = vadd.f32 %v9542, %v9662
    %v9664 = vpop.f32.mrf.mxu0
    %v9665 = vadd.f32 %v9544, %v9664
    %v9666 = vpop.f32.mrf.mxu0
    %v9667 = vadd.f32 %v9546, %v9666
    %v9668 = vpop.f32.mrf.mxu0
    %v9669 = vadd.f32 %v9548, %v9668
    %9670 = vmatprep.mubr.bf16.mxu0 %v7458
    %9671 = vmatmul.mubr.bf16.gmra.mxu0 %v7457
    %v9672 = vpop.f32.mrf.mxu0
    %v9673 = vadd.f32 %v9552, %v9672
    %v9674 = vpop.f32.mrf.mxu0
    %v9675 = vadd.f32 %v9554, %v9674
    %v9676 = vpop.f32.mrf.mxu0
    %v9677 = vpop.f32.mrf.mxu0
    %9678 = vdwg.mxu0
    %9679 = vmatprep.subr.bf16.mxu0 %v8424
    %9680 = vmatpush1.bf16.msra.mxu0 %v8423
    %9681 = vmatprep.subr.bf16.mxu0 %v8418
    %9682 = vmatpush1.bf16.msra.mxu0 %v8417
    %9683 = vmatprep.subr.bf16.mxu0 %v8412
    %9684 = vmatpush1.bf16.msra.mxu0 %v8411
    %9685 = vmatprep.subr.bf16.mxu0 %v8406
    %9686 = vmatpush1.bf16.msra.mxu0 %v8405
    %9687 = vmatprep.subr.bf16.mxu0 %v8400
    %9688 = vmatpush1.bf16.msra.mxu0 %v8399
    %9689 = vmatprep.subr.bf16.mxu0 %v8394
    %9690 = vmatpush1.bf16.msra.mxu0 %v8393
    %9691 = vmatprep.subr.bf16.mxu0 %v8388
    %9692 = vmatpush1.bf16.msra.mxu0 %v8387
    %9693 = vmatprep.subr.bf16.mxu0 %v8382
    %9694 = vmatpush1.bf16.msra.mxu0 %v8381
    %9695 = vmatprep.subr.bf16.mxu0 %v8472
    %9696 = vmatpush2.bf16.msra.mxu0 %v8471
    %9697 = vmatprep.subr.bf16.mxu0 %v8466
    %9698 = vmatpush2.bf16.msra.mxu0 %v8465
    %9699 = vmatprep.subr.bf16.mxu0 %v8460
    %9700 = vmatpush2.bf16.msra.mxu0 %v8459
    %9701 = vmatprep.subr.bf16.mxu0 %v8454
    %9702 = vmatpush2.bf16.msra.mxu0 %v8453
    %9703 = vmatprep.subr.bf16.mxu0 %v8448
    %9704 = vmatpush2.bf16.msra.mxu0 %v8447
    %9705 = vmatprep.subr.bf16.mxu0 %v8442
    %9706 = vmatpush2.bf16.msra.mxu0 %v8441
    %9707 = vmatprep.subr.bf16.mxu0 %v8436
    %9708 = vmatpush2.bf16.msra.mxu0 %v8435
    %9709 = vmatprep.subr.bf16.mxu0 %v8430
    %9710 = vmatpush2.bf16.msra.mxu0 %v8429
    %9711 = vmatprep.mubr.bf16.mxu0 %v7406
    %9712 = vmatmul.mubr.bf16.gmra.mxu0 %v7405
    %v9713 = vpop.f32.mrf.mxu0
    %v9714 = vadd.f32 %v7508, %v9713
    %v9715 = vpop.f32.mrf.mxu0
    %v9716 = vadd.f32 %v7512, %v9715
    %v9717 = vpop.f32.mrf.mxu0
    %v9718 = vadd.f32 %v7508, %v9717
    %v9719 = vpop.f32.mrf.mxu0
    %v9720 = vadd.f32 %v7512, %v9719
    %9721 = vmatprep.mubr.bf16.mxu0 %v7412
    %9722 = vmatmul.mubr.bf16.gmra.mxu0 %v7411
    %v9723 = vpop.f32.mrf.mxu0
    %v9724 = vadd.f32 %v7508, %v9723
    %v9725 = vpop.f32.mrf.mxu0
    %v9726 = vadd.f32 %v7512, %v9725
    %v9727 = vpop.f32.mrf.mxu0
    %v9728 = vadd.f32 %v7508, %v9727
    %v9729 = vpop.f32.mrf.mxu0
    %v9730 = vadd.f32 %v7512, %v9729
    %9731 = vmatprep.mubr.bf16.mxu0 %v7418
    %9732 = vmatmul.mubr.bf16.gmra.mxu0 %v7417
    %v9733 = vpop.f32.mrf.mxu0
    %v9734 = vadd.f32 %v7508, %v9733
    %v9735 = vpop.f32.mrf.mxu0
    %v9736 = vadd.f32 %v7512, %v9735
    %v9737 = vpop.f32.mrf.mxu0
    %v9738 = vadd.f32 %v7508, %v9737
    %v9739 = vpop.f32.mrf.mxu0
    %v9740 = vadd.f32 %v7512, %v9739
    %9741 = vmatprep.mubr.bf16.mxu0 %v7424
    %9742 = vmatmul.mubr.bf16.gmra.mxu0 %v7423
    %v9743 = vpop.f32.mrf.mxu0
    %v9744 = vadd.f32 %v7508, %v9743
    %v9745 = vpop.f32.mrf.mxu0
    %v9746 = vadd.f32 %v7512, %v9745
    %v9747 = vpop.f32.mrf.mxu0
    %v9748 = vadd.f32 %v7508, %v9747
    %v9749 = vpop.f32.mrf.mxu0
    %v9750 = vadd.f32 %v7512, %v9749
    %9751 = vmatprep.mubr.bf16.mxu0 %v7430
    %9752 = vmatmul.mubr.bf16.gmra.mxu0 %v7429
    %v9753 = vpop.f32.mrf.mxu0
    %v9754 = vadd.f32 %v7508, %v9753
    %v9755 = vpop.f32.mrf.mxu0
    %v9756 = vadd.f32 %v7512, %v9755
    %v9757 = vpop.f32.mrf.mxu0
    %v9758 = vadd.f32 %v7508, %v9757
    %v9759 = vpop.f32.mrf.mxu0
    %v9760 = vadd.f32 %v7512, %v9759
    %9761 = vmatprep.mubr.bf16.mxu0 %v7436
    %9762 = vmatmul.mubr.bf16.gmra.mxu0 %v7435
    %v9763 = vpop.f32.mrf.mxu0
    %v9764 = vadd.f32 %v7508, %v9763
    %v9765 = vpop.f32.mrf.mxu0
    %v9766 = vadd.f32 %v7512, %v9765
    %v9767 = vpop.f32.mrf.mxu0
    %v9768 = vadd.f32 %v7508, %v9767
    %v9769 = vpop.f32.mrf.mxu0
    %v9770 = vadd.f32 %v7512, %v9769
    %9771 = vmatprep.mubr.bf16.mxu0 %v7442
    %9772 = vmatmul.mubr.bf16.gmra.mxu0 %v7441
    %v9773 = vpop.f32.mrf.mxu0
    %v9774 = vadd.f32 %v7508, %v9773
    %v9775 = vpop.f32.mrf.mxu0
    %v9776 = vadd.f32 %v7512, %v9775
    %v9777 = vpop.f32.mrf.mxu0
    %v9778 = vadd.f32 %v7508, %v9777
    %v9779 = vpop.f32.mrf.mxu0
    %v9780 = vadd.f32 %v7512, %v9779
    %9781 = vmatprep.mubr.bf16.mxu0 %v7448
    %9782 = vmatmul.mubr.bf16.gmra.mxu0 %v7447
    %v9783 = vpop.f32.mrf.mxu0
    %v9784 = vadd.f32 %v7508, %v9783
    %v9785 = vpop.f32.mrf.mxu0
    %v9786 = vadd.f32 %v7512, %v9785
    %v9787 = vpop.f32.mrf.mxu0
    %v9788 = vadd.f32 %v7508, %v9787
    %v9789 = vpop.f32.mrf.mxu0
    %v9790 = vadd.f32 %v7512, %v9789
    %9791 = vmatprep.mubr.bf16.mxu0 %v7454
    %9792 = vmatmul.mubr.bf16.gmra.mxu0 %v7453
    %v9793 = vpop.f32.mrf.mxu0
    %v9794 = vadd.f32 %v7508, %v9793
    %v9795 = vpop.f32.mrf.mxu0
    %v9796 = vadd.f32 %v7512, %v9795
    %v9797 = vpop.f32.mrf.mxu0
    %v9798 = vpop.f32.mrf.mxu0
    %9799 = vdwg.mxu0
    %9800 = vmatprep.subr.bf16.mxu0 %v8520
    %9801 = vmatpush1.bf16.msra.mxu0 %v8519
    %9802 = vmatprep.subr.bf16.mxu0 %v8514
    %9803 = vmatpush1.bf16.msra.mxu0 %v8513
    %9804 = vmatprep.subr.bf16.mxu0 %v8508
    %9805 = vmatpush1.bf16.msra.mxu0 %v8507
    %9806 = vmatprep.subr.bf16.mxu0 %v8502
    %9807 = vmatpush1.bf16.msra.mxu0 %v8501
    %9808 = vmatprep.subr.bf16.mxu0 %v8496
    %9809 = vmatpush1.bf16.msra.mxu0 %v8495
    %9810 = vmatprep.subr.bf16.mxu0 %v8490
    %9811 = vmatpush1.bf16.msra.mxu0 %v8489
    %9812 = vmatprep.subr.bf16.mxu0 %v8484
    %9813 = vmatpush1.bf16.msra.mxu0 %v8483
    %9814 = vmatprep.subr.bf16.mxu0 %v8478
    %9815 = vmatpush1.bf16.msra.mxu0 %v8477
    %9816 = vmatprep.subr.bf16.mxu0 %v8568
    %9817 = vmatpush2.bf16.msra.mxu0 %v8567
    %9818 = vmatprep.subr.bf16.mxu0 %v8562
    %9819 = vmatpush2.bf16.msra.mxu0 %v8561
    %9820 = vmatprep.subr.bf16.mxu0 %v8556
    %9821 = vmatpush2.bf16.msra.mxu0 %v8555
    %9822 = vmatprep.subr.bf16.mxu0 %v8550
    %9823 = vmatpush2.bf16.msra.mxu0 %v8549
    %9824 = vmatprep.subr.bf16.mxu0 %v8544
    %9825 = vmatpush2.bf16.msra.mxu0 %v8543
    %9826 = vmatprep.subr.bf16.mxu0 %v8538
    %9827 = vmatpush2.bf16.msra.mxu0 %v8537
    %9828 = vmatprep.subr.bf16.mxu0 %v8532
    %9829 = vmatpush2.bf16.msra.mxu0 %v8531
    %9830 = vmatprep.subr.bf16.mxu0 %v8526
    %9831 = vmatpush2.bf16.msra.mxu0 %v8525
    %9832 = vmatprep.mubr.bf16.mxu0 %v7408
    %9833 = vmatmul.mubr.bf16.gmra.mxu0 %v7407
    %v9834 = vpop.f32.mrf.mxu0
    %v9835 = vadd.f32 %v9714, %v9834
    %v9836 = vpop.f32.mrf.mxu0
    %v9837 = vadd.f32 %v9716, %v9836
    %v9838 = vpop.f32.mrf.mxu0
    %v9839 = vadd.f32 %v9718, %v9838
    %v9840 = vpop.f32.mrf.mxu0
    %v9841 = vadd.f32 %v9720, %v9840
    %9842 = vmatprep.mubr.bf16.mxu0 %v7414
    %9843 = vmatmul.mubr.bf16.gmra.mxu0 %v7413
    %v9844 = vpop.f32.mrf.mxu0
    %v9845 = vadd.f32 %v9724, %v9844
    %v9846 = vpop.f32.mrf.mxu0
    %v9847 = vadd.f32 %v9726, %v9846
    %v9848 = vpop.f32.mrf.mxu0
    %v9849 = vadd.f32 %v9728, %v9848
    %v9850 = vpop.f32.mrf.mxu0
    %v9851 = vadd.f32 %v9730, %v9850
    %9852 = vmatprep.mubr.bf16.mxu0 %v7420
    %9853 = vmatmul.mubr.bf16.gmra.mxu0 %v7419
    %v9854 = vpop.f32.mrf.mxu0
    %v9855 = vadd.f32 %v9734, %v9854
    %v9856 = vpop.f32.mrf.mxu0
    %v9857 = vadd.f32 %v9736, %v9856
    %v9858 = vpop.f32.mrf.mxu0
    %v9859 = vadd.f32 %v9738, %v9858
    %v9860 = vpop.f32.mrf.mxu0
    %v9861 = vadd.f32 %v9740, %v9860
    %9862 = vmatprep.mubr.bf16.mxu0 %v7426
    %9863 = vmatmul.mubr.bf16.gmra.mxu0 %v7425
    %v9864 = vpop.f32.mrf.mxu0
    %v9865 = vadd.f32 %v9744, %v9864
    %v9866 = vpop.f32.mrf.mxu0
    %v9867 = vadd.f32 %v9746, %v9866
    %v9868 = vpop.f32.mrf.mxu0
    %v9869 = vadd.f32 %v9748, %v9868
    %v9870 = vpop.f32.mrf.mxu0
    %v9871 = vadd.f32 %v9750, %v9870
    %9872 = vmatprep.mubr.bf16.mxu0 %v7432
    %9873 = vmatmul.mubr.bf16.gmra.mxu0 %v7431
    %v9874 = vpop.f32.mrf.mxu0
    %v9875 = vadd.f32 %v9754, %v9874
    %v9876 = vpop.f32.mrf.mxu0
    %v9877 = vadd.f32 %v9756, %v9876
    %v9878 = vpop.f32.mrf.mxu0
    %v9879 = vadd.f32 %v9758, %v9878
    %v9880 = vpop.f32.mrf.mxu0
    %v9881 = vadd.f32 %v9760, %v9880
    %9882 = vmatprep.mubr.bf16.mxu0 %v7438
    %9883 = vmatmul.mubr.bf16.gmra.mxu0 %v7437
    %v9884 = vpop.f32.mrf.mxu0
    %v9885 = vadd.f32 %v9764, %v9884
    %v9886 = vpop.f32.mrf.mxu0
    %v9887 = vadd.f32 %v9766, %v9886
    %v9888 = vpop.f32.mrf.mxu0
    %v9889 = vadd.f32 %v9768, %v9888
    %v9890 = vpop.f32.mrf.mxu0
    %v9891 = vadd.f32 %v9770, %v9890
    %9892 = vmatprep.mubr.bf16.mxu0 %v7444
    %9893 = vmatmul.mubr.bf16.gmra.mxu0 %v7443
    %v9894 = vpop.f32.mrf.mxu0
    %v9895 = vadd.f32 %v9774, %v9894
    %v9896 = vpop.f32.mrf.mxu0
    %v9897 = vadd.f32 %v9776, %v9896
    %v9898 = vpop.f32.mrf.mxu0
    %v9899 = vadd.f32 %v9778, %v9898
    %v9900 = vpop.f32.mrf.mxu0
    %v9901 = vadd.f32 %v9780, %v9900
    %9902 = vmatprep.mubr.bf16.mxu0 %v7450
    %9903 = vmatmul.mubr.bf16.gmra.mxu0 %v7449
    %v9904 = vpop.f32.mrf.mxu0
    %v9905 = vadd.f32 %v9784, %v9904
    %v9906 = vpop.f32.mrf.mxu0
    %v9907 = vadd.f32 %v9786, %v9906
    %v9908 = vpop.f32.mrf.mxu0
    %v9909 = vadd.f32 %v9788, %v9908
    %v9910 = vpop.f32.mrf.mxu0
    %v9911 = vadd.f32 %v9790, %v9910
    %9912 = vmatprep.mubr.bf16.mxu0 %v7456
    %9913 = vmatmul.mubr.bf16.gmra.mxu0 %v7455
    %v9914 = vpop.f32.mrf.mxu0
    %v9915 = vadd.f32 %v9794, %v9914
    %v9916 = vpop.f32.mrf.mxu0
    %v9917 = vadd.f32 %v9796, %v9916
    %v9918 = vpop.f32.mrf.mxu0
    %v9919 = vpop.f32.mrf.mxu0
    %9920 = vdwg.mxu0
    %9921 = vmatprep.subr.bf16.mxu0 %v8616
    %9922 = vmatpush1.bf16.msra.mxu0 %v8615
    %9923 = vmatprep.subr.bf16.mxu0 %v8610
    %9924 = vmatpush1.bf16.msra.mxu0 %v8609
    %9925 = vmatprep.subr.bf16.mxu0 %v8604
    %9926 = vmatpush1.bf16.msra.mxu0 %v8603
    %9927 = vmatprep.subr.bf16.mxu0 %v8598
    %9928 = vmatpush1.bf16.msra.mxu0 %v8597
    %9929 = vmatprep.subr.bf16.mxu0 %v8592
    %9930 = vmatpush1.bf16.msra.mxu0 %v8591
    %9931 = vmatprep.subr.bf16.mxu0 %v8586
    %9932 = vmatpush1.bf16.msra.mxu0 %v8585
    %9933 = vmatprep.subr.bf16.mxu0 %v8580
    %9934 = vmatpush1.bf16.msra.mxu0 %v8579
    %9935 = vmatprep.subr.bf16.mxu0 %v8574
    %9936 = vmatpush1.bf16.msra.mxu0 %v8573
    %9937 = vmatprep.subr.bf16.mxu0 %v8664
    %9938 = vmatpush2.bf16.msra.mxu0 %v8663
    %9939 = vmatprep.subr.bf16.mxu0 %v8658
    %9940 = vmatpush2.bf16.msra.mxu0 %v8657
    %9941 = vmatprep.subr.bf16.mxu0 %v8652
    %9942 = vmatpush2.bf16.msra.mxu0 %v8651
    %9943 = vmatprep.subr.bf16.mxu0 %v8646
    %9944 = vmatpush2.bf16.msra.mxu0 %v8645
    %9945 = vmatprep.subr.bf16.mxu0 %v8640
    %9946 = vmatpush2.bf16.msra.mxu0 %v8639
    %9947 = vmatprep.subr.bf16.mxu0 %v8634
    %9948 = vmatpush2.bf16.msra.mxu0 %v8633
    %9949 = vmatprep.subr.bf16.mxu0 %v8628
    %9950 = vmatpush2.bf16.msra.mxu0 %v8627
    %9951 = vmatprep.subr.bf16.mxu0 %v8622
    %9952 = vmatpush2.bf16.msra.mxu0 %v8621
    %9953 = vmatprep.mubr.bf16.mxu0 %v7410
    %9954 = vmatmul.mubr.bf16.gmra.mxu0 %v7409
    %v9955 = vpop.f32.mrf.mxu0
    %v9956 = vadd.f32 %v9835, %v9955
    %v9957 = vpop.f32.mrf.mxu0
    %v9958 = vadd.f32 %v9837, %v9957
    %v9959 = vpop.f32.mrf.mxu0
    %v9960 = vadd.f32 %v9839, %v9959
    %v9961 = vpop.f32.mrf.mxu0
    %v9962 = vadd.f32 %v9841, %v9961
    %9963 = vmatprep.mubr.bf16.mxu0 %v7416
    %9964 = vmatmul.mubr.bf16.gmra.mxu0 %v7415
    %v9965 = vpop.f32.mrf.mxu0
    %v9966 = vadd.f32 %v9845, %v9965
    %v9967 = vpop.f32.mrf.mxu0
    %v9968 = vadd.f32 %v9847, %v9967
    %v9969 = vpop.f32.mrf.mxu0
    %v9970 = vadd.f32 %v9849, %v9969
    %v9971 = vpop.f32.mrf.mxu0
    %v9972 = vadd.f32 %v9851, %v9971
    %9973 = vmatprep.mubr.bf16.mxu0 %v7422
    %9974 = vmatmul.mubr.bf16.gmra.mxu0 %v7421
    %v9975 = vpop.f32.mrf.mxu0
    %v9976 = vadd.f32 %v9855, %v9975
    %v9977 = vpop.f32.mrf.mxu0
    %v9978 = vadd.f32 %v9857, %v9977
    %v9979 = vpop.f32.mrf.mxu0
    %v9980 = vadd.f32 %v9859, %v9979
    %v9981 = vpop.f32.mrf.mxu0
    %v9982 = vadd.f32 %v9861, %v9981
    %9983 = vmatprep.mubr.bf16.mxu0 %v7428
    %9984 = vmatmul.mubr.bf16.gmra.mxu0 %v7427
    %v9985 = vpop.f32.mrf.mxu0
    %v9986 = vadd.f32 %v9865, %v9985
    %v9987 = vpop.f32.mrf.mxu0
    %v9988 = vadd.f32 %v9867, %v9987
    %v9989 = vpop.f32.mrf.mxu0
    %v9990 = vadd.f32 %v9869, %v9989
    %v9991 = vpop.f32.mrf.mxu0
    %v9992 = vadd.f32 %v9871, %v9991
    %9993 = vmatprep.mubr.bf16.mxu0 %v7434
    %9994 = vmatmul.mubr.bf16.gmra.mxu0 %v7433
    %v9995 = vpop.f32.mrf.mxu0
    %v9996 = vadd.f32 %v9875, %v9995
    %v9997 = vpop.f32.mrf.mxu0
    %v9998 = vadd.f32 %v9877, %v9997
    %v9999 = vpop.f32.mrf.mxu0
    %v10000 = vadd.f32 %v9879, %v9999
    %v10001 = vpop.f32.mrf.mxu0
    %v10002 = vadd.f32 %v9881, %v10001
    %10003 = vmatprep.mubr.bf16.mxu0 %v7440
    %10004 = vmatmul.mubr.bf16.gmra.mxu0 %v7439
    %v10005 = vpop.f32.mrf.mxu0
    %v10006 = vadd.f32 %v9885, %v10005
    %v10007 = vpop.f32.mrf.mxu0
    %v10008 = vadd.f32 %v9887, %v10007
    %v10009 = vpop.f32.mrf.mxu0
    %v10010 = vadd.f32 %v9889, %v10009
    %v10011 = vpop.f32.mrf.mxu0
    %v10012 = vadd.f32 %v9891, %v10011
    %10013 = vmatprep.mubr.bf16.mxu0 %v7446
    %10014 = vmatmul.mubr.bf16.gmra.mxu0 %v7445
    %v10015 = vpop.f32.mrf.mxu0
    %v10016 = vadd.f32 %v9895, %v10015
    %v10017 = vpop.f32.mrf.mxu0
    %v10018 = vadd.f32 %v9897, %v10017
    %v10019 = vpop.f32.mrf.mxu0
    %v10020 = vadd.f32 %v9899, %v10019
    %v10021 = vpop.f32.mrf.mxu0
    %v10022 = vadd.f32 %v9901, %v10021
    %10023 = vmatprep.mubr.bf16.mxu0 %v7452
    %10024 = vmatmul.mubr.bf16.gmra.mxu0 %v7451
    %v10025 = vpop.f32.mrf.mxu0
    %v10026 = vadd.f32 %v9905, %v10025
    %v10027 = vpop.f32.mrf.mxu0
    %v10028 = vadd.f32 %v9907, %v10027
    %v10029 = vpop.f32.mrf.mxu0
    %v10030 = vadd.f32 %v9909, %v10029
    %v10031 = vpop.f32.mrf.mxu0
    %v10032 = vadd.f32 %v9911, %v10031
    %10033 = vmatprep.mubr.bf16.mxu0 %v7458
    %10034 = vmatmul.mubr.bf16.gmra.mxu0 %v7457
    %v10035 = vpop.f32.mrf.mxu0
    %v10036 = vadd.f32 %v9915, %v10035
    %v10037 = vpop.f32.mrf.mxu0
    %v10038 = vadd.f32 %v9917, %v10037
    %v10039 = vpop.f32.mrf.mxu0
    %v10040 = vpop.f32.mrf.mxu0
    %10041 = vdwg.mxu0
    %10042 = vst [vmem:[%s10] sm:$0xff] %v9230
    %10043 = vst [vmem:[%s10 + $0x8] sm:$0xff] %v9232
    %10044 = vst [vmem:[%s10 + $0x10] sm:$0xff] %v9593
    %10045 = vst [vmem:[%s10 + $0x18] sm:$0xff] %v9595
    %10046 = vst [vmem:[%s10 + $0x20] sm:$0xff] %v9956
    %10047 = vst [vmem:[%s10 + $0x28] sm:$0xff] %v9958
    %10048 = vst [vmem:[%s10 + $0x30] sm:$0xff] %v9234
    %10049 = vst [vmem:[%s10 + $0x38] sm:$0xff] %v9236
    %10050 = vst [vmem:[%s10 + $0x40] sm:$0xff] %v9597
    %10051 = vst [vmem:[%s10 + $0x48] sm:$0xff] %v9599
    %10052 = vst [vmem:[%s10 + $0x50] sm:$0xff] %v9960
    %10053 = vst [vmem:[%s10 + $0x58] sm:$0xff] %v9962
    %10054 = vst [vmem:[%s10 + $0x60] sm:$0xff] %v9240
    %10055 = vst [vmem:[%s10 + $0x68] sm:$0xff] %v9242
    %10056 = vst [vmem:[%s10 + $0x70] sm:$0xff] %v9603
    %10057 = vst [vmem:[%s10 + $0x78] sm:$0xff] %v9605
    %10058 = vst [vmem:[%s10 + $0x80] sm:$0xff] %v9966
    %10059 = vst [vmem:[%s10 + $0x88] sm:$0xff] %v9968
    %10060 = vst [vmem:[%s10 + $0x90] sm:$0xff] %v9244
    %10061 = vst [vmem:[%s10 + $0x98] sm:$0xff] %v9246
    %10062 = vst [vmem:[%s10 + $0xa0] sm:$0xff] %v9607
    %10063 = vst [vmem:[%s10 + $0xa8] sm:$0xff] %v9609
    %10064 = vst [vmem:[%s10 + $0xb0] sm:$0xff] %v9970
    %10065 = vst [vmem:[%s10 + $0xb8] sm:$0xff] %v9972
    %10066 = vst [vmem:[%s10 + $0xc0] sm:$0xff] %v9250
    %10067 = vst [vmem:[%s10 + $0xc8] sm:$0xff] %v9252
    %10068 = vst [vmem:[%s10 + $0xd0] sm:$0xff] %v9613
    %10069 = vst [vmem:[%s10 + $0xd8] sm:$0xff] %v9615
    %10070 = vst [vmem:[%s10 + $0xe0] sm:$0xff] %v9976
    %10071 = vst [vmem:[%s10 + $0xe8] sm:$0xff] %v9978
    %10072 = vst [vmem:[%s10 + $0xf0] sm:$0xff] %v9254
    %10073 = vst [vmem:[%s10 + $0xf8] sm:$0xff] %v9256
    %10074 = vst [vmem:[%s10 + $0x100] sm:$0xff] %v9617
    %10075 = vst [vmem:[%s10 + $0x108] sm:$0xff] %v9619
    %10076 = vst [vmem:[%s10 + $0x110] sm:$0xff] %v9980
    %10077 = vst [vmem:[%s10 + $0x118] sm:$0xff] %v9982
    %10078 = vst [vmem:[%s10 + $0x120] sm:$0xff] %v9260
    %10079 = vst [vmem:[%s10 + $0x128] sm:$0xff] %v9262
    %10080 = vst [vmem:[%s10 + $0x130] sm:$0xff] %v9623
    %10081 = vst [vmem:[%s10 + $0x138] sm:$0xff] %v9625
    %10082 = vst [vmem:[%s10 + $0x140] sm:$0xff] %v9986
    %10083 = vst [vmem:[%s10 + $0x148] sm:$0xff] %v9988
    %10084 = vst [vmem:[%s10 + $0x150] sm:$0xff] %v9264
    %10085 = vst [vmem:[%s10 + $0x158] sm:$0xff] %v9266
    %10086 = vst [vmem:[%s10 + $0x160] sm:$0xff] %v9627
    %10087 = vst [vmem:[%s10 + $0x168] sm:$0xff] %v9629
    %10088 = vst [vmem:[%s10 + $0x170] sm:$0xff] %v9990
    %10089 = vst [vmem:[%s10 + $0x178] sm:$0xff] %v9992
    %10090 = vst [vmem:[%s10 + $0x180] sm:$0xff] %v9270
    %10091 = vst [vmem:[%s10 + $0x188] sm:$0xff] %v9272
    %10092 = vst [vmem:[%s10 + $0x190] sm:$0xff] %v9633
    %10093 = vst [vmem:[%s10 + $0x198] sm:$0xff] %v9635
    %10094 = vst [vmem:[%s10 + $0x1a0] sm:$0xff] %v9996
    %10095 = vst [vmem:[%s10 + $0x1a8] sm:$0xff] %v9998
    %10096 = vst [vmem:[%s10 + $0x1b0] sm:$0xff] %v9274
    %10097 = vst [vmem:[%s10 + $0x1b8] sm:$0xff] %v9276
    %10098 = vst [vmem:[%s10 + $0x1c0] sm:$0xff] %v9637
    %10099 = vst [vmem:[%s10 + $0x1c8] sm:$0xff] %v9639
    %10100 = vst [vmem:[%s10 + $0x1d0] sm:$0xff] %v10000
    %10101 = vst [vmem:[%s10 + $0x1d8] sm:$0xff] %v10002
    %10102 = vst [vmem:[%s10 + $0x1e0] sm:$0xff] %v9280
    %10103 = vst [vmem:[%s10 + $0x1e8] sm:$0xff] %v9282
    %10104 = vst [vmem:[%s10 + $0x1f0] sm:$0xff] %v9643
    %10105 = vst [vmem:[%s10 + $0x1f8] sm:$0xff] %v9645
    %10106 = vst [vmem:[%s10 + $0x200] sm:$0xff] %v10006
    %10107 = vst [vmem:[%s10 + $0x208] sm:$0xff] %v10008
    %10108 = vst [vmem:[%s10 + $0x210] sm:$0xff] %v9284
    %10109 = vst [vmem:[%s10 + $0x218] sm:$0xff] %v9286
    %10110 = vst [vmem:[%s10 + $0x220] sm:$0xff] %v9647
    %10111 = vst [vmem:[%s10 + $0x228] sm:$0xff] %v9649
    %10112 = vst [vmem:[%s10 + $0x230] sm:$0xff] %v10010
    %10113 = vst [vmem:[%s10 + $0x238] sm:$0xff] %v10012
    %10114 = vst [vmem:[%s10 + $0x240] sm:$0xff] %v9290
    %10115 = vst [vmem:[%s10 + $0x248] sm:$0xff] %v9292
    %10116 = vst [vmem:[%s10 + $0x250] sm:$0xff] %v9653
    %10117 = vst [vmem:[%s10 + $0x258] sm:$0xff] %v9655
    %10118 = vst [vmem:[%s10 + $0x260] sm:$0xff] %v10016
    %10119 = vst [vmem:[%s10 + $0x268] sm:$0xff] %v10018
    %10120 = vst [vmem:[%s10 + $0x270] sm:$0xff] %v9294
    %10121 = vst [vmem:[%s10 + $0x278] sm:$0xff] %v9296
    %10122 = vst [vmem:[%s10 + $0x280] sm:$0xff] %v9657
    %10123 = vst [vmem:[%s10 + $0x288] sm:$0xff] %v9659
    %10124 = vst [vmem:[%s10 + $0x290] sm:$0xff] %v10020
    %10125 = vst [vmem:[%s10 + $0x298] sm:$0xff] %v10022
    %10126 = vst [vmem:[%s10 + $0x2a0] sm:$0xff] %v9300
    %10127 = vst [vmem:[%s10 + $0x2a8] sm:$0xff] %v9302
    %10128 = vst [vmem:[%s10 + $0x2b0] sm:$0xff] %v9663
    %10129 = vst [vmem:[%s10 + $0x2b8] sm:$0xff] %v9665
    %10130 = vst [vmem:[%s10 + $0x2c0] sm:$0xff] %v10026
    %10131 = vst [vmem:[%s10 + $0x2c8] sm:$0xff] %v10028
    %10132 = vst [vmem:[%s10 + $0x2d0] sm:$0xff] %v9304
    %10133 = vst [vmem:[%s10 + $0x2d8] sm:$0xff] %v9306
    %10134 = vst [vmem:[%s10 + $0x2e0] sm:$0xff] %v9667
    %10135 = vst [vmem:[%s10 + $0x2e8] sm:$0xff] %v9669
    %10136 = vst [vmem:[%s10 + $0x2f0] sm:$0xff] %v10030
    %10137 = vst [vmem:[%s10 + $0x2f8] sm:$0xff] %v10032
    %10138 = vst [vmem:[%s10 + $0x300] sm:$0xff] %v9310
    %10139 = vst [vmem:[%s10 + $0x308] sm:$0xff] %v9312
    %10140 = vst [vmem:[%s10 + $0x310] sm:$0xff] %v9673
    %10141 = vst [vmem:[%s10 + $0x318] sm:$0xff] %v9675
    %10142 = vst [vmem:[%s10 + $0x320] sm:$0xff] %v10036
    %10143 = vst [vmem:[%s10 + $0x328] sm:$0xff] %v10038
    %v10144 = vld [vmem:[%s2] sm:$0xff]
    %v10145 = vlaneseq
    %v10146 = vand.u32 %v10145, 127
    %v10147 = vadd.s32 %v10146, 128
    %v10148 = vlaneseq
    %v10149 = vshrl.u32 %v10148, 7
    %v10150 = vmul.u32 %v10149, 17
    %vm10151 = vcmp.eq.s32.totalorder %v10146, %v10150
    %vm10152 = vcmp.eq.s32.totalorder %v10147, %v10150
    %v10153 = vsel %vm10151, 1, 0
    %v10154 = vsel %vm10152, 1, 0
    %v10155 = vcvt.s32.f32 %v10153
    %v10156 = vcvt.s32.f32 %v10154
    %10157 = vst [vmem:[#allocation2] sm:$0xff] %v10155
    %vm10158 = vcmask 64512
    %10159 = vst.msk [vmem:[#allocation2 + $0x8] sm:$0xff] %vm10158, %v10156
    %10160 = vmax.xlane.f32.xlu0 %v10144
    %v10161 = vpop.xlane.xlu0 %10160
    %vm10162 = vcmp.eq.f32.partialorder %v10144, %v10161
    %v10163 = vsel %vm10162, %v10146, 128
    %v10164 = vand.u32 %v10163, 65535
    %v10165 = vshra.s32 %v10163, 16
    %v10166 = vcvt.s32.f32 %v10164
    %v10167 = vcvt.s32.f32 %v10165
    %10168 = vmin.xlane.f32.xlu0 %v10167
    %v10169 = vpop.xlane.xlu0 %10168
    %vm10170 = vcmp.eq.f32.partialorder %v10167, %v10169
    %v10171 = vsel %vm10170, %v10166, inf
    %10172 = vmin.xlane.f32.xlu0 %v10171
    %v10173 = vpop.xlane.xlu0 %10172
    %v10174 = vcvt.f32.s32 %v10173
    %v10175 = vcvt.f32.s32 %v10169
    %v10176 = vshll.u32 %v10175, 16
    %v10177 = vadd.s32 %v10176, %v10174
    %v10178 = vadd.s32 %v10150, %v10177
    %v10179 = vadd.s32 %v10178, 1
    %vm10180 = vcmp.eq.s32.totalorder %v10146, %v10179
    %vm10181 = vcmp.eq.s32.totalorder %v10147, %v10179
    %v10182 = vsel %vm10180, 1, 0
    %v10183 = vsel %vm10181, 1, 0
    %v10184 = vcvt.s32.f32 %v10182
    %v10185 = vcvt.s32.f32 %v10183
    %10186 = vst [vmem:[#allocation2 + $0x10] sm:$0xff] %v10184
    %10187 = vst.msk [vmem:[#allocation2 + $0x18] sm:$0xff] %vm10158, %v10185
    %vm10188 = vcmp.eq.s32.totalorder %v10146, %v10177
    %v10189 = vsel %vm10188, -inf, %v10144
    %10190 = vmax.xlane.f32.xlu0 %v10189
    %v10191 = vpop.xlane.xlu0 %10190
    %vm10192 = vcmp.eq.f32.partialorder %v10189, %v10191
    %v10193 = vsel %vm10192, %v10146, 128
    %v10194 = vand.u32 %v10193, 65535
    %v10195 = vshra.s32 %v10193, 16
    %v10196 = vcvt.s32.f32 %v10194
    %v10197 = vcvt.s32.f32 %v10195
    %10198 = vmin.xlane.f32.xlu0 %v10197
    %v10199 = vpop.xlane.xlu0 %10198
    %vm10200 = vcmp.eq.f32.partialorder %v10197, %v10199
    %v10201 = vsel %vm10200, %v10196, inf
    %10202 = vmin.xlane.f32.xlu0 %v10201
    %v10203 = vpop.xlane.xlu0 %10202
    %v10204 = vcvt.f32.s32 %v10203
    %v10205 = vcvt.f32.s32 %v10199
    %v10206 = vshll.u32 %v10205, 16
    %v10207 = vadd.s32 %v10206, %v10204
    %v10208 = vadd.s32 %v10150, %v10207
    %v10209 = vadd.s32 %v10208, 1
    %vm10210 = vcmp.eq.s32.totalorder %v10146, %v10209
    %vm10211 = vcmp.eq.s32.totalorder %v10147, %v10209
    %v10212 = vsel %vm10210, 1, 0
    %v10213 = vsel %vm10211, 1, 0
    %v10214 = vcvt.s32.f32 %v10212
    %v10215 = vcvt.s32.f32 %v10213
    %10216 = vst [vmem:[#allocation2 + $0x20] sm:$0xff] %v10214
    %10217 = vst.msk [vmem:[#allocation2 + $0x28] sm:$0xff] %vm10158, %v10215
    %vm10218 = vcmp.eq.s32.totalorder %v10146, %v10207
    %v10219 = vsel %vm10218, -inf, %v10189
    %10220 = vmax.xlane.f32.xlu0 %v10219
    %v10221 = vpop.xlane.xlu0 %10220
    %vm10222 = vcmp.eq.f32.partialorder %v10219, %v10221
    %v10223 = vsel %vm10222, %v10146, 128
    %v10224 = vand.u32 %v10223, 65535
    %v10225 = vshra.s32 %v10223, 16
    %v10226 = vcvt.s32.f32 %v10224
    %v10227 = vcvt.s32.f32 %v10225
    %10228 = vmin.xlane.f32.xlu0 %v10227
    %v10229 = vpop.xlane.xlu0 %10228
    %vm10230 = vcmp.eq.f32.partialorder %v10227, %v10229
    %v10231 = vsel %vm10230, %v10226, inf
    %10232 = vmin.xlane.f32.xlu0 %v10231
    %v10233 = vpop.xlane.xlu0 %10232
    %v10234 = vcvt.f32.s32 %v10233
    %v10235 = vcvt.f32.s32 %v10229
    %v10236 = vshll.u32 %v10235, 16
    %v10237 = vadd.s32 %v10236, %v10234
    %v10238 = vadd.s32 %v10150, %v10237
    %v10239 = vadd.s32 %v10238, 1
    %vm10240 = vcmp.eq.s32.totalorder %v10146, %v10239
    %vm10241 = vcmp.eq.s32.totalorder %v10147, %v10239
    %v10242 = vsel %vm10240, 1, 0
    %v10243 = vsel %vm10241, 1, 0
    %v10244 = vcvt.s32.f32 %v10242
    %v10245 = vcvt.s32.f32 %v10243
    %10246 = vst [vmem:[#allocation2 + $0x30] sm:$0xff] %v10244
    %10247 = vst.msk [vmem:[#allocation2 + $0x38] sm:$0xff] %vm10158, %v10245
    %vm10248 = vcmp.eq.s32.totalorder %v10146, %v10237
    %v10249 = vsel %vm10248, -inf, %v10219
    %10250 = vmax.xlane.f32.xlu0 %v10249
    %v10251 = vpop.xlane.xlu0 %10250
    %vm10252 = vcmp.eq.f32.partialorder %v10249, %v10251
    %v10253 = vsel %vm10252, %v10146, 128
    %v10254 = vand.u32 %v10253, 65535
    %v10255 = vshra.s32 %v10253, 16
    %v10256 = vcvt.s32.f32 %v10254
    %v10257 = vcvt.s32.f32 %v10255
    %10258 = vmin.xlane.f32.xlu0 %v10257
    %v10259 = vpop.xlane.xlu0 %10258
    %vm10260 = vcmp.eq.f32.partialorder %v10257, %v10259
    %v10261 = vsel %vm10260, %v10256, inf
    %10262 = vmin.xlane.f32.xlu0 %v10261
    %v10263 = vpop.xlane.xlu0 %10262
    %v10264 = vcvt.f32.s32 %v10263
    %v10265 = vcvt.f32.s32 %v10259
    %v10266 = vshll.u32 %v10265, 16
    %v10267 = vadd.s32 %v10266, %v10264
    %v10268 = vadd.s32 %v10150, %v10267
    %v10269 = vadd.s32 %v10268, 1
    %vm10270 = vcmp.eq.s32.totalorder %v10146, %v10269
    %vm10271 = vcmp.eq.s32.totalorder %v10147, %v10269
    %v10272 = vsel %vm10270, 1, 0
    %v10273 = vsel %vm10271, 1, 0
    %v10274 = vcvt.s32.f32 %v10272
    %v10275 = vcvt.s32.f32 %v10273
    %10276 = vst [vmem:[#allocation2 + $0x40] sm:$0xff] %v10274
    %10277 = vst.msk [vmem:[#allocation2 + $0x48] sm:$0xff] %vm10158, %v10275
    %vm10278 = vcmp.eq.s32.totalorder %v10146, %v10267
    %v10279 = vsel %vm10278, -inf, %v10249
    %10280 = vmax.xlane.f32.xlu0 %v10279
    %v10281 = vpop.xlane.xlu0 %10280
    %vm10282 = vcmp.eq.f32.partialorder %v10279, %v10281
    %v10283 = vsel %vm10282, %v10146, 128
    %v10284 = vand.u32 %v10283, 65535
    %v10285 = vshra.s32 %v10283, 16
    %v10286 = vcvt.s32.f32 %v10284
    %v10287 = vcvt.s32.f32 %v10285
    %10288 = vmin.xlane.f32.xlu0 %v10287
    %v10289 = vpop.xlane.xlu0 %10288
    %vm10290 = vcmp.eq.f32.partialorder %v10287, %v10289
    %v10291 = vsel %vm10290, %v10286, inf
    %10292 = vmin.xlane.f32.xlu0 %v10291
    %v10293 = vpop.xlane.xlu0 %10292
    %v10294 = vcvt.f32.s32 %v10293
    %v10295 = vcvt.f32.s32 %v10289
    %v10296 = vshll.u32 %v10295, 16
    %v10297 = vadd.s32 %v10296, %v10294
    %v10298 = vadd.s32 %v10150, %v10297
    %v10299 = vadd.s32 %v10298, 1
    %vm10300 = vcmp.eq.s32.totalorder %v10146, %v10299
    %vm10301 = vcmp.eq.s32.totalorder %v10147, %v10299
    %v10302 = vsel %vm10300, 1, 0
    %v10303 = vsel %vm10301, 1, 0
    %v10304 = vcvt.s32.f32 %v10302
    %v10305 = vcvt.s32.f32 %v10303
    %10306 = vst [vmem:[#allocation2 + $0x50] sm:$0xff] %v10304
    %10307 = vst.msk [vmem:[#allocation2 + $0x58] sm:$0xff] %vm10158, %v10305
    %vm10308 = vcmp.ge.s32.totalorder %v10146, %v10150
    %vm10309 = vcmp.ge.s32.totalorder %v10147, %v10150
    %v10310 = vadd.s32 %v10150, 17
    %vm10311 = vcmp.lt.s32.totalorder %v10146, %v10310
    %vm10312 = vcmp.lt.s32.totalorder %v10147, %v10310
    %vm10313 = vmand %vm10308, %vm10311
    %vm10314 = vmand %vm10309, %vm10312
    %v10315 = vsel %vm10313, 0.05882353, 0.0
    %v10316 = vsel %vm10314, 0.05882353, 0.0
    %10317 = vst [vmem:[#allocation2 + $0x60] sm:$0xff] %v10315
    %10318 = vst.msk [vmem:[#allocation2 + $0x68] sm:$0xff] %vm10158, %v10316
    %v10319 = vld [vmem:[#allocation2] sm:$0xff]
    %v10320 = vld [vmem:[#allocation2 + $0x8] sm:$0xff]
    %v10321 = vld [vmem:[#allocation2 + $0x10] sm:$0xff]
    %v10322 = vld [vmem:[#allocation2 + $0x18] sm:$0xff]
    %v10323 = vld [vmem:[#allocation2 + $0x20] sm:$0xff]
    %v10324 = vld [vmem:[#allocation2 + $0x28] sm:$0xff]
    %v10325 = vld [vmem:[#allocation2 + $0x30] sm:$0xff]
    %v10326 = vld [vmem:[#allocation2 + $0x38] sm:$0xff]
    %v10327 = vld [vmem:[#allocation2 + $0x40] sm:$0xff]
    %v10328 = vld [vmem:[#allocation2 + $0x48] sm:$0xff]
    %v10329 = vld [vmem:[#allocation2 + $0x50] sm:$0xff]
    %v10330 = vld [vmem:[#allocation2 + $0x58] sm:$0xff]
    %v10331 = vld [vmem:[#allocation2 + $0x60] sm:$0xff]
    %v10332 = vld [vmem:[#allocation2 + $0x68] sm:$0xff]
    %v10333 = vld [vmem:[%s10] sm:$0xff]
    %v10334 = vld [vmem:[%s10 + $0x8] sm:$0xff]
    %v10335 = vld [vmem:[%s10 + $0x10] sm:$0xff]
    %v10336 = vld [vmem:[%s10 + $0x18] sm:$0xff]
    %v10337 = vld [vmem:[%s10 + $0x20] sm:$0xff]
    %v10338 = vld [vmem:[%s10 + $0x28] sm:$0xff]
    %v10339 = vld [vmem:[%s10 + $0x30] sm:$0xff]
    %v10340 = vld [vmem:[%s10 + $0x38] sm:$0xff]
    %v10341 = vld [vmem:[%s10 + $0x40] sm:$0xff]
    %v10342 = vld [vmem:[%s10 + $0x48] sm:$0xff]
    %v10343 = vld [vmem:[%s10 + $0x50] sm:$0xff]
    %v10344 = vld [vmem:[%s10 + $0x58] sm:$0xff]
    %v10345 = vld [vmem:[%s10 + $0x60] sm:$0xff]
    %v10346 = vld [vmem:[%s10 + $0x68] sm:$0xff]
    %v10347 = vld [vmem:[%s10 + $0x70] sm:$0xff]
    %v10348 = vld [vmem:[%s10 + $0x78] sm:$0xff]
    %v10349 = vld [vmem:[%s10 + $0x80] sm:$0xff]
    %v10350 = vld [vmem:[%s10 + $0x88] sm:$0xff]
    %v10351 = vld [vmem:[%s10 + $0x90] sm:$0xff]
    %v10352 = vld [vmem:[%s10 + $0x98] sm:$0xff]
    %v10353 = vld [vmem:[%s10 + $0xa0] sm:$0xff]
    %v10354 = vld [vmem:[%s10 + $0xa8] sm:$0xff]
    %v10355 = vld [vmem:[%s10 + $0xb0] sm:$0xff]
    %v10356 = vld [vmem:[%s10 + $0xb8] sm:$0xff]
    %v10357 = vld [vmem:[%s10 + $0xc0] sm:$0xff]
    %v10358 = vld [vmem:[%s10 + $0xc8] sm:$0xff]
    %v10359 = vld [vmem:[%s10 + $0xd0] sm:$0xff]
    %v10360 = vld [vmem:[%s10 + $0xd8] sm:$0xff]
    %v10361 = vld [vmem:[%s10 + $0xe0] sm:$0xff]
    %v10362 = vld [vmem:[%s10 + $0xe8] sm:$0xff]
    %v10363 = vld [vmem:[%s10 + $0xf0] sm:$0xff]
    %v10364 = vld [vmem:[%s10 + $0xf8] sm:$0xff]
    %v10365 = vld [vmem:[%s10 + $0x100] sm:$0xff]
    %v10366 = vld [vmem:[%s10 + $0x108] sm:$0xff]
    %v10367 = vld [vmem:[%s10 + $0x110] sm:$0xff]
    %v10368 = vld [vmem:[%s10 + $0x118] sm:$0xff]
    %v10369 = vld [vmem:[%s10 + $0x120] sm:$0xff]
    %v10370 = vld [vmem:[%s10 + $0x128] sm:$0xff]
    %v10371 = vld [vmem:[%s10 + $0x130] sm:$0xff]
    %v10372 = vld [vmem:[%s10 + $0x138] sm:$0xff]
    %v10373 = vld [vmem:[%s10 + $0x140] sm:$0xff]
    %v10374 = vld [vmem:[%s10 + $0x148] sm:$0xff]
    %v10375 = vld [vmem:[%s10 + $0x150] sm:$0xff]
    %v10376 = vld [vmem:[%s10 + $0x158] sm:$0xff]
    %v10377 = vld [vmem:[%s10 + $0x160] sm:$0xff]
    %v10378 = vld [vmem:[%s10 + $0x168] sm:$0xff]
    %v10379 = vld [vmem:[%s10 + $0x170] sm:$0xff]
    %v10380 = vld [vmem:[%s10 + $0x178] sm:$0xff]
    %v10381 = vld [vmem:[%s10 + $0x180] sm:$0xff]
    %v10382 = vld [vmem:[%s10 + $0x188] sm:$0xff]
    %v10383 = vld [vmem:[%s10 + $0x190] sm:$0xff]
    %v10384 = vld [vmem:[%s10 + $0x198] sm:$0xff]
    %v10385 = vld [vmem:[%s10 + $0x1a0] sm:$0xff]
    %v10386 = vld [vmem:[%s10 + $0x1a8] sm:$0xff]
    %v10387 = vld [vmem:[%s10 + $0x1b0] sm:$0xff]
    %v10388 = vld [vmem:[%s10 + $0x1b8] sm:$0xff]
    %v10389 = vld [vmem:[%s10 + $0x1c0] sm:$0xff]
    %v10390 = vld [vmem:[%s10 + $0x1c8] sm:$0xff]
    %v10391 = vld [vmem:[%s10 + $0x1d0] sm:$0xff]
    %v10392 = vld [vmem:[%s10 + $0x1d8] sm:$0xff]
    %v10393 = vld [vmem:[%s10 + $0x1e0] sm:$0xff]
    %v10394 = vld [vmem:[%s10 + $0x1e8] sm:$0xff]
    %v10395 = vld [vmem:[%s10 + $0x1f0] sm:$0xff]
    %v10396 = vld [vmem:[%s10 + $0x1f8] sm:$0xff]
    %v10397 = vld [vmem:[%s10 + $0x200] sm:$0xff]
    %v10398 = vld [vmem:[%s10 + $0x208] sm:$0xff]
    %v10399 = vld [vmem:[%s10 + $0x210] sm:$0xff]
    %v10400 = vld [vmem:[%s10 + $0x218] sm:$0xff]
    %v10401 = vld [vmem:[%s10 + $0x220] sm:$0xff]
    %v10402 = vld [vmem:[%s10 + $0x228] sm:$0xff]
    %v10403 = vld [vmem:[%s10 + $0x230] sm:$0xff]
    %v10404 = vld [vmem:[%s10 + $0x238] sm:$0xff]
    %v10405 = vld [vmem:[%s10 + $0x240] sm:$0xff]
    %v10406 = vld [vmem:[%s10 + $0x248] sm:$0xff]
    %v10407 = vld [vmem:[%s10 + $0x250] sm:$0xff]
    %v10408 = vld [vmem:[%s10 + $0x258] sm:$0xff]
    %v10409 = vld [vmem:[%s10 + $0x260] sm:$0xff]
    %v10410 = vld [vmem:[%s10 + $0x268] sm:$0xff]
    %v10411 = vld [vmem:[%s10 + $0x270] sm:$0xff]
    %v10412 = vld [vmem:[%s10 + $0x278] sm:$0xff]
    %v10413 = vld [vmem:[%s10 + $0x280] sm:$0xff]
    %v10414 = vld [vmem:[%s10 + $0x288] sm:$0xff]
    %v10415 = vld [vmem:[%s10 + $0x290] sm:$0xff]
    %v10416 = vld [vmem:[%s10 + $0x298] sm:$0xff]
    %v10417 = vld [vmem:[%s10 + $0x2a0] sm:$0xff]
    %v10418 = vld [vmem:[%s10 + $0x2a8] sm:$0xff]
    %v10419 = vld [vmem:[%s10 + $0x2b0] sm:$0xff]
    %v10420 = vld [vmem:[%s10 + $0x2b8] sm:$0xff]
    %v10421 = vld [vmem:[%s10 + $0x2c0] sm:$0xff]
    %v10422 = vld [vmem:[%s10 + $0x2c8] sm:$0xff]
    %v10423 = vld [vmem:[%s10 + $0x2d0] sm:$0xff]
    %v10424 = vld [vmem:[%s10 + $0x2d8] sm:$0xff]
    %v10425 = vld [vmem:[%s10 + $0x2e0] sm:$0xff]
    %v10426 = vld [vmem:[%s10 + $0x2e8] sm:$0xff]
    %v10427 = vld [vmem:[%s10 + $0x2f0] sm:$0xff]
    %v10428 = vld [vmem:[%s10 + $0x2f8] sm:$0xff]
    %v10429 = vld [vmem:[%s10 + $0x300] sm:$0xff]
    %v10430 = vld [vmem:[%s10 + $0x308] sm:$0xff]
    %v10431 = vld [vmem:[%s10 + $0x310] sm:$0xff]
    %v10432 = vld [vmem:[%s10 + $0x318] sm:$0xff]
    %v10433 = vld [vmem:[%s10 + $0x320] sm:$0xff]
    %v10434 = vld [vmem:[%s10 + $0x328] sm:$0xff]
    %v10436 = vsel %vm10158, %v10320, 0
    %v10439 = vsel %vm10158, %v10322, 0
    %v10442 = vsel %vm10158, %v10324, 0
    %v10445 = vsel %vm10158, %v10326, 0
    %v10448 = vsel %vm10158, %v10328, 0
    %v10451 = vsel %vm10158, %v10330, 0
    %v10454 = vsel %vm10158, %v10332, 0
    %10456 = vmatprep.subr.mxu0 %v10424
    %10457 = vmatpush1.msra.mxu0 %v10423
    %10458 = vmatprep.subr.mxu0 %v10418
    %10459 = vmatpush1.msra.mxu0 %v10417
    %10460 = vmatprep.subr.mxu0 %v10412
    %10461 = vmatpush1.msra.mxu0 %v10411
    %10462 = vmatprep.subr.mxu0 %v10406
    %10463 = vmatpush1.msra.mxu0 %v10405
    %10464 = vmatprep.subr.mxu0 %v10400
    %10465 = vmatpush1.msra.mxu0 %v10399
    %10466 = vmatprep.subr.mxu0 %v10394
    %10467 = vmatpush1.msra.mxu0 %v10393
    %10468 = vmatprep.subr.mxu0 %v10388
    %10469 = vmatpush1.msra.mxu0 %v10387
    %10470 = vmatprep.subr.mxu0 %v10382
    %10471 = vmatpush1.msra.mxu0 %v10381
    %10472 = vmatprep.subr.mxu0 %v10376
    %10473 = vmatpush1.msra.mxu0 %v10375
    %10474 = vmatprep.subr.mxu0 %v10370
    %10475 = vmatpush1.msra.mxu0 %v10369
    %10476 = vmatprep.subr.mxu0 %v10364
    %10477 = vmatpush1.msra.mxu0 %v10363
    %10478 = vmatprep.subr.mxu0 %v10358
    %10479 = vmatpush1.msra.mxu0 %v10357
    %10480 = vmatprep.subr.mxu0 %v10352
    %10481 = vmatpush1.msra.mxu0 %v10351
    %10482 = vmatprep.subr.mxu0 %v10346
    %10483 = vmatpush1.msra.mxu0 %v10345
    %10484 = vmatprep.subr.mxu0 %v10340
    %10485 = vmatpush1.msra.mxu0 %v10339
    %10486 = vmatprep.subr.mxu0 %v10334
    %10487 = vmatpush1.msra.mxu0 %v10333
    %10488 = vmatprep.subr.mxu0 0.0
    %10489 = vmatpush2.msra.mxu0 0.0
    %10490 = vmatprep.subr.mxu0 0.0
    %10491 = vmatpush2.msra.mxu0 0.0
    %10492 = vmatprep.subr.mxu0 0.0
    %10493 = vmatpush2.msra.mxu0 0.0
    %10494 = vmatprep.subr.mxu0 0.0
    %10495 = vmatpush2.msra.mxu0 0.0
    %10496 = vmatprep.subr.mxu0 0.0
    %10497 = vmatpush2.msra.mxu0 0.0
    %10498 = vmatprep.subr.mxu0 0.0
    %10499 = vmatpush2.msra.mxu0 0.0
    %10500 = vmatprep.subr.mxu0 0.0
    %10501 = vmatpush2.msra.mxu0 0.0
    %10502 = vmatprep.subr.mxu0 0.0
    %10503 = vmatpush2.msra.mxu0 0.0
    %10504 = vmatprep.subr.mxu0 0.0
    %10505 = vmatpush2.msra.mxu0 0.0
    %10506 = vmatprep.subr.mxu0 0.0
    %10507 = vmatpush2.msra.mxu0 0.0
    %10508 = vmatprep.subr.mxu0 0.0
    %10509 = vmatpush2.msra.mxu0 0.0
    %10510 = vmatprep.subr.mxu0 0.0
    %10511 = vmatpush2.msra.mxu0 0.0
    %10512 = vmatprep.subr.mxu0 0.0
    %10513 = vmatpush2.msra.mxu0 0.0
    %10514 = vmatprep.subr.mxu0 0.0
    %10515 = vmatpush2.msra.mxu0 0.0
    %10516 = vmatprep.subr.mxu0 0.0
    %10517 = vmatpush2.msra.mxu0 0.0
    %10518 = vmatprep.subr.mxu0 %v10430
    %10519 = vmatpush2.msra.mxu0 %v10429
    %10520 = vmatprep.mubr.f32.mxu0 %v10436
    %10521 = vmatmul.mubr.f32.gmra.mxu0 %v10319
    %v10522 = vpop.f32.mrf.mxu0
    %v10523 = vadd.f32 0.0, %v10522
    %v10524 = vpop.f32.mrf.mxu0
    %v10525 = vadd.f32 0.0, %v10524
    %10526 = vmatprep.mubr.f32.mxu0 %v10439
    %10527 = vmatmul.mubr.f32.gmra.mxu0 %v10321
    %v10528 = vpop.f32.mrf.mxu0
    %v10529 = vadd.f32 0.0, %v10528
    %v10530 = vpop.f32.mrf.mxu0
    %v10531 = vadd.f32 0.0, %v10530
    %10532 = vmatprep.mubr.f32.mxu0 %v10442
    %10533 = vmatmul.mubr.f32.gmra.mxu0 %v10323
    %v10534 = vpop.f32.mrf.mxu0
    %v10535 = vadd.f32 0.0, %v10534
    %v10536 = vpop.f32.mrf.mxu0
    %v10537 = vadd.f32 0.0, %v10536
    %10538 = vmatprep.mubr.f32.mxu0 %v10445
    %10539 = vmatmul.mubr.f32.gmra.mxu0 %v10325
    %v10540 = vpop.f32.mrf.mxu0
    %v10541 = vadd.f32 0.0, %v10540
    %v10542 = vpop.f32.mrf.mxu0
    %v10543 = vadd.f32 0.0, %v10542
    %10544 = vmatprep.mubr.f32.mxu0 %v10448
    %10545 = vmatmul.mubr.f32.gmra.mxu0 %v10327
    %v10546 = vpop.f32.mrf.mxu0
    %v10547 = vadd.f32 0.0, %v10546
    %v10548 = vpop.f32.mrf.mxu0
    %v10549 = vadd.f32 0.0, %v10548
    %10550 = vmatprep.mubr.f32.mxu0 %v10451
    %10551 = vmatmul.mubr.f32.gmra.mxu0 %v10329
    %v10552 = vpop.f32.mrf.mxu0
    %v10553 = vadd.f32 0.0, %v10552
    %v10554 = vpop.f32.mrf.mxu0
    %v10555 = vadd.f32 0.0, %v10554
    %10556 = vmatprep.mubr.f32.mxu0 %v10454
    %10557 = vmatmul.mubr.f32.gmra.mxu0 %v10331
    %v10558 = vpop.f32.mrf.mxu0
    %v10559 = vadd.f32 0.0, %v10558
    %v10560 = vpop.f32.mrf.mxu0
    %v10561 = vadd.f32 0.0, %v10560
    %10562 = vdwg.mxu0
    %10563 = vmatprep.subr.mxu0 %v10426
    %10564 = vmatpush1.msra.mxu0 %v10425
    %10565 = vmatprep.subr.mxu0 %v10420
    %10566 = vmatpush1.msra.mxu0 %v10419
    %10567 = vmatprep.subr.mxu0 %v10414
    %10568 = vmatpush1.msra.mxu0 %v10413
    %10569 = vmatprep.subr.mxu0 %v10408
    %10570 = vmatpush1.msra.mxu0 %v10407
    %10571 = vmatprep.subr.mxu0 %v10402
    %10572 = vmatpush1.msra.mxu0 %v10401
    %10573 = vmatprep.subr.mxu0 %v10396
    %10574 = vmatpush1.msra.mxu0 %v10395
    %10575 = vmatprep.subr.mxu0 %v10390
    %10576 = vmatpush1.msra.mxu0 %v10389
    %10577 = vmatprep.subr.mxu0 %v10384
    %10578 = vmatpush1.msra.mxu0 %v10383
    %10579 = vmatprep.subr.mxu0 %v10378
    %10580 = vmatpush1.msra.mxu0 %v10377
    %10581 = vmatprep.subr.mxu0 %v10372
    %10582 = vmatpush1.msra.mxu0 %v10371
    %10583 = vmatprep.subr.mxu0 %v10366
    %10584 = vmatpush1.msra.mxu0 %v10365
    %10585 = vmatprep.subr.mxu0 %v10360
    %10586 = vmatpush1.msra.mxu0 %v10359
    %10587 = vmatprep.subr.mxu0 %v10354
    %10588 = vmatpush1.msra.mxu0 %v10353
    %10589 = vmatprep.subr.mxu0 %v10348
    %10590 = vmatpush1.msra.mxu0 %v10347
    %10591 = vmatprep.subr.mxu0 %v10342
    %10592 = vmatpush1.msra.mxu0 %v10341
    %10593 = vmatprep.subr.mxu0 %v10336
    %10594 = vmatpush1.msra.mxu0 %v10335
    %10595 = vmatprep.subr.mxu0 0.0
    %10596 = vmatpush2.msra.mxu0 0.0
    %10597 = vmatprep.subr.mxu0 0.0
    %10598 = vmatpush2.msra.mxu0 0.0
    %10599 = vmatprep.subr.mxu0 0.0
    %10600 = vmatpush2.msra.mxu0 0.0
    %10601 = vmatprep.subr.mxu0 0.0
    %10602 = vmatpush2.msra.mxu0 0.0
    %10603 = vmatprep.subr.mxu0 0.0
    %10604 = vmatpush2.msra.mxu0 0.0
    %10605 = vmatprep.subr.mxu0 0.0
    %10606 = vmatpush2.msra.mxu0 0.0
    %10607 = vmatprep.subr.mxu0 0.0
    %10608 = vmatpush2.msra.mxu0 0.0
    %10609 = vmatprep.subr.mxu0 0.0
    %10610 = vmatpush2.msra.mxu0 0.0
    %10611 = vmatprep.subr.mxu0 0.0
    %10612 = vmatpush2.msra.mxu0 0.0
    %10613 = vmatprep.subr.mxu0 0.0
    %10614 = vmatpush2.msra.mxu0 0.0
    %10615 = vmatprep.subr.mxu0 0.0
    %10616 = vmatpush2.msra.mxu0 0.0
    %10617 = vmatprep.subr.mxu0 0.0
    %10618 = vmatpush2.msra.mxu0 0.0
    %10619 = vmatprep.subr.mxu0 0.0
    %10620 = vmatpush2.msra.mxu0 0.0
    %10621 = vmatprep.subr.mxu0 0.0
    %10622 = vmatpush2.msra.mxu0 0.0
    %10623 = vmatprep.subr.mxu0 0.0
    %10624 = vmatpush2.msra.mxu0 0.0
    %10625 = vmatprep.subr.mxu0 %v10432
    %10626 = vmatpush2.msra.mxu0 %v10431
    %10627 = vmatprep.mubr.f32.mxu0 %v10436
    %10628 = vmatmul.mubr.f32.gmra.mxu0 %v10319
    %v10629 = vpop.f32.mrf.mxu0
    %v10630 = vadd.f32 0.0, %v10629
    %v10631 = vpop.f32.mrf.mxu0
    %v10632 = vadd.f32 0.0, %v10631
    %10633 = vmatprep.mubr.f32.mxu0 %v10439
    %10634 = vmatmul.mubr.f32.gmra.mxu0 %v10321
    %v10635 = vpop.f32.mrf.mxu0
    %v10636 = vadd.f32 0.0, %v10635
    %v10637 = vpop.f32.mrf.mxu0
    %v10638 = vadd.f32 0.0, %v10637
    %10639 = vmatprep.mubr.f32.mxu0 %v10442
    %10640 = vmatmul.mubr.f32.gmra.mxu0 %v10323
    %v10641 = vpop.f32.mrf.mxu0
    %v10642 = vadd.f32 0.0, %v10641
    %v10643 = vpop.f32.mrf.mxu0
    %v10644 = vadd.f32 0.0, %v10643
    %10645 = vmatprep.mubr.f32.mxu0 %v10445
    %10646 = vmatmul.mubr.f32.gmra.mxu0 %v10325
    %v10647 = vpop.f32.mrf.mxu0
    %v10648 = vadd.f32 0.0, %v10647
    %v10649 = vpop.f32.mrf.mxu0
    %v10650 = vadd.f32 0.0, %v10649
    %10651 = vmatprep.mubr.f32.mxu0 %v10448
    %10652 = vmatmul.mubr.f32.gmra.mxu0 %v10327
    %v10653 = vpop.f32.mrf.mxu0
    %v10654 = vadd.f32 0.0, %v10653
    %v10655 = vpop.f32.mrf.mxu0
    %v10656 = vadd.f32 0.0, %v10655
    %10657 = vmatprep.mubr.f32.mxu0 %v10451
    %10658 = vmatmul.mubr.f32.gmra.mxu0 %v10329
    %v10659 = vpop.f32.mrf.mxu0
    %v10660 = vadd.f32 0.0, %v10659
    %v10661 = vpop.f32.mrf.mxu0
    %v10662 = vadd.f32 0.0, %v10661
    %10663 = vmatprep.mubr.f32.mxu0 %v10454
    %10664 = vmatmul.mubr.f32.gmra.mxu0 %v10331
    %v10665 = vpop.f32.mrf.mxu0
    %v10666 = vadd.f32 0.0, %v10665
    %v10667 = vpop.f32.mrf.mxu0
    %v10668 = vadd.f32 0.0, %v10667
    %10669 = vdwg.mxu0
    %10670 = vmatprep.subr.mxu0 %v10428
    %10671 = vmatpush1.msra.mxu0 %v10427
    %10672 = vmatprep.subr.mxu0 %v10422
    %10673 = vmatpush1.msra.mxu0 %v10421
    %10674 = vmatprep.subr.mxu0 %v10416
    %10675 = vmatpush1.msra.mxu0 %v10415
    %10676 = vmatprep.subr.mxu0 %v10410
    %10677 = vmatpush1.msra.mxu0 %v10409
    %10678 = vmatprep.subr.mxu0 %v10404
    %10679 = vmatpush1.msra.mxu0 %v10403
    %10680 = vmatprep.subr.mxu0 %v10398
    %10681 = vmatpush1.msra.mxu0 %v10397
    %10682 = vmatprep.subr.mxu0 %v10392
    %10683 = vmatpush1.msra.mxu0 %v10391
    %10684 = vmatprep.subr.mxu0 %v10386
    %10685 = vmatpush1.msra.mxu0 %v10385
    %10686 = vmatprep.subr.mxu0 %v10380
    %10687 = vmatpush1.msra.mxu0 %v10379
    %10688 = vmatprep.subr.mxu0 %v10374
    %10689 = vmatpush1.msra.mxu0 %v10373
    %10690 = vmatprep.subr.mxu0 %v10368
    %10691 = vmatpush1.msra.mxu0 %v10367
    %10692 = vmatprep.subr.mxu0 %v10362
    %10693 = vmatpush1.msra.mxu0 %v10361
    %10694 = vmatprep.subr.mxu0 %v10356
    %10695 = vmatpush1.msra.mxu0 %v10355
    %10696 = vmatprep.subr.mxu0 %v10350
    %10697 = vmatpush1.msra.mxu0 %v10349
    %10698 = vmatprep.subr.mxu0 %v10344
    %10699 = vmatpush1.msra.mxu0 %v10343
    %10700 = vmatprep.subr.mxu0 %v10338
    %10701 = vmatpush1.msra.mxu0 %v10337
    %10702 = vmatprep.subr.mxu0 0.0
    %10703 = vmatpush2.msra.mxu0 0.0
    %10704 = vmatprep.subr.mxu0 0.0
    %10705 = vmatpush2.msra.mxu0 0.0
    %10706 = vmatprep.subr.mxu0 0.0
    %10707 = vmatpush2.msra.mxu0 0.0
    %10708 = vmatprep.subr.mxu0 0.0
    %10709 = vmatpush2.msra.mxu0 0.0
    %10710 = vmatprep.subr.mxu0 0.0
    %10711 = vmatpush2.msra.mxu0 0.0
    %10712 = vmatprep.subr.mxu0 0.0
    %10713 = vmatpush2.msra.mxu0 0.0
    %10714 = vmatprep.subr.mxu0 0.0
    %10715 = vmatpush2.msra.mxu0 0.0
    %10716 = vmatprep.subr.mxu0 0.0
    %10717 = vmatpush2.msra.mxu0 0.0
    %10718 = vmatprep.subr.mxu0 0.0
    %10719 = vmatpush2.msra.mxu0 0.0
    %10720 = vmatprep.subr.mxu0 0.0
    %10721 = vmatpush2.msra.mxu0 0.0
    %10722 = vmatprep.subr.mxu0 0.0
    %10723 = vmatpush2.msra.mxu0 0.0
    %10724 = vmatprep.subr.mxu0 0.0
    %10725 = vmatpush2.msra.mxu0 0.0
    %10726 = vmatprep.subr.mxu0 0.0
    %10727 = vmatpush2.msra.mxu0 0.0
    %10728 = vmatprep.subr.mxu0 0.0
    %10729 = vmatpush2.msra.mxu0 0.0
    %10730 = vmatprep.subr.mxu0 0.0
    %10731 = vmatpush2.msra.mxu0 0.0
    %10732 = vmatprep.subr.mxu0 %v10434
    %10733 = vmatpush2.msra.mxu0 %v10433
    %10734 = vmatprep.mubr.f32.mxu0 %v10436
    %10735 = vmatmul.mubr.f32.gmra.mxu0 %v10319
    %v10736 = vpop.f32.mrf.mxu0
    %v10737 = vadd.f32 0.0, %v10736
    %v10738 = vpop.f32.mrf.mxu0
    %v10739 = vadd.f32 0.0, %v10738
    %10740 = vmatprep.mubr.f32.mxu0 %v10439
    %10741 = vmatmul.mubr.f32.gmra.mxu0 %v10321
    %v10742 = vpop.f32.mrf.mxu0
    %v10743 = vadd.f32 0.0, %v10742
    %v10744 = vpop.f32.mrf.mxu0
    %v10745 = vadd.f32 0.0, %v10744
    %10746 = vmatprep.mubr.f32.mxu0 %v10442
    %10747 = vmatmul.mubr.f32.gmra.mxu0 %v10323
    %v10748 = vpop.f32.mrf.mxu0
    %v10749 = vadd.f32 0.0, %v10748
    %v10750 = vpop.f32.mrf.mxu0
    %v10751 = vadd.f32 0.0, %v10750
    %10752 = vmatprep.mubr.f32.mxu0 %v10445
    %10753 = vmatmul.mubr.f32.gmra.mxu0 %v10325
    %v10754 = vpop.f32.mrf.mxu0
    %v10755 = vadd.f32 0.0, %v10754
    %v10756 = vpop.f32.mrf.mxu0
    %v10757 = vadd.f32 0.0, %v10756
    %10758 = vmatprep.mubr.f32.mxu0 %v10448
    %10759 = vmatmul.mubr.f32.gmra.mxu0 %v10327
    %v10760 = vpop.f32.mrf.mxu0
    %v10761 = vadd.f32 0.0, %v10760
    %v10762 = vpop.f32.mrf.mxu0
    %v10763 = vadd.f32 0.0, %v10762
    %10764 = vmatprep.mubr.f32.mxu0 %v10451
    %10765 = vmatmul.mubr.f32.gmra.mxu0 %v10329
    %v10766 = vpop.f32.mrf.mxu0
    %v10767 = vadd.f32 0.0, %v10766
    %v10768 = vpop.f32.mrf.mxu0
    %v10769 = vadd.f32 0.0, %v10768
    %10770 = vmatprep.mubr.f32.mxu0 %v10454
    %10771 = vmatmul.mubr.f32.gmra.mxu0 %v10331
    %v10772 = vpop.f32.mrf.mxu0
    %v10773 = vadd.f32 0.0, %v10772
    %v10774 = vpop.f32.mrf.mxu0
    %v10775 = vadd.f32 0.0, %v10774
    %10776 = vdwg.mxu0
    %10777 = vst [vmem:[%s11] sm:$0xff] %v10523
    %10778 = vst [vmem:[%s11 + $0x8] sm:$0xff] %v10525
    %10779 = vst [vmem:[%s11 + $0x10] sm:$0xff] %v10630
    %10780 = vst [vmem:[%s11 + $0x18] sm:$0xff] %v10632
    %10781 = vst [vmem:[%s11 + $0x20] sm:$0xff] %v10737
    %10782 = vst [vmem:[%s11 + $0x28] sm:$0xff] %v10739
    %10783 = vst [vmem:[%s11 + $0x30] sm:$0xff] %v10529
    %10784 = vst [vmem:[%s11 + $0x38] sm:$0xff] %v10531
    %10785 = vst [vmem:[%s11 + $0x40] sm:$0xff] %v10636
    %10786 = vst [vmem:[%s11 + $0x48] sm:$0xff] %v10638
    %10787 = vst [vmem:[%s11 + $0x50] sm:$0xff] %v10743
    %10788 = vst [vmem:[%s11 + $0x58] sm:$0xff] %v10745
    %10789 = vst [vmem:[%s11 + $0x60] sm:$0xff] %v10535
    %10790 = vst [vmem:[%s11 + $0x68] sm:$0xff] %v10537
    %10791 = vst [vmem:[%s11 + $0x70] sm:$0xff] %v10642
    %10792 = vst [vmem:[%s11 + $0x78] sm:$0xff] %v10644
    %10793 = vst [vmem:[%s11 + $0x80] sm:$0xff] %v10749
    %10794 = vst [vmem:[%s11 + $0x88] sm:$0xff] %v10751
    %10795 = vst [vmem:[%s11 + $0x90] sm:$0xff] %v10541
    %10796 = vst [vmem:[%s11 + $0x98] sm:$0xff] %v10543
    %10797 = vst [vmem:[%s11 + $0xa0] sm:$0xff] %v10648
    %10798 = vst [vmem:[%s11 + $0xa8] sm:$0xff] %v10650
    %10799 = vst [vmem:[%s11 + $0xb0] sm:$0xff] %v10755
    %10800 = vst [vmem:[%s11 + $0xb8] sm:$0xff] %v10757
    %10801 = vst [vmem:[%s11 + $0xc0] sm:$0xff] %v10547
    %10802 = vst [vmem:[%s11 + $0xc8] sm:$0xff] %v10549
    %10803 = vst [vmem:[%s11 + $0xd0] sm:$0xff] %v10654
    %10804 = vst [vmem:[%s11 + $0xd8] sm:$0xff] %v10656
    %10805 = vst [vmem:[%s11 + $0xe0] sm:$0xff] %v10761
    %10806 = vst [vmem:[%s11 + $0xe8] sm:$0xff] %v10763
    %10807 = vst [vmem:[%s11 + $0xf0] sm:$0xff] %v10553
    %10808 = vst [vmem:[%s11 + $0xf8] sm:$0xff] %v10555
    %10809 = vst [vmem:[%s11 + $0x100] sm:$0xff] %v10660
    %10810 = vst [vmem:[%s11 + $0x108] sm:$0xff] %v10662
    %10811 = vst [vmem:[%s11 + $0x110] sm:$0xff] %v10767
    %10812 = vst [vmem:[%s11 + $0x118] sm:$0xff] %v10769
    %10813 = vst [vmem:[%s11 + $0x120] sm:$0xff] %v10559
    %10814 = vst [vmem:[%s11 + $0x128] sm:$0xff] %v10561
    %10815 = vst [vmem:[%s11 + $0x130] sm:$0xff] %v10666
    %10816 = vst [vmem:[%s11 + $0x138] sm:$0xff] %v10668
    %10817 = vst [vmem:[%s11 + $0x140] sm:$0xff] %v10773
    %10818 = vst [vmem:[%s11 + $0x148] sm:$0xff] %v10775
    // Predicated region
    $region46: #{custom_clip_forward.1} parent=1 // pred_check
      _
    $region47: #{custom_clip_forward.1} parent=1 // pred_check_branch
      %10820 = sbr.rel (0) target = $region49
    $region48: #{custom_clip_forward.1} parent=1 // pred_region
      %s10822 = ssub.s32 768, 768
      %10823 = vsyncadd [#allocation5], %s10822
      %s10825 = sshll.u32 [#allocation8], 4
      %s10826 = int_to_ptr.vmem [resolvable:$true] %s10825
      %10828 = dma.vmem_to_hbm [thread:$0]  %s10826, 768, %s9, [#allocation5]
    $region49: #{custom_clip_forward.1} parent=1 // pred_fallthru
      _
    // Predicated region
    $region50: #{custom_clip_forward.1} parent=1 // pred_check
      _
    $region51: #{custom_clip_forward.1} parent=1 // pred_check_branch
      %10830 = sbr.rel (0) target = $region53
    $region52: #{custom_clip_forward.1} parent=1 // pred_region
      _
    $region53: #{custom_clip_forward.1} parent=1 // pred_fallthru
      _
    // Predicated region
    $region54: #{custom_clip_forward.1} parent=1 // pred_check
      _
    $region55: #{custom_clip_forward.1} parent=1 // pred_check_branch
      %10832 = sbr.rel (0) target = $region57
    $region56: #{custom_clip_forward.1} parent=1 // pred_region
      _
    $region57: #{custom_clip_forward.1} parent=1 // pred_fallthru
      _
    // Predicated region
    $region58: #{custom_clip_forward.1} parent=1 // pred_check
      _
    $region59: #{custom_clip_forward.1} parent=1 // pred_check_branch
      %10834 = sbr.rel (0) target = $region61
    $region60: #{custom_clip_forward.1} parent=1 // pred_region
      %10835 = dma.done [#allocation5], 768
    $region61: #{custom_clip_forward.1} parent=1 // pred_fallthru
      _
    // Predicated region
    $region62: #{custom_clip_forward.1} parent=1 // pred_check
      _
    $region63: #{custom_clip_forward.1} parent=1 // pred_check_branch
      %10837 = sbr.rel (0) target = $region65
    $region64: #{custom_clip_forward.1} parent=1 // pred_region
      _
    $region65: #{custom_clip_forward.1} parent=1 // pred_fallthru
      _
    // Predicated region
    $region66: #{custom_clip_forward.1} parent=1 // pred_check
      _
    $region67: #{custom_clip_forward.1} parent=1 // pred_check_branch
      %10839 = sbr.rel (0) target = $region69
    $region68: #{custom_clip_forward.1} parent=1 // pred_region
      _
    $region69: #{custom_clip_forward.1} parent=1 // pred_fallthru
      _
    %10840 = vsyncpa [#allocation4], 1
    %10841 = vsyncpa [#allocation7], 1
    %10842 = vsyncpa [#allocation5], 1

</llo_original>
